<compile_context>
chip_gen: v6e
topology: v6e:2x2x1
jax: 0.10.0
libtpu: 0.0.40
codegen_flags: <defaults>
</compile_context>

<pallas_src>
import jax
import jax.numpy as jnp
from jax import lax
from jax.experimental import pallas as pl
from jax.experimental.pallas import tpu as pltpu

# ----------------------------------------------------------------------------
# Constants from the PyTorch module
# ----------------------------------------------------------------------------
chars = ['<SOS>', '<EOS>', '<PAD>', ' ', '!', '"', '#', '&', "'", '(', ')',
         ',', '-', '.', '0', '1', '2', '3', '4', '5', '6', '7', '8', '9', ':',
         ';', '=', '?', 'A', 'B', 'C', 'D', 'E', 'F', 'G', 'H', 'I', 'J', 'K',
         'L', 'M', 'N', 'O', 'P', 'Q', 'R', 'S', 'T', 'U', 'V', 'W', 'X', 'Y',
         'Z', 'a', 'b', 'c', 'd', 'e', 'f', 'g', 'h', 'i', 'j', 'k', 'l', 'm',
         'n', 'o', 'p', 'q', 'r', 's', 't', 'u', 'v', 'w', 'x', 'y', 'z']
NUM_CHAR = len(chars)              # 81
char2idx = {v: k for k, v in enumerate(chars)}
HIDDEN = 512
NUM_CHAR_PAD = 128                 # lane-pad projection output (sliced back to 81)
TEXT_MAX_LEN = 201                 # module default (demo uses a small T)

BB_MULT = 16                       # batch block multiple: full bf16 (16,128) tiles
MAX_BATCH_BLOCK = 256              # >= 256x256 MXU rows on v6e/v7x, 2x128 on v5e
PROJ_TARGET_ROWS = 256             # LHS rows per projection matmul


# ----------------------------------------------------------------------------
# Pooled image feature (stand-in for the ResNet-18 pooler_output) — plain JAX,
# the work is trivial so a second pallas_call would only add launch overhead.
# ----------------------------------------------------------------------------
def feature_extract(img, w_feat, b_feat):
    # TODO(synk): pretrained microsoft/resnet-18 backbone (HF checkpoint) has no
    # in-script equivalent; replaced by a deterministic global-avg-pool + linear
    # stand-in producing the same (B, 512) pooled-feature shape.
    B, C, H, W = img.shape
    pooled = jnp.mean(img.reshape(B, C, H * W), axis=-1)          # (B, C)
    return pooled @ w_feat + b_feat                               # (B, 512)


# ----------------------------------------------------------------------------
# Decode kernel: GRU re-decode over the growing prefix (exactly like the
# PyTorch loop) + output projection.  One grid program = one batch block.
# ----------------------------------------------------------------------------
def _gru_decode_kernel(feat_ref, start_ref, wih_ref, whh_ref, bgi_ref, bhn_ref,
                       wp_ref, bp_ref, out_ref, seq_ref, gi_ref):
    H = HIDDEN
    T, BB, _ = seq_ref.shape

    wih = wih_ref[...]                                    # (H, 3H) bf16, gates r|z|n
    whh = whh_ref[...]                                    # (H, 3H) bf16
    bgi = bgi_ref[...]                                    # (1, 3H) f32  (b_ih + b_hh[r|z])
    bhn_b = jnp.broadcast_to(bhn_ref[...], (BB, H))       # hoisted once (used in hot loop)

    def compute_gi(x_bf16):
        # Input-to-hidden gates; computed exactly once per written sequence element,
        # cached in bf16 (only ever consumed after implicit bf16->f32 promotion).
        return (jnp.dot(x_bf16, wih, preferred_element_type=jnp.float32)
                + bgi).astype(jnp.bfloat16)

    x0 = start_ref[...].astype(jnp.bfloat16)              # (BB, H) <SOS> embedding
    seq_ref[0] = x0
    gi_ref[0] = compute_gi(x0)

    def gru_step(gi_k, h):
        # Only the recurrent matmul remains in the O(T^2) inner loop.  With the
        # enlarged batch block, each W_hh push feeds up to 256 LHS rows.
        gh = jnp.dot(h.astype(jnp.bfloat16), whh,
                     preferred_element_type=jnp.float32)   # (BB, 3H) f32
        r = jax.nn.sigmoid(gi_k[:, 0:H] + gh[:, 0:H])
        z = jax.nn.sigmoid(gi_k[:, H:2 * H] + gh[:, H:2 * H])
        n = jnp.tanh(gi_k[:, 2 * H:3 * H] + r * (gh[:, 2 * H:3 * H] + bhn_b))
        return (1.0 - z) * n + z * h

    def outer(t, h_prev):
        # Re-run the GRU over the whole prefix seq[0..t] starting from the hidden
        # left by the previous call (== torch `self.gru(inp, hidden)`).
        def inner(k, h_run):
            return gru_step(gi_ref[k], h_run)
        h_new = lax.fori_loop(0, t + 1, inner, h_prev)     # f32 carry
        h_bf = h_new.astype(jnp.bfloat16)
        seq_ref[t + 1] = h_bf                              # `out[-1:]` appended to inp

        @pl.when(t < T - 2)                                # gi[T-1] is never read
        def _():
            gi_ref[t + 1] = compute_gi(h_bf)               # cache its gates once
        return h_new

    lax.fori_loop(0, T - 1, outer, feat_ref[...])

    # Output projection: lane-dense (chunk*BB, 512) x (512, 128) matmuls with
    # ~PROJ_TARGET_ROWS LHS rows per W_proj push.
    wp = wp_ref[...]                                      # (H, 128) bf16
    bp = bp_ref[...]                                      # (1, 128) f32
    chunk = max(1, min(T, PROJ_TARGET_ROWS // BB))
    for t0 in range(0, T, chunk):                         # static Python loop
        tc = min(chunk, T - t0)
        xs = seq_ref[t0:t0 + tc].reshape(tc * BB, H)      # bf16
        lg = jnp.dot(xs, wp, preferred_element_type=jnp.float32) + bp
        out_ref[t0:t0 + tc] = lg.reshape(tc, BB, NUM_CHAR_PAD)


# ----------------------------------------------------------------------------
# Per-generation VMEM sizing
# ----------------------------------------------------------------------------
def _per_row_vmem_bytes(T):
    # bf16 seq + bf16 gi scratch + double-buffered f32 out block + f32 feat/start.
    return (T * HIDDEN * 2 + T * 3 * HIDDEN * 2
            + 2 * T * NUM_CHAR_PAD * 4 + 2 * 2 * HIDDEN * 4)


def _weights_vmem_bytes():
    # Double-buffered replicated weight blocks (bf16) + biases (f32).
    return 2 * (2 * HIDDEN * 3 * HIDDEN * 2 + HIDDEN * NUM_CHAR_PAD * 2
                + (3 * HIDDEN + HIDDEN + NUM_CHAR_PAD) * 4)


def _vmem_scratch_budget():
    # v7x has 64 MiB VMEM / TensorCore -> keep scratches well under that.
    # v5e / v6e have 128 MiB, so a single fat program can use much more.
    try:
        kind = jax.devices()[0].device_kind.lower()
    except Exception:
        kind = ""
    if "v7" in kind:
        return 44 * 1024 * 1024
    return 96 * 1024 * 1024


def _pick_batch_block(B, T, budget):
    """Rows per grid program: multiple of 16, capped by MXU height and VMEM."""
    b_pad = ((B + BB_MULT - 1) // BB_MULT) * BB_MULT
    cap = (budget - _weights_vmem_bytes()) // max(_per_row_vmem_bytes(T), 1)
    cap = max(BB_MULT, (cap // BB_MULT) * BB_MULT)
    bb = min(b_pad, MAX_BATCH_BLOCK, cap)
    bb = max(BB_MULT, (bb // BB_MULT) * BB_MULT)
    nb = -(-b_pad // bb)                                  # cdiv
    return bb, nb


def _vmem_limit_bytes(T, BB, budget):
    usage = BB * _per_row_vmem_bytes(T) + _weights_vmem_bytes()
    limit = int(usage * 1.3) + (4 << 20)
    return max(32 << 20, min(limit, budget + (16 << 20), 112 << 20))


# ----------------------------------------------------------------------------
# Wrapper
# ----------------------------------------------------------------------------
def gru_decode(feat, start_embeds, params, text_max_len):
    B = feat.shape[0]
    T = int(text_max_len)

    budget = _vmem_scratch_budget()
    BB, nb = _pick_batch_block(B, T, budget)
    B_pad = BB * nb
    pad = B_pad - B

    # Pad batch to full batch-block tiles (padded rows are discarded afterwards).
    feat_pad = jnp.pad(feat, ((0, pad), (0, 0)))
    start_pad = jnp.pad(start_embeds, ((0, pad), (0, 0)))

    # Pre-fold biases: r/z gates get b_ih + b_hh, n gate keeps b_hh_n separate.
    b_ih = params['b_ih']                                 # (1, 3H)
    b_hh = params['b_hh']                                 # (1, 3H)
    b_gi = b_ih.at[:, :2 * HIDDEN].add(b_hh[:, :2 * HIDDEN])   # (1, 3H)
    b_hn = b_hh[:, 2 * HIDDEN:]                                 # (1, H)

    # bf16 weights, f32 MXU accumulation.
    wih_bf = params['w_ih_t'].astype(jnp.bfloat16)
    whh_bf = params['w_hh_t'].astype(jnp.bfloat16)
    wp_bf = params['w_proj_t'].astype(jnp.bfloat16)
    bp = params['b_proj']

    rep = lambda b: (0, 0)   # weights replicated across batch blocks

    out = pl.pallas_call(
        _gru_decode_kernel,
        out_shape=jax.ShapeDtypeStruct((T, B_pad, NUM_CHAR_PAD), jnp.float32),
        grid_spec=pltpu.PrefetchScalarGridSpec(
            num_scalar_prefetch=0,
            grid=(nb,),
            in_specs=[
                pl.BlockSpec((BB, HIDDEN), lambda b: (b, 0)),        # feat (h0)
                pl.BlockSpec((BB, HIDDEN), lambda b: (b, 0)),        # <SOS> embeds
                pl.BlockSpec((HIDDEN, 3 * HIDDEN), rep),             # W_ih^T (bf16)
                pl.BlockSpec((HIDDEN, 3 * HIDDEN), rep),             # W_hh^T (bf16)
                pl.BlockSpec((1, 3 * HIDDEN), rep),                  # folded gi bias
                pl.BlockSpec((1, HIDDEN), rep),                      # b_hh_n
                pl.BlockSpec((HIDDEN, NUM_CHAR_PAD), rep),           # W_proj^T (bf16)
                pl.BlockSpec((1, NUM_CHAR_PAD), rep),                # b_proj
            ],
            out_specs=pl.BlockSpec((T, BB, NUM_CHAR_PAD), lambda b: (0, b, 0)),
            scratch_shapes=[
                pltpu.VMEM((T, BB, HIDDEN), jnp.bfloat16),           # seq (growing prefix)
                pltpu.VMEM((T, BB, 3 * HIDDEN), jnp.bfloat16),       # cached gi gates
            ]),
        compiler_params=pltpu.CompilerParams(
            dimension_semantics=("parallel",),                       # batch blocks -> TCs
            vmem_limit_bytes=_vmem_limit_bytes(T, BB, budget)),
    )(feat_pad, start_pad, wih_bf, whh_bf, b_gi, b_hn, wp_bf, bp)

    return out[:, :B, :]                                  # drop padded batch rows


# ----------------------------------------------------------------------------
# Full forward (glue in plain JAX)
# ----------------------------------------------------------------------------
def model_forward(img, params, text_max_len=TEXT_MAX_LEN):
    B = img.shape[0]
    feat = feature_extract(img, params['w_feat'], params['b_feat'])     # (B, 512)
    start_embed = params['embed'][char2idx['<SOS>']]                    # (512,)
    start_embeds = jnp.broadcast_to(start_embed[None, :], (B, HIDDEN))  # (B, 512)
    out = gru_decode(feat, start_embeds, params, text_max_len)          # (T, B, 128)
    res = out[:, :, :NUM_CHAR]                                          # (T, B, 81)
    return jnp.transpose(res, (1, 2, 0))                                # (B, 81, T)


# ----------------------------------------------------------------------------
# Deterministic parameter init (shapes follow the PyTorch __init__)
# ----------------------------------------------------------------------------
def init_params(key):
    ks = jax.random.split(key, 8)
    s = 1.0 / float(HIDDEN) ** 0.5
    u = lambda k, shape: jax.random.uniform(k, shape, jnp.float32, -s, s)

    embed = jax.random.normal(ks[0], (NUM_CHAR, HIDDEN), jnp.float32)   # nn.Embedding
    w_ih_t = u(ks[1], (HIDDEN, 3 * HIDDEN))                             # GRU W_ih^T (r|z|n)
    w_hh_t = u(ks[2], (HIDDEN, 3 * HIDDEN))                             # GRU W_hh^T
    b_ih = u(ks[3], (1, 3 * HIDDEN))
    b_hh = u(ks[4], (1, 3 * HIDDEN))
    w_proj_t = jnp.zeros((HIDDEN, NUM_CHAR_PAD), jnp.float32)
    w_proj_t = w_proj_t.at[:, :NUM_CHAR].set(u(ks[5], (HIDDEN, NUM_CHAR)))
    b_proj = jnp.zeros((1, NUM_CHAR_PAD), jnp.float32)
    b_proj = b_proj.at[:, :NUM_CHAR].set(u(ks[6], (1, NUM_CHAR)))
    w_feat = u(ks[7], (3, HIDDEN))                                      # stand-in backbone
    b_feat = jnp.zeros((1, HIDDEN), jnp.float32)

    return dict(embed=embed, w_ih_t=w_ih_t, w_hh_t=w_hh_t, b_ih=b_ih, b_hh=b_hh,
                w_proj_t=w_proj_t, b_proj=b_proj, w_feat=w_feat, b_feat=b_feat)


if __name__ == "__main__":
    key = jax.random.PRNGKey(0)
    pkey, ikey = jax.random.split(key)
    params = init_params(pkey)

    # Small demo shapes: batch=2, 3-channel 16x16 image (NCHW), short text len.
    img = jax.random.normal(ikey, (2, 3, 16, 16), jnp.float32)
    demo_text_max_len = 9   # module default is TEXT_MAX_LEN=201; kept small for the demo

    res = model_forward(img, params, text_max_len=demo_text_max_len)
    res = jax.block_until_ready(res)
    assert res.shape == (2, NUM_CHAR, demo_text_max_len), res.shape
    assert bool(jnp.all(jnp.isfinite(res)))
    print("KERNEL_OK")
</pallas_src>

<mosaic_0001>
module attributes {stable_mosaic.version = 11 : i64} {
  func.func @_gru_decode_kernel(%arg0: i32, %arg1: memref<16x512xf32, #tpu.memory_space<vmem>>, %arg2: memref<16x512xf32, #tpu.memory_space<vmem>>, %arg3: memref<512x1536xbf16, #tpu.memory_space<vmem>>, %arg4: memref<512x1536xbf16, #tpu.memory_space<vmem>>, %arg5: memref<1x1536xf32, #tpu.memory_space<vmem>>, %arg6: memref<1x512xf32, #tpu.memory_space<vmem>>, %arg7: memref<512x128xbf16, #tpu.memory_space<vmem>>, %arg8: memref<1x128xf32, #tpu.memory_space<vmem>>, %arg9: memref<9x16x128xf32, #tpu.memory_space<vmem>>, %arg10: memref<9x16x512xbf16, #tpu.memory_space<vmem>>, %arg11: memref<9x16x1536xbf16, #tpu.memory_space<vmem>>) attributes {dimension_semantics = [#tpu.dimension_semantics<parallel>], iteration_bounds = array<i64: 1>, scalar_prefetch = 0 : i64, scratch_operands = 2 : i64, tpu.core_type = #tpu.core_type<tc>, window_params = [{transform_indices = @transform_0, window_bounds = array<i64: 16, 512>}, {transform_indices = @transform_1, window_bounds = array<i64: 16, 512>}, {pipeline_mode = #tpu.pipeline_mode<synchronous>, transform_indices = @transform_2, window_bounds = array<i64: 512, 1536>}, {pipeline_mode = #tpu.pipeline_mode<synchronous>, transform_indices = @transform_3, window_bounds = array<i64: 512, 1536>}, {pipeline_mode = #tpu.pipeline_mode<synchronous>, transform_indices = @transform_4, window_bounds = array<i64: 1, 1536>}, {pipeline_mode = #tpu.pipeline_mode<synchronous>, transform_indices = @transform_5, window_bounds = array<i64: 1, 512>}, {pipeline_mode = #tpu.pipeline_mode<synchronous>, transform_indices = @transform_6, window_bounds = array<i64: 512, 128>}, {pipeline_mode = #tpu.pipeline_mode<synchronous>, transform_indices = @transform_7, window_bounds = array<i64: 1, 128>}, {transform_indices = @transform_8, window_bounds = array<i64: 9, 16, 128>}]} {
    %c0 = arith.constant 0 : index
    %c0_0 = arith.constant 0 : index
    %0 = vector.load %arg3[%c0, %c0_0] : memref<512x1536xbf16, #tpu.memory_space<vmem>>, vector<512x1536xbf16>
    %c0_1 = arith.constant 0 : index
    %c0_2 = arith.constant 0 : index
    %1 = vector.load %arg4[%c0_1, %c0_2] : memref<512x1536xbf16, #tpu.memory_space<vmem>>, vector<512x1536xbf16>
    %c0_3 = arith.constant 0 : index
    %c0_4 = arith.constant 0 : index
    %2 = vector.load %arg5[%c0_3, %c0_4] : memref<1x1536xf32, #tpu.memory_space<vmem>>, vector<1x1536xf32>
    %c0_5 = arith.constant 0 : index
    %c0_6 = arith.constant 0 : index
    %3 = vector.load %arg6[%c0_5, %c0_6] : memref<1x512xf32, #tpu.memory_space<vmem>>, vector<1x512xf32>
    %4 = vector.shape_cast %3 : vector<1x512xf32> to vector<1x512xf32>
    %5 = vector.broadcast %4 : vector<1x512xf32> to vector<16x512xf32>
    %c0_7 = arith.constant 0 : index
    %c0_8 = arith.constant 0 : index
    %6 = vector.load %arg2[%c0_7, %c0_8] : memref<16x512xf32, #tpu.memory_space<vmem>>, vector<16x512xf32>
    %7 = arith.truncf %6 : vector<16x512xf32> to vector<16x512xbf16>
    %c0_9 = arith.constant 0 : index
    %c0_10 = arith.constant 0 : index
    %c0_11 = arith.constant 0 : index
    %8 = vector.load %arg10[%c0_9, %c0_10, %c0_11] : memref<9x16x512xbf16, #tpu.memory_space<vmem>>, vector<1x16x512xbf16>
    %9 = vector.shape_cast %8 : vector<1x16x512xbf16> to vector<16x512xbf16>
    %10 = vector.shape_cast %7 : vector<16x512xbf16> to vector<1x16x512xbf16>
    tpu.vector_store %arg10[%c0_9, %c0_10, %c0_11], %10 {strides = array<i32>} : memref<9x16x512xbf16, #tpu.memory_space<vmem>>, vector<1x16x512xbf16>,
    %cst = arith.constant dense<0.000000e+00> : vector<16x1536xf32>
    %11 = tpu.matmul %7, %0, %cst {dimension_numbers = #tpu.dot_dimension_numbers<[1], [0], [0], [1], [0, 0, 1, 1], [], []>} : vector<16x512xbf16>, vector<512x1536xbf16>, vector<16x1536xf32> -> vector<16x1536xf32>
    %12 = vector.broadcast %2 : vector<1x1536xf32> to vector<16x1536xf32>
    %13 = arith.addf %11, %12 : vector<16x1536xf32>
    %14 = arith.truncf %13 : vector<16x1536xf32> to vector<16x1536xbf16>
    %c0_12 = arith.constant 0 : index
    %c0_13 = arith.constant 0 : index
    %c0_14 = arith.constant 0 : index
    %15 = vector.load %arg11[%c0_12, %c0_13, %c0_14] : memref<9x16x1536xbf16, #tpu.memory_space<vmem>>, vector<1x16x1536xbf16>
    %16 = vector.shape_cast %15 : vector<1x16x1536xbf16> to vector<16x1536xbf16>
    %17 = vector.shape_cast %14 : vector<16x1536xbf16> to vector<1x16x1536xbf16>
    tpu.vector_store %arg11[%c0_12, %c0_13, %c0_14], %17 {strides = array<i32>} : memref<9x16x1536xbf16, #tpu.memory_space<vmem>>, vector<1x16x1536xbf16>,
    %c0_15 = arith.constant 0 : index
    %c0_16 = arith.constant 0 : index
    %18 = vector.load %arg1[%c0_15, %c0_16] : memref<16x512xf32, #tpu.memory_space<vmem>>, vector<16x512xf32>
    %c0_i32 = arith.constant 0 : i32
    %c8_i32 = arith.constant 8 : i32
    %19 = arith.addi %c0_i32, %c8_i32 : i32
    %c1_i32 = arith.constant 1 : i32
    %20 = scf.for %arg12 = %c0_i32 to %19 step %c1_i32 iter_args(%arg13 = %18) -> (vector<16x512xf32>)  : i32 {
      %c1_i32_29 = arith.constant 1 : i32
      %30 = arith.addi %arg12, %c1_i32_29 : i32
      %c0_i32_30 = arith.constant 0 : i32
      %31 = arith.subi %30, %c0_i32_30 : i32
      %32 = arith.addi %c0_i32_30, %31 : i32
      %c1_i32_31 = arith.constant 1 : i32
      %33 = scf.for %arg14 = %c0_i32_30 to %32 step %c1_i32_31 iter_args(%arg15 = %arg13) -> (vector<16x512xf32>)  : i32 {
        %43 = arith.index_cast %arg14 : i32 to index
        %c0_36 = arith.constant 0 : index
        %c0_37 = arith.constant 0 : index
        %44 = vector.load %arg11[%43, %c0_36, %c0_37] : memref<9x16x1536xbf16, #tpu.memory_space<vmem>>, vector<1x16x1536xbf16>
        %45 = vector.shape_cast %44 : vector<1x16x1536xbf16> to vector<16x1536xbf16>
        %46 = arith.truncf %arg15 : vector<16x512xf32> to vector<16x512xbf16>
        %cst_38 = arith.constant dense<0.000000e+00> : vector<16x1536xf32>
        %47 = tpu.matmul %46, %1, %cst_38 {dimension_numbers = #tpu.dot_dimension_numbers<[1], [0], [0], [1], [0, 0, 1, 1], [], []>} : vector<16x512xbf16>, vector<512x1536xbf16>, vector<16x1536xf32> -> vector<16x1536xf32>
        %48 = vector.extract_strided_slice %45 {offsets = [0, 0], sizes = [16, 512], strides = [1, 1]} : vector<16x1536xbf16> to vector<16x512xbf16>
        %49 = vector.extract_strided_slice %47 {offsets = [0, 0], sizes = [16, 512], strides = [1, 1]} : vector<16x1536xf32> to vector<16x512xf32>
        %50 = arith.extf %48 : vector<16x512xbf16> to vector<16x512xf32>
        %51 = arith.addf %50, %49 : vector<16x512xf32>
        %52 = arith.negf %51 : vector<16x512xf32>
        %53 = math.exp %52 : vector<16x512xf32>
        %cst_39 = arith.constant 1.000000e+00 : f32
        %54 = vector.broadcast %cst_39 : f32 to vector<16x512xf32>
        %55 = arith.addf %54, %53 : vector<16x512xf32>
        %56 = arith.divf %54, %55 : vector<16x512xf32>
        %57 = vector.extract_strided_slice %45 {offsets = [0, 512], sizes = [16, 512], strides = [1, 1]} : vector<16x1536xbf16> to vector<16x512xbf16>
        %58 = vector.extract_strided_slice %47 {offsets = [0, 512], sizes = [16, 512], strides = [1, 1]} : vector<16x1536xf32> to vector<16x512xf32>
        %59 = arith.extf %57 : vector<16x512xbf16> to vector<16x512xf32>
        %60 = arith.addf %59, %58 : vector<16x512xf32>
        %61 = arith.negf %60 : vector<16x512xf32>
        %62 = math.exp %61 : vector<16x512xf32>
        %cst_40 = arith.constant 1.000000e+00 : f32
        %63 = vector.broadcast %cst_40 : f32 to vector<16x512xf32>
        %64 = arith.addf %63, %62 : vector<16x512xf32>
        %65 = arith.divf %63, %64 : vector<16x512xf32>
        %66 = vector.extract_strided_slice %45 {offsets = [0, 1024], sizes = [16, 512], strides = [1, 1]} : vector<16x1536xbf16> to vector<16x512xbf16>
        %67 = vector.extract_strided_slice %47 {offsets = [0, 1024], sizes = [16, 512], strides = [1, 1]} : vector<16x1536xf32> to vector<16x512xf32>
        %68 = arith.addf %67, %5 : vector<16x512xf32>
        %69 = arith.mulf %56, %68 : vector<16x512xf32>
        %70 = arith.extf %66 : vector<16x512xbf16> to vector<16x512xf32>
        %71 = arith.addf %70, %69 : vector<16x512xf32>
        %72 = math.tanh %71 : vector<16x512xf32>
        %cst_41 = arith.constant 1.000000e+00 : f32
        %73 = vector.broadcast %cst_41 : f32 to vector<16x512xf32>
        %74 = arith.subf %73, %65 : vector<16x512xf32>
        %75 = arith.mulf %74, %72 : vector<16x512xf32>
        %76 = arith.mulf %65, %arg15 : vector<16x512xf32>
        %77 = arith.addf %75, %76 : vector<16x512xf32>
        scf.yield %77 : vector<16x512xf32>
      }
      %34 = arith.truncf %33 : vector<16x512xf32> to vector<16x512xbf16>
      %c1_i32_32 = arith.constant 1 : i32
      %35 = arith.addi %arg12, %c1_i32_32 : i32
      %36 = arith.index_cast %35 : i32 to index
      %c0_33 = arith.constant 0 : index
      %c0_34 = arith.constant 0 : index
      %37 = vector.load %arg10[%36, %c0_33, %c0_34] : memref<9x16x512xbf16, #tpu.memory_space<vmem>>, vector<1x16x512xbf16>
      %38 = vector.shape_cast %37 : vector<1x16x512xbf16> to vector<16x512xbf16>
      %39 = vector.shape_cast %34 : vector<16x512xbf16> to vector<1x16x512xbf16>
      tpu.vector_store %arg10[%36, %c0_33, %c0_34], %39 {strides = array<i32>} : memref<9x16x512xbf16, #tpu.memory_space<vmem>>, vector<1x16x512xbf16>,
      %c7_i32 = arith.constant 7 : i32
      %40 = arith.cmpi slt, %arg12, %c7_i32 : i32
      %41 = arith.extui %40 : i1 to i32
      %c0_i32_35 = arith.constant 0 : i32
      %42 = arith.cmpi ne, %41, %c0_i32_35 : i32
      scf.if %42 {
        %cst_36 = arith.constant dense<0.000000e+00> : vector<16x1536xf32>
        %43 = tpu.matmul %34, %0, %cst_36 {dimension_numbers = #tpu.dot_dimension_numbers<[1], [0], [0], [1], [0, 0, 1, 1], [], []>} : vector<16x512xbf16>, vector<512x1536xbf16>, vector<16x1536xf32> -> vector<16x1536xf32>
        %44 = vector.broadcast %2 : vector<1x1536xf32> to vector<16x1536xf32>
        %45 = arith.addf %43, %44 : vector<16x1536xf32>
        %46 = arith.truncf %45 : vector<16x1536xf32> to vector<16x1536xbf16>
        %c1_i32_37 = arith.constant 1 : i32
        %47 = arith.addi %arg12, %c1_i32_37 : i32
        %48 = arith.index_cast %47 : i32 to index
        %c0_38 = arith.constant 0 : index
        %c0_39 = arith.constant 0 : index
        %49 = vector.load %arg11[%48, %c0_38, %c0_39] : memref<9x16x1536xbf16, #tpu.memory_space<vmem>>, vector<1x16x1536xbf16>
        %50 = vector.shape_cast %49 : vector<1x16x1536xbf16> to vector<16x1536xbf16>
        %51 = vector.shape_cast %46 : vector<16x1536xbf16> to vector<1x16x1536xbf16>
        tpu.vector_store %arg11[%48, %c0_38, %c0_39], %51 {strides = array<i32>} : memref<9x16x1536xbf16, #tpu.memory_space<vmem>>, vector<1x16x1536xbf16>,
      } else {
      }
      scf.yield %33 : vector<16x512xf32>
    }
    %c8_i32_17 = arith.constant 8 : i32
    %c0_18 = arith.constant 0 : index
    %c0_19 = arith.constant 0 : index
    %21 = vector.load %arg7[%c0_18, %c0_19] : memref<512x128xbf16, #tpu.memory_space<vmem>>, vector<512x128xbf16>
    %c0_20 = arith.constant 0 : index
    %c0_21 = arith.constant 0 : index
    %22 = vector.load %arg8[%c0_20, %c0_21] : memref<1x128xf32, #tpu.memory_space<vmem>>, vector<1x128xf32>
    %c0_22 = arith.constant 0 : index
    %c0_23 = arith.constant 0 : index
    %c0_24 = arith.constant 0 : index
    %23 = vector.load %arg10[%c0_22, %c0_23, %c0_24] : memref<9x16x512xbf16, #tpu.memory_space<vmem>>, vector<9x16x512xbf16>
    %24 = vector.shape_cast %23 : vector<9x16x512xbf16> to vector<144x512xbf16>
    %cst_25 = arith.constant dense<0.000000e+00> : vector<144x128xf32>
    %25 = tpu.matmul %24, %21, %cst_25 {dimension_numbers = #tpu.dot_dimension_numbers<[1], [0], [0], [1], [0, 0, 1, 1], [], []>} : vector<144x512xbf16>, vector<512x128xbf16>, vector<144x128xf32> -> vector<144x128xf32>
    %26 = vector.broadcast %22 : vector<1x128xf32> to vector<144x128xf32>
    %27 = arith.addf %25, %26 : vector<144x128xf32>
    %28 = vector.shape_cast %27 : vector<144x128xf32> to vector<9x16x128xf32>
    %c0_26 = arith.constant 0 : index
    %c0_27 = arith.constant 0 : index
    %c0_28 = arith.constant 0 : index
    %29 = vector.load %arg9[%c0_26, %c0_27, %c0_28] : memref<9x16x128xf32, #tpu.memory_space<vmem>>, vector<9x16x128xf32>
    tpu.vector_store %arg9[%c0_26, %c0_27, %c0_28], %28 {strides = array<i32>} : memref<9x16x128xf32, #tpu.memory_space<vmem>>, vector<9x16x128xf32>,
    return
  }
  func.func @transform_0(%arg0: i32) -> (i32, i32) {
    %c0_i32 = arith.constant 0 : i32
    %c0_i32_0 = arith.constant 0 : i32
    return %arg0, %c0_i32 : i32, i32
  }
  func.func @transform_1(%arg0: i32) -> (i32, i32) {
    %c0_i32 = arith.constant 0 : i32
    %c0_i32_0 = arith.constant 0 : i32
    return %arg0, %c0_i32 : i32, i32
  }
  func.func @transform_2(%arg0: i32) -> (i32, i32) {
    %c0_i32 = arith.constant 0 : i32
    %c0_i32_0 = arith.constant 0 : i32
    %c0_i32_1 = arith.constant 0 : i32
    return %c0_i32, %c0_i32_0 : i32, i32
  }
  func.func @transform_3(%arg0: i32) -> (i32, i32) {
    %c0_i32 = arith.constant 0 : i32
    %c0_i32_0 = arith.constant 0 : i32
    %c0_i32_1 = arith.constant 0 : i32
    return %c0_i32, %c0_i32_0 : i32, i32
  }
  func.func @transform_4(%arg0: i32) -> (i32, i32) {
    %c0_i32 = arith.constant 0 : i32
    %c0_i32_0 = arith.constant 0 : i32
    %c0_i32_1 = arith.constant 0 : i32
    return %c0_i32, %c0_i32_0 : i32, i32
  }
  func.func @transform_5(%arg0: i32) -> (i32, i32) {
    %c0_i32 = arith.constant 0 : i32
    %c0_i32_0 = arith.constant 0 : i32
    %c0_i32_1 = arith.constant 0 : i32
    return %c0_i32, %c0_i32_0 : i32, i32
  }
  func.func @transform_6(%arg0: i32) -> (i32, i32) {
    %c0_i32 = arith.constant 0 : i32
    %c0_i32_0 = arith.constant 0 : i32
    %c0_i32_1 = arith.constant 0 : i32
    return %c0_i32, %c0_i32_0 : i32, i32
  }
  func.func @transform_7(%arg0: i32) -> (i32, i32) {
    %c0_i32 = arith.constant 0 : i32
    %c0_i32_0 = arith.constant 0 : i32
    %c0_i32_1 = arith.constant 0 : i32
    return %c0_i32, %c0_i32_0 : i32, i32
  }
  func.func @transform_8(%arg0: i32) -> (i32, i32, i32) {
    %c0_i32 = arith.constant 0 : i32
    %c0_i32_0 = arith.constant 0 : i32
    %c0_i32_1 = arith.constant 0 : i32
    return %c0_i32, %arg0, %c0_i32_0 : i32, i32, i32
  }
}

</mosaic_0001>

<llo_original>
// kernel: tpu_custom_call.1
$region0: #{tpu_custom_call.1}
  #allocation0 [shape = 'u32[]', space=smem, size = 0x4, offset = 0x4, fixed_abs, tag = 'smem constant byte address 0x4 - core index']
  #allocation1 [shape = 'u32[144,128]{1,0:T(1,128)}', space=vmem, size = 0x12000, scoped, tag = 'internal scratch']
  #allocation2 [shape = 'bf16[9,16,512]{2,1,0:T(8,128)(2,1)}', space=vmem, size = 0x24000, scoped, tag = 'scratch operand']
  #allocation3 [shape = 'bf16[9,16,1536]{2,1,0:T(8,128)(2,1)}', space=vmem, size = 0x6c000, scoped, tag = 'scratch operand']
  %s0 = inlined_call_operand.hbm [shape: f32[16,512], index: 0, kind: input, shape index: {}]
  %s1 = inlined_call_operand.hbm [shape: f32[16,512], index: 1, kind: input, shape index: {}]
  %s2 = inlined_call_operand.hbm [shape: bf16[512,1536], index: 2, kind: input, shape index: {}]
  %s3 = inlined_call_operand.hbm [shape: bf16[512,1536], index: 3, kind: input, shape index: {}]
  %s4 = inlined_call_operand.hbm [shape: f32[1,1536], index: 4, kind: input, shape index: {}]
  %s5 = inlined_call_operand.hbm [shape: f32[1,512], index: 5, kind: input, shape index: {}]
  %s6 = inlined_call_operand.hbm [shape: bf16[512,128], index: 6, kind: input, shape index: {}]
  %s7 = inlined_call_operand.hbm [shape: f32[1,128], index: 7, kind: input, shape index: {}]
  %s8 = inlined_call_operand.hbm [shape: f32[9,16,128], index: 8, kind: output, shape index: {}]
  %s9 = sld [smem:[#allocation0]]
  $region92: #{tpu_custom_call.1} parent=0
    _
  %s11 = ssub.s32 1, %s9
  %s12 = scalar_select 0, %s11, %s9
  $region1: #{tpu_custom_call.1} parent=0
    #allocation4 [shape = 'u8[32768]{0}', space=vmem, size = 0x8000, scoped, tag = 'input window, operand 0, single buffered']
    #allocation5 [shape = 's32[1]{0}', space=sflag, size = 0x4, scoped, tag = 'scoped memory for tpu_custom_call.1']
    #allocation6 [shape = 's32[1]{0}', space=sflag, size = 0x4, scoped, tag = 'scoped memory for tpu_custom_call.1']
    #allocation7 [shape = 'u8[32768]{0}', space=vmem, size = 0x8000, scoped, tag = 'input window, operand 1, single buffered']
    #allocation8 [shape = 's32[1]{0}', space=sflag, size = 0x4, scoped, tag = 'scoped memory for tpu_custom_call.1']
    #allocation9 [shape = 'u8[1572864]{0}', space=vmem, size = 0x180000, scoped, tag = 'input window, operand 2, single buffered']
    #allocation10 [shape = 'u8[1572864]{0}', space=vmem, size = 0x180000, scoped, tag = 'input window, operand 3, single buffered']
    #allocation11 [shape = 's32[1]{0}', space=sflag, size = 0x4, scoped, tag = 'scoped memory for tpu_custom_call.1']
    #allocation12 [shape = 'u8[6144]{0}', space=vmem, size = 0x1800, scoped, tag = 'input window, operand 4, single buffered']
    #allocation13 [shape = 'u8[2048]{0}', space=vmem, size = 0x800, scoped, tag = 'input window, operand 5, single buffered']
    #allocation14 [shape = 's32[1]{0}', space=sflag, size = 0x4, scoped, tag = 'scoped memory for tpu_custom_call.1']
    #allocation15 [shape = 'u8[131072]{0}', space=vmem, size = 0x20000, scoped, tag = 'input window, operand 6, single buffered']
    #allocation16 [shape = 'u8[512]{0}', space=vmem, size = 0x400, scoped, tag = 'input window, operand 7, single buffered']
    #allocation17 [shape = 's32[1]{0}', space=sflag, size = 0x4, scoped, tag = 'scoped memory for tpu_custom_call.1']
    #allocation18 [shape = 'u8[73728]{0}', space=vmem, size = 0x12000, scoped, tag = 'output window, operand 0, single buffered']
    %13 = vsyncpa [#allocation5], 0
    %14 = vsyncpa [#allocation8], 0
    %15 = vsyncpa [#allocation11], 0
    %16 = vsyncpa [#allocation14], 0
    %17 = vsyncpa [#allocation17], 0
    %18 = vsyncpa [#allocation6], 0
    // Predicated region
    $region2: #{tpu_custom_call.1} parent=1 // pred_check
      _
    $region3: #{tpu_custom_call.1} parent=1 // pred_check_branch
      %20 = sbr.rel (0) target = $region5
    $region4: #{tpu_custom_call.1} parent=1 // pred_region
      %s22 = ssub.s32 1024, 1024
      %23 = vsyncadd [#allocation5], %s22
      %s24 = sshll.u32 [#allocation4], 4
      %s25 = int_to_ptr.vmem [resolvable:$true] %s24
      %30 = dma.hbm_to_vmem [thread:$0]  %s0, 1024, %s25, [#allocation5], 512, 512, 32
    $region5: #{tpu_custom_call.1} parent=1 // pred_fallthru
      _
    // Predicated region
    $region6: #{tpu_custom_call.1} parent=1 // pred_check
      _
    $region7: #{tpu_custom_call.1} parent=1 // pred_check_branch
      %32 = sbr.rel (0) target = $region9
    $region8: #{tpu_custom_call.1} parent=1 // pred_region
      %s34 = ssub.s32 1024, 1024
      %35 = vsyncadd [#allocation8], %s34
      %s36 = sshll.u32 [#allocation7], 4
      %s37 = int_to_ptr.vmem [resolvable:$true] %s36
      %42 = dma.hbm_to_vmem [thread:$0]  %s1, 1024, %s37, [#allocation8], 512, 512, 32
    $region9: #{tpu_custom_call.1} parent=1 // pred_fallthru
      _
    // Predicated region
    $region10: #{tpu_custom_call.1} parent=1 // pred_check
      _
    $region11: #{tpu_custom_call.1} parent=1 // pred_check_branch
      %44 = sbr.rel (0) target = $region13
    $region12: #{tpu_custom_call.1} parent=1 // pred_region
      %s46 = ssub.s32 49152, 49152
      %47 = vsyncadd [#allocation8], %s46
      %s48 = sshll.u32 [#allocation9], 4
      %s49 = int_to_ptr.vmem [resolvable:$true] %s48
      %54 = dma.hbm_to_vmem [thread:$0]  %s2, 49152, %s49, [#allocation8], 768, 768, 48
    $region13: #{tpu_custom_call.1} parent=1 // pred_fallthru
      _
    // Predicated region
    $region14: #{tpu_custom_call.1} parent=1 // pred_check
      _
    $region15: #{tpu_custom_call.1} parent=1 // pred_check_branch
      %56 = sbr.rel (0) target = $region17
    $region16: #{tpu_custom_call.1} parent=1 // pred_region
      %s58 = ssub.s32 49152, 49152
      %59 = vsyncadd [#allocation11], %s58
      %s60 = sshll.u32 [#allocation10], 4
      %s61 = int_to_ptr.vmem [resolvable:$true] %s60
      %66 = dma.hbm_to_vmem [thread:$0]  %s3, 49152, %s61, [#allocation11], 768, 768, 48
    $region17: #{tpu_custom_call.1} parent=1 // pred_fallthru
      _
    // Predicated region
    $region18: #{tpu_custom_call.1} parent=1 // pred_check
      _
    $region19: #{tpu_custom_call.1} parent=1 // pred_check_branch
      %68 = sbr.rel (0) target = $region21
    $region20: #{tpu_custom_call.1} parent=1 // pred_region
      %s70 = ssub.s32 192, 192
      %71 = vsyncadd [#allocation11], %s70
      %s73 = sshll.u32 [#allocation12], 4
      %s74 = int_to_ptr.vmem [resolvable:$true] %s73
      %76 = dma.hbm_to_vmem [thread:$0]  %s4, 192, %s74, [#allocation11]
    $region21: #{tpu_custom_call.1} parent=1 // pred_fallthru
      _
    // Predicated region
    $region22: #{tpu_custom_call.1} parent=1 // pred_check
      _
    $region23: #{tpu_custom_call.1} parent=1 // pred_check_branch
      %78 = sbr.rel (0) target = $region25
    $region24: #{tpu_custom_call.1} parent=1 // pred_region
      %s80 = ssub.s32 64, 64
      %81 = vsyncadd [#allocation14], %s80
      %s83 = sshll.u32 [#allocation13], 4
      %s84 = int_to_ptr.vmem [resolvable:$true] %s83
      %86 = dma.hbm_to_vmem [thread:$0]  %s5, 64, %s84, [#allocation14]
    $region25: #{tpu_custom_call.1} parent=1 // pred_fallthru
      _
    // Predicated region
    $region26: #{tpu_custom_call.1} parent=1 // pred_check
      _
    $region27: #{tpu_custom_call.1} parent=1 // pred_check_branch
      %88 = sbr.rel (0) target = $region29
    $region28: #{tpu_custom_call.1} parent=1 // pred_region
      %s90 = ssub.s32 4096, 4096
      %91 = vsyncadd [#allocation14], %s90
      %s92 = sshll.u32 [#allocation15], 4
      %s93 = int_to_ptr.vmem [resolvable:$true] %s92
      %98 = dma.hbm_to_vmem [thread:$0]  %s6, 4096, %s93, [#allocation14], 64, 64, 4
    $region29: #{tpu_custom_call.1} parent=1 // pred_fallthru
      _
    // Predicated region
    $region30: #{tpu_custom_call.1} parent=1 // pred_check
      _
    $region31: #{tpu_custom_call.1} parent=1 // pred_check_branch
      %100 = sbr.rel (0) target = $region33
    $region32: #{tpu_custom_call.1} parent=1 // pred_region
      %s102 = ssub.s32 16, 16
      %103 = vsyncadd [#allocation17], %s102
      %s105 = sshll.u32 [#allocation16], 4
      %s106 = int_to_ptr.vmem [resolvable:$true] %s105
      %108 = dma.hbm_to_vmem [thread:$0]  %s7, 16, %s106, [#allocation17]
    $region33: #{tpu_custom_call.1} parent=1 // pred_fallthru
      _
    // Predicated region
    $region34: #{tpu_custom_call.1} parent=1 // pred_check
      _
    $region35: #{tpu_custom_call.1} parent=1 // pred_check_branch
      %110 = sbr.rel (0) target = $region37
    $region36: #{tpu_custom_call.1} parent=1 // pred_region
      %111 = dma.done [#allocation5], 1024
    $region37: #{tpu_custom_call.1} parent=1 // pred_fallthru
      _
    // Predicated region
    $region38: #{tpu_custom_call.1} parent=1 // pred_check
      _
    $region39: #{tpu_custom_call.1} parent=1 // pred_check_branch
      %113 = sbr.rel (0) target = $region41
    $region40: #{tpu_custom_call.1} parent=1 // pred_region
      %114 = dma.done [#allocation8], 1024
    $region41: #{tpu_custom_call.1} parent=1 // pred_fallthru
      _
    // Predicated region
    $region42: #{tpu_custom_call.1} parent=1 // pred_check
      _
    $region43: #{tpu_custom_call.1} parent=1 // pred_check_branch
      %116 = sbr.rel (0) target = $region45
    $region44: #{tpu_custom_call.1} parent=1 // pred_region
      %117 = dma.done [#allocation8], 49152
    $region45: #{tpu_custom_call.1} parent=1 // pred_fallthru
      _
    // Predicated region
    $region46: #{tpu_custom_call.1} parent=1 // pred_check
      _
    $region47: #{tpu_custom_call.1} parent=1 // pred_check_branch
      %119 = sbr.rel (0) target = $region49
    $region48: #{tpu_custom_call.1} parent=1 // pred_region
      %120 = dma.done [#allocation11], 49152
    $region49: #{tpu_custom_call.1} parent=1 // pred_fallthru
      _
    // Predicated region
    $region50: #{tpu_custom_call.1} parent=1 // pred_check
      _
    $region51: #{tpu_custom_call.1} parent=1 // pred_check_branch
      %122 = sbr.rel (0) target = $region53
    $region52: #{tpu_custom_call.1} parent=1 // pred_region
      %123 = dma.done [#allocation11], 192
    $region53: #{tpu_custom_call.1} parent=1 // pred_fallthru
      _
    // Predicated region
    $region54: #{tpu_custom_call.1} parent=1 // pred_check
      _
    $region55: #{tpu_custom_call.1} parent=1 // pred_check_branch
      %125 = sbr.rel (0) target = $region57
    $region56: #{tpu_custom_call.1} parent=1 // pred_region
      %126 = dma.done [#allocation14], 64
    $region57: #{tpu_custom_call.1} parent=1 // pred_fallthru
      _
    // Predicated region
    $region58: #{tpu_custom_call.1} parent=1 // pred_check
      _
    $region59: #{tpu_custom_call.1} parent=1 // pred_check_branch
      %128 = sbr.rel (0) target = $region61
    $region60: #{tpu_custom_call.1} parent=1 // pred_region
      %129 = dma.done [#allocation14], 4096
    $region61: #{tpu_custom_call.1} parent=1 // pred_fallthru
      _
    // Predicated region
    $region62: #{tpu_custom_call.1} parent=1 // pred_check
      _
    $region63: #{tpu_custom_call.1} parent=1 // pred_check_branch
      %131 = sbr.rel (0) target = $region65
    $region64: #{tpu_custom_call.1} parent=1 // pred_region
      %132 = dma.done [#allocation17], 16
    $region65: #{tpu_custom_call.1} parent=1 // pred_fallthru
      _
    %v134 = vld [vmem:[#allocation9] sm:$0xff]
    %v135 = vld [vmem:[#allocation9 + $0x8] sm:$0xff]
    %v136 = vld [vmem:[#allocation9 + $0x10] sm:$0xff]
    %v137 = vld [vmem:[#allocation9 + $0x18] sm:$0xff]
    %v138 = vld [vmem:[#allocation9 + $0x20] sm:$0xff]
    %v139 = vld [vmem:[#allocation9 + $0x28] sm:$0xff]
    %v140 = vld [vmem:[#allocation9 + $0x30] sm:$0xff]
    %v141 = vld [vmem:[#allocation9 + $0x38] sm:$0xff]
    %v142 = vld [vmem:[#allocation9 + $0x40] sm:$0xff]
    %v143 = vld [vmem:[#allocation9 + $0x48] sm:$0xff]
    %v144 = vld [vmem:[#allocation9 + $0x50] sm:$0xff]
    %v145 = vld [vmem:[#allocation9 + $0x58] sm:$0xff]
    %v146 = vld [vmem:[#allocation9 + $0x60] sm:$0xff]
    %v147 = vld [vmem:[#allocation9 + $0x68] sm:$0xff]
    %v148 = vld [vmem:[#allocation9 + $0x70] sm:$0xff]
    %v149 = vld [vmem:[#allocation9 + $0x78] sm:$0xff]
    %v150 = vld [vmem:[#allocation9 + $0x80] sm:$0xff]
    %v151 = vld [vmem:[#allocation9 + $0x88] sm:$0xff]
    %v152 = vld [vmem:[#allocation9 + $0x90] sm:$0xff]
    %v153 = vld [vmem:[#allocation9 + $0x98] sm:$0xff]
    %v154 = vld [vmem:[#allocation9 + $0xa0] sm:$0xff]
    %v155 = vld [vmem:[#allocation9 + $0xa8] sm:$0xff]
    %v156 = vld [vmem:[#allocation9 + $0xb0] sm:$0xff]
    %v157 = vld [vmem:[#allocation9 + $0xb8] sm:$0xff]
    %v158 = vld [vmem:[#allocation9 + $0xc0] sm:$0xff]
    %v159 = vld [vmem:[#allocation9 + $0xc8] sm:$0xff]
    %v160 = vld [vmem:[#allocation9 + $0xd0] sm:$0xff]
    %v161 = vld [vmem:[#allocation9 + $0xd8] sm:$0xff]
    %v162 = vld [vmem:[#allocation9 + $0xe0] sm:$0xff]
    %v163 = vld [vmem:[#allocation9 + $0xe8] sm:$0xff]
    %v164 = vld [vmem:[#allocation9 + $0xf0] sm:$0xff]
    %v165 = vld [vmem:[#allocation9 + $0xf8] sm:$0xff]
    %v166 = vld [vmem:[#allocation9 + $0x100] sm:$0xff]
    %v167 = vld [vmem:[#allocation9 + $0x108] sm:$0xff]
    %v168 = vld [vmem:[#allocation9 + $0x110] sm:$0xff]
    %v169 = vld [vmem:[#allocation9 + $0x118] sm:$0xff]
    %v170 = vld [vmem:[#allocation9 + $0x120] sm:$0xff]
    %v171 = vld [vmem:[#allocation9 + $0x128] sm:$0xff]
    %v172 = vld [vmem:[#allocation9 + $0x130] sm:$0xff]
    %v173 = vld [vmem:[#allocation9 + $0x138] sm:$0xff]
    %v174 = vld [vmem:[#allocation9 + $0x140] sm:$0xff]
    %v175 = vld [vmem:[#allocation9 + $0x148] sm:$0xff]
    %v176 = vld [vmem:[#allocation9 + $0x150] sm:$0xff]
    %v177 = vld [vmem:[#allocation9 + $0x158] sm:$0xff]
    %v178 = vld [vmem:[#allocation9 + $0x160] sm:$0xff]
    %v179 = vld [vmem:[#allocation9 + $0x168] sm:$0xff]
    %v180 = vld [vmem:[#allocation9 + $0x170] sm:$0xff]
    %v181 = vld [vmem:[#allocation9 + $0x178] sm:$0xff]
    %v182 = vld [vmem:[#allocation9 + $0x180] sm:$0xff]
    %v183 = vld [vmem:[#allocation9 + $0x188] sm:$0xff]
    %v184 = vld [vmem:[#allocation9 + $0x190] sm:$0xff]
    %v185 = vld [vmem:[#allocation9 + $0x198] sm:$0xff]
    %v186 = vld [vmem:[#allocation9 + $0x1a0] sm:$0xff]
    %v187 = vld [vmem:[#allocation9 + $0x1a8] sm:$0xff]
    %v188 = vld [vmem:[#allocation9 + $0x1b0] sm:$0xff]
    %v189 = vld [vmem:[#allocation9 + $0x1b8] sm:$0xff]
    %v190 = vld [vmem:[#allocation9 + $0x1c0] sm:$0xff]
    %v191 = vld [vmem:[#allocation9 + $0x1c8] sm:$0xff]
    %v192 = vld [vmem:[#allocation9 + $0x1d0] sm:$0xff]
    %v193 = vld [vmem:[#allocation9 + $0x1d8] sm:$0xff]
    %v194 = vld [vmem:[#allocation9 + $0x1e0] sm:$0xff]
    %v195 = vld [vmem:[#allocation9 + $0x1e8] sm:$0xff]
    %v196 = vld [vmem:[#allocation9 + $0x1f0] sm:$0xff]
    %v197 = vld [vmem:[#allocation9 + $0x1f8] sm:$0xff]
    %v198 = vld [vmem:[#allocation9 + $0x200] sm:$0xff]
    %v199 = vld [vmem:[#allocation9 + $0x208] sm:$0xff]
    %v200 = vld [vmem:[#allocation9 + $0x210] sm:$0xff]
    %v201 = vld [vmem:[#allocation9 + $0x218] sm:$0xff]
    %v202 = vld [vmem:[#allocation9 + $0x220] sm:$0xff]
    %v203 = vld [vmem:[#allocation9 + $0x228] sm:$0xff]
    %v204 = vld [vmem:[#allocation9 + $0x230] sm:$0xff]
    %v205 = vld [vmem:[#allocation9 + $0x238] sm:$0xff]
    %v206 = vld [vmem:[#allocation9 + $0x240] sm:$0xff]
    %v207 = vld [vmem:[#allocation9 + $0x248] sm:$0xff]
    %v208 = vld [vmem:[#allocation9 + $0x250] sm:$0xff]
    %v209 = vld [vmem:[#allocation9 + $0x258] sm:$0xff]
    %v210 = vld [vmem:[#allocation9 + $0x260] sm:$0xff]
    %v211 = vld [vmem:[#allocation9 + $0x268] sm:$0xff]
    %v212 = vld [vmem:[#allocation9 + $0x270] sm:$0xff]
    %v213 = vld [vmem:[#allocation9 + $0x278] sm:$0xff]
    %v214 = vld [vmem:[#allocation9 + $0x280] sm:$0xff]
    %v215 = vld [vmem:[#allocation9 + $0x288] sm:$0xff]
    %v216 = vld [vmem:[#allocation9 + $0x290] sm:$0xff]
    %v217 = vld [vmem:[#allocation9 + $0x298] sm:$0xff]
    %v218 = vld [vmem:[#allocation9 + $0x2a0] sm:$0xff]
    %v219 = vld [vmem:[#allocation9 + $0x2a8] sm:$0xff]
    %v220 = vld [vmem:[#allocation9 + $0x2b0] sm:$0xff]
    %v221 = vld [vmem:[#allocation9 + $0x2b8] sm:$0xff]
    %v222 = vld [vmem:[#allocation9 + $0x2c0] sm:$0xff]
    %v223 = vld [vmem:[#allocation9 + $0x2c8] sm:$0xff]
    %v224 = vld [vmem:[#allocation9 + $0x2d0] sm:$0xff]
    %v225 = vld [vmem:[#allocation9 + $0x2d8] sm:$0xff]
    %v226 = vld [vmem:[#allocation9 + $0x2e0] sm:$0xff]
    %v227 = vld [vmem:[#allocation9 + $0x2e8] sm:$0xff]
    %v228 = vld [vmem:[#allocation9 + $0x2f0] sm:$0xff]
    %v229 = vld [vmem:[#allocation9 + $0x2f8] sm:$0xff]
    %v230 = vld [vmem:[#allocation9 + $0x300] sm:$0xff]
    %v231 = vld [vmem:[#allocation9 + $0x308] sm:$0xff]
    %v232 = vld [vmem:[#allocation9 + $0x310] sm:$0xff]
    %v233 = vld [vmem:[#allocation9 + $0x318] sm:$0xff]
    %v234 = vld [vmem:[#allocation9 + $0x320] sm:$0xff]
    %v235 = vld [vmem:[#allocation9 + $0x328] sm:$0xff]
    %v236 = vld [vmem:[#allocation9 + $0x330] sm:$0xff]
    %v237 = vld [vmem:[#allocation9 + $0x338] sm:$0xff]
    %v238 = vld [vmem:[#allocation9 + $0x340] sm:$0xff]
    %v239 = vld [vmem:[#allocation9 + $0x348] sm:$0xff]
    %v240 = vld [vmem:[#allocation9 + $0x350] sm:$0xff]
    %v241 = vld [vmem:[#allocation9 + $0x358] sm:$0xff]
    %v242 = vld [vmem:[#allocation9 + $0x360] sm:$0xff]
    %v243 = vld [vmem:[#allocation9 + $0x368] sm:$0xff]
    %v244 = vld [vmem:[#allocation9 + $0x370] sm:$0xff]
    %v245 = vld [vmem:[#allocation9 + $0x378] sm:$0xff]
    %v246 = vld [vmem:[#allocation9 + $0x380] sm:$0xff]
    %v247 = vld [vmem:[#allocation9 + $0x388] sm:$0xff]
    %v248 = vld [vmem:[#allocation9 + $0x390] sm:$0xff]
    %v249 = vld [vmem:[#allocation9 + $0x398] sm:$0xff]
    %v250 = vld [vmem:[#allocation9 + $0x3a0] sm:$0xff]
    %v251 = vld [vmem:[#allocation9 + $0x3a8] sm:$0xff]
    %v252 = vld [vmem:[#allocation9 + $0x3b0] sm:$0xff]
    %v253 = vld [vmem:[#allocation9 + $0x3b8] sm:$0xff]
    %v254 = vld [vmem:[#allocation9 + $0x3c0] sm:$0xff]
    %v255 = vld [vmem:[#allocation9 + $0x3c8] sm:$0xff]
    %v256 = vld [vmem:[#allocation9 + $0x3d0] sm:$0xff]
    %v257 = vld [vmem:[#allocation9 + $0x3d8] sm:$0xff]
    %v258 = vld [vmem:[#allocation9 + $0x3e0] sm:$0xff]
    %v259 = vld [vmem:[#allocation9 + $0x3e8] sm:$0xff]
    %v260 = vld [vmem:[#allocation9 + $0x3f0] sm:$0xff]
    %v261 = vld [vmem:[#allocation9 + $0x3f8] sm:$0xff]
    %v262 = vld [vmem:[#allocation9 + $0x400] sm:$0xff]
    %v263 = vld [vmem:[#allocation9 + $0x408] sm:$0xff]
    %v264 = vld [vmem:[#allocation9 + $0x410] sm:$0xff]
    %v265 = vld [vmem:[#allocation9 + $0x418] sm:$0xff]
    %v266 = vld [vmem:[#allocation9 + $0x420] sm:$0xff]
    %v267 = vld [vmem:[#allocation9 + $0x428] sm:$0xff]
    %v268 = vld [vmem:[#allocation9 + $0x430] sm:$0xff]
    %v269 = vld [vmem:[#allocation9 + $0x438] sm:$0xff]
    %v270 = vld [vmem:[#allocation9 + $0x440] sm:$0xff]
    %v271 = vld [vmem:[#allocation9 + $0x448] sm:$0xff]
    %v272 = vld [vmem:[#allocation9 + $0x450] sm:$0xff]
    %v273 = vld [vmem:[#allocation9 + $0x458] sm:$0xff]
    %v274 = vld [vmem:[#allocation9 + $0x460] sm:$0xff]
    %v275 = vld [vmem:[#allocation9 + $0x468] sm:$0xff]
    %v276 = vld [vmem:[#allocation9 + $0x470] sm:$0xff]
    %v277 = vld [vmem:[#allocation9 + $0x478] sm:$0xff]
    %v278 = vld [vmem:[#allocation9 + $0x480] sm:$0xff]
    %v279 = vld [vmem:[#allocation9 + $0x488] sm:$0xff]
    %v280 = vld [vmem:[#allocation9 + $0x490] sm:$0xff]
    %v281 = vld [vmem:[#allocation9 + $0x498] sm:$0xff]
    %v282 = vld [vmem:[#allocation9 + $0x4a0] sm:$0xff]
    %v283 = vld [vmem:[#allocation9 + $0x4a8] sm:$0xff]
    %v284 = vld [vmem:[#allocation9 + $0x4b0] sm:$0xff]
    %v285 = vld [vmem:[#allocation9 + $0x4b8] sm:$0xff]
    %v286 = vld [vmem:[#allocation9 + $0x4c0] sm:$0xff]
    %v287 = vld [vmem:[#allocation9 + $0x4c8] sm:$0xff]
    %v288 = vld [vmem:[#allocation9 + $0x4d0] sm:$0xff]
    %v289 = vld [vmem:[#allocation9 + $0x4d8] sm:$0xff]
    %v290 = vld [vmem:[#allocation9 + $0x4e0] sm:$0xff]
    %v291 = vld [vmem:[#allocation9 + $0x4e8] sm:$0xff]
    %v292 = vld [vmem:[#allocation9 + $0x4f0] sm:$0xff]
    %v293 = vld [vmem:[#allocation9 + $0x4f8] sm:$0xff]
    %v294 = vld [vmem:[#allocation9 + $0x500] sm:$0xff]
    %v295 = vld [vmem:[#allocation9 + $0x508] sm:$0xff]
    %v296 = vld [vmem:[#allocation9 + $0x510] sm:$0xff]
    %v297 = vld [vmem:[#allocation9 + $0x518] sm:$0xff]
    %v298 = vld [vmem:[#allocation9 + $0x520] sm:$0xff]
    %v299 = vld [vmem:[#allocation9 + $0x528] sm:$0xff]
    %v300 = vld [vmem:[#allocation9 + $0x530] sm:$0xff]
    %v301 = vld [vmem:[#allocation9 + $0x538] sm:$0xff]
    %v302 = vld [vmem:[#allocation9 + $0x540] sm:$0xff]
    %v303 = vld [vmem:[#allocation9 + $0x548] sm:$0xff]
    %v304 = vld [vmem:[#allocation9 + $0x550] sm:$0xff]
    %v305 = vld [vmem:[#allocation9 + $0x558] sm:$0xff]
    %v306 = vld [vmem:[#allocation9 + $0x560] sm:$0xff]
    %v307 = vld [vmem:[#allocation9 + $0x568] sm:$0xff]
    %v308 = vld [vmem:[#allocation9 + $0x570] sm:$0xff]
    %v309 = vld [vmem:[#allocation9 + $0x578] sm:$0xff]
    %v310 = vld [vmem:[#allocation9 + $0x580] sm:$0xff]
    %v311 = vld [vmem:[#allocation9 + $0x588] sm:$0xff]
    %v312 = vld [vmem:[#allocation9 + $0x590] sm:$0xff]
    %v313 = vld [vmem:[#allocation9 + $0x598] sm:$0xff]
    %v314 = vld [vmem:[#allocation9 + $0x5a0] sm:$0xff]
    %v315 = vld [vmem:[#allocation9 + $0x5a8] sm:$0xff]
    %v316 = vld [vmem:[#allocation9 + $0x5b0] sm:$0xff]
    %v317 = vld [vmem:[#allocation9 + $0x5b8] sm:$0xff]
    %v318 = vld [vmem:[#allocation9 + $0x5c0] sm:$0xff]
    %v319 = vld [vmem:[#allocation9 + $0x5c8] sm:$0xff]
    %v320 = vld [vmem:[#allocation9 + $0x5d0] sm:$0xff]
    %v321 = vld [vmem:[#allocation9 + $0x5d8] sm:$0xff]
    %v322 = vld [vmem:[#allocation9 + $0x5e0] sm:$0xff]
    %v323 = vld [vmem:[#allocation9 + $0x5e8] sm:$0xff]
    %v324 = vld [vmem:[#allocation9 + $0x5f0] sm:$0xff]
    %v325 = vld [vmem:[#allocation9 + $0x5f8] sm:$0xff]
    %v326 = vld [vmem:[#allocation9 + $0x600] sm:$0xff]
    %v327 = vld [vmem:[#allocation9 + $0x608] sm:$0xff]
    %v328 = vld [vmem:[#allocation9 + $0x610] sm:$0xff]
    %v329 = vld [vmem:[#allocation9 + $0x618] sm:$0xff]
    %v330 = vld [vmem:[#allocation9 + $0x620] sm:$0xff]
    %v331 = vld [vmem:[#allocation9 + $0x628] sm:$0xff]
    %v332 = vld [vmem:[#allocation9 + $0x630] sm:$0xff]
    %v333 = vld [vmem:[#allocation9 + $0x638] sm:$0xff]
    %v334 = vld [vmem:[#allocation9 + $0x640] sm:$0xff]
    %v335 = vld [vmem:[#allocation9 + $0x648] sm:$0xff]
    %v336 = vld [vmem:[#allocation9 + $0x650] sm:$0xff]
    %v337 = vld [vmem:[#allocation9 + $0x658] sm:$0xff]
    %v338 = vld [vmem:[#allocation9 + $0x660] sm:$0xff]
    %v339 = vld [vmem:[#allocation9 + $0x668] sm:$0xff]
    %v340 = vld [vmem:[#allocation9 + $0x670] sm:$0xff]
    %v341 = vld [vmem:[#allocation9 + $0x678] sm:$0xff]
    %v342 = vld [vmem:[#allocation9 + $0x680] sm:$0xff]
    %v343 = vld [vmem:[#allocation9 + $0x688] sm:$0xff]
    %v344 = vld [vmem:[#allocation9 + $0x690] sm:$0xff]
    %v345 = vld [vmem:[#allocation9 + $0x698] sm:$0xff]
    %v346 = vld [vmem:[#allocation9 + $0x6a0] sm:$0xff]
    %v347 = vld [vmem:[#allocation9 + $0x6a8] sm:$0xff]
    %v348 = vld [vmem:[#allocation9 + $0x6b0] sm:$0xff]
    %v349 = vld [vmem:[#allocation9 + $0x6b8] sm:$0xff]
    %v350 = vld [vmem:[#allocation9 + $0x6c0] sm:$0xff]
    %v351 = vld [vmem:[#allocation9 + $0x6c8] sm:$0xff]
    %v352 = vld [vmem:[#allocation9 + $0x6d0] sm:$0xff]
    %v353 = vld [vmem:[#allocation9 + $0x6d8] sm:$0xff]
    %v354 = vld [vmem:[#allocation9 + $0x6e0] sm:$0xff]
    %v355 = vld [vmem:[#allocation9 + $0x6e8] sm:$0xff]
    %v356 = vld [vmem:[#allocation9 + $0x6f0] sm:$0xff]
    %v357 = vld [vmem:[#allocation9 + $0x6f8] sm:$0xff]
    %v358 = vld [vmem:[#allocation9 + $0x700] sm:$0xff]
    %v359 = vld [vmem:[#allocation9 + $0x708] sm:$0xff]
    %v360 = vld [vmem:[#allocation9 + $0x710] sm:$0xff]
    %v361 = vld [vmem:[#allocation9 + $0x718] sm:$0xff]
    %v362 = vld [vmem:[#allocation9 + $0x720] sm:$0xff]
    %v363 = vld [vmem:[#allocation9 + $0x728] sm:$0xff]
    %v364 = vld [vmem:[#allocation9 + $0x730] sm:$0xff]
    %v365 = vld [vmem:[#allocation9 + $0x738] sm:$0xff]
    %v366 = vld [vmem:[#allocation9 + $0x740] sm:$0xff]
    %v367 = vld [vmem:[#allocation9 + $0x748] sm:$0xff]
    %v368 = vld [vmem:[#allocation9 + $0x750] sm:$0xff]
    %v369 = vld [vmem:[#allocation9 + $0x758] sm:$0xff]
    %v370 = vld [vmem:[#allocation9 + $0x760] sm:$0xff]
    %v371 = vld [vmem:[#allocation9 + $0x768] sm:$0xff]
    %v372 = vld [vmem:[#allocation9 + $0x770] sm:$0xff]
    %v373 = vld [vmem:[#allocation9 + $0x778] sm:$0xff]
    %v374 = vld [vmem:[#allocation9 + $0x780] sm:$0xff]
    %v375 = vld [vmem:[#allocation9 + $0x788] sm:$0xff]
    %v376 = vld [vmem:[#allocation9 + $0x790] sm:$0xff]
    %v377 = vld [vmem:[#allocation9 + $0x798] sm:$0xff]
    %v378 = vld [vmem:[#allocation9 + $0x7a0] sm:$0xff]
    %v379 = vld [vmem:[#allocation9 + $0x7a8] sm:$0xff]
    %v380 = vld [vmem:[#allocation9 + $0x7b0] sm:$0xff]
    %v381 = vld [vmem:[#allocation9 + $0x7b8] sm:$0xff]
    %v382 = vld [vmem:[#allocation9 + $0x7c0] sm:$0xff]
    %v383 = vld [vmem:[#allocation9 + $0x7c8] sm:$0xff]
    %v384 = vld [vmem:[#allocation9 + $0x7d0] sm:$0xff]
    %v385 = vld [vmem:[#allocation9 + $0x7d8] sm:$0xff]
    %v386 = vld [vmem:[#allocation9 + $0x7e0] sm:$0xff]
    %v387 = vld [vmem:[#allocation9 + $0x7e8] sm:$0xff]
    %v388 = vld [vmem:[#allocation9 + $0x7f0] sm:$0xff]
    %v389 = vld [vmem:[#allocation9 + $0x7f8] sm:$0xff]
    %v390 = vld [vmem:[#allocation9 + $0x800] sm:$0xff]
    %v391 = vld [vmem:[#allocation9 + $0x808] sm:$0xff]
    %v392 = vld [vmem:[#allocation9 + $0x810] sm:$0xff]
    %v393 = vld [vmem:[#allocation9 + $0x818] sm:$0xff]
    %v394 = vld [vmem:[#allocation9 + $0x820] sm:$0xff]
    %v395 = vld [vmem:[#allocation9 + $0x828] sm:$0xff]
    %v396 = vld [vmem:[#allocation9 + $0x830] sm:$0xff]
    %v397 = vld [vmem:[#allocation9 + $0x838] sm:$0xff]
    %v398 = vld [vmem:[#allocation9 + $0x840] sm:$0xff]
    %v399 = vld [vmem:[#allocation9 + $0x848] sm:$0xff]
    %v400 = vld [vmem:[#allocation9 + $0x850] sm:$0xff]
    %v401 = vld [vmem:[#allocation9 + $0x858] sm:$0xff]
    %v402 = vld [vmem:[#allocation9 + $0x860] sm:$0xff]
    %v403 = vld [vmem:[#allocation9 + $0x868] sm:$0xff]
    %v404 = vld [vmem:[#allocation9 + $0x870] sm:$0xff]
    %v405 = vld [vmem:[#allocation9 + $0x878] sm:$0xff]
    %v406 = vld [vmem:[#allocation9 + $0x880] sm:$0xff]
    %v407 = vld [vmem:[#allocation9 + $0x888] sm:$0xff]
    %v408 = vld [vmem:[#allocation9 + $0x890] sm:$0xff]
    %v409 = vld [vmem:[#allocation9 + $0x898] sm:$0xff]
    %v410 = vld [vmem:[#allocation9 + $0x8a0] sm:$0xff]
    %v411 = vld [vmem:[#allocation9 + $0x8a8] sm:$0xff]
    %v412 = vld [vmem:[#allocation9 + $0x8b0] sm:$0xff]
    %v413 = vld [vmem:[#allocation9 + $0x8b8] sm:$0xff]
    %v414 = vld [vmem:[#allocation9 + $0x8c0] sm:$0xff]
    %v415 = vld [vmem:[#allocation9 + $0x8c8] sm:$0xff]
    %v416 = vld [vmem:[#allocation9 + $0x8d0] sm:$0xff]
    %v417 = vld [vmem:[#allocation9 + $0x8d8] sm:$0xff]
    %v418 = vld [vmem:[#allocation9 + $0x8e0] sm:$0xff]
    %v419 = vld [vmem:[#allocation9 + $0x8e8] sm:$0xff]
    %v420 = vld [vmem:[#allocation9 + $0x8f0] sm:$0xff]
    %v421 = vld [vmem:[#allocation9 + $0x8f8] sm:$0xff]
    %v422 = vld [vmem:[#allocation9 + $0x900] sm:$0xff]
    %v423 = vld [vmem:[#allocation9 + $0x908] sm:$0xff]
    %v424 = vld [vmem:[#allocation9 + $0x910] sm:$0xff]
    %v425 = vld [vmem:[#allocation9 + $0x918] sm:$0xff]
    %v426 = vld [vmem:[#allocation9 + $0x920] sm:$0xff]
    %v427 = vld [vmem:[#allocation9 + $0x928] sm:$0xff]
    %v428 = vld [vmem:[#allocation9 + $0x930] sm:$0xff]
    %v429 = vld [vmem:[#allocation9 + $0x938] sm:$0xff]
    %v430 = vld [vmem:[#allocation9 + $0x940] sm:$0xff]
    %v431 = vld [vmem:[#allocation9 + $0x948] sm:$0xff]
    %v432 = vld [vmem:[#allocation9 + $0x950] sm:$0xff]
    %v433 = vld [vmem:[#allocation9 + $0x958] sm:$0xff]
    %v434 = vld [vmem:[#allocation9 + $0x960] sm:$0xff]
    %v435 = vld [vmem:[#allocation9 + $0x968] sm:$0xff]
    %v436 = vld [vmem:[#allocation9 + $0x970] sm:$0xff]
    %v437 = vld [vmem:[#allocation9 + $0x978] sm:$0xff]
    %v438 = vld [vmem:[#allocation9 + $0x980] sm:$0xff]
    %v439 = vld [vmem:[#allocation9 + $0x988] sm:$0xff]
    %v440 = vld [vmem:[#allocation9 + $0x990] sm:$0xff]
    %v441 = vld [vmem:[#allocation9 + $0x998] sm:$0xff]
    %v442 = vld [vmem:[#allocation9 + $0x9a0] sm:$0xff]
    %v443 = vld [vmem:[#allocation9 + $0x9a8] sm:$0xff]
    %v444 = vld [vmem:[#allocation9 + $0x9b0] sm:$0xff]
    %v445 = vld [vmem:[#allocation9 + $0x9b8] sm:$0xff]
    %v446 = vld [vmem:[#allocation9 + $0x9c0] sm:$0xff]
    %v447 = vld [vmem:[#allocation9 + $0x9c8] sm:$0xff]
    %v448 = vld [vmem:[#allocation9 + $0x9d0] sm:$0xff]
    %v449 = vld [vmem:[#allocation9 + $0x9d8] sm:$0xff]
    %v450 = vld [vmem:[#allocation9 + $0x9e0] sm:$0xff]
    %v451 = vld [vmem:[#allocation9 + $0x9e8] sm:$0xff]
    %v452 = vld [vmem:[#allocation9 + $0x9f0] sm:$0xff]
    %v453 = vld [vmem:[#allocation9 + $0x9f8] sm:$0xff]
    %v454 = vld [vmem:[#allocation9 + $0xa00] sm:$0xff]
    %v455 = vld [vmem:[#allocation9 + $0xa08] sm:$0xff]
    %v456 = vld [vmem:[#allocation9 + $0xa10] sm:$0xff]
    %v457 = vld [vmem:[#allocation9 + $0xa18] sm:$0xff]
    %v458 = vld [vmem:[#allocation9 + $0xa20] sm:$0xff]
    %v459 = vld [vmem:[#allocation9 + $0xa28] sm:$0xff]
    %v460 = vld [vmem:[#allocation9 + $0xa30] sm:$0xff]
    %v461 = vld [vmem:[#allocation9 + $0xa38] sm:$0xff]
    %v462 = vld [vmem:[#allocation9 + $0xa40] sm:$0xff]
    %v463 = vld [vmem:[#allocation9 + $0xa48] sm:$0xff]
    %v464 = vld [vmem:[#allocation9 + $0xa50] sm:$0xff]
    %v465 = vld [vmem:[#allocation9 + $0xa58] sm:$0xff]
    %v466 = vld [vmem:[#allocation9 + $0xa60] sm:$0xff]
    %v467 = vld [vmem:[#allocation9 + $0xa68] sm:$0xff]
    %v468 = vld [vmem:[#allocation9 + $0xa70] sm:$0xff]
    %v469 = vld [vmem:[#allocation9 + $0xa78] sm:$0xff]
    %v470 = vld [vmem:[#allocation9 + $0xa80] sm:$0xff]
    %v471 = vld [vmem:[#allocation9 + $0xa88] sm:$0xff]
    %v472 = vld [vmem:[#allocation9 + $0xa90] sm:$0xff]
    %v473 = vld [vmem:[#allocation9 + $0xa98] sm:$0xff]
    %v474 = vld [vmem:[#allocation9 + $0xaa0] sm:$0xff]
    %v475 = vld [vmem:[#allocation9 + $0xaa8] sm:$0xff]
    %v476 = vld [vmem:[#allocation9 + $0xab0] sm:$0xff]
    %v477 = vld [vmem:[#allocation9 + $0xab8] sm:$0xff]
    %v478 = vld [vmem:[#allocation9 + $0xac0] sm:$0xff]
    %v479 = vld [vmem:[#allocation9 + $0xac8] sm:$0xff]
    %v480 = vld [vmem:[#allocation9 + $0xad0] sm:$0xff]
    %v481 = vld [vmem:[#allocation9 + $0xad8] sm:$0xff]
    %v482 = vld [vmem:[#allocation9 + $0xae0] sm:$0xff]
    %v483 = vld [vmem:[#allocation9 + $0xae8] sm:$0xff]
    %v484 = vld [vmem:[#allocation9 + $0xaf0] sm:$0xff]
    %v485 = vld [vmem:[#allocation9 + $0xaf8] sm:$0xff]
    %v486 = vld [vmem:[#allocation9 + $0xb00] sm:$0xff]
    %v487 = vld [vmem:[#allocation9 + $0xb08] sm:$0xff]
    %v488 = vld [vmem:[#allocation9 + $0xb10] sm:$0xff]
    %v489 = vld [vmem:[#allocation9 + $0xb18] sm:$0xff]
    %v490 = vld [vmem:[#allocation9 + $0xb20] sm:$0xff]
    %v491 = vld [vmem:[#allocation9 + $0xb28] sm:$0xff]
    %v492 = vld [vmem:[#allocation9 + $0xb30] sm:$0xff]
    %v493 = vld [vmem:[#allocation9 + $0xb38] sm:$0xff]
    %v494 = vld [vmem:[#allocation9 + $0xb40] sm:$0xff]
    %v495 = vld [vmem:[#allocation9 + $0xb48] sm:$0xff]
    %v496 = vld [vmem:[#allocation9 + $0xb50] sm:$0xff]
    %v497 = vld [vmem:[#allocation9 + $0xb58] sm:$0xff]
    %v498 = vld [vmem:[#allocation9 + $0xb60] sm:$0xff]
    %v499 = vld [vmem:[#allocation9 + $0xb68] sm:$0xff]
    %v500 = vld [vmem:[#allocation9 + $0xb70] sm:$0xff]
    %v501 = vld [vmem:[#allocation9 + $0xb78] sm:$0xff]
    %v502 = vld [vmem:[#allocation9 + $0xb80] sm:$0xff]
    %v503 = vld [vmem:[#allocation9 + $0xb88] sm:$0xff]
    %v504 = vld [vmem:[#allocation9 + $0xb90] sm:$0xff]
    %v505 = vld [vmem:[#allocation9 + $0xb98] sm:$0xff]
    %v506 = vld [vmem:[#allocation9 + $0xba0] sm:$0xff]
    %v507 = vld [vmem:[#allocation9 + $0xba8] sm:$0xff]
    %v508 = vld [vmem:[#allocation9 + $0xbb0] sm:$0xff]
    %v509 = vld [vmem:[#allocation9 + $0xbb8] sm:$0xff]
    %v510 = vld [vmem:[#allocation9 + $0xbc0] sm:$0xff]
    %v511 = vld [vmem:[#allocation9 + $0xbc8] sm:$0xff]
    %v512 = vld [vmem:[#allocation9 + $0xbd0] sm:$0xff]
    %v513 = vld [vmem:[#allocation9 + $0xbd8] sm:$0xff]
    %v514 = vld [vmem:[#allocation9 + $0xbe0] sm:$0xff]
    %v515 = vld [vmem:[#allocation9 + $0xbe8] sm:$0xff]
    %v516 = vld [vmem:[#allocation9 + $0xbf0] sm:$0xff]
    %v517 = vld [vmem:[#allocation9 + $0xbf8] sm:$0xff]
    %v518 = vld [vmem:[#allocation10] sm:$0xff]
    %v519 = vld [vmem:[#allocation10 + $0x8] sm:$0xff]
    %v520 = vld [vmem:[#allocation10 + $0x10] sm:$0xff]
    %v521 = vld [vmem:[#allocation10 + $0x18] sm:$0xff]
    %v522 = vld [vmem:[#allocation10 + $0x20] sm:$0xff]
    %v523 = vld [vmem:[#allocation10 + $0x28] sm:$0xff]
    %v524 = vld [vmem:[#allocation10 + $0x30] sm:$0xff]
    %v525 = vld [vmem:[#allocation10 + $0x38] sm:$0xff]
    %v526 = vld [vmem:[#allocation10 + $0x40] sm:$0xff]
    %v527 = vld [vmem:[#allocation10 + $0x48] sm:$0xff]
    %v528 = vld [vmem:[#allocation10 + $0x50] sm:$0xff]
    %v529 = vld [vmem:[#allocation10 + $0x58] sm:$0xff]
    %v530 = vld [vmem:[#allocation10 + $0x60] sm:$0xff]
    %v531 = vld [vmem:[#allocation10 + $0x68] sm:$0xff]
    %v532 = vld [vmem:[#allocation10 + $0x70] sm:$0xff]
    %v533 = vld [vmem:[#allocation10 + $0x78] sm:$0xff]
    %v534 = vld [vmem:[#allocation10 + $0x80] sm:$0xff]
    %v535 = vld [vmem:[#allocation10 + $0x88] sm:$0xff]
    %v536 = vld [vmem:[#allocation10 + $0x90] sm:$0xff]
    %v537 = vld [vmem:[#allocation10 + $0x98] sm:$0xff]
    %v538 = vld [vmem:[#allocation10 + $0xa0] sm:$0xff]
    %v539 = vld [vmem:[#allocation10 + $0xa8] sm:$0xff]
    %v540 = vld [vmem:[#allocation10 + $0xb0] sm:$0xff]
    %v541 = vld [vmem:[#allocation10 + $0xb8] sm:$0xff]
    %v542 = vld [vmem:[#allocation10 + $0xc0] sm:$0xff]
    %v543 = vld [vmem:[#allocation10 + $0xc8] sm:$0xff]
    %v544 = vld [vmem:[#allocation10 + $0xd0] sm:$0xff]
    %v545 = vld [vmem:[#allocation10 + $0xd8] sm:$0xff]
    %v546 = vld [vmem:[#allocation10 + $0xe0] sm:$0xff]
    %v547 = vld [vmem:[#allocation10 + $0xe8] sm:$0xff]
    %v548 = vld [vmem:[#allocation10 + $0xf0] sm:$0xff]
    %v549 = vld [vmem:[#allocation10 + $0xf8] sm:$0xff]
    %v550 = vld [vmem:[#allocation10 + $0x100] sm:$0xff]
    %v551 = vld [vmem:[#allocation10 + $0x108] sm:$0xff]
    %v552 = vld [vmem:[#allocation10 + $0x110] sm:$0xff]
    %v553 = vld [vmem:[#allocation10 + $0x118] sm:$0xff]
    %v554 = vld [vmem:[#allocation10 + $0x120] sm:$0xff]
    %v555 = vld [vmem:[#allocation10 + $0x128] sm:$0xff]
    %v556 = vld [vmem:[#allocation10 + $0x130] sm:$0xff]
    %v557 = vld [vmem:[#allocation10 + $0x138] sm:$0xff]
    %v558 = vld [vmem:[#allocation10 + $0x140] sm:$0xff]
    %v559 = vld [vmem:[#allocation10 + $0x148] sm:$0xff]
    %v560 = vld [vmem:[#allocation10 + $0x150] sm:$0xff]
    %v561 = vld [vmem:[#allocation10 + $0x158] sm:$0xff]
    %v562 = vld [vmem:[#allocation10 + $0x160] sm:$0xff]
    %v563 = vld [vmem:[#allocation10 + $0x168] sm:$0xff]
    %v564 = vld [vmem:[#allocation10 + $0x170] sm:$0xff]
    %v565 = vld [vmem:[#allocation10 + $0x178] sm:$0xff]
    %v566 = vld [vmem:[#allocation10 + $0x180] sm:$0xff]
    %v567 = vld [vmem:[#allocation10 + $0x188] sm:$0xff]
    %v568 = vld [vmem:[#allocation10 + $0x190] sm:$0xff]
    %v569 = vld [vmem:[#allocation10 + $0x198] sm:$0xff]
    %v570 = vld [vmem:[#allocation10 + $0x1a0] sm:$0xff]
    %v571 = vld [vmem:[#allocation10 + $0x1a8] sm:$0xff]
    %v572 = vld [vmem:[#allocation10 + $0x1b0] sm:$0xff]
    %v573 = vld [vmem:[#allocation10 + $0x1b8] sm:$0xff]
    %v574 = vld [vmem:[#allocation10 + $0x1c0] sm:$0xff]
    %v575 = vld [vmem:[#allocation10 + $0x1c8] sm:$0xff]
    %v576 = vld [vmem:[#allocation10 + $0x1d0] sm:$0xff]
    %v577 = vld [vmem:[#allocation10 + $0x1d8] sm:$0xff]
    %v578 = vld [vmem:[#allocation10 + $0x1e0] sm:$0xff]
    %v579 = vld [vmem:[#allocation10 + $0x1e8] sm:$0xff]
    %v580 = vld [vmem:[#allocation10 + $0x1f0] sm:$0xff]
    %v581 = vld [vmem:[#allocation10 + $0x1f8] sm:$0xff]
    %v582 = vld [vmem:[#allocation10 + $0x200] sm:$0xff]
    %v583 = vld [vmem:[#allocation10 + $0x208] sm:$0xff]
    %v584 = vld [vmem:[#allocation10 + $0x210] sm:$0xff]
    %v585 = vld [vmem:[#allocation10 + $0x218] sm:$0xff]
    %v586 = vld [vmem:[#allocation10 + $0x220] sm:$0xff]
    %v587 = vld [vmem:[#allocation10 + $0x228] sm:$0xff]
    %v588 = vld [vmem:[#allocation10 + $0x230] sm:$0xff]
    %v589 = vld [vmem:[#allocation10 + $0x238] sm:$0xff]
    %v590 = vld [vmem:[#allocation10 + $0x240] sm:$0xff]
    %v591 = vld [vmem:[#allocation10 + $0x248] sm:$0xff]
    %v592 = vld [vmem:[#allocation10 + $0x250] sm:$0xff]
    %v593 = vld [vmem:[#allocation10 + $0x258] sm:$0xff]
    %v594 = vld [vmem:[#allocation10 + $0x260] sm:$0xff]
    %v595 = vld [vmem:[#allocation10 + $0x268] sm:$0xff]
    %v596 = vld [vmem:[#allocation10 + $0x270] sm:$0xff]
    %v597 = vld [vmem:[#allocation10 + $0x278] sm:$0xff]
    %v598 = vld [vmem:[#allocation10 + $0x280] sm:$0xff]
    %v599 = vld [vmem:[#allocation10 + $0x288] sm:$0xff]
    %v600 = vld [vmem:[#allocation10 + $0x290] sm:$0xff]
    %v601 = vld [vmem:[#allocation10 + $0x298] sm:$0xff]
    %v602 = vld [vmem:[#allocation10 + $0x2a0] sm:$0xff]
    %v603 = vld [vmem:[#allocation10 + $0x2a8] sm:$0xff]
    %v604 = vld [vmem:[#allocation10 + $0x2b0] sm:$0xff]
    %v605 = vld [vmem:[#allocation10 + $0x2b8] sm:$0xff]
    %v606 = vld [vmem:[#allocation10 + $0x2c0] sm:$0xff]
    %v607 = vld [vmem:[#allocation10 + $0x2c8] sm:$0xff]
    %v608 = vld [vmem:[#allocation10 + $0x2d0] sm:$0xff]
    %v609 = vld [vmem:[#allocation10 + $0x2d8] sm:$0xff]
    %v610 = vld [vmem:[#allocation10 + $0x2e0] sm:$0xff]
    %v611 = vld [vmem:[#allocation10 + $0x2e8] sm:$0xff]
    %v612 = vld [vmem:[#allocation10 + $0x2f0] sm:$0xff]
    %v613 = vld [vmem:[#allocation10 + $0x2f8] sm:$0xff]
    %v614 = vld [vmem:[#allocation10 + $0x300] sm:$0xff]
    %v615 = vld [vmem:[#allocation10 + $0x308] sm:$0xff]
    %v616 = vld [vmem:[#allocation10 + $0x310] sm:$0xff]
    %v617 = vld [vmem:[#allocation10 + $0x318] sm:$0xff]
    %v618 = vld [vmem:[#allocation10 + $0x320] sm:$0xff]
    %v619 = vld [vmem:[#allocation10 + $0x328] sm:$0xff]
    %v620 = vld [vmem:[#allocation10 + $0x330] sm:$0xff]
    %v621 = vld [vmem:[#allocation10 + $0x338] sm:$0xff]
    %v622 = vld [vmem:[#allocation10 + $0x340] sm:$0xff]
    %v623 = vld [vmem:[#allocation10 + $0x348] sm:$0xff]
    %v624 = vld [vmem:[#allocation10 + $0x350] sm:$0xff]
    %v625 = vld [vmem:[#allocation10 + $0x358] sm:$0xff]
    %v626 = vld [vmem:[#allocation10 + $0x360] sm:$0xff]
    %v627 = vld [vmem:[#allocation10 + $0x368] sm:$0xff]
    %v628 = vld [vmem:[#allocation10 + $0x370] sm:$0xff]
    %v629 = vld [vmem:[#allocation10 + $0x378] sm:$0xff]
    %v630 = vld [vmem:[#allocation10 + $0x380] sm:$0xff]
    %v631 = vld [vmem:[#allocation10 + $0x388] sm:$0xff]
    %v632 = vld [vmem:[#allocation10 + $0x390] sm:$0xff]
    %v633 = vld [vmem:[#allocation10 + $0x398] sm:$0xff]
    %v634 = vld [vmem:[#allocation10 + $0x3a0] sm:$0xff]
    %v635 = vld [vmem:[#allocation10 + $0x3a8] sm:$0xff]
    %v636 = vld [vmem:[#allocation10 + $0x3b0] sm:$0xff]
    %v637 = vld [vmem:[#allocation10 + $0x3b8] sm:$0xff]
    %v638 = vld [vmem:[#allocation10 + $0x3c0] sm:$0xff]
    %v639 = vld [vmem:[#allocation10 + $0x3c8] sm:$0xff]
    %v640 = vld [vmem:[#allocation10 + $0x3d0] sm:$0xff]
    %v641 = vld [vmem:[#allocation10 + $0x3d8] sm:$0xff]
    %v642 = vld [vmem:[#allocation10 + $0x3e0] sm:$0xff]
    %v643 = vld [vmem:[#allocation10 + $0x3e8] sm:$0xff]
    %v644 = vld [vmem:[#allocation10 + $0x3f0] sm:$0xff]
    %v645 = vld [vmem:[#allocation10 + $0x3f8] sm:$0xff]
    %v646 = vld [vmem:[#allocation10 + $0x400] sm:$0xff]
    %v647 = vld [vmem:[#allocation10 + $0x408] sm:$0xff]
    %v648 = vld [vmem:[#allocation10 + $0x410] sm:$0xff]
    %v649 = vld [vmem:[#allocation10 + $0x418] sm:$0xff]
    %v650 = vld [vmem:[#allocation10 + $0x420] sm:$0xff]
    %v651 = vld [vmem:[#allocation10 + $0x428] sm:$0xff]
    %v652 = vld [vmem:[#allocation10 + $0x430] sm:$0xff]
    %v653 = vld [vmem:[#allocation10 + $0x438] sm:$0xff]
    %v654 = vld [vmem:[#allocation10 + $0x440] sm:$0xff]
    %v655 = vld [vmem:[#allocation10 + $0x448] sm:$0xff]
    %v656 = vld [vmem:[#allocation10 + $0x450] sm:$0xff]
    %v657 = vld [vmem:[#allocation10 + $0x458] sm:$0xff]
    %v658 = vld [vmem:[#allocation10 + $0x460] sm:$0xff]
    %v659 = vld [vmem:[#allocation10 + $0x468] sm:$0xff]
    %v660 = vld [vmem:[#allocation10 + $0x470] sm:$0xff]
    %v661 = vld [vmem:[#allocation10 + $0x478] sm:$0xff]
    %v662 = vld [vmem:[#allocation10 + $0x480] sm:$0xff]
    %v663 = vld [vmem:[#allocation10 + $0x488] sm:$0xff]
    %v664 = vld [vmem:[#allocation10 + $0x490] sm:$0xff]
    %v665 = vld [vmem:[#allocation10 + $0x498] sm:$0xff]
    %v666 = vld [vmem:[#allocation10 + $0x4a0] sm:$0xff]
    %v667 = vld [vmem:[#allocation10 + $0x4a8] sm:$0xff]
    %v668 = vld [vmem:[#allocation10 + $0x4b0] sm:$0xff]
    %v669 = vld [vmem:[#allocation10 + $0x4b8] sm:$0xff]
    %v670 = vld [vmem:[#allocation10 + $0x4c0] sm:$0xff]
    %v671 = vld [vmem:[#allocation10 + $0x4c8] sm:$0xff]
    %v672 = vld [vmem:[#allocation10 + $0x4d0] sm:$0xff]
    %v673 = vld [vmem:[#allocation10 + $0x4d8] sm:$0xff]
    %v674 = vld [vmem:[#allocation10 + $0x4e0] sm:$0xff]
    %v675 = vld [vmem:[#allocation10 + $0x4e8] sm:$0xff]
    %v676 = vld [vmem:[#allocation10 + $0x4f0] sm:$0xff]
    %v677 = vld [vmem:[#allocation10 + $0x4f8] sm:$0xff]
    %v678 = vld [vmem:[#allocation10 + $0x500] sm:$0xff]
    %v679 = vld [vmem:[#allocation10 + $0x508] sm:$0xff]
    %v680 = vld [vmem:[#allocation10 + $0x510] sm:$0xff]
    %v681 = vld [vmem:[#allocation10 + $0x518] sm:$0xff]
    %v682 = vld [vmem:[#allocation10 + $0x520] sm:$0xff]
    %v683 = vld [vmem:[#allocation10 + $0x528] sm:$0xff]
    %v684 = vld [vmem:[#allocation10 + $0x530] sm:$0xff]
    %v685 = vld [vmem:[#allocation10 + $0x538] sm:$0xff]
    %v686 = vld [vmem:[#allocation10 + $0x540] sm:$0xff]
    %v687 = vld [vmem:[#allocation10 + $0x548] sm:$0xff]
    %v688 = vld [vmem:[#allocation10 + $0x550] sm:$0xff]
    %v689 = vld [vmem:[#allocation10 + $0x558] sm:$0xff]
    %v690 = vld [vmem:[#allocation10 + $0x560] sm:$0xff]
    %v691 = vld [vmem:[#allocation10 + $0x568] sm:$0xff]
    %v692 = vld [vmem:[#allocation10 + $0x570] sm:$0xff]
    %v693 = vld [vmem:[#allocation10 + $0x578] sm:$0xff]
    %v694 = vld [vmem:[#allocation10 + $0x580] sm:$0xff]
    %v695 = vld [vmem:[#allocation10 + $0x588] sm:$0xff]
    %v696 = vld [vmem:[#allocation10 + $0x590] sm:$0xff]
    %v697 = vld [vmem:[#allocation10 + $0x598] sm:$0xff]
    %v698 = vld [vmem:[#allocation10 + $0x5a0] sm:$0xff]
    %v699 = vld [vmem:[#allocation10 + $0x5a8] sm:$0xff]
    %v700 = vld [vmem:[#allocation10 + $0x5b0] sm:$0xff]
    %v701 = vld [vmem:[#allocation10 + $0x5b8] sm:$0xff]
    %v702 = vld [vmem:[#allocation10 + $0x5c0] sm:$0xff]
    %v703 = vld [vmem:[#allocation10 + $0x5c8] sm:$0xff]
    %v704 = vld [vmem:[#allocation10 + $0x5d0] sm:$0xff]
    %v705 = vld [vmem:[#allocation10 + $0x5d8] sm:$0xff]
    %v706 = vld [vmem:[#allocation10 + $0x5e0] sm:$0xff]
    %v707 = vld [vmem:[#allocation10 + $0x5e8] sm:$0xff]
    %v708 = vld [vmem:[#allocation10 + $0x5f0] sm:$0xff]
    %v709 = vld [vmem:[#allocation10 + $0x5f8] sm:$0xff]
    %v710 = vld [vmem:[#allocation10 + $0x600] sm:$0xff]
    %v711 = vld [vmem:[#allocation10 + $0x608] sm:$0xff]
    %v712 = vld [vmem:[#allocation10 + $0x610] sm:$0xff]
    %v713 = vld [vmem:[#allocation10 + $0x618] sm:$0xff]
    %v714 = vld [vmem:[#allocation10 + $0x620] sm:$0xff]
    %v715 = vld [vmem:[#allocation10 + $0x628] sm:$0xff]
    %v716 = vld [vmem:[#allocation10 + $0x630] sm:$0xff]
    %v717 = vld [vmem:[#allocation10 + $0x638] sm:$0xff]
    %v718 = vld [vmem:[#allocation10 + $0x640] sm:$0xff]
    %v719 = vld [vmem:[#allocation10 + $0x648] sm:$0xff]
    %v720 = vld [vmem:[#allocation10 + $0x650] sm:$0xff]
    %v721 = vld [vmem:[#allocation10 + $0x658] sm:$0xff]
    %v722 = vld [vmem:[#allocation10 + $0x660] sm:$0xff]
    %v723 = vld [vmem:[#allocation10 + $0x668] sm:$0xff]
    %v724 = vld [vmem:[#allocation10 + $0x670] sm:$0xff]
    %v725 = vld [vmem:[#allocation10 + $0x678] sm:$0xff]
    %v726 = vld [vmem:[#allocation10 + $0x680] sm:$0xff]
    %v727 = vld [vmem:[#allocation10 + $0x688] sm:$0xff]
    %v728 = vld [vmem:[#allocation10 + $0x690] sm:$0xff]
    %v729 = vld [vmem:[#allocation10 + $0x698] sm:$0xff]
    %v730 = vld [vmem:[#allocation10 + $0x6a0] sm:$0xff]
    %v731 = vld [vmem:[#allocation10 + $0x6a8] sm:$0xff]
    %v732 = vld [vmem:[#allocation10 + $0x6b0] sm:$0xff]
    %v733 = vld [vmem:[#allocation10 + $0x6b8] sm:$0xff]
    %v734 = vld [vmem:[#allocation10 + $0x6c0] sm:$0xff]
    %v735 = vld [vmem:[#allocation10 + $0x6c8] sm:$0xff]
    %v736 = vld [vmem:[#allocation10 + $0x6d0] sm:$0xff]
    %v737 = vld [vmem:[#allocation10 + $0x6d8] sm:$0xff]
    %v738 = vld [vmem:[#allocation10 + $0x6e0] sm:$0xff]
    %v739 = vld [vmem:[#allocation10 + $0x6e8] sm:$0xff]
    %v740 = vld [vmem:[#allocation10 + $0x6f0] sm:$0xff]
    %v741 = vld [vmem:[#allocation10 + $0x6f8] sm:$0xff]
    %v742 = vld [vmem:[#allocation10 + $0x700] sm:$0xff]
    %v743 = vld [vmem:[#allocation10 + $0x708] sm:$0xff]
    %v744 = vld [vmem:[#allocation10 + $0x710] sm:$0xff]
    %v745 = vld [vmem:[#allocation10 + $0x718] sm:$0xff]
    %v746 = vld [vmem:[#allocation10 + $0x720] sm:$0xff]
    %v747 = vld [vmem:[#allocation10 + $0x728] sm:$0xff]
    %v748 = vld [vmem:[#allocation10 + $0x730] sm:$0xff]
    %v749 = vld [vmem:[#allocation10 + $0x738] sm:$0xff]
    %v750 = vld [vmem:[#allocation10 + $0x740] sm:$0xff]
    %v751 = vld [vmem:[#allocation10 + $0x748] sm:$0xff]
    %v752 = vld [vmem:[#allocation10 + $0x750] sm:$0xff]
    %v753 = vld [vmem:[#allocation10 + $0x758] sm:$0xff]
    %v754 = vld [vmem:[#allocation10 + $0x760] sm:$0xff]
    %v755 = vld [vmem:[#allocation10 + $0x768] sm:$0xff]
    %v756 = vld [vmem:[#allocation10 + $0x770] sm:$0xff]
    %v757 = vld [vmem:[#allocation10 + $0x778] sm:$0xff]
    %v758 = vld [vmem:[#allocation10 + $0x780] sm:$0xff]
    %v759 = vld [vmem:[#allocation10 + $0x788] sm:$0xff]
    %v760 = vld [vmem:[#allocation10 + $0x790] sm:$0xff]
    %v761 = vld [vmem:[#allocation10 + $0x798] sm:$0xff]
    %v762 = vld [vmem:[#allocation10 + $0x7a0] sm:$0xff]
    %v763 = vld [vmem:[#allocation10 + $0x7a8] sm:$0xff]
    %v764 = vld [vmem:[#allocation10 + $0x7b0] sm:$0xff]
    %v765 = vld [vmem:[#allocation10 + $0x7b8] sm:$0xff]
    %v766 = vld [vmem:[#allocation10 + $0x7c0] sm:$0xff]
    %v767 = vld [vmem:[#allocation10 + $0x7c8] sm:$0xff]
    %v768 = vld [vmem:[#allocation10 + $0x7d0] sm:$0xff]
    %v769 = vld [vmem:[#allocation10 + $0x7d8] sm:$0xff]
    %v770 = vld [vmem:[#allocation10 + $0x7e0] sm:$0xff]
    %v771 = vld [vmem:[#allocation10 + $0x7e8] sm:$0xff]
    %v772 = vld [vmem:[#allocation10 + $0x7f0] sm:$0xff]
    %v773 = vld [vmem:[#allocation10 + $0x7f8] sm:$0xff]
    %v774 = vld [vmem:[#allocation10 + $0x800] sm:$0xff]
    %v775 = vld [vmem:[#allocation10 + $0x808] sm:$0xff]
    %v776 = vld [vmem:[#allocation10 + $0x810] sm:$0xff]
    %v777 = vld [vmem:[#allocation10 + $0x818] sm:$0xff]
    %v778 = vld [vmem:[#allocation10 + $0x820] sm:$0xff]
    %v779 = vld [vmem:[#allocation10 + $0x828] sm:$0xff]
    %v780 = vld [vmem:[#allocation10 + $0x830] sm:$0xff]
    %v781 = vld [vmem:[#allocation10 + $0x838] sm:$0xff]
    %v782 = vld [vmem:[#allocation10 + $0x840] sm:$0xff]
    %v783 = vld [vmem:[#allocation10 + $0x848] sm:$0xff]
    %v784 = vld [vmem:[#allocation10 + $0x850] sm:$0xff]
    %v785 = vld [vmem:[#allocation10 + $0x858] sm:$0xff]
    %v786 = vld [vmem:[#allocation10 + $0x860] sm:$0xff]
    %v787 = vld [vmem:[#allocation10 + $0x868] sm:$0xff]
    %v788 = vld [vmem:[#allocation10 + $0x870] sm:$0xff]
    %v789 = vld [vmem:[#allocation10 + $0x878] sm:$0xff]
    %v790 = vld [vmem:[#allocation10 + $0x880] sm:$0xff]
    %v791 = vld [vmem:[#allocation10 + $0x888] sm:$0xff]
    %v792 = vld [vmem:[#allocation10 + $0x890] sm:$0xff]
    %v793 = vld [vmem:[#allocation10 + $0x898] sm:$0xff]
    %v794 = vld [vmem:[#allocation10 + $0x8a0] sm:$0xff]
    %v795 = vld [vmem:[#allocation10 + $0x8a8] sm:$0xff]
    %v796 = vld [vmem:[#allocation10 + $0x8b0] sm:$0xff]
    %v797 = vld [vmem:[#allocation10 + $0x8b8] sm:$0xff]
    %v798 = vld [vmem:[#allocation10 + $0x8c0] sm:$0xff]
    %v799 = vld [vmem:[#allocation10 + $0x8c8] sm:$0xff]
    %v800 = vld [vmem:[#allocation10 + $0x8d0] sm:$0xff]
    %v801 = vld [vmem:[#allocation10 + $0x8d8] sm:$0xff]
    %v802 = vld [vmem:[#allocation10 + $0x8e0] sm:$0xff]
    %v803 = vld [vmem:[#allocation10 + $0x8e8] sm:$0xff]
    %v804 = vld [vmem:[#allocation10 + $0x8f0] sm:$0xff]
    %v805 = vld [vmem:[#allocation10 + $0x8f8] sm:$0xff]
    %v806 = vld [vmem:[#allocation10 + $0x900] sm:$0xff]
    %v807 = vld [vmem:[#allocation10 + $0x908] sm:$0xff]
    %v808 = vld [vmem:[#allocation10 + $0x910] sm:$0xff]
    %v809 = vld [vmem:[#allocation10 + $0x918] sm:$0xff]
    %v810 = vld [vmem:[#allocation10 + $0x920] sm:$0xff]
    %v811 = vld [vmem:[#allocation10 + $0x928] sm:$0xff]
    %v812 = vld [vmem:[#allocation10 + $0x930] sm:$0xff]
    %v813 = vld [vmem:[#allocation10 + $0x938] sm:$0xff]
    %v814 = vld [vmem:[#allocation10 + $0x940] sm:$0xff]
    %v815 = vld [vmem:[#allocation10 + $0x948] sm:$0xff]
    %v816 = vld [vmem:[#allocation10 + $0x950] sm:$0xff]
    %v817 = vld [vmem:[#allocation10 + $0x958] sm:$0xff]
    %v818 = vld [vmem:[#allocation10 + $0x960] sm:$0xff]
    %v819 = vld [vmem:[#allocation10 + $0x968] sm:$0xff]
    %v820 = vld [vmem:[#allocation10 + $0x970] sm:$0xff]
    %v821 = vld [vmem:[#allocation10 + $0x978] sm:$0xff]
    %v822 = vld [vmem:[#allocation10 + $0x980] sm:$0xff]
    %v823 = vld [vmem:[#allocation10 + $0x988] sm:$0xff]
    %v824 = vld [vmem:[#allocation10 + $0x990] sm:$0xff]
    %v825 = vld [vmem:[#allocation10 + $0x998] sm:$0xff]
    %v826 = vld [vmem:[#allocation10 + $0x9a0] sm:$0xff]
    %v827 = vld [vmem:[#allocation10 + $0x9a8] sm:$0xff]
    %v828 = vld [vmem:[#allocation10 + $0x9b0] sm:$0xff]
    %v829 = vld [vmem:[#allocation10 + $0x9b8] sm:$0xff]
    %v830 = vld [vmem:[#allocation10 + $0x9c0] sm:$0xff]
    %v831 = vld [vmem:[#allocation10 + $0x9c8] sm:$0xff]
    %v832 = vld [vmem:[#allocation10 + $0x9d0] sm:$0xff]
    %v833 = vld [vmem:[#allocation10 + $0x9d8] sm:$0xff]
    %v834 = vld [vmem:[#allocation10 + $0x9e0] sm:$0xff]
    %v835 = vld [vmem:[#allocation10 + $0x9e8] sm:$0xff]
    %v836 = vld [vmem:[#allocation10 + $0x9f0] sm:$0xff]
    %v837 = vld [vmem:[#allocation10 + $0x9f8] sm:$0xff]
    %v838 = vld [vmem:[#allocation10 + $0xa00] sm:$0xff]
    %v839 = vld [vmem:[#allocation10 + $0xa08] sm:$0xff]
    %v840 = vld [vmem:[#allocation10 + $0xa10] sm:$0xff]
    %v841 = vld [vmem:[#allocation10 + $0xa18] sm:$0xff]
    %v842 = vld [vmem:[#allocation10 + $0xa20] sm:$0xff]
    %v843 = vld [vmem:[#allocation10 + $0xa28] sm:$0xff]
    %v844 = vld [vmem:[#allocation10 + $0xa30] sm:$0xff]
    %v845 = vld [vmem:[#allocation10 + $0xa38] sm:$0xff]
    %v846 = vld [vmem:[#allocation10 + $0xa40] sm:$0xff]
    %v847 = vld [vmem:[#allocation10 + $0xa48] sm:$0xff]
    %v848 = vld [vmem:[#allocation10 + $0xa50] sm:$0xff]
    %v849 = vld [vmem:[#allocation10 + $0xa58] sm:$0xff]
    %v850 = vld [vmem:[#allocation10 + $0xa60] sm:$0xff]
    %v851 = vld [vmem:[#allocation10 + $0xa68] sm:$0xff]
    %v852 = vld [vmem:[#allocation10 + $0xa70] sm:$0xff]
    %v853 = vld [vmem:[#allocation10 + $0xa78] sm:$0xff]
    %v854 = vld [vmem:[#allocation10 + $0xa80] sm:$0xff]
    %v855 = vld [vmem:[#allocation10 + $0xa88] sm:$0xff]
    %v856 = vld [vmem:[#allocation10 + $0xa90] sm:$0xff]
    %v857 = vld [vmem:[#allocation10 + $0xa98] sm:$0xff]
    %v858 = vld [vmem:[#allocation10 + $0xaa0] sm:$0xff]
    %v859 = vld [vmem:[#allocation10 + $0xaa8] sm:$0xff]
    %v860 = vld [vmem:[#allocation10 + $0xab0] sm:$0xff]
    %v861 = vld [vmem:[#allocation10 + $0xab8] sm:$0xff]
    %v862 = vld [vmem:[#allocation10 + $0xac0] sm:$0xff]
    %v863 = vld [vmem:[#allocation10 + $0xac8] sm:$0xff]
    %v864 = vld [vmem:[#allocation10 + $0xad0] sm:$0xff]
    %v865 = vld [vmem:[#allocation10 + $0xad8] sm:$0xff]
    %v866 = vld [vmem:[#allocation10 + $0xae0] sm:$0xff]
    %v867 = vld [vmem:[#allocation10 + $0xae8] sm:$0xff]
    %v868 = vld [vmem:[#allocation10 + $0xaf0] sm:$0xff]
    %v869 = vld [vmem:[#allocation10 + $0xaf8] sm:$0xff]
    %v870 = vld [vmem:[#allocation10 + $0xb00] sm:$0xff]
    %v871 = vld [vmem:[#allocation10 + $0xb08] sm:$0xff]
    %v872 = vld [vmem:[#allocation10 + $0xb10] sm:$0xff]
    %v873 = vld [vmem:[#allocation10 + $0xb18] sm:$0xff]
    %v874 = vld [vmem:[#allocation10 + $0xb20] sm:$0xff]
    %v875 = vld [vmem:[#allocation10 + $0xb28] sm:$0xff]
    %v876 = vld [vmem:[#allocation10 + $0xb30] sm:$0xff]
    %v877 = vld [vmem:[#allocation10 + $0xb38] sm:$0xff]
    %v878 = vld [vmem:[#allocation10 + $0xb40] sm:$0xff]
    %v879 = vld [vmem:[#allocation10 + $0xb48] sm:$0xff]
    %v880 = vld [vmem:[#allocation10 + $0xb50] sm:$0xff]
    %v881 = vld [vmem:[#allocation10 + $0xb58] sm:$0xff]
    %v882 = vld [vmem:[#allocation10 + $0xb60] sm:$0xff]
    %v883 = vld [vmem:[#allocation10 + $0xb68] sm:$0xff]
    %v884 = vld [vmem:[#allocation10 + $0xb70] sm:$0xff]
    %v885 = vld [vmem:[#allocation10 + $0xb78] sm:$0xff]
    %v886 = vld [vmem:[#allocation10 + $0xb80] sm:$0xff]
    %v887 = vld [vmem:[#allocation10 + $0xb88] sm:$0xff]
    %v888 = vld [vmem:[#allocation10 + $0xb90] sm:$0xff]
    %v889 = vld [vmem:[#allocation10 + $0xb98] sm:$0xff]
    %v890 = vld [vmem:[#allocation10 + $0xba0] sm:$0xff]
    %v891 = vld [vmem:[#allocation10 + $0xba8] sm:$0xff]
    %v892 = vld [vmem:[#allocation10 + $0xbb0] sm:$0xff]
    %v893 = vld [vmem:[#allocation10 + $0xbb8] sm:$0xff]
    %v894 = vld [vmem:[#allocation10 + $0xbc0] sm:$0xff]
    %v895 = vld [vmem:[#allocation10 + $0xbc8] sm:$0xff]
    %v896 = vld [vmem:[#allocation10 + $0xbd0] sm:$0xff]
    %v897 = vld [vmem:[#allocation10 + $0xbd8] sm:$0xff]
    %v898 = vld [vmem:[#allocation10 + $0xbe0] sm:$0xff]
    %v899 = vld [vmem:[#allocation10 + $0xbe8] sm:$0xff]
    %v900 = vld [vmem:[#allocation10 + $0xbf0] sm:$0xff]
    %v901 = vld [vmem:[#allocation10 + $0xbf8] sm:$0xff]
    %v902 = vld [vmem:[#allocation12] sm:$0xff]
    %v903 = vld [vmem:[#allocation12 + $0x8] sm:$0xf]
    %v904 = vld [vmem:[#allocation13] sm:$0xf]
    %v906 = vlaneseq
    %v907 = vshrl.u32 %v906, 7
    %v908 = vsub.s32 0, %v907
    %v909 = vrot.slane %v904, %v908
    %v910 = vlaneseq
    %v911 = vshrl.u32 %v910, 7
    %v912 = vsub.s32 1, %v911
    %v913 = vrot.slane %v904, %v912
    %v914 = vlaneseq
    %v915 = vshrl.u32 %v914, 7
    %v916 = vsub.s32 2, %v915
    %v917 = vrot.slane %v904, %v916
    %v918 = vlaneseq
    %v919 = vshrl.u32 %v918, 7
    %v920 = vsub.s32 3, %v919
    %v921 = vrot.slane %v904, %v920
    %v926 = vld [vmem:[#allocation7] sm:$0xff]
    %v927 = vld [vmem:[#allocation7 + $0x8] sm:$0xff]
    %v928 = vld [vmem:[#allocation7 + $0x10] sm:$0xff]
    %v929 = vld [vmem:[#allocation7 + $0x18] sm:$0xff]
    %v930 = vld [vmem:[#allocation7 + $0x20] sm:$0xff]
    %v931 = vld [vmem:[#allocation7 + $0x28] sm:$0xff]
    %v932 = vld [vmem:[#allocation7 + $0x30] sm:$0xff]
    %v933 = vld [vmem:[#allocation7 + $0x38] sm:$0xff]
    %v934 = vpack.c.bf16 %v930, %v926
    %v935 = vpack.c.bf16 %v931, %v927
    %v936 = vpack.c.bf16 %v932, %v928
    %v937 = vpack.c.bf16 %v933, %v929
    %v942 = vunpack.c.l.b16 %v934
    %v943 = vunpack.c.l.b16 %v935
    %v944 = vunpack.c.l.b16 %v936
    %v945 = vunpack.c.l.b16 %v937
    %v946 = vunpack.c.h.b16 %v934
    %v947 = vunpack.c.h.b16 %v935
    %v948 = vunpack.c.h.b16 %v936
    %v949 = vunpack.c.h.b16 %v937
    %v950 = vpack.c.b16 %v943, %v942
    %v951 = vpack.c.b16 %v945, %v944
    %v952 = vpack.c.b16 %v947, %v946
    %v953 = vpack.c.b16 %v949, %v948
    %958 = vst [vmem:[#allocation2] sm:$0xff] %v950
    %959 = vst [vmem:[#allocation2 + $0x8] sm:$0xff] %v951
    %960 = vst [vmem:[#allocation2 + $0x10] sm:$0xff] %v952
    %961 = vst [vmem:[#allocation2 + $0x18] sm:$0xff] %v953
    %v964 = vlaneseq
    %v965 = vshrl.u32 %v964, 7
    %v966 = vsub.s32 0, %v965
    %v967 = vrot.slane %v902, %v966
    %v968 = vlaneseq
    %v969 = vshrl.u32 %v968, 7
    %v970 = vsub.s32 1, %v969
    %v971 = vrot.slane %v902, %v970
    %v972 = vlaneseq
    %v973 = vshrl.u32 %v972, 7
    %v974 = vsub.s32 2, %v973
    %v975 = vrot.slane %v902, %v974
    %v976 = vlaneseq
    %v977 = vshrl.u32 %v976, 7
    %v978 = vsub.s32 3, %v977
    %v979 = vrot.slane %v902, %v978
    %v980 = vlaneseq
    %v981 = vshrl.u32 %v980, 7
    %v982 = vsub.s32 4, %v981
    %v983 = vrot.slane %v902, %v982
    %v984 = vlaneseq
    %v985 = vshrl.u32 %v984, 7
    %v986 = vsub.s32 5, %v985
    %v987 = vrot.slane %v902, %v986
    %v988 = vlaneseq
    %v989 = vshrl.u32 %v988, 7
    %v990 = vsub.s32 6, %v989
    %v991 = vrot.slane %v902, %v990
    %v992 = vlaneseq
    %v993 = vshrl.u32 %v992, 7
    %v994 = vsub.s32 7, %v993
    %v995 = vrot.slane %v902, %v994
    %v996 = vlaneseq
    %v997 = vshrl.u32 %v996, 7
    %v998 = vsub.s32 0, %v997
    %v999 = vrot.slane %v903, %v998
    %v1000 = vlaneseq
    %v1001 = vshrl.u32 %v1000, 7
    %v1002 = vsub.s32 1, %v1001
    %v1003 = vrot.slane %v903, %v1002
    %v1004 = vlaneseq
    %v1005 = vshrl.u32 %v1004, 7
    %v1006 = vsub.s32 2, %v1005
    %v1007 = vrot.slane %v903, %v1006
    %v1008 = vlaneseq
    %v1009 = vshrl.u32 %v1008, 7
    %v1010 = vsub.s32 3, %v1009
    %v1011 = vrot.slane %v903, %v1010
    %v1408 = vunpack.c.l.b16 %v134
    %v1409 = vunpack.c.h.b16 %v134
    %v1410 = vunpack.c.l.b16 %v135
    %v1411 = vunpack.c.h.b16 %v135
    %v1412 = vunpack.c.l.b16 %v136
    %v1413 = vunpack.c.h.b16 %v136
    %v1414 = vunpack.c.l.b16 %v137
    %v1415 = vunpack.c.h.b16 %v137
    %v1416 = vunpack.c.l.b16 %v138
    %v1417 = vunpack.c.h.b16 %v138
    %v1418 = vunpack.c.l.b16 %v139
    %v1419 = vunpack.c.h.b16 %v139
    %v1420 = vunpack.c.l.b16 %v140
    %v1421 = vunpack.c.h.b16 %v140
    %v1422 = vunpack.c.l.b16 %v141
    %v1423 = vunpack.c.h.b16 %v141
    %v1424 = vunpack.c.l.b16 %v142
    %v1425 = vunpack.c.h.b16 %v142
    %v1426 = vunpack.c.l.b16 %v143
    %v1427 = vunpack.c.h.b16 %v143
    %v1428 = vunpack.c.l.b16 %v144
    %v1429 = vunpack.c.h.b16 %v144
    %v1430 = vunpack.c.l.b16 %v145
    %v1431 = vunpack.c.h.b16 %v145
    %v1432 = vunpack.c.l.b16 %v146
    %v1433 = vunpack.c.h.b16 %v146
    %v1434 = vunpack.c.l.b16 %v147
    %v1435 = vunpack.c.h.b16 %v147
    %v1436 = vunpack.c.l.b16 %v148
    %v1437 = vunpack.c.h.b16 %v148
    %v1438 = vunpack.c.l.b16 %v149
    %v1439 = vunpack.c.h.b16 %v149
    %v1440 = vunpack.c.l.b16 %v150
    %v1441 = vunpack.c.h.b16 %v150
    %v1442 = vunpack.c.l.b16 %v151
    %v1443 = vunpack.c.h.b16 %v151
    %v1444 = vunpack.c.l.b16 %v152
    %v1445 = vunpack.c.h.b16 %v152
    %v1446 = vunpack.c.l.b16 %v153
    %v1447 = vunpack.c.h.b16 %v153
    %v1448 = vunpack.c.l.b16 %v154
    %v1449 = vunpack.c.h.b16 %v154
    %v1450 = vunpack.c.l.b16 %v155
    %v1451 = vunpack.c.h.b16 %v155
    %v1452 = vunpack.c.l.b16 %v156
    %v1453 = vunpack.c.h.b16 %v156
    %v1454 = vunpack.c.l.b16 %v157
    %v1455 = vunpack.c.h.b16 %v157
    %v1456 = vunpack.c.l.b16 %v158
    %v1457 = vunpack.c.h.b16 %v158
    %v1458 = vunpack.c.l.b16 %v159
    %v1459 = vunpack.c.h.b16 %v159
    %v1460 = vunpack.c.l.b16 %v160
    %v1461 = vunpack.c.h.b16 %v160
    %v1462 = vunpack.c.l.b16 %v161
    %v1463 = vunpack.c.h.b16 %v161
    %v1464 = vunpack.c.l.b16 %v162
    %v1465 = vunpack.c.h.b16 %v162
    %v1466 = vunpack.c.l.b16 %v163
    %v1467 = vunpack.c.h.b16 %v163
    %v1468 = vunpack.c.l.b16 %v164
    %v1469 = vunpack.c.h.b16 %v164
    %v1470 = vunpack.c.l.b16 %v165
    %v1471 = vunpack.c.h.b16 %v165
    %v1472 = vunpack.c.l.b16 %v166
    %v1473 = vunpack.c.h.b16 %v166
    %v1474 = vunpack.c.l.b16 %v167
    %v1475 = vunpack.c.h.b16 %v167
    %v1476 = vunpack.c.l.b16 %v168
    %v1477 = vunpack.c.h.b16 %v168
    %v1478 = vunpack.c.l.b16 %v169
    %v1479 = vunpack.c.h.b16 %v169
    %v1480 = vunpack.c.l.b16 %v170
    %v1481 = vunpack.c.h.b16 %v170
    %v1482 = vunpack.c.l.b16 %v171
    %v1483 = vunpack.c.h.b16 %v171
    %v1484 = vunpack.c.l.b16 %v172
    %v1485 = vunpack.c.h.b16 %v172
    %v1486 = vunpack.c.l.b16 %v173
    %v1487 = vunpack.c.h.b16 %v173
    %v1488 = vunpack.c.l.b16 %v174
    %v1489 = vunpack.c.h.b16 %v174
    %v1490 = vunpack.c.l.b16 %v175
    %v1491 = vunpack.c.h.b16 %v175
    %v1492 = vunpack.c.l.b16 %v176
    %v1493 = vunpack.c.h.b16 %v176
    %v1494 = vunpack.c.l.b16 %v177
    %v1495 = vunpack.c.h.b16 %v177
    %v1496 = vunpack.c.l.b16 %v178
    %v1497 = vunpack.c.h.b16 %v178
    %v1498 = vunpack.c.l.b16 %v179
    %v1499 = vunpack.c.h.b16 %v179
    %v1500 = vunpack.c.l.b16 %v180
    %v1501 = vunpack.c.h.b16 %v180
    %v1502 = vunpack.c.l.b16 %v181
    %v1503 = vunpack.c.h.b16 %v181
    %v1504 = vunpack.c.l.b16 %v182
    %v1505 = vunpack.c.h.b16 %v182
    %v1506 = vunpack.c.l.b16 %v183
    %v1507 = vunpack.c.h.b16 %v183
    %v1508 = vunpack.c.l.b16 %v184
    %v1509 = vunpack.c.h.b16 %v184
    %v1510 = vunpack.c.l.b16 %v185
    %v1511 = vunpack.c.h.b16 %v185
    %v1512 = vunpack.c.l.b16 %v186
    %v1513 = vunpack.c.h.b16 %v186
    %v1514 = vunpack.c.l.b16 %v187
    %v1515 = vunpack.c.h.b16 %v187
    %v1516 = vunpack.c.l.b16 %v188
    %v1517 = vunpack.c.h.b16 %v188
    %v1518 = vunpack.c.l.b16 %v189
    %v1519 = vunpack.c.h.b16 %v189
    %v1520 = vunpack.c.l.b16 %v190
    %v1521 = vunpack.c.h.b16 %v190
    %v1522 = vunpack.c.l.b16 %v191
    %v1523 = vunpack.c.h.b16 %v191
    %v1524 = vunpack.c.l.b16 %v192
    %v1525 = vunpack.c.h.b16 %v192
    %v1526 = vunpack.c.l.b16 %v193
    %v1527 = vunpack.c.h.b16 %v193
    %v1528 = vunpack.c.l.b16 %v194
    %v1529 = vunpack.c.h.b16 %v194
    %v1530 = vunpack.c.l.b16 %v195
    %v1531 = vunpack.c.h.b16 %v195
    %v1532 = vunpack.c.l.b16 %v196
    %v1533 = vunpack.c.h.b16 %v196
    %v1534 = vunpack.c.l.b16 %v197
    %v1535 = vunpack.c.h.b16 %v197
    %v1536 = vunpack.c.l.b16 %v198
    %v1537 = vunpack.c.h.b16 %v198
    %v1538 = vunpack.c.l.b16 %v199
    %v1539 = vunpack.c.h.b16 %v199
    %v1540 = vunpack.c.l.b16 %v200
    %v1541 = vunpack.c.h.b16 %v200
    %v1542 = vunpack.c.l.b16 %v201
    %v1543 = vunpack.c.h.b16 %v201
    %v1544 = vunpack.c.l.b16 %v202
    %v1545 = vunpack.c.h.b16 %v202
    %v1546 = vunpack.c.l.b16 %v203
    %v1547 = vunpack.c.h.b16 %v203
    %v1548 = vunpack.c.l.b16 %v204
    %v1549 = vunpack.c.h.b16 %v204
    %v1550 = vunpack.c.l.b16 %v205
    %v1551 = vunpack.c.h.b16 %v205
    %v1552 = vunpack.c.l.b16 %v206
    %v1553 = vunpack.c.h.b16 %v206
    %v1554 = vunpack.c.l.b16 %v207
    %v1555 = vunpack.c.h.b16 %v207
    %v1556 = vunpack.c.l.b16 %v208
    %v1557 = vunpack.c.h.b16 %v208
    %v1558 = vunpack.c.l.b16 %v209
    %v1559 = vunpack.c.h.b16 %v209
    %v1560 = vunpack.c.l.b16 %v210
    %v1561 = vunpack.c.h.b16 %v210
    %v1562 = vunpack.c.l.b16 %v211
    %v1563 = vunpack.c.h.b16 %v211
    %v1564 = vunpack.c.l.b16 %v212
    %v1565 = vunpack.c.h.b16 %v212
    %v1566 = vunpack.c.l.b16 %v213
    %v1567 = vunpack.c.h.b16 %v213
    %v1568 = vunpack.c.l.b16 %v214
    %v1569 = vunpack.c.h.b16 %v214
    %v1570 = vunpack.c.l.b16 %v215
    %v1571 = vunpack.c.h.b16 %v215
    %v1572 = vunpack.c.l.b16 %v216
    %v1573 = vunpack.c.h.b16 %v216
    %v1574 = vunpack.c.l.b16 %v217
    %v1575 = vunpack.c.h.b16 %v217
    %v1576 = vunpack.c.l.b16 %v218
    %v1577 = vunpack.c.h.b16 %v218
    %v1578 = vunpack.c.l.b16 %v219
    %v1579 = vunpack.c.h.b16 %v219
    %v1580 = vunpack.c.l.b16 %v220
    %v1581 = vunpack.c.h.b16 %v220
    %v1582 = vunpack.c.l.b16 %v221
    %v1583 = vunpack.c.h.b16 %v221
    %v1584 = vunpack.c.l.b16 %v222
    %v1585 = vunpack.c.h.b16 %v222
    %v1586 = vunpack.c.l.b16 %v223
    %v1587 = vunpack.c.h.b16 %v223
    %v1588 = vunpack.c.l.b16 %v224
    %v1589 = vunpack.c.h.b16 %v224
    %v1590 = vunpack.c.l.b16 %v225
    %v1591 = vunpack.c.h.b16 %v225
    %v1592 = vunpack.c.l.b16 %v226
    %v1593 = vunpack.c.h.b16 %v226
    %v1594 = vunpack.c.l.b16 %v227
    %v1595 = vunpack.c.h.b16 %v227
    %v1596 = vunpack.c.l.b16 %v228
    %v1597 = vunpack.c.h.b16 %v228
    %v1598 = vunpack.c.l.b16 %v229
    %v1599 = vunpack.c.h.b16 %v229
    %v1600 = vunpack.c.l.b16 %v230
    %v1601 = vunpack.c.h.b16 %v230
    %v1602 = vunpack.c.l.b16 %v231
    %v1603 = vunpack.c.h.b16 %v231
    %v1604 = vunpack.c.l.b16 %v232
    %v1605 = vunpack.c.h.b16 %v232
    %v1606 = vunpack.c.l.b16 %v233
    %v1607 = vunpack.c.h.b16 %v233
    %v1608 = vunpack.c.l.b16 %v234
    %v1609 = vunpack.c.h.b16 %v234
    %v1610 = vunpack.c.l.b16 %v235
    %v1611 = vunpack.c.h.b16 %v235
    %v1612 = vunpack.c.l.b16 %v236
    %v1613 = vunpack.c.h.b16 %v236
    %v1614 = vunpack.c.l.b16 %v237
    %v1615 = vunpack.c.h.b16 %v237
    %v1616 = vunpack.c.l.b16 %v238
    %v1617 = vunpack.c.h.b16 %v238
    %v1618 = vunpack.c.l.b16 %v239
    %v1619 = vunpack.c.h.b16 %v239
    %v1620 = vunpack.c.l.b16 %v240
    %v1621 = vunpack.c.h.b16 %v240
    %v1622 = vunpack.c.l.b16 %v241
    %v1623 = vunpack.c.h.b16 %v241
    %v1624 = vunpack.c.l.b16 %v242
    %v1625 = vunpack.c.h.b16 %v242
    %v1626 = vunpack.c.l.b16 %v243
    %v1627 = vunpack.c.h.b16 %v243
    %v1628 = vunpack.c.l.b16 %v244
    %v1629 = vunpack.c.h.b16 %v244
    %v1630 = vunpack.c.l.b16 %v245
    %v1631 = vunpack.c.h.b16 %v245
    %v1632 = vunpack.c.l.b16 %v246
    %v1633 = vunpack.c.h.b16 %v246
    %v1634 = vunpack.c.l.b16 %v247
    %v1635 = vunpack.c.h.b16 %v247
    %v1636 = vunpack.c.l.b16 %v248
    %v1637 = vunpack.c.h.b16 %v248
    %v1638 = vunpack.c.l.b16 %v249
    %v1639 = vunpack.c.h.b16 %v249
    %v1640 = vunpack.c.l.b16 %v250
    %v1641 = vunpack.c.h.b16 %v250
    %v1642 = vunpack.c.l.b16 %v251
    %v1643 = vunpack.c.h.b16 %v251
    %v1644 = vunpack.c.l.b16 %v252
    %v1645 = vunpack.c.h.b16 %v252
    %v1646 = vunpack.c.l.b16 %v253
    %v1647 = vunpack.c.h.b16 %v253
    %v1648 = vunpack.c.l.b16 %v254
    %v1649 = vunpack.c.h.b16 %v254
    %v1650 = vunpack.c.l.b16 %v255
    %v1651 = vunpack.c.h.b16 %v255
    %v1652 = vunpack.c.l.b16 %v256
    %v1653 = vunpack.c.h.b16 %v256
    %v1654 = vunpack.c.l.b16 %v257
    %v1655 = vunpack.c.h.b16 %v257
    %v1656 = vunpack.c.l.b16 %v258
    %v1657 = vunpack.c.h.b16 %v258
    %v1658 = vunpack.c.l.b16 %v259
    %v1659 = vunpack.c.h.b16 %v259
    %v1660 = vunpack.c.l.b16 %v260
    %v1661 = vunpack.c.h.b16 %v260
    %v1662 = vunpack.c.l.b16 %v261
    %v1663 = vunpack.c.h.b16 %v261
    %v1664 = vunpack.c.l.b16 %v262
    %v1665 = vunpack.c.h.b16 %v262
    %v1666 = vunpack.c.l.b16 %v263
    %v1667 = vunpack.c.h.b16 %v263
    %v1668 = vunpack.c.l.b16 %v264
    %v1669 = vunpack.c.h.b16 %v264
    %v1670 = vunpack.c.l.b16 %v265
    %v1671 = vunpack.c.h.b16 %v265
    %v1672 = vunpack.c.l.b16 %v266
    %v1673 = vunpack.c.h.b16 %v266
    %v1674 = vunpack.c.l.b16 %v267
    %v1675 = vunpack.c.h.b16 %v267
    %v1676 = vunpack.c.l.b16 %v268
    %v1677 = vunpack.c.h.b16 %v268
    %v1678 = vunpack.c.l.b16 %v269
    %v1679 = vunpack.c.h.b16 %v269
    %v1680 = vunpack.c.l.b16 %v270
    %v1681 = vunpack.c.h.b16 %v270
    %v1682 = vunpack.c.l.b16 %v271
    %v1683 = vunpack.c.h.b16 %v271
    %v1684 = vunpack.c.l.b16 %v272
    %v1685 = vunpack.c.h.b16 %v272
    %v1686 = vunpack.c.l.b16 %v273
    %v1687 = vunpack.c.h.b16 %v273
    %v1688 = vunpack.c.l.b16 %v274
    %v1689 = vunpack.c.h.b16 %v274
    %v1690 = vunpack.c.l.b16 %v275
    %v1691 = vunpack.c.h.b16 %v275
    %v1692 = vunpack.c.l.b16 %v276
    %v1693 = vunpack.c.h.b16 %v276
    %v1694 = vunpack.c.l.b16 %v277
    %v1695 = vunpack.c.h.b16 %v277
    %v1696 = vunpack.c.l.b16 %v278
    %v1697 = vunpack.c.h.b16 %v278
    %v1698 = vunpack.c.l.b16 %v279
    %v1699 = vunpack.c.h.b16 %v279
    %v1700 = vunpack.c.l.b16 %v280
    %v1701 = vunpack.c.h.b16 %v280
    %v1702 = vunpack.c.l.b16 %v281
    %v1703 = vunpack.c.h.b16 %v281
    %v1704 = vunpack.c.l.b16 %v282
    %v1705 = vunpack.c.h.b16 %v282
    %v1706 = vunpack.c.l.b16 %v283
    %v1707 = vunpack.c.h.b16 %v283
    %v1708 = vunpack.c.l.b16 %v284
    %v1709 = vunpack.c.h.b16 %v284
    %v1710 = vunpack.c.l.b16 %v285
    %v1711 = vunpack.c.h.b16 %v285
    %v1712 = vunpack.c.l.b16 %v286
    %v1713 = vunpack.c.h.b16 %v286
    %v1714 = vunpack.c.l.b16 %v287
    %v1715 = vunpack.c.h.b16 %v287
    %v1716 = vunpack.c.l.b16 %v288
    %v1717 = vunpack.c.h.b16 %v288
    %v1718 = vunpack.c.l.b16 %v289
    %v1719 = vunpack.c.h.b16 %v289
    %v1720 = vunpack.c.l.b16 %v290
    %v1721 = vunpack.c.h.b16 %v290
    %v1722 = vunpack.c.l.b16 %v291
    %v1723 = vunpack.c.h.b16 %v291
    %v1724 = vunpack.c.l.b16 %v292
    %v1725 = vunpack.c.h.b16 %v292
    %v1726 = vunpack.c.l.b16 %v293
    %v1727 = vunpack.c.h.b16 %v293
    %v1728 = vunpack.c.l.b16 %v294
    %v1729 = vunpack.c.h.b16 %v294
    %v1730 = vunpack.c.l.b16 %v295
    %v1731 = vunpack.c.h.b16 %v295
    %v1732 = vunpack.c.l.b16 %v296
    %v1733 = vunpack.c.h.b16 %v296
    %v1734 = vunpack.c.l.b16 %v297
    %v1735 = vunpack.c.h.b16 %v297
    %v1736 = vunpack.c.l.b16 %v298
    %v1737 = vunpack.c.h.b16 %v298
    %v1738 = vunpack.c.l.b16 %v299
    %v1739 = vunpack.c.h.b16 %v299
    %v1740 = vunpack.c.l.b16 %v300
    %v1741 = vunpack.c.h.b16 %v300
    %v1742 = vunpack.c.l.b16 %v301
    %v1743 = vunpack.c.h.b16 %v301
    %v1744 = vunpack.c.l.b16 %v302
    %v1745 = vunpack.c.h.b16 %v302
    %v1746 = vunpack.c.l.b16 %v303
    %v1747 = vunpack.c.h.b16 %v303
    %v1748 = vunpack.c.l.b16 %v304
    %v1749 = vunpack.c.h.b16 %v304
    %v1750 = vunpack.c.l.b16 %v305
    %v1751 = vunpack.c.h.b16 %v305
    %v1752 = vunpack.c.l.b16 %v306
    %v1753 = vunpack.c.h.b16 %v306
    %v1754 = vunpack.c.l.b16 %v307
    %v1755 = vunpack.c.h.b16 %v307
    %v1756 = vunpack.c.l.b16 %v308
    %v1757 = vunpack.c.h.b16 %v308
    %v1758 = vunpack.c.l.b16 %v309
    %v1759 = vunpack.c.h.b16 %v309
    %v1760 = vunpack.c.l.b16 %v310
    %v1761 = vunpack.c.h.b16 %v310
    %v1762 = vunpack.c.l.b16 %v311
    %v1763 = vunpack.c.h.b16 %v311
    %v1764 = vunpack.c.l.b16 %v312
    %v1765 = vunpack.c.h.b16 %v312
    %v1766 = vunpack.c.l.b16 %v313
    %v1767 = vunpack.c.h.b16 %v313
    %v1768 = vunpack.c.l.b16 %v314
    %v1769 = vunpack.c.h.b16 %v314
    %v1770 = vunpack.c.l.b16 %v315
    %v1771 = vunpack.c.h.b16 %v315
    %v1772 = vunpack.c.l.b16 %v316
    %v1773 = vunpack.c.h.b16 %v316
    %v1774 = vunpack.c.l.b16 %v317
    %v1775 = vunpack.c.h.b16 %v317
    %v1776 = vunpack.c.l.b16 %v318
    %v1777 = vunpack.c.h.b16 %v318
    %v1778 = vunpack.c.l.b16 %v319
    %v1779 = vunpack.c.h.b16 %v319
    %v1780 = vunpack.c.l.b16 %v320
    %v1781 = vunpack.c.h.b16 %v320
    %v1782 = vunpack.c.l.b16 %v321
    %v1783 = vunpack.c.h.b16 %v321
    %v1784 = vunpack.c.l.b16 %v322
    %v1785 = vunpack.c.h.b16 %v322
    %v1786 = vunpack.c.l.b16 %v323
    %v1787 = vunpack.c.h.b16 %v323
    %v1788 = vunpack.c.l.b16 %v324
    %v1789 = vunpack.c.h.b16 %v324
    %v1790 = vunpack.c.l.b16 %v325
    %v1791 = vunpack.c.h.b16 %v325
    %v1792 = vunpack.c.l.b16 %v326
    %v1793 = vunpack.c.h.b16 %v326
    %v1794 = vunpack.c.l.b16 %v327
    %v1795 = vunpack.c.h.b16 %v327
    %v1796 = vunpack.c.l.b16 %v328
    %v1797 = vunpack.c.h.b16 %v328
    %v1798 = vunpack.c.l.b16 %v329
    %v1799 = vunpack.c.h.b16 %v329
    %v1800 = vunpack.c.l.b16 %v330
    %v1801 = vunpack.c.h.b16 %v330
    %v1802 = vunpack.c.l.b16 %v331
    %v1803 = vunpack.c.h.b16 %v331
    %v1804 = vunpack.c.l.b16 %v332
    %v1805 = vunpack.c.h.b16 %v332
    %v1806 = vunpack.c.l.b16 %v333
    %v1807 = vunpack.c.h.b16 %v333
    %v1808 = vunpack.c.l.b16 %v334
    %v1809 = vunpack.c.h.b16 %v334
    %v1810 = vunpack.c.l.b16 %v335
    %v1811 = vunpack.c.h.b16 %v335
    %v1812 = vunpack.c.l.b16 %v336
    %v1813 = vunpack.c.h.b16 %v336
    %v1814 = vunpack.c.l.b16 %v337
    %v1815 = vunpack.c.h.b16 %v337
    %v1816 = vunpack.c.l.b16 %v338
    %v1817 = vunpack.c.h.b16 %v338
    %v1818 = vunpack.c.l.b16 %v339
    %v1819 = vunpack.c.h.b16 %v339
    %v1820 = vunpack.c.l.b16 %v340
    %v1821 = vunpack.c.h.b16 %v340
    %v1822 = vunpack.c.l.b16 %v341
    %v1823 = vunpack.c.h.b16 %v341
    %v1824 = vunpack.c.l.b16 %v342
    %v1825 = vunpack.c.h.b16 %v342
    %v1826 = vunpack.c.l.b16 %v343
    %v1827 = vunpack.c.h.b16 %v343
    %v1828 = vunpack.c.l.b16 %v344
    %v1829 = vunpack.c.h.b16 %v344
    %v1830 = vunpack.c.l.b16 %v345
    %v1831 = vunpack.c.h.b16 %v345
    %v1832 = vunpack.c.l.b16 %v346
    %v1833 = vunpack.c.h.b16 %v346
    %v1834 = vunpack.c.l.b16 %v347
    %v1835 = vunpack.c.h.b16 %v347
    %v1836 = vunpack.c.l.b16 %v348
    %v1837 = vunpack.c.h.b16 %v348
    %v1838 = vunpack.c.l.b16 %v349
    %v1839 = vunpack.c.h.b16 %v349
    %v1840 = vunpack.c.l.b16 %v350
    %v1841 = vunpack.c.h.b16 %v350
    %v1842 = vunpack.c.l.b16 %v351
    %v1843 = vunpack.c.h.b16 %v351
    %v1844 = vunpack.c.l.b16 %v352
    %v1845 = vunpack.c.h.b16 %v352
    %v1846 = vunpack.c.l.b16 %v353
    %v1847 = vunpack.c.h.b16 %v353
    %v1848 = vunpack.c.l.b16 %v354
    %v1849 = vunpack.c.h.b16 %v354
    %v1850 = vunpack.c.l.b16 %v355
    %v1851 = vunpack.c.h.b16 %v355
    %v1852 = vunpack.c.l.b16 %v356
    %v1853 = vunpack.c.h.b16 %v356
    %v1854 = vunpack.c.l.b16 %v357
    %v1855 = vunpack.c.h.b16 %v357
    %v1856 = vunpack.c.l.b16 %v358
    %v1857 = vunpack.c.h.b16 %v358
    %v1858 = vunpack.c.l.b16 %v359
    %v1859 = vunpack.c.h.b16 %v359
    %v1860 = vunpack.c.l.b16 %v360
    %v1861 = vunpack.c.h.b16 %v360
    %v1862 = vunpack.c.l.b16 %v361
    %v1863 = vunpack.c.h.b16 %v361
    %v1864 = vunpack.c.l.b16 %v362
    %v1865 = vunpack.c.h.b16 %v362
    %v1866 = vunpack.c.l.b16 %v363
    %v1867 = vunpack.c.h.b16 %v363
    %v1868 = vunpack.c.l.b16 %v364
    %v1869 = vunpack.c.h.b16 %v364
    %v1870 = vunpack.c.l.b16 %v365
    %v1871 = vunpack.c.h.b16 %v365
    %v1872 = vunpack.c.l.b16 %v366
    %v1873 = vunpack.c.h.b16 %v366
    %v1874 = vunpack.c.l.b16 %v367
    %v1875 = vunpack.c.h.b16 %v367
    %v1876 = vunpack.c.l.b16 %v368
    %v1877 = vunpack.c.h.b16 %v368
    %v1878 = vunpack.c.l.b16 %v369
    %v1879 = vunpack.c.h.b16 %v369
    %v1880 = vunpack.c.l.b16 %v370
    %v1881 = vunpack.c.h.b16 %v370
    %v1882 = vunpack.c.l.b16 %v371
    %v1883 = vunpack.c.h.b16 %v371
    %v1884 = vunpack.c.l.b16 %v372
    %v1885 = vunpack.c.h.b16 %v372
    %v1886 = vunpack.c.l.b16 %v373
    %v1887 = vunpack.c.h.b16 %v373
    %v1888 = vunpack.c.l.b16 %v374
    %v1889 = vunpack.c.h.b16 %v374
    %v1890 = vunpack.c.l.b16 %v375
    %v1891 = vunpack.c.h.b16 %v375
    %v1892 = vunpack.c.l.b16 %v376
    %v1893 = vunpack.c.h.b16 %v376
    %v1894 = vunpack.c.l.b16 %v377
    %v1895 = vunpack.c.h.b16 %v377
    %v1896 = vunpack.c.l.b16 %v378
    %v1897 = vunpack.c.h.b16 %v378
    %v1898 = vunpack.c.l.b16 %v379
    %v1899 = vunpack.c.h.b16 %v379
    %v1900 = vunpack.c.l.b16 %v380
    %v1901 = vunpack.c.h.b16 %v380
    %v1902 = vunpack.c.l.b16 %v381
    %v1903 = vunpack.c.h.b16 %v381
    %v1904 = vunpack.c.l.b16 %v382
    %v1905 = vunpack.c.h.b16 %v382
    %v1906 = vunpack.c.l.b16 %v383
    %v1907 = vunpack.c.h.b16 %v383
    %v1908 = vunpack.c.l.b16 %v384
    %v1909 = vunpack.c.h.b16 %v384
    %v1910 = vunpack.c.l.b16 %v385
    %v1911 = vunpack.c.h.b16 %v385
    %v1912 = vunpack.c.l.b16 %v386
    %v1913 = vunpack.c.h.b16 %v386
    %v1914 = vunpack.c.l.b16 %v387
    %v1915 = vunpack.c.h.b16 %v387
    %v1916 = vunpack.c.l.b16 %v388
    %v1917 = vunpack.c.h.b16 %v388
    %v1918 = vunpack.c.l.b16 %v389
    %v1919 = vunpack.c.h.b16 %v389
    %v1920 = vunpack.c.l.b16 %v390
    %v1921 = vunpack.c.h.b16 %v390
    %v1922 = vunpack.c.l.b16 %v391
    %v1923 = vunpack.c.h.b16 %v391
    %v1924 = vunpack.c.l.b16 %v392
    %v1925 = vunpack.c.h.b16 %v392
    %v1926 = vunpack.c.l.b16 %v393
    %v1927 = vunpack.c.h.b16 %v393
    %v1928 = vunpack.c.l.b16 %v394
    %v1929 = vunpack.c.h.b16 %v394
    %v1930 = vunpack.c.l.b16 %v395
    %v1931 = vunpack.c.h.b16 %v395
    %v1932 = vunpack.c.l.b16 %v396
    %v1933 = vunpack.c.h.b16 %v396
    %v1934 = vunpack.c.l.b16 %v397
    %v1935 = vunpack.c.h.b16 %v397
    %v1936 = vunpack.c.l.b16 %v398
    %v1937 = vunpack.c.h.b16 %v398
    %v1938 = vunpack.c.l.b16 %v399
    %v1939 = vunpack.c.h.b16 %v399
    %v1940 = vunpack.c.l.b16 %v400
    %v1941 = vunpack.c.h.b16 %v400
    %v1942 = vunpack.c.l.b16 %v401
    %v1943 = vunpack.c.h.b16 %v401
    %v1944 = vunpack.c.l.b16 %v402
    %v1945 = vunpack.c.h.b16 %v402
    %v1946 = vunpack.c.l.b16 %v403
    %v1947 = vunpack.c.h.b16 %v403
    %v1948 = vunpack.c.l.b16 %v404
    %v1949 = vunpack.c.h.b16 %v404
    %v1950 = vunpack.c.l.b16 %v405
    %v1951 = vunpack.c.h.b16 %v405
    %v1952 = vunpack.c.l.b16 %v406
    %v1953 = vunpack.c.h.b16 %v406
    %v1954 = vunpack.c.l.b16 %v407
    %v1955 = vunpack.c.h.b16 %v407
    %v1956 = vunpack.c.l.b16 %v408
    %v1957 = vunpack.c.h.b16 %v408
    %v1958 = vunpack.c.l.b16 %v409
    %v1959 = vunpack.c.h.b16 %v409
    %v1960 = vunpack.c.l.b16 %v410
    %v1961 = vunpack.c.h.b16 %v410
    %v1962 = vunpack.c.l.b16 %v411
    %v1963 = vunpack.c.h.b16 %v411
    %v1964 = vunpack.c.l.b16 %v412
    %v1965 = vunpack.c.h.b16 %v412
    %v1966 = vunpack.c.l.b16 %v413
    %v1967 = vunpack.c.h.b16 %v413
    %v1968 = vunpack.c.l.b16 %v414
    %v1969 = vunpack.c.h.b16 %v414
    %v1970 = vunpack.c.l.b16 %v415
    %v1971 = vunpack.c.h.b16 %v415
    %v1972 = vunpack.c.l.b16 %v416
    %v1973 = vunpack.c.h.b16 %v416
    %v1974 = vunpack.c.l.b16 %v417
    %v1975 = vunpack.c.h.b16 %v417
    %v1976 = vunpack.c.l.b16 %v418
    %v1977 = vunpack.c.h.b16 %v418
    %v1978 = vunpack.c.l.b16 %v419
    %v1979 = vunpack.c.h.b16 %v419
    %v1980 = vunpack.c.l.b16 %v420
    %v1981 = vunpack.c.h.b16 %v420
    %v1982 = vunpack.c.l.b16 %v421
    %v1983 = vunpack.c.h.b16 %v421
    %v1984 = vunpack.c.l.b16 %v422
    %v1985 = vunpack.c.h.b16 %v422
    %v1986 = vunpack.c.l.b16 %v423
    %v1987 = vunpack.c.h.b16 %v423
    %v1988 = vunpack.c.l.b16 %v424
    %v1989 = vunpack.c.h.b16 %v424
    %v1990 = vunpack.c.l.b16 %v425
    %v1991 = vunpack.c.h.b16 %v425
    %v1992 = vunpack.c.l.b16 %v426
    %v1993 = vunpack.c.h.b16 %v426
    %v1994 = vunpack.c.l.b16 %v427
    %v1995 = vunpack.c.h.b16 %v427
    %v1996 = vunpack.c.l.b16 %v428
    %v1997 = vunpack.c.h.b16 %v428
    %v1998 = vunpack.c.l.b16 %v429
    %v1999 = vunpack.c.h.b16 %v429
    %v2000 = vunpack.c.l.b16 %v430
    %v2001 = vunpack.c.h.b16 %v430
    %v2002 = vunpack.c.l.b16 %v431
    %v2003 = vunpack.c.h.b16 %v431
    %v2004 = vunpack.c.l.b16 %v432
    %v2005 = vunpack.c.h.b16 %v432
    %v2006 = vunpack.c.l.b16 %v433
    %v2007 = vunpack.c.h.b16 %v433
    %v2008 = vunpack.c.l.b16 %v434
    %v2009 = vunpack.c.h.b16 %v434
    %v2010 = vunpack.c.l.b16 %v435
    %v2011 = vunpack.c.h.b16 %v435
    %v2012 = vunpack.c.l.b16 %v436
    %v2013 = vunpack.c.h.b16 %v436
    %v2014 = vunpack.c.l.b16 %v437
    %v2015 = vunpack.c.h.b16 %v437
    %v2016 = vunpack.c.l.b16 %v438
    %v2017 = vunpack.c.h.b16 %v438
    %v2018 = vunpack.c.l.b16 %v439
    %v2019 = vunpack.c.h.b16 %v439
    %v2020 = vunpack.c.l.b16 %v440
    %v2021 = vunpack.c.h.b16 %v440
    %v2022 = vunpack.c.l.b16 %v441
    %v2023 = vunpack.c.h.b16 %v441
    %v2024 = vunpack.c.l.b16 %v442
    %v2025 = vunpack.c.h.b16 %v442
    %v2026 = vunpack.c.l.b16 %v443
    %v2027 = vunpack.c.h.b16 %v443
    %v2028 = vunpack.c.l.b16 %v444
    %v2029 = vunpack.c.h.b16 %v444
    %v2030 = vunpack.c.l.b16 %v445
    %v2031 = vunpack.c.h.b16 %v445
    %v2032 = vunpack.c.l.b16 %v446
    %v2033 = vunpack.c.h.b16 %v446
    %v2034 = vunpack.c.l.b16 %v447
    %v2035 = vunpack.c.h.b16 %v447
    %v2036 = vunpack.c.l.b16 %v448
    %v2037 = vunpack.c.h.b16 %v448
    %v2038 = vunpack.c.l.b16 %v449
    %v2039 = vunpack.c.h.b16 %v449
    %v2040 = vunpack.c.l.b16 %v450
    %v2041 = vunpack.c.h.b16 %v450
    %v2042 = vunpack.c.l.b16 %v451
    %v2043 = vunpack.c.h.b16 %v451
    %v2044 = vunpack.c.l.b16 %v452
    %v2045 = vunpack.c.h.b16 %v452
    %v2046 = vunpack.c.l.b16 %v453
    %v2047 = vunpack.c.h.b16 %v453
    %v2048 = vunpack.c.l.b16 %v454
    %v2049 = vunpack.c.h.b16 %v454
    %v2050 = vunpack.c.l.b16 %v455
    %v2051 = vunpack.c.h.b16 %v455
    %v2052 = vunpack.c.l.b16 %v456
    %v2053 = vunpack.c.h.b16 %v456
    %v2054 = vunpack.c.l.b16 %v457
    %v2055 = vunpack.c.h.b16 %v457
    %v2056 = vunpack.c.l.b16 %v458
    %v2057 = vunpack.c.h.b16 %v458
    %v2058 = vunpack.c.l.b16 %v459
    %v2059 = vunpack.c.h.b16 %v459
    %v2060 = vunpack.c.l.b16 %v460
    %v2061 = vunpack.c.h.b16 %v460
    %v2062 = vunpack.c.l.b16 %v461
    %v2063 = vunpack.c.h.b16 %v461
    %v2064 = vunpack.c.l.b16 %v462
    %v2065 = vunpack.c.h.b16 %v462
    %v2066 = vunpack.c.l.b16 %v463
    %v2067 = vunpack.c.h.b16 %v463
    %v2068 = vunpack.c.l.b16 %v464
    %v2069 = vunpack.c.h.b16 %v464
    %v2070 = vunpack.c.l.b16 %v465
    %v2071 = vunpack.c.h.b16 %v465
    %v2072 = vunpack.c.l.b16 %v466
    %v2073 = vunpack.c.h.b16 %v466
    %v2074 = vunpack.c.l.b16 %v467
    %v2075 = vunpack.c.h.b16 %v467
    %v2076 = vunpack.c.l.b16 %v468
    %v2077 = vunpack.c.h.b16 %v468
    %v2078 = vunpack.c.l.b16 %v469
    %v2079 = vunpack.c.h.b16 %v469
    %v2080 = vunpack.c.l.b16 %v470
    %v2081 = vunpack.c.h.b16 %v470
    %v2082 = vunpack.c.l.b16 %v471
    %v2083 = vunpack.c.h.b16 %v471
    %v2084 = vunpack.c.l.b16 %v472
    %v2085 = vunpack.c.h.b16 %v472
    %v2086 = vunpack.c.l.b16 %v473
    %v2087 = vunpack.c.h.b16 %v473
    %v2088 = vunpack.c.l.b16 %v474
    %v2089 = vunpack.c.h.b16 %v474
    %v2090 = vunpack.c.l.b16 %v475
    %v2091 = vunpack.c.h.b16 %v475
    %v2092 = vunpack.c.l.b16 %v476
    %v2093 = vunpack.c.h.b16 %v476
    %v2094 = vunpack.c.l.b16 %v477
    %v2095 = vunpack.c.h.b16 %v477
    %v2096 = vunpack.c.l.b16 %v478
    %v2097 = vunpack.c.h.b16 %v478
    %v2098 = vunpack.c.l.b16 %v479
    %v2099 = vunpack.c.h.b16 %v479
    %v2100 = vunpack.c.l.b16 %v480
    %v2101 = vunpack.c.h.b16 %v480
    %v2102 = vunpack.c.l.b16 %v481
    %v2103 = vunpack.c.h.b16 %v481
    %v2104 = vunpack.c.l.b16 %v482
    %v2105 = vunpack.c.h.b16 %v482
    %v2106 = vunpack.c.l.b16 %v483
    %v2107 = vunpack.c.h.b16 %v483
    %v2108 = vunpack.c.l.b16 %v484
    %v2109 = vunpack.c.h.b16 %v484
    %v2110 = vunpack.c.l.b16 %v485
    %v2111 = vunpack.c.h.b16 %v485
    %v2112 = vunpack.c.l.b16 %v486
    %v2113 = vunpack.c.h.b16 %v486
    %v2114 = vunpack.c.l.b16 %v487
    %v2115 = vunpack.c.h.b16 %v487
    %v2116 = vunpack.c.l.b16 %v488
    %v2117 = vunpack.c.h.b16 %v488
    %v2118 = vunpack.c.l.b16 %v489
    %v2119 = vunpack.c.h.b16 %v489
    %v2120 = vunpack.c.l.b16 %v490
    %v2121 = vunpack.c.h.b16 %v490
    %v2122 = vunpack.c.l.b16 %v491
    %v2123 = vunpack.c.h.b16 %v491
    %v2124 = vunpack.c.l.b16 %v492
    %v2125 = vunpack.c.h.b16 %v492
    %v2126 = vunpack.c.l.b16 %v493
    %v2127 = vunpack.c.h.b16 %v493
    %v2128 = vunpack.c.l.b16 %v494
    %v2129 = vunpack.c.h.b16 %v494
    %v2130 = vunpack.c.l.b16 %v495
    %v2131 = vunpack.c.h.b16 %v495
    %v2132 = vunpack.c.l.b16 %v496
    %v2133 = vunpack.c.h.b16 %v496
    %v2134 = vunpack.c.l.b16 %v497
    %v2135 = vunpack.c.h.b16 %v497
    %v2136 = vunpack.c.l.b16 %v498
    %v2137 = vunpack.c.h.b16 %v498
    %v2138 = vunpack.c.l.b16 %v499
    %v2139 = vunpack.c.h.b16 %v499
    %v2140 = vunpack.c.l.b16 %v500
    %v2141 = vunpack.c.h.b16 %v500
    %v2142 = vunpack.c.l.b16 %v501
    %v2143 = vunpack.c.h.b16 %v501
    %v2144 = vunpack.c.l.b16 %v502
    %v2145 = vunpack.c.h.b16 %v502
    %v2146 = vunpack.c.l.b16 %v503
    %v2147 = vunpack.c.h.b16 %v503
    %v2148 = vunpack.c.l.b16 %v504
    %v2149 = vunpack.c.h.b16 %v504
    %v2150 = vunpack.c.l.b16 %v505
    %v2151 = vunpack.c.h.b16 %v505
    %v2152 = vunpack.c.l.b16 %v506
    %v2153 = vunpack.c.h.b16 %v506
    %v2154 = vunpack.c.l.b16 %v507
    %v2155 = vunpack.c.h.b16 %v507
    %v2156 = vunpack.c.l.b16 %v508
    %v2157 = vunpack.c.h.b16 %v508
    %v2158 = vunpack.c.l.b16 %v509
    %v2159 = vunpack.c.h.b16 %v509
    %v2160 = vunpack.c.l.b16 %v510
    %v2161 = vunpack.c.h.b16 %v510
    %v2162 = vunpack.c.l.b16 %v511
    %v2163 = vunpack.c.h.b16 %v511
    %v2164 = vunpack.c.l.b16 %v512
    %v2165 = vunpack.c.h.b16 %v512
    %v2166 = vunpack.c.l.b16 %v513
    %v2167 = vunpack.c.h.b16 %v513
    %v2168 = vunpack.c.l.b16 %v514
    %v2169 = vunpack.c.h.b16 %v514
    %v2170 = vunpack.c.l.b16 %v515
    %v2171 = vunpack.c.h.b16 %v515
    %v2172 = vunpack.c.l.b16 %v516
    %v2173 = vunpack.c.h.b16 %v516
    %v2174 = vunpack.c.l.b16 %v517
    %v2175 = vunpack.c.h.b16 %v517
    %v2176 = vpack.c.b16 %v1420, %v1408
    %v2177 = vpack.c.b16 %v1421, %v1409
    %v2178 = vpack.c.b16 %v1422, %v1410
    %v2179 = vpack.c.b16 %v1423, %v1411
    %v2180 = vpack.c.b16 %v1424, %v1412
    %v2181 = vpack.c.b16 %v1425, %v1413
    %v2182 = vpack.c.b16 %v1426, %v1414
    %v2183 = vpack.c.b16 %v1427, %v1415
    %v2184 = vpack.c.b16 %v1428, %v1416
    %v2185 = vpack.c.b16 %v1429, %v1417
    %v2186 = vpack.c.b16 %v1430, %v1418
    %v2187 = vpack.c.b16 %v1431, %v1419
    %v2188 = vpack.c.b16 %v1444, %v1432
    %v2189 = vpack.c.b16 %v1445, %v1433
    %v2190 = vpack.c.b16 %v1446, %v1434
    %v2191 = vpack.c.b16 %v1447, %v1435
    %v2192 = vpack.c.b16 %v1448, %v1436
    %v2193 = vpack.c.b16 %v1449, %v1437
    %v2194 = vpack.c.b16 %v1450, %v1438
    %v2195 = vpack.c.b16 %v1451, %v1439
    %v2196 = vpack.c.b16 %v1452, %v1440
    %v2197 = vpack.c.b16 %v1453, %v1441
    %v2198 = vpack.c.b16 %v1454, %v1442
    %v2199 = vpack.c.b16 %v1455, %v1443
    %v2200 = vpack.c.b16 %v1468, %v1456
    %v2201 = vpack.c.b16 %v1469, %v1457
    %v2202 = vpack.c.b16 %v1470, %v1458
    %v2203 = vpack.c.b16 %v1471, %v1459
    %v2204 = vpack.c.b16 %v1472, %v1460
    %v2205 = vpack.c.b16 %v1473, %v1461
    %v2206 = vpack.c.b16 %v1474, %v1462
    %v2207 = vpack.c.b16 %v1475, %v1463
    %v2208 = vpack.c.b16 %v1476, %v1464
    %v2209 = vpack.c.b16 %v1477, %v1465
    %v2210 = vpack.c.b16 %v1478, %v1466
    %v2211 = vpack.c.b16 %v1479, %v1467
    %v2212 = vpack.c.b16 %v1492, %v1480
    %v2213 = vpack.c.b16 %v1493, %v1481
    %v2214 = vpack.c.b16 %v1494, %v1482
    %v2215 = vpack.c.b16 %v1495, %v1483
    %v2216 = vpack.c.b16 %v1496, %v1484
    %v2217 = vpack.c.b16 %v1497, %v1485
    %v2218 = vpack.c.b16 %v1498, %v1486
    %v2219 = vpack.c.b16 %v1499, %v1487
    %v2220 = vpack.c.b16 %v1500, %v1488
    %v2221 = vpack.c.b16 %v1501, %v1489
    %v2222 = vpack.c.b16 %v1502, %v1490
    %v2223 = vpack.c.b16 %v1503, %v1491
    %v2224 = vpack.c.b16 %v1516, %v1504
    %v2225 = vpack.c.b16 %v1517, %v1505
    %v2226 = vpack.c.b16 %v1518, %v1506
    %v2227 = vpack.c.b16 %v1519, %v1507
    %v2228 = vpack.c.b16 %v1520, %v1508
    %v2229 = vpack.c.b16 %v1521, %v1509
    %v2230 = vpack.c.b16 %v1522, %v1510
    %v2231 = vpack.c.b16 %v1523, %v1511
    %v2232 = vpack.c.b16 %v1524, %v1512
    %v2233 = vpack.c.b16 %v1525, %v1513
    %v2234 = vpack.c.b16 %v1526, %v1514
    %v2235 = vpack.c.b16 %v1527, %v1515
    %v2236 = vpack.c.b16 %v1540, %v1528
    %v2237 = vpack.c.b16 %v1541, %v1529
    %v2238 = vpack.c.b16 %v1542, %v1530
    %v2239 = vpack.c.b16 %v1543, %v1531
    %v2240 = vpack.c.b16 %v1544, %v1532
    %v2241 = vpack.c.b16 %v1545, %v1533
    %v2242 = vpack.c.b16 %v1546, %v1534
    %v2243 = vpack.c.b16 %v1547, %v1535
    %v2244 = vpack.c.b16 %v1548, %v1536
    %v2245 = vpack.c.b16 %v1549, %v1537
    %v2246 = vpack.c.b16 %v1550, %v1538
    %v2247 = vpack.c.b16 %v1551, %v1539
    %v2248 = vpack.c.b16 %v1564, %v1552
    %v2249 = vpack.c.b16 %v1565, %v1553
    %v2250 = vpack.c.b16 %v1566, %v1554
    %v2251 = vpack.c.b16 %v1567, %v1555
    %v2252 = vpack.c.b16 %v1568, %v1556
    %v2253 = vpack.c.b16 %v1569, %v1557
    %v2254 = vpack.c.b16 %v1570, %v1558
    %v2255 = vpack.c.b16 %v1571, %v1559
    %v2256 = vpack.c.b16 %v1572, %v1560
    %v2257 = vpack.c.b16 %v1573, %v1561
    %v2258 = vpack.c.b16 %v1574, %v1562
    %v2259 = vpack.c.b16 %v1575, %v1563
    %v2260 = vpack.c.b16 %v1588, %v1576
    %v2261 = vpack.c.b16 %v1589, %v1577
    %v2262 = vpack.c.b16 %v1590, %v1578
    %v2263 = vpack.c.b16 %v1591, %v1579
    %v2264 = vpack.c.b16 %v1592, %v1580
    %v2265 = vpack.c.b16 %v1593, %v1581
    %v2266 = vpack.c.b16 %v1594, %v1582
    %v2267 = vpack.c.b16 %v1595, %v1583
    %v2268 = vpack.c.b16 %v1596, %v1584
    %v2269 = vpack.c.b16 %v1597, %v1585
    %v2270 = vpack.c.b16 %v1598, %v1586
    %v2271 = vpack.c.b16 %v1599, %v1587
    %v2272 = vpack.c.b16 %v1612, %v1600
    %v2273 = vpack.c.b16 %v1613, %v1601
    %v2274 = vpack.c.b16 %v1614, %v1602
    %v2275 = vpack.c.b16 %v1615, %v1603
    %v2276 = vpack.c.b16 %v1616, %v1604
    %v2277 = vpack.c.b16 %v1617, %v1605
    %v2278 = vpack.c.b16 %v1618, %v1606
    %v2279 = vpack.c.b16 %v1619, %v1607
    %v2280 = vpack.c.b16 %v1620, %v1608
    %v2281 = vpack.c.b16 %v1621, %v1609
    %v2282 = vpack.c.b16 %v1622, %v1610
    %v2283 = vpack.c.b16 %v1623, %v1611
    %v2284 = vpack.c.b16 %v1636, %v1624
    %v2285 = vpack.c.b16 %v1637, %v1625
    %v2286 = vpack.c.b16 %v1638, %v1626
    %v2287 = vpack.c.b16 %v1639, %v1627
    %v2288 = vpack.c.b16 %v1640, %v1628
    %v2289 = vpack.c.b16 %v1641, %v1629
    %v2290 = vpack.c.b16 %v1642, %v1630
    %v2291 = vpack.c.b16 %v1643, %v1631
    %v2292 = vpack.c.b16 %v1644, %v1632
    %v2293 = vpack.c.b16 %v1645, %v1633
    %v2294 = vpack.c.b16 %v1646, %v1634
    %v2295 = vpack.c.b16 %v1647, %v1635
    %v2296 = vpack.c.b16 %v1660, %v1648
    %v2297 = vpack.c.b16 %v1661, %v1649
    %v2298 = vpack.c.b16 %v1662, %v1650
    %v2299 = vpack.c.b16 %v1663, %v1651
    %v2300 = vpack.c.b16 %v1664, %v1652
    %v2301 = vpack.c.b16 %v1665, %v1653
    %v2302 = vpack.c.b16 %v1666, %v1654
    %v2303 = vpack.c.b16 %v1667, %v1655
    %v2304 = vpack.c.b16 %v1668, %v1656
    %v2305 = vpack.c.b16 %v1669, %v1657
    %v2306 = vpack.c.b16 %v1670, %v1658
    %v2307 = vpack.c.b16 %v1671, %v1659
    %v2308 = vpack.c.b16 %v1684, %v1672
    %v2309 = vpack.c.b16 %v1685, %v1673
    %v2310 = vpack.c.b16 %v1686, %v1674
    %v2311 = vpack.c.b16 %v1687, %v1675
    %v2312 = vpack.c.b16 %v1688, %v1676
    %v2313 = vpack.c.b16 %v1689, %v1677
    %v2314 = vpack.c.b16 %v1690, %v1678
    %v2315 = vpack.c.b16 %v1691, %v1679
    %v2316 = vpack.c.b16 %v1692, %v1680
    %v2317 = vpack.c.b16 %v1693, %v1681
    %v2318 = vpack.c.b16 %v1694, %v1682
    %v2319 = vpack.c.b16 %v1695, %v1683
    %v2320 = vpack.c.b16 %v1708, %v1696
    %v2321 = vpack.c.b16 %v1709, %v1697
    %v2322 = vpack.c.b16 %v1710, %v1698
    %v2323 = vpack.c.b16 %v1711, %v1699
    %v2324 = vpack.c.b16 %v1712, %v1700
    %v2325 = vpack.c.b16 %v1713, %v1701
    %v2326 = vpack.c.b16 %v1714, %v1702
    %v2327 = vpack.c.b16 %v1715, %v1703
    %v2328 = vpack.c.b16 %v1716, %v1704
    %v2329 = vpack.c.b16 %v1717, %v1705
    %v2330 = vpack.c.b16 %v1718, %v1706
    %v2331 = vpack.c.b16 %v1719, %v1707
    %v2332 = vpack.c.b16 %v1732, %v1720
    %v2333 = vpack.c.b16 %v1733, %v1721
    %v2334 = vpack.c.b16 %v1734, %v1722
    %v2335 = vpack.c.b16 %v1735, %v1723
    %v2336 = vpack.c.b16 %v1736, %v1724
    %v2337 = vpack.c.b16 %v1737, %v1725
    %v2338 = vpack.c.b16 %v1738, %v1726
    %v2339 = vpack.c.b16 %v1739, %v1727
    %v2340 = vpack.c.b16 %v1740, %v1728
    %v2341 = vpack.c.b16 %v1741, %v1729
    %v2342 = vpack.c.b16 %v1742, %v1730
    %v2343 = vpack.c.b16 %v1743, %v1731
    %v2344 = vpack.c.b16 %v1756, %v1744
    %v2345 = vpack.c.b16 %v1757, %v1745
    %v2346 = vpack.c.b16 %v1758, %v1746
    %v2347 = vpack.c.b16 %v1759, %v1747
    %v2348 = vpack.c.b16 %v1760, %v1748
    %v2349 = vpack.c.b16 %v1761, %v1749
    %v2350 = vpack.c.b16 %v1762, %v1750
    %v2351 = vpack.c.b16 %v1763, %v1751
    %v2352 = vpack.c.b16 %v1764, %v1752
    %v2353 = vpack.c.b16 %v1765, %v1753
    %v2354 = vpack.c.b16 %v1766, %v1754
    %v2355 = vpack.c.b16 %v1767, %v1755
    %v2356 = vpack.c.b16 %v1780, %v1768
    %v2357 = vpack.c.b16 %v1781, %v1769
    %v2358 = vpack.c.b16 %v1782, %v1770
    %v2359 = vpack.c.b16 %v1783, %v1771
    %v2360 = vpack.c.b16 %v1784, %v1772
    %v2361 = vpack.c.b16 %v1785, %v1773
    %v2362 = vpack.c.b16 %v1786, %v1774
    %v2363 = vpack.c.b16 %v1787, %v1775
    %v2364 = vpack.c.b16 %v1788, %v1776
    %v2365 = vpack.c.b16 %v1789, %v1777
    %v2366 = vpack.c.b16 %v1790, %v1778
    %v2367 = vpack.c.b16 %v1791, %v1779
    %v2368 = vpack.c.b16 %v1804, %v1792
    %v2369 = vpack.c.b16 %v1805, %v1793
    %v2370 = vpack.c.b16 %v1806, %v1794
    %v2371 = vpack.c.b16 %v1807, %v1795
    %v2372 = vpack.c.b16 %v1808, %v1796
    %v2373 = vpack.c.b16 %v1809, %v1797
    %v2374 = vpack.c.b16 %v1810, %v1798
    %v2375 = vpack.c.b16 %v1811, %v1799
    %v2376 = vpack.c.b16 %v1812, %v1800
    %v2377 = vpack.c.b16 %v1813, %v1801
    %v2378 = vpack.c.b16 %v1814, %v1802
    %v2379 = vpack.c.b16 %v1815, %v1803
    %v2380 = vpack.c.b16 %v1828, %v1816
    %v2381 = vpack.c.b16 %v1829, %v1817
    %v2382 = vpack.c.b16 %v1830, %v1818
    %v2383 = vpack.c.b16 %v1831, %v1819
    %v2384 = vpack.c.b16 %v1832, %v1820
    %v2385 = vpack.c.b16 %v1833, %v1821
    %v2386 = vpack.c.b16 %v1834, %v1822
    %v2387 = vpack.c.b16 %v1835, %v1823
    %v2388 = vpack.c.b16 %v1836, %v1824
    %v2389 = vpack.c.b16 %v1837, %v1825
    %v2390 = vpack.c.b16 %v1838, %v1826
    %v2391 = vpack.c.b16 %v1839, %v1827
    %v2392 = vpack.c.b16 %v1852, %v1840
    %v2393 = vpack.c.b16 %v1853, %v1841
    %v2394 = vpack.c.b16 %v1854, %v1842
    %v2395 = vpack.c.b16 %v1855, %v1843
    %v2396 = vpack.c.b16 %v1856, %v1844
    %v2397 = vpack.c.b16 %v1857, %v1845
    %v2398 = vpack.c.b16 %v1858, %v1846
    %v2399 = vpack.c.b16 %v1859, %v1847
    %v2400 = vpack.c.b16 %v1860, %v1848
    %v2401 = vpack.c.b16 %v1861, %v1849
    %v2402 = vpack.c.b16 %v1862, %v1850
    %v2403 = vpack.c.b16 %v1863, %v1851
    %v2404 = vpack.c.b16 %v1876, %v1864
    %v2405 = vpack.c.b16 %v1877, %v1865
    %v2406 = vpack.c.b16 %v1878, %v1866
    %v2407 = vpack.c.b16 %v1879, %v1867
    %v2408 = vpack.c.b16 %v1880, %v1868
    %v2409 = vpack.c.b16 %v1881, %v1869
    %v2410 = vpack.c.b16 %v1882, %v1870
    %v2411 = vpack.c.b16 %v1883, %v1871
    %v2412 = vpack.c.b16 %v1884, %v1872
    %v2413 = vpack.c.b16 %v1885, %v1873
    %v2414 = vpack.c.b16 %v1886, %v1874
    %v2415 = vpack.c.b16 %v1887, %v1875
    %v2416 = vpack.c.b16 %v1900, %v1888
    %v2417 = vpack.c.b16 %v1901, %v1889
    %v2418 = vpack.c.b16 %v1902, %v1890
    %v2419 = vpack.c.b16 %v1903, %v1891
    %v2420 = vpack.c.b16 %v1904, %v1892
    %v2421 = vpack.c.b16 %v1905, %v1893
    %v2422 = vpack.c.b16 %v1906, %v1894
    %v2423 = vpack.c.b16 %v1907, %v1895
    %v2424 = vpack.c.b16 %v1908, %v1896
    %v2425 = vpack.c.b16 %v1909, %v1897
    %v2426 = vpack.c.b16 %v1910, %v1898
    %v2427 = vpack.c.b16 %v1911, %v1899
    %v2428 = vpack.c.b16 %v1924, %v1912
    %v2429 = vpack.c.b16 %v1925, %v1913
    %v2430 = vpack.c.b16 %v1926, %v1914
    %v2431 = vpack.c.b16 %v1927, %v1915
    %v2432 = vpack.c.b16 %v1928, %v1916
    %v2433 = vpack.c.b16 %v1929, %v1917
    %v2434 = vpack.c.b16 %v1930, %v1918
    %v2435 = vpack.c.b16 %v1931, %v1919
    %v2436 = vpack.c.b16 %v1932, %v1920
    %v2437 = vpack.c.b16 %v1933, %v1921
    %v2438 = vpack.c.b16 %v1934, %v1922
    %v2439 = vpack.c.b16 %v1935, %v1923
    %v2440 = vpack.c.b16 %v1948, %v1936
    %v2441 = vpack.c.b16 %v1949, %v1937
    %v2442 = vpack.c.b16 %v1950, %v1938
    %v2443 = vpack.c.b16 %v1951, %v1939
    %v2444 = vpack.c.b16 %v1952, %v1940
    %v2445 = vpack.c.b16 %v1953, %v1941
    %v2446 = vpack.c.b16 %v1954, %v1942
    %v2447 = vpack.c.b16 %v1955, %v1943
    %v2448 = vpack.c.b16 %v1956, %v1944
    %v2449 = vpack.c.b16 %v1957, %v1945
    %v2450 = vpack.c.b16 %v1958, %v1946
    %v2451 = vpack.c.b16 %v1959, %v1947
    %v2452 = vpack.c.b16 %v1972, %v1960
    %v2453 = vpack.c.b16 %v1973, %v1961
    %v2454 = vpack.c.b16 %v1974, %v1962
    %v2455 = vpack.c.b16 %v1975, %v1963
    %v2456 = vpack.c.b16 %v1976, %v1964
    %v2457 = vpack.c.b16 %v1977, %v1965
    %v2458 = vpack.c.b16 %v1978, %v1966
    %v2459 = vpack.c.b16 %v1979, %v1967
    %v2460 = vpack.c.b16 %v1980, %v1968
    %v2461 = vpack.c.b16 %v1981, %v1969
    %v2462 = vpack.c.b16 %v1982, %v1970
    %v2463 = vpack.c.b16 %v1983, %v1971
    %v2464 = vpack.c.b16 %v1996, %v1984
    %v2465 = vpack.c.b16 %v1997, %v1985
    %v2466 = vpack.c.b16 %v1998, %v1986
    %v2467 = vpack.c.b16 %v1999, %v1987
    %v2468 = vpack.c.b16 %v2000, %v1988
    %v2469 = vpack.c.b16 %v2001, %v1989
    %v2470 = vpack.c.b16 %v2002, %v1990
    %v2471 = vpack.c.b16 %v2003, %v1991
    %v2472 = vpack.c.b16 %v2004, %v1992
    %v2473 = vpack.c.b16 %v2005, %v1993
    %v2474 = vpack.c.b16 %v2006, %v1994
    %v2475 = vpack.c.b16 %v2007, %v1995
    %v2476 = vpack.c.b16 %v2020, %v2008
    %v2477 = vpack.c.b16 %v2021, %v2009
    %v2478 = vpack.c.b16 %v2022, %v2010
    %v2479 = vpack.c.b16 %v2023, %v2011
    %v2480 = vpack.c.b16 %v2024, %v2012
    %v2481 = vpack.c.b16 %v2025, %v2013
    %v2482 = vpack.c.b16 %v2026, %v2014
    %v2483 = vpack.c.b16 %v2027, %v2015
    %v2484 = vpack.c.b16 %v2028, %v2016
    %v2485 = vpack.c.b16 %v2029, %v2017
    %v2486 = vpack.c.b16 %v2030, %v2018
    %v2487 = vpack.c.b16 %v2031, %v2019
    %v2488 = vpack.c.b16 %v2044, %v2032
    %v2489 = vpack.c.b16 %v2045, %v2033
    %v2490 = vpack.c.b16 %v2046, %v2034
    %v2491 = vpack.c.b16 %v2047, %v2035
    %v2492 = vpack.c.b16 %v2048, %v2036
    %v2493 = vpack.c.b16 %v2049, %v2037
    %v2494 = vpack.c.b16 %v2050, %v2038
    %v2495 = vpack.c.b16 %v2051, %v2039
    %v2496 = vpack.c.b16 %v2052, %v2040
    %v2497 = vpack.c.b16 %v2053, %v2041
    %v2498 = vpack.c.b16 %v2054, %v2042
    %v2499 = vpack.c.b16 %v2055, %v2043
    %v2500 = vpack.c.b16 %v2068, %v2056
    %v2501 = vpack.c.b16 %v2069, %v2057
    %v2502 = vpack.c.b16 %v2070, %v2058
    %v2503 = vpack.c.b16 %v2071, %v2059
    %v2504 = vpack.c.b16 %v2072, %v2060
    %v2505 = vpack.c.b16 %v2073, %v2061
    %v2506 = vpack.c.b16 %v2074, %v2062
    %v2507 = vpack.c.b16 %v2075, %v2063
    %v2508 = vpack.c.b16 %v2076, %v2064
    %v2509 = vpack.c.b16 %v2077, %v2065
    %v2510 = vpack.c.b16 %v2078, %v2066
    %v2511 = vpack.c.b16 %v2079, %v2067
    %v2512 = vpack.c.b16 %v2092, %v2080
    %v2513 = vpack.c.b16 %v2093, %v2081
    %v2514 = vpack.c.b16 %v2094, %v2082
    %v2515 = vpack.c.b16 %v2095, %v2083
    %v2516 = vpack.c.b16 %v2096, %v2084
    %v2517 = vpack.c.b16 %v2097, %v2085
    %v2518 = vpack.c.b16 %v2098, %v2086
    %v2519 = vpack.c.b16 %v2099, %v2087
    %v2520 = vpack.c.b16 %v2100, %v2088
    %v2521 = vpack.c.b16 %v2101, %v2089
    %v2522 = vpack.c.b16 %v2102, %v2090
    %v2523 = vpack.c.b16 %v2103, %v2091
    %v2524 = vpack.c.b16 %v2116, %v2104
    %v2525 = vpack.c.b16 %v2117, %v2105
    %v2526 = vpack.c.b16 %v2118, %v2106
    %v2527 = vpack.c.b16 %v2119, %v2107
    %v2528 = vpack.c.b16 %v2120, %v2108
    %v2529 = vpack.c.b16 %v2121, %v2109
    %v2530 = vpack.c.b16 %v2122, %v2110
    %v2531 = vpack.c.b16 %v2123, %v2111
    %v2532 = vpack.c.b16 %v2124, %v2112
    %v2533 = vpack.c.b16 %v2125, %v2113
    %v2534 = vpack.c.b16 %v2126, %v2114
    %v2535 = vpack.c.b16 %v2127, %v2115
    %v2536 = vpack.c.b16 %v2140, %v2128
    %v2537 = vpack.c.b16 %v2141, %v2129
    %v2538 = vpack.c.b16 %v2142, %v2130
    %v2539 = vpack.c.b16 %v2143, %v2131
    %v2540 = vpack.c.b16 %v2144, %v2132
    %v2541 = vpack.c.b16 %v2145, %v2133
    %v2542 = vpack.c.b16 %v2146, %v2134
    %v2543 = vpack.c.b16 %v2147, %v2135
    %v2544 = vpack.c.b16 %v2148, %v2136
    %v2545 = vpack.c.b16 %v2149, %v2137
    %v2546 = vpack.c.b16 %v2150, %v2138
    %v2547 = vpack.c.b16 %v2151, %v2139
    %v2548 = vpack.c.b16 %v2164, %v2152
    %v2549 = vpack.c.b16 %v2165, %v2153
    %v2550 = vpack.c.b16 %v2166, %v2154
    %v2551 = vpack.c.b16 %v2167, %v2155
    %v2552 = vpack.c.b16 %v2168, %v2156
    %v2553 = vpack.c.b16 %v2169, %v2157
    %v2554 = vpack.c.b16 %v2170, %v2158
    %v2555 = vpack.c.b16 %v2171, %v2159
    %v2556 = vpack.c.b16 %v2172, %v2160
    %v2557 = vpack.c.b16 %v2173, %v2161
    %v2558 = vpack.c.b16 %v2174, %v2162
    %v2559 = vpack.c.b16 %v2175, %v2163
    %2944 = vmatprep.subr.bf16.mxu0 %v2261
    %2945 = vmatpush1.bf16.msra.mxu0 %v2260
    %2946 = vmatprep.subr.bf16.mxu0 %v2249
    %2947 = vmatpush1.bf16.msra.mxu0 %v2248
    %2948 = vmatprep.subr.bf16.mxu0 %v2237
    %2949 = vmatpush1.bf16.msra.mxu0 %v2236
    %2950 = vmatprep.subr.bf16.mxu0 %v2225
    %2951 = vmatpush1.bf16.msra.mxu0 %v2224
    %2952 = vmatprep.subr.bf16.mxu0 %v2213
    %2953 = vmatpush1.bf16.msra.mxu0 %v2212
    %2954 = vmatprep.subr.bf16.mxu0 %v2201
    %2955 = vmatpush1.bf16.msra.mxu0 %v2200
    %2956 = vmatprep.subr.bf16.mxu0 %v2189
    %2957 = vmatpush1.bf16.msra.mxu0 %v2188
    %2958 = vmatprep.subr.bf16.mxu0 %v2177
    %2959 = vmatpush1.bf16.msra.mxu0 %v2176
    %2960 = vmatprep.subr.bf16.mxu0 %v2357
    %2961 = vmatpush2.bf16.msra.mxu0 %v2356
    %2962 = vmatprep.subr.bf16.mxu0 %v2345
    %2963 = vmatpush2.bf16.msra.mxu0 %v2344
    %2964 = vmatprep.subr.bf16.mxu0 %v2333
    %2965 = vmatpush2.bf16.msra.mxu0 %v2332
    %2966 = vmatprep.subr.bf16.mxu0 %v2321
    %2967 = vmatpush2.bf16.msra.mxu0 %v2320
    %2968 = vmatprep.subr.bf16.mxu0 %v2309
    %2969 = vmatpush2.bf16.msra.mxu0 %v2308
    %2970 = vmatprep.subr.bf16.mxu0 %v2297
    %2971 = vmatpush2.bf16.msra.mxu0 %v2296
    %2972 = vmatprep.subr.bf16.mxu0 %v2285
    %2973 = vmatpush2.bf16.msra.mxu0 %v2284
    %2974 = vmatprep.subr.bf16.mxu0 %v2273
    %2975 = vmatpush2.bf16.msra.mxu0 %v2272
    %2976 = vmatprep.mubr.bf16.mxu0 %v935
    %2977 = vmatmul.mubr.bf16.gmra.mxu0 %v934
    %v2978 = vpop.f32.mrf.mxu0
    %v2979 = vadd.f32 %v967, %v2978
    %v2980 = vpop.f32.mrf.mxu0
    %v2981 = vadd.f32 %v971, %v2980
    %v2982 = vpop.f32.mrf.mxu0
    %v2983 = vadd.f32 %v967, %v2982
    %v2984 = vpop.f32.mrf.mxu0
    %v2985 = vadd.f32 %v971, %v2984
    %2986 = vdwg.mxu0
    %2987 = vmatprep.subr.bf16.mxu0 %v2453
    %2988 = vmatpush1.bf16.msra.mxu0 %v2452
    %2989 = vmatprep.subr.bf16.mxu0 %v2441
    %2990 = vmatpush1.bf16.msra.mxu0 %v2440
    %2991 = vmatprep.subr.bf16.mxu0 %v2429
    %2992 = vmatpush1.bf16.msra.mxu0 %v2428
    %2993 = vmatprep.subr.bf16.mxu0 %v2417
    %2994 = vmatpush1.bf16.msra.mxu0 %v2416
    %2995 = vmatprep.subr.bf16.mxu0 %v2405
    %2996 = vmatpush1.bf16.msra.mxu0 %v2404
    %2997 = vmatprep.subr.bf16.mxu0 %v2393
    %2998 = vmatpush1.bf16.msra.mxu0 %v2392
    %2999 = vmatprep.subr.bf16.mxu0 %v2381
    %3000 = vmatpush1.bf16.msra.mxu0 %v2380
    %3001 = vmatprep.subr.bf16.mxu0 %v2369
    %3002 = vmatpush1.bf16.msra.mxu0 %v2368
    %3003 = vmatprep.subr.bf16.mxu0 %v2549
    %3004 = vmatpush2.bf16.msra.mxu0 %v2548
    %3005 = vmatprep.subr.bf16.mxu0 %v2537
    %3006 = vmatpush2.bf16.msra.mxu0 %v2536
    %3007 = vmatprep.subr.bf16.mxu0 %v2525
    %3008 = vmatpush2.bf16.msra.mxu0 %v2524
    %3009 = vmatprep.subr.bf16.mxu0 %v2513
    %3010 = vmatpush2.bf16.msra.mxu0 %v2512
    %3011 = vmatprep.subr.bf16.mxu0 %v2501
    %3012 = vmatpush2.bf16.msra.mxu0 %v2500
    %3013 = vmatprep.subr.bf16.mxu0 %v2489
    %3014 = vmatpush2.bf16.msra.mxu0 %v2488
    %3015 = vmatprep.subr.bf16.mxu0 %v2477
    %3016 = vmatpush2.bf16.msra.mxu0 %v2476
    %3017 = vmatprep.subr.bf16.mxu0 %v2465
    %3018 = vmatpush2.bf16.msra.mxu0 %v2464
    %3019 = vmatprep.mubr.bf16.mxu0 %v937
    %3020 = vmatmul.mubr.bf16.gmra.mxu0 %v936
    %v3021 = vpop.f32.mrf.mxu0
    %v3022 = vadd.f32 %v2979, %v3021
    %v3023 = vpop.f32.mrf.mxu0
    %v3024 = vadd.f32 %v2981, %v3023
    %v3025 = vpop.f32.mrf.mxu0
    %v3026 = vadd.f32 %v2983, %v3025
    %v3027 = vpop.f32.mrf.mxu0
    %v3028 = vadd.f32 %v2985, %v3027
    %3029 = vdwg.mxu0
    %3030 = vmatprep.subr.bf16.mxu0 %v2263
    %3031 = vmatpush1.bf16.msra.mxu0 %v2262
    %3032 = vmatprep.subr.bf16.mxu0 %v2251
    %3033 = vmatpush1.bf16.msra.mxu0 %v2250
    %3034 = vmatprep.subr.bf16.mxu0 %v2239
    %3035 = vmatpush1.bf16.msra.mxu0 %v2238
    %3036 = vmatprep.subr.bf16.mxu0 %v2227
    %3037 = vmatpush1.bf16.msra.mxu0 %v2226
    %3038 = vmatprep.subr.bf16.mxu0 %v2215
    %3039 = vmatpush1.bf16.msra.mxu0 %v2214
    %3040 = vmatprep.subr.bf16.mxu0 %v2203
    %3041 = vmatpush1.bf16.msra.mxu0 %v2202
    %3042 = vmatprep.subr.bf16.mxu0 %v2191
    %3043 = vmatpush1.bf16.msra.mxu0 %v2190
    %3044 = vmatprep.subr.bf16.mxu0 %v2179
    %3045 = vmatpush1.bf16.msra.mxu0 %v2178
    %3046 = vmatprep.subr.bf16.mxu0 %v2359
    %3047 = vmatpush2.bf16.msra.mxu0 %v2358
    %3048 = vmatprep.subr.bf16.mxu0 %v2347
    %3049 = vmatpush2.bf16.msra.mxu0 %v2346
    %3050 = vmatprep.subr.bf16.mxu0 %v2335
    %3051 = vmatpush2.bf16.msra.mxu0 %v2334
    %3052 = vmatprep.subr.bf16.mxu0 %v2323
    %3053 = vmatpush2.bf16.msra.mxu0 %v2322
    %3054 = vmatprep.subr.bf16.mxu0 %v2311
    %3055 = vmatpush2.bf16.msra.mxu0 %v2310
    %3056 = vmatprep.subr.bf16.mxu0 %v2299
    %3057 = vmatpush2.bf16.msra.mxu0 %v2298
    %3058 = vmatprep.subr.bf16.mxu0 %v2287
    %3059 = vmatpush2.bf16.msra.mxu0 %v2286
    %3060 = vmatprep.subr.bf16.mxu0 %v2275
    %3061 = vmatpush2.bf16.msra.mxu0 %v2274
    %3062 = vmatprep.mubr.bf16.mxu0 %v935
    %3063 = vmatmul.mubr.bf16.gmra.mxu0 %v934
    %v3064 = vpop.f32.mrf.mxu0
    %v3065 = vadd.f32 %v975, %v3064
    %v3066 = vpop.f32.mrf.mxu0
    %v3067 = vadd.f32 %v979, %v3066
    %v3068 = vpop.f32.mrf.mxu0
    %v3069 = vadd.f32 %v975, %v3068
    %v3070 = vpop.f32.mrf.mxu0
    %v3071 = vadd.f32 %v979, %v3070
    %3072 = vdwg.mxu0
    %3073 = vmatprep.subr.bf16.mxu0 %v2455
    %3074 = vmatpush1.bf16.msra.mxu0 %v2454
    %3075 = vmatprep.subr.bf16.mxu0 %v2443
    %3076 = vmatpush1.bf16.msra.mxu0 %v2442
    %3077 = vmatprep.subr.bf16.mxu0 %v2431
    %3078 = vmatpush1.bf16.msra.mxu0 %v2430
    %3079 = vmatprep.subr.bf16.mxu0 %v2419
    %3080 = vmatpush1.bf16.msra.mxu0 %v2418
    %3081 = vmatprep.subr.bf16.mxu0 %v2407
    %3082 = vmatpush1.bf16.msra.mxu0 %v2406
    %3083 = vmatprep.subr.bf16.mxu0 %v2395
    %3084 = vmatpush1.bf16.msra.mxu0 %v2394
    %3085 = vmatprep.subr.bf16.mxu0 %v2383
    %3086 = vmatpush1.bf16.msra.mxu0 %v2382
    %3087 = vmatprep.subr.bf16.mxu0 %v2371
    %3088 = vmatpush1.bf16.msra.mxu0 %v2370
    %3089 = vmatprep.subr.bf16.mxu0 %v2551
    %3090 = vmatpush2.bf16.msra.mxu0 %v2550
    %3091 = vmatprep.subr.bf16.mxu0 %v2539
    %3092 = vmatpush2.bf16.msra.mxu0 %v2538
    %3093 = vmatprep.subr.bf16.mxu0 %v2527
    %3094 = vmatpush2.bf16.msra.mxu0 %v2526
    %3095 = vmatprep.subr.bf16.mxu0 %v2515
    %3096 = vmatpush2.bf16.msra.mxu0 %v2514
    %3097 = vmatprep.subr.bf16.mxu0 %v2503
    %3098 = vmatpush2.bf16.msra.mxu0 %v2502
    %3099 = vmatprep.subr.bf16.mxu0 %v2491
    %3100 = vmatpush2.bf16.msra.mxu0 %v2490
    %3101 = vmatprep.subr.bf16.mxu0 %v2479
    %3102 = vmatpush2.bf16.msra.mxu0 %v2478
    %3103 = vmatprep.subr.bf16.mxu0 %v2467
    %3104 = vmatpush2.bf16.msra.mxu0 %v2466
    %3105 = vmatprep.mubr.bf16.mxu0 %v937
    %3106 = vmatmul.mubr.bf16.gmra.mxu0 %v936
    %v3107 = vpop.f32.mrf.mxu0
    %v3108 = vadd.f32 %v3065, %v3107
    %v3109 = vpop.f32.mrf.mxu0
    %v3110 = vadd.f32 %v3067, %v3109
    %v3111 = vpop.f32.mrf.mxu0
    %v3112 = vadd.f32 %v3069, %v3111
    %v3113 = vpop.f32.mrf.mxu0
    %v3114 = vadd.f32 %v3071, %v3113
    %3115 = vdwg.mxu0
    %3116 = vmatprep.subr.bf16.mxu0 %v2265
    %3117 = vmatpush1.bf16.msra.mxu0 %v2264
    %3118 = vmatprep.subr.bf16.mxu0 %v2253
    %3119 = vmatpush1.bf16.msra.mxu0 %v2252
    %3120 = vmatprep.subr.bf16.mxu0 %v2241
    %3121 = vmatpush1.bf16.msra.mxu0 %v2240
    %3122 = vmatprep.subr.bf16.mxu0 %v2229
    %3123 = vmatpush1.bf16.msra.mxu0 %v2228
    %3124 = vmatprep.subr.bf16.mxu0 %v2217
    %3125 = vmatpush1.bf16.msra.mxu0 %v2216
    %3126 = vmatprep.subr.bf16.mxu0 %v2205
    %3127 = vmatpush1.bf16.msra.mxu0 %v2204
    %3128 = vmatprep.subr.bf16.mxu0 %v2193
    %3129 = vmatpush1.bf16.msra.mxu0 %v2192
    %3130 = vmatprep.subr.bf16.mxu0 %v2181
    %3131 = vmatpush1.bf16.msra.mxu0 %v2180
    %3132 = vmatprep.subr.bf16.mxu0 %v2361
    %3133 = vmatpush2.bf16.msra.mxu0 %v2360
    %3134 = vmatprep.subr.bf16.mxu0 %v2349
    %3135 = vmatpush2.bf16.msra.mxu0 %v2348
    %3136 = vmatprep.subr.bf16.mxu0 %v2337
    %3137 = vmatpush2.bf16.msra.mxu0 %v2336
    %3138 = vmatprep.subr.bf16.mxu0 %v2325
    %3139 = vmatpush2.bf16.msra.mxu0 %v2324
    %3140 = vmatprep.subr.bf16.mxu0 %v2313
    %3141 = vmatpush2.bf16.msra.mxu0 %v2312
    %3142 = vmatprep.subr.bf16.mxu0 %v2301
    %3143 = vmatpush2.bf16.msra.mxu0 %v2300
    %3144 = vmatprep.subr.bf16.mxu0 %v2289
    %3145 = vmatpush2.bf16.msra.mxu0 %v2288
    %3146 = vmatprep.subr.bf16.mxu0 %v2277
    %3147 = vmatpush2.bf16.msra.mxu0 %v2276
    %3148 = vmatprep.mubr.bf16.mxu0 %v935
    %3149 = vmatmul.mubr.bf16.gmra.mxu0 %v934
    %v3150 = vpop.f32.mrf.mxu0
    %v3151 = vadd.f32 %v983, %v3150
    %v3152 = vpop.f32.mrf.mxu0
    %v3153 = vadd.f32 %v987, %v3152
    %v3154 = vpop.f32.mrf.mxu0
    %v3155 = vadd.f32 %v983, %v3154
    %v3156 = vpop.f32.mrf.mxu0
    %v3157 = vadd.f32 %v987, %v3156
    %3158 = vdwg.mxu0
    %3159 = vmatprep.subr.bf16.mxu0 %v2457
    %3160 = vmatpush1.bf16.msra.mxu0 %v2456
    %3161 = vmatprep.subr.bf16.mxu0 %v2445
    %3162 = vmatpush1.bf16.msra.mxu0 %v2444
    %3163 = vmatprep.subr.bf16.mxu0 %v2433
    %3164 = vmatpush1.bf16.msra.mxu0 %v2432
    %3165 = vmatprep.subr.bf16.mxu0 %v2421
    %3166 = vmatpush1.bf16.msra.mxu0 %v2420
    %3167 = vmatprep.subr.bf16.mxu0 %v2409
    %3168 = vmatpush1.bf16.msra.mxu0 %v2408
    %3169 = vmatprep.subr.bf16.mxu0 %v2397
    %3170 = vmatpush1.bf16.msra.mxu0 %v2396
    %3171 = vmatprep.subr.bf16.mxu0 %v2385
    %3172 = vmatpush1.bf16.msra.mxu0 %v2384
    %3173 = vmatprep.subr.bf16.mxu0 %v2373
    %3174 = vmatpush1.bf16.msra.mxu0 %v2372
    %3175 = vmatprep.subr.bf16.mxu0 %v2553
    %3176 = vmatpush2.bf16.msra.mxu0 %v2552
    %3177 = vmatprep.subr.bf16.mxu0 %v2541
    %3178 = vmatpush2.bf16.msra.mxu0 %v2540
    %3179 = vmatprep.subr.bf16.mxu0 %v2529
    %3180 = vmatpush2.bf16.msra.mxu0 %v2528
    %3181 = vmatprep.subr.bf16.mxu0 %v2517
    %3182 = vmatpush2.bf16.msra.mxu0 %v2516
    %3183 = vmatprep.subr.bf16.mxu0 %v2505
    %3184 = vmatpush2.bf16.msra.mxu0 %v2504
    %3185 = vmatprep.subr.bf16.mxu0 %v2493
    %3186 = vmatpush2.bf16.msra.mxu0 %v2492
    %3187 = vmatprep.subr.bf16.mxu0 %v2481
    %3188 = vmatpush2.bf16.msra.mxu0 %v2480
    %3189 = vmatprep.subr.bf16.mxu0 %v2469
    %3190 = vmatpush2.bf16.msra.mxu0 %v2468
    %3191 = vmatprep.mubr.bf16.mxu0 %v937
    %3192 = vmatmul.mubr.bf16.gmra.mxu0 %v936
    %v3193 = vpop.f32.mrf.mxu0
    %v3194 = vadd.f32 %v3151, %v3193
    %v3195 = vpop.f32.mrf.mxu0
    %v3196 = vadd.f32 %v3153, %v3195
    %v3197 = vpop.f32.mrf.mxu0
    %v3198 = vadd.f32 %v3155, %v3197
    %v3199 = vpop.f32.mrf.mxu0
    %v3200 = vadd.f32 %v3157, %v3199
    %3201 = vdwg.mxu0
    %3202 = vmatprep.subr.bf16.mxu0 %v2267
    %3203 = vmatpush1.bf16.msra.mxu0 %v2266
    %3204 = vmatprep.subr.bf16.mxu0 %v2255
    %3205 = vmatpush1.bf16.msra.mxu0 %v2254
    %3206 = vmatprep.subr.bf16.mxu0 %v2243
    %3207 = vmatpush1.bf16.msra.mxu0 %v2242
    %3208 = vmatprep.subr.bf16.mxu0 %v2231
    %3209 = vmatpush1.bf16.msra.mxu0 %v2230
    %3210 = vmatprep.subr.bf16.mxu0 %v2219
    %3211 = vmatpush1.bf16.msra.mxu0 %v2218
    %3212 = vmatprep.subr.bf16.mxu0 %v2207
    %3213 = vmatpush1.bf16.msra.mxu0 %v2206
    %3214 = vmatprep.subr.bf16.mxu0 %v2195
    %3215 = vmatpush1.bf16.msra.mxu0 %v2194
    %3216 = vmatprep.subr.bf16.mxu0 %v2183
    %3217 = vmatpush1.bf16.msra.mxu0 %v2182
    %3218 = vmatprep.subr.bf16.mxu0 %v2363
    %3219 = vmatpush2.bf16.msra.mxu0 %v2362
    %3220 = vmatprep.subr.bf16.mxu0 %v2351
    %3221 = vmatpush2.bf16.msra.mxu0 %v2350
    %3222 = vmatprep.subr.bf16.mxu0 %v2339
    %3223 = vmatpush2.bf16.msra.mxu0 %v2338
    %3224 = vmatprep.subr.bf16.mxu0 %v2327
    %3225 = vmatpush2.bf16.msra.mxu0 %v2326
    %3226 = vmatprep.subr.bf16.mxu0 %v2315
    %3227 = vmatpush2.bf16.msra.mxu0 %v2314
    %3228 = vmatprep.subr.bf16.mxu0 %v2303
    %3229 = vmatpush2.bf16.msra.mxu0 %v2302
    %3230 = vmatprep.subr.bf16.mxu0 %v2291
    %3231 = vmatpush2.bf16.msra.mxu0 %v2290
    %3232 = vmatprep.subr.bf16.mxu0 %v2279
    %3233 = vmatpush2.bf16.msra.mxu0 %v2278
    %3234 = vmatprep.mubr.bf16.mxu0 %v935
    %3235 = vmatmul.mubr.bf16.gmra.mxu0 %v934
    %v3236 = vpop.f32.mrf.mxu0
    %v3237 = vadd.f32 %v991, %v3236
    %v3238 = vpop.f32.mrf.mxu0
    %v3239 = vadd.f32 %v995, %v3238
    %v3240 = vpop.f32.mrf.mxu0
    %v3241 = vadd.f32 %v991, %v3240
    %v3242 = vpop.f32.mrf.mxu0
    %v3243 = vadd.f32 %v995, %v3242
    %3244 = vdwg.mxu0
    %3245 = vmatprep.subr.bf16.mxu0 %v2459
    %3246 = vmatpush1.bf16.msra.mxu0 %v2458
    %3247 = vmatprep.subr.bf16.mxu0 %v2447
    %3248 = vmatpush1.bf16.msra.mxu0 %v2446
    %3249 = vmatprep.subr.bf16.mxu0 %v2435
    %3250 = vmatpush1.bf16.msra.mxu0 %v2434
    %3251 = vmatprep.subr.bf16.mxu0 %v2423
    %3252 = vmatpush1.bf16.msra.mxu0 %v2422
    %3253 = vmatprep.subr.bf16.mxu0 %v2411
    %3254 = vmatpush1.bf16.msra.mxu0 %v2410
    %3255 = vmatprep.subr.bf16.mxu0 %v2399
    %3256 = vmatpush1.bf16.msra.mxu0 %v2398
    %3257 = vmatprep.subr.bf16.mxu0 %v2387
    %3258 = vmatpush1.bf16.msra.mxu0 %v2386
    %3259 = vmatprep.subr.bf16.mxu0 %v2375
    %3260 = vmatpush1.bf16.msra.mxu0 %v2374
    %3261 = vmatprep.subr.bf16.mxu0 %v2555
    %3262 = vmatpush2.bf16.msra.mxu0 %v2554
    %3263 = vmatprep.subr.bf16.mxu0 %v2543
    %3264 = vmatpush2.bf16.msra.mxu0 %v2542
    %3265 = vmatprep.subr.bf16.mxu0 %v2531
    %3266 = vmatpush2.bf16.msra.mxu0 %v2530
    %3267 = vmatprep.subr.bf16.mxu0 %v2519
    %3268 = vmatpush2.bf16.msra.mxu0 %v2518
    %3269 = vmatprep.subr.bf16.mxu0 %v2507
    %3270 = vmatpush2.bf16.msra.mxu0 %v2506
    %3271 = vmatprep.subr.bf16.mxu0 %v2495
    %3272 = vmatpush2.bf16.msra.mxu0 %v2494
    %3273 = vmatprep.subr.bf16.mxu0 %v2483
    %3274 = vmatpush2.bf16.msra.mxu0 %v2482
    %3275 = vmatprep.subr.bf16.mxu0 %v2471
    %3276 = vmatpush2.bf16.msra.mxu0 %v2470
    %3277 = vmatprep.mubr.bf16.mxu0 %v937
    %3278 = vmatmul.mubr.bf16.gmra.mxu0 %v936
    %v3279 = vpop.f32.mrf.mxu0
    %v3280 = vadd.f32 %v3237, %v3279
    %v3281 = vpop.f32.mrf.mxu0
    %v3282 = vadd.f32 %v3239, %v3281
    %v3283 = vpop.f32.mrf.mxu0
    %v3284 = vadd.f32 %v3241, %v3283
    %v3285 = vpop.f32.mrf.mxu0
    %v3286 = vadd.f32 %v3243, %v3285
    %3287 = vdwg.mxu0
    %3288 = vmatprep.subr.bf16.mxu0 %v2269
    %3289 = vmatpush1.bf16.msra.mxu0 %v2268
    %3290 = vmatprep.subr.bf16.mxu0 %v2257
    %3291 = vmatpush1.bf16.msra.mxu0 %v2256
    %3292 = vmatprep.subr.bf16.mxu0 %v2245
    %3293 = vmatpush1.bf16.msra.mxu0 %v2244
    %3294 = vmatprep.subr.bf16.mxu0 %v2233
    %3295 = vmatpush1.bf16.msra.mxu0 %v2232
    %3296 = vmatprep.subr.bf16.mxu0 %v2221
    %3297 = vmatpush1.bf16.msra.mxu0 %v2220
    %3298 = vmatprep.subr.bf16.mxu0 %v2209
    %3299 = vmatpush1.bf16.msra.mxu0 %v2208
    %3300 = vmatprep.subr.bf16.mxu0 %v2197
    %3301 = vmatpush1.bf16.msra.mxu0 %v2196
    %3302 = vmatprep.subr.bf16.mxu0 %v2185
    %3303 = vmatpush1.bf16.msra.mxu0 %v2184
    %3304 = vmatprep.subr.bf16.mxu0 %v2365
    %3305 = vmatpush2.bf16.msra.mxu0 %v2364
    %3306 = vmatprep.subr.bf16.mxu0 %v2353
    %3307 = vmatpush2.bf16.msra.mxu0 %v2352
    %3308 = vmatprep.subr.bf16.mxu0 %v2341
    %3309 = vmatpush2.bf16.msra.mxu0 %v2340
    %3310 = vmatprep.subr.bf16.mxu0 %v2329
    %3311 = vmatpush2.bf16.msra.mxu0 %v2328
    %3312 = vmatprep.subr.bf16.mxu0 %v2317
    %3313 = vmatpush2.bf16.msra.mxu0 %v2316
    %3314 = vmatprep.subr.bf16.mxu0 %v2305
    %3315 = vmatpush2.bf16.msra.mxu0 %v2304
    %3316 = vmatprep.subr.bf16.mxu0 %v2293
    %3317 = vmatpush2.bf16.msra.mxu0 %v2292
    %3318 = vmatprep.subr.bf16.mxu0 %v2281
    %3319 = vmatpush2.bf16.msra.mxu0 %v2280
    %3320 = vmatprep.mubr.bf16.mxu0 %v935
    %3321 = vmatmul.mubr.bf16.gmra.mxu0 %v934
    %v3322 = vpop.f32.mrf.mxu0
    %v3323 = vadd.f32 %v999, %v3322
    %v3324 = vpop.f32.mrf.mxu0
    %v3325 = vadd.f32 %v1003, %v3324
    %v3326 = vpop.f32.mrf.mxu0
    %v3327 = vadd.f32 %v999, %v3326
    %v3328 = vpop.f32.mrf.mxu0
    %v3329 = vadd.f32 %v1003, %v3328
    %3330 = vdwg.mxu0
    %3331 = vmatprep.subr.bf16.mxu0 %v2461
    %3332 = vmatpush1.bf16.msra.mxu0 %v2460
    %3333 = vmatprep.subr.bf16.mxu0 %v2449
    %3334 = vmatpush1.bf16.msra.mxu0 %v2448
    %3335 = vmatprep.subr.bf16.mxu0 %v2437
    %3336 = vmatpush1.bf16.msra.mxu0 %v2436
    %3337 = vmatprep.subr.bf16.mxu0 %v2425
    %3338 = vmatpush1.bf16.msra.mxu0 %v2424
    %3339 = vmatprep.subr.bf16.mxu0 %v2413
    %3340 = vmatpush1.bf16.msra.mxu0 %v2412
    %3341 = vmatprep.subr.bf16.mxu0 %v2401
    %3342 = vmatpush1.bf16.msra.mxu0 %v2400
    %3343 = vmatprep.subr.bf16.mxu0 %v2389
    %3344 = vmatpush1.bf16.msra.mxu0 %v2388
    %3345 = vmatprep.subr.bf16.mxu0 %v2377
    %3346 = vmatpush1.bf16.msra.mxu0 %v2376
    %3347 = vmatprep.subr.bf16.mxu0 %v2557
    %3348 = vmatpush2.bf16.msra.mxu0 %v2556
    %3349 = vmatprep.subr.bf16.mxu0 %v2545
    %3350 = vmatpush2.bf16.msra.mxu0 %v2544
    %3351 = vmatprep.subr.bf16.mxu0 %v2533
    %3352 = vmatpush2.bf16.msra.mxu0 %v2532
    %3353 = vmatprep.subr.bf16.mxu0 %v2521
    %3354 = vmatpush2.bf16.msra.mxu0 %v2520
    %3355 = vmatprep.subr.bf16.mxu0 %v2509
    %3356 = vmatpush2.bf16.msra.mxu0 %v2508
    %3357 = vmatprep.subr.bf16.mxu0 %v2497
    %3358 = vmatpush2.bf16.msra.mxu0 %v2496
    %3359 = vmatprep.subr.bf16.mxu0 %v2485
    %3360 = vmatpush2.bf16.msra.mxu0 %v2484
    %3361 = vmatprep.subr.bf16.mxu0 %v2473
    %3362 = vmatpush2.bf16.msra.mxu0 %v2472
    %3363 = vmatprep.mubr.bf16.mxu0 %v937
    %3364 = vmatmul.mubr.bf16.gmra.mxu0 %v936
    %v3365 = vpop.f32.mrf.mxu0
    %v3366 = vadd.f32 %v3323, %v3365
    %v3367 = vpop.f32.mrf.mxu0
    %v3368 = vadd.f32 %v3325, %v3367
    %v3369 = vpop.f32.mrf.mxu0
    %v3370 = vadd.f32 %v3327, %v3369
    %v3371 = vpop.f32.mrf.mxu0
    %v3372 = vadd.f32 %v3329, %v3371
    %3373 = vdwg.mxu0
    %3374 = vmatprep.subr.bf16.mxu0 %v2271
    %3375 = vmatpush1.bf16.msra.mxu0 %v2270
    %3376 = vmatprep.subr.bf16.mxu0 %v2259
    %3377 = vmatpush1.bf16.msra.mxu0 %v2258
    %3378 = vmatprep.subr.bf16.mxu0 %v2247
    %3379 = vmatpush1.bf16.msra.mxu0 %v2246
    %3380 = vmatprep.subr.bf16.mxu0 %v2235
    %3381 = vmatpush1.bf16.msra.mxu0 %v2234
    %3382 = vmatprep.subr.bf16.mxu0 %v2223
    %3383 = vmatpush1.bf16.msra.mxu0 %v2222
    %3384 = vmatprep.subr.bf16.mxu0 %v2211
    %3385 = vmatpush1.bf16.msra.mxu0 %v2210
    %3386 = vmatprep.subr.bf16.mxu0 %v2199
    %3387 = vmatpush1.bf16.msra.mxu0 %v2198
    %3388 = vmatprep.subr.bf16.mxu0 %v2187
    %3389 = vmatpush1.bf16.msra.mxu0 %v2186
    %3390 = vmatprep.subr.bf16.mxu0 %v2367
    %3391 = vmatpush2.bf16.msra.mxu0 %v2366
    %3392 = vmatprep.subr.bf16.mxu0 %v2355
    %3393 = vmatpush2.bf16.msra.mxu0 %v2354
    %3394 = vmatprep.subr.bf16.mxu0 %v2343
    %3395 = vmatpush2.bf16.msra.mxu0 %v2342
    %3396 = vmatprep.subr.bf16.mxu0 %v2331
    %3397 = vmatpush2.bf16.msra.mxu0 %v2330
    %3398 = vmatprep.subr.bf16.mxu0 %v2319
    %3399 = vmatpush2.bf16.msra.mxu0 %v2318
    %3400 = vmatprep.subr.bf16.mxu0 %v2307
    %3401 = vmatpush2.bf16.msra.mxu0 %v2306
    %3402 = vmatprep.subr.bf16.mxu0 %v2295
    %3403 = vmatpush2.bf16.msra.mxu0 %v2294
    %3404 = vmatprep.subr.bf16.mxu0 %v2283
    %3405 = vmatpush2.bf16.msra.mxu0 %v2282
    %3406 = vmatprep.mubr.bf16.mxu0 %v935
    %3407 = vmatmul.mubr.bf16.gmra.mxu0 %v934
    %v3408 = vpop.f32.mrf.mxu0
    %v3409 = vadd.f32 %v1007, %v3408
    %v3410 = vpop.f32.mrf.mxu0
    %v3411 = vadd.f32 %v1011, %v3410
    %v3412 = vpop.f32.mrf.mxu0
    %v3413 = vadd.f32 %v1007, %v3412
    %v3414 = vpop.f32.mrf.mxu0
    %v3415 = vadd.f32 %v1011, %v3414
    %3416 = vdwg.mxu0
    %3417 = vmatprep.subr.bf16.mxu0 %v2463
    %3418 = vmatpush1.bf16.msra.mxu0 %v2462
    %3419 = vmatprep.subr.bf16.mxu0 %v2451
    %3420 = vmatpush1.bf16.msra.mxu0 %v2450
    %3421 = vmatprep.subr.bf16.mxu0 %v2439
    %3422 = vmatpush1.bf16.msra.mxu0 %v2438
    %3423 = vmatprep.subr.bf16.mxu0 %v2427
    %3424 = vmatpush1.bf16.msra.mxu0 %v2426
    %3425 = vmatprep.subr.bf16.mxu0 %v2415
    %3426 = vmatpush1.bf16.msra.mxu0 %v2414
    %3427 = vmatprep.subr.bf16.mxu0 %v2403
    %3428 = vmatpush1.bf16.msra.mxu0 %v2402
    %3429 = vmatprep.subr.bf16.mxu0 %v2391
    %3430 = vmatpush1.bf16.msra.mxu0 %v2390
    %3431 = vmatprep.subr.bf16.mxu0 %v2379
    %3432 = vmatpush1.bf16.msra.mxu0 %v2378
    %3433 = vmatprep.subr.bf16.mxu0 %v2559
    %3434 = vmatpush2.bf16.msra.mxu0 %v2558
    %3435 = vmatprep.subr.bf16.mxu0 %v2547
    %3436 = vmatpush2.bf16.msra.mxu0 %v2546
    %3437 = vmatprep.subr.bf16.mxu0 %v2535
    %3438 = vmatpush2.bf16.msra.mxu0 %v2534
    %3439 = vmatprep.subr.bf16.mxu0 %v2523
    %3440 = vmatpush2.bf16.msra.mxu0 %v2522
    %3441 = vmatprep.subr.bf16.mxu0 %v2511
    %3442 = vmatpush2.bf16.msra.mxu0 %v2510
    %3443 = vmatprep.subr.bf16.mxu0 %v2499
    %3444 = vmatpush2.bf16.msra.mxu0 %v2498
    %3445 = vmatprep.subr.bf16.mxu0 %v2487
    %3446 = vmatpush2.bf16.msra.mxu0 %v2486
    %3447 = vmatprep.subr.bf16.mxu0 %v2475
    %3448 = vmatpush2.bf16.msra.mxu0 %v2474
    %3449 = vmatprep.mubr.bf16.mxu0 %v937
    %3450 = vmatmul.mubr.bf16.gmra.mxu0 %v936
    %v3451 = vpop.f32.mrf.mxu0
    %v3452 = vadd.f32 %v3409, %v3451
    %v3453 = vpop.f32.mrf.mxu0
    %v3454 = vadd.f32 %v3411, %v3453
    %v3455 = vpop.f32.mrf.mxu0
    %v3456 = vadd.f32 %v3413, %v3455
    %v3457 = vpop.f32.mrf.mxu0
    %v3458 = vadd.f32 %v3415, %v3457
    %3459 = vdwg.mxu0
    %v3460 = vpack.c.bf16 %v3026, %v3022
    %v3461 = vpack.c.bf16 %v3028, %v3024
    %v3462 = vpack.c.bf16 %v3112, %v3108
    %v3463 = vpack.c.bf16 %v3114, %v3110
    %v3464 = vpack.c.bf16 %v3198, %v3194
    %v3465 = vpack.c.bf16 %v3200, %v3196
    %v3466 = vpack.c.bf16 %v3284, %v3280
    %v3467 = vpack.c.bf16 %v3286, %v3282
    %v3468 = vpack.c.bf16 %v3370, %v3366
    %v3469 = vpack.c.bf16 %v3372, %v3368
    %v3470 = vpack.c.bf16 %v3456, %v3452
    %v3471 = vpack.c.bf16 %v3458, %v3454
    %v3484 = vunpack.c.l.b16 %v3460
    %v3485 = vunpack.c.l.b16 %v3461
    %v3486 = vunpack.c.l.b16 %v3462
    %v3487 = vunpack.c.l.b16 %v3463
    %v3488 = vunpack.c.l.b16 %v3464
    %v3489 = vunpack.c.l.b16 %v3465
    %v3490 = vunpack.c.l.b16 %v3466
    %v3491 = vunpack.c.l.b16 %v3467
    %v3492 = vunpack.c.l.b16 %v3468
    %v3493 = vunpack.c.l.b16 %v3469
    %v3494 = vunpack.c.l.b16 %v3470
    %v3495 = vunpack.c.l.b16 %v3471
    %v3496 = vunpack.c.h.b16 %v3460
    %v3497 = vunpack.c.h.b16 %v3461
    %v3498 = vunpack.c.h.b16 %v3462
    %v3499 = vunpack.c.h.b16 %v3463
    %v3500 = vunpack.c.h.b16 %v3464
    %v3501 = vunpack.c.h.b16 %v3465
    %v3502 = vunpack.c.h.b16 %v3466
    %v3503 = vunpack.c.h.b16 %v3467
    %v3504 = vunpack.c.h.b16 %v3468
    %v3505 = vunpack.c.h.b16 %v3469
    %v3506 = vunpack.c.h.b16 %v3470
    %v3507 = vunpack.c.h.b16 %v3471
    %v3508 = vpack.c.b16 %v3485, %v3484
    %v3509 = vpack.c.b16 %v3487, %v3486
    %v3510 = vpack.c.b16 %v3489, %v3488
    %v3511 = vpack.c.b16 %v3491, %v3490
    %v3512 = vpack.c.b16 %v3493, %v3492
    %v3513 = vpack.c.b16 %v3495, %v3494
    %v3514 = vpack.c.b16 %v3497, %v3496
    %v3515 = vpack.c.b16 %v3499, %v3498
    %v3516 = vpack.c.b16 %v3501, %v3500
    %v3517 = vpack.c.b16 %v3503, %v3502
    %v3518 = vpack.c.b16 %v3505, %v3504
    %v3519 = vpack.c.b16 %v3507, %v3506
    %3532 = vst [vmem:[#allocation3] sm:$0xff] %v3508
    %3533 = vst [vmem:[#allocation3 + $0x8] sm:$0xff] %v3509
    %3534 = vst [vmem:[#allocation3 + $0x10] sm:$0xff] %v3510
    %3535 = vst [vmem:[#allocation3 + $0x18] sm:$0xff] %v3511
    %3536 = vst [vmem:[#allocation3 + $0x20] sm:$0xff] %v3512
    %3537 = vst [vmem:[#allocation3 + $0x28] sm:$0xff] %v3513
    %3538 = vst [vmem:[#allocation3 + $0x30] sm:$0xff] %v3514
    %3539 = vst [vmem:[#allocation3 + $0x38] sm:$0xff] %v3515
    %3540 = vst [vmem:[#allocation3 + $0x40] sm:$0xff] %v3516
    %3541 = vst [vmem:[#allocation3 + $0x48] sm:$0xff] %v3517
    %3542 = vst [vmem:[#allocation3 + $0x50] sm:$0xff] %v3518
    %3543 = vst [vmem:[#allocation3 + $0x58] sm:$0xff] %v3519
    %v3544 = vld [vmem:[#allocation4] sm:$0xff]
    %v3545 = vld [vmem:[#allocation4 + $0x8] sm:$0xff]
    %v3546 = vld [vmem:[#allocation4 + $0x10] sm:$0xff]
    %v3547 = vld [vmem:[#allocation4 + $0x18] sm:$0xff]
    %v3548 = vld [vmem:[#allocation4 + $0x20] sm:$0xff]
    %v3549 = vld [vmem:[#allocation4 + $0x28] sm:$0xff]
    %v3550 = vld [vmem:[#allocation4 + $0x30] sm:$0xff]
    %v3551 = vld [vmem:[#allocation4 + $0x38] sm:$0xff]
    loop: start=0, step=1, limit=8
    $region66: #{tpu_custom_call.1} parent=1 // loop_pre_header
      _
    $region67: #{tpu_custom_call.1} parent=1 // loop_header
      %s3553 = sphi 0, %s3557
      %p3554 = scmp.ge.s32.totalorder %s3553, 8
      %v3558 = vphi %v3544, %v3573
      %v3559 = vphi %v3545, %v3574
      %v3560 = vphi %v3546, %v3575
      %v3561 = vphi %v3547, %v3576
      %v3562 = vphi %v3548, %v3577
      %v3563 = vphi %v3549, %v3578
      %v3564 = vphi %v3550, %v3579
      %v3565 = vphi %v3551, %v3580
    $region68: #{tpu_custom_call.1} parent=1 // loop_header_branch
      %3556 = sbr.rel (%p3554) target = $region72
    $region69: #{tpu_custom_call.1} parent=1 // loop_body
      %s3566 = sadd.s32 %s3553, 1
      // While loop
      $region73: #{tpu_custom_call.1} parent=69 // loop_pre_header
        _
      $region74: #{tpu_custom_call.1} parent=69 // loop_header
        %s3568 = sphi 0, %s3570
        %p3569 = scmp.ge.s32.totalorder %s3568, %s3566
        %v3573 = vphi %v3558, %v6228
        %v3574 = vphi %v3559, %v6229
        %v3575 = vphi %v3560, %v6230
        %v3576 = vphi %v3561, %v6231
        %v3577 = vphi %v3562, %v6232
        %v3578 = vphi %v3563, %v6233
        %v3579 = vphi %v3564, %v6234
        %v3580 = vphi %v3565, %v6235
      $region75: #{tpu_custom_call.1} parent=69 // loop_header_branch
        %3572 = sbr.rel (%p3569) target = $region79
      $region76: #{tpu_custom_call.1} parent=69 // loop_body
        %s3581 = smul.u32 %s3568, 24
        %s3582 = smul.addr %s3581, 4
        %s3583 = scalar_lea.vmem [#allocation3], %s3582
        %v3584 = vld [vmem:[%s3583] sm:$0xff]
        %v3585 = vld [vmem:[%s3583 + $0x8] sm:$0xff]
        %v3586 = vld [vmem:[%s3583 + $0x10] sm:$0xff]
        %v3587 = vld [vmem:[%s3583 + $0x18] sm:$0xff]
        %v3588 = vld [vmem:[%s3583 + $0x20] sm:$0xff]
        %v3589 = vld [vmem:[%s3583 + $0x28] sm:$0xff]
        %v3590 = vld [vmem:[%s3583 + $0x30] sm:$0xff]
        %v3591 = vld [vmem:[%s3583 + $0x38] sm:$0xff]
        %v3592 = vld [vmem:[%s3583 + $0x40] sm:$0xff]
        %v3593 = vld [vmem:[%s3583 + $0x48] sm:$0xff]
        %v3594 = vld [vmem:[%s3583 + $0x50] sm:$0xff]
        %v3595 = vld [vmem:[%s3583 + $0x58] sm:$0xff]
        %v3596 = vpack.c.bf16 %v3577, %v3573
        %v3597 = vpack.c.bf16 %v3578, %v3574
        %v3598 = vpack.c.bf16 %v3579, %v3575
        %v3599 = vpack.c.bf16 %v3580, %v3576
        %v3984 = vunpack.c.l.b16 %v518
        %v3985 = vunpack.c.h.b16 %v518
        %v3986 = vunpack.c.l.b16 %v519
        %v3987 = vunpack.c.h.b16 %v519
        %v3988 = vunpack.c.l.b16 %v520
        %v3989 = vunpack.c.h.b16 %v520
        %v3990 = vunpack.c.l.b16 %v521
        %v3991 = vunpack.c.h.b16 %v521
        %v3992 = vunpack.c.l.b16 %v522
        %v3993 = vunpack.c.h.b16 %v522
        %v3994 = vunpack.c.l.b16 %v523
        %v3995 = vunpack.c.h.b16 %v523
        %v3996 = vunpack.c.l.b16 %v524
        %v3997 = vunpack.c.h.b16 %v524
        %v3998 = vunpack.c.l.b16 %v525
        %v3999 = vunpack.c.h.b16 %v525
        %v4000 = vunpack.c.l.b16 %v526
        %v4001 = vunpack.c.h.b16 %v526
        %v4002 = vunpack.c.l.b16 %v527
        %v4003 = vunpack.c.h.b16 %v527
        %v4004 = vunpack.c.l.b16 %v528
        %v4005 = vunpack.c.h.b16 %v528
        %v4006 = vunpack.c.l.b16 %v529
        %v4007 = vunpack.c.h.b16 %v529
        %v4008 = vunpack.c.l.b16 %v530
        %v4009 = vunpack.c.h.b16 %v530
        %v4010 = vunpack.c.l.b16 %v531
        %v4011 = vunpack.c.h.b16 %v531
        %v4012 = vunpack.c.l.b16 %v532
        %v4013 = vunpack.c.h.b16 %v532
        %v4014 = vunpack.c.l.b16 %v533
        %v4015 = vunpack.c.h.b16 %v533
        %v4016 = vunpack.c.l.b16 %v534
        %v4017 = vunpack.c.h.b16 %v534
        %v4018 = vunpack.c.l.b16 %v535
        %v4019 = vunpack.c.h.b16 %v535
        %v4020 = vunpack.c.l.b16 %v536
        %v4021 = vunpack.c.h.b16 %v536
        %v4022 = vunpack.c.l.b16 %v537
        %v4023 = vunpack.c.h.b16 %v537
        %v4024 = vunpack.c.l.b16 %v538
        %v4025 = vunpack.c.h.b16 %v538
        %v4026 = vunpack.c.l.b16 %v539
        %v4027 = vunpack.c.h.b16 %v539
        %v4028 = vunpack.c.l.b16 %v540
        %v4029 = vunpack.c.h.b16 %v540
        %v4030 = vunpack.c.l.b16 %v541
        %v4031 = vunpack.c.h.b16 %v541
        %v4032 = vunpack.c.l.b16 %v542
        %v4033 = vunpack.c.h.b16 %v542
        %v4034 = vunpack.c.l.b16 %v543
        %v4035 = vunpack.c.h.b16 %v543
        %v4036 = vunpack.c.l.b16 %v544
        %v4037 = vunpack.c.h.b16 %v544
        %v4038 = vunpack.c.l.b16 %v545
        %v4039 = vunpack.c.h.b16 %v545
        %v4040 = vunpack.c.l.b16 %v546
        %v4041 = vunpack.c.h.b16 %v546
        %v4042 = vunpack.c.l.b16 %v547
        %v4043 = vunpack.c.h.b16 %v547
        %v4044 = vunpack.c.l.b16 %v548
        %v4045 = vunpack.c.h.b16 %v548
        %v4046 = vunpack.c.l.b16 %v549
        %v4047 = vunpack.c.h.b16 %v549
        %v4048 = vunpack.c.l.b16 %v550
        %v4049 = vunpack.c.h.b16 %v550
        %v4050 = vunpack.c.l.b16 %v551
        %v4051 = vunpack.c.h.b16 %v551
        %v4052 = vunpack.c.l.b16 %v552
        %v4053 = vunpack.c.h.b16 %v552
        %v4054 = vunpack.c.l.b16 %v553
        %v4055 = vunpack.c.h.b16 %v553
        %v4056 = vunpack.c.l.b16 %v554
        %v4057 = vunpack.c.h.b16 %v554
        %v4058 = vunpack.c.l.b16 %v555
        %v4059 = vunpack.c.h.b16 %v555
        %v4060 = vunpack.c.l.b16 %v556
        %v4061 = vunpack.c.h.b16 %v556
        %v4062 = vunpack.c.l.b16 %v557
        %v4063 = vunpack.c.h.b16 %v557
        %v4064 = vunpack.c.l.b16 %v558
        %v4065 = vunpack.c.h.b16 %v558
        %v4066 = vunpack.c.l.b16 %v559
        %v4067 = vunpack.c.h.b16 %v559
        %v4068 = vunpack.c.l.b16 %v560
        %v4069 = vunpack.c.h.b16 %v560
        %v4070 = vunpack.c.l.b16 %v561
        %v4071 = vunpack.c.h.b16 %v561
        %v4072 = vunpack.c.l.b16 %v562
        %v4073 = vunpack.c.h.b16 %v562
        %v4074 = vunpack.c.l.b16 %v563
        %v4075 = vunpack.c.h.b16 %v563
        %v4076 = vunpack.c.l.b16 %v564
        %v4077 = vunpack.c.h.b16 %v564
        %v4078 = vunpack.c.l.b16 %v565
        %v4079 = vunpack.c.h.b16 %v565
        %v4080 = vunpack.c.l.b16 %v566
        %v4081 = vunpack.c.h.b16 %v566
        %v4082 = vunpack.c.l.b16 %v567
        %v4083 = vunpack.c.h.b16 %v567
        %v4084 = vunpack.c.l.b16 %v568
        %v4085 = vunpack.c.h.b16 %v568
        %v4086 = vunpack.c.l.b16 %v569
        %v4087 = vunpack.c.h.b16 %v569
        %v4088 = vunpack.c.l.b16 %v570
        %v4089 = vunpack.c.h.b16 %v570
        %v4090 = vunpack.c.l.b16 %v571
        %v4091 = vunpack.c.h.b16 %v571
        %v4092 = vunpack.c.l.b16 %v572
        %v4093 = vunpack.c.h.b16 %v572
        %v4094 = vunpack.c.l.b16 %v573
        %v4095 = vunpack.c.h.b16 %v573
        %v4096 = vunpack.c.l.b16 %v574
        %v4097 = vunpack.c.h.b16 %v574
        %v4098 = vunpack.c.l.b16 %v575
        %v4099 = vunpack.c.h.b16 %v575
        %v4100 = vunpack.c.l.b16 %v576
        %v4101 = vunpack.c.h.b16 %v576
        %v4102 = vunpack.c.l.b16 %v577
        %v4103 = vunpack.c.h.b16 %v577
        %v4104 = vunpack.c.l.b16 %v578
        %v4105 = vunpack.c.h.b16 %v578
        %v4106 = vunpack.c.l.b16 %v579
        %v4107 = vunpack.c.h.b16 %v579
        %v4108 = vunpack.c.l.b16 %v580
        %v4109 = vunpack.c.h.b16 %v580
        %v4110 = vunpack.c.l.b16 %v581
        %v4111 = vunpack.c.h.b16 %v581
        %v4112 = vunpack.c.l.b16 %v582
        %v4113 = vunpack.c.h.b16 %v582
        %v4114 = vunpack.c.l.b16 %v583
        %v4115 = vunpack.c.h.b16 %v583
        %v4116 = vunpack.c.l.b16 %v584
        %v4117 = vunpack.c.h.b16 %v584
        %v4118 = vunpack.c.l.b16 %v585
        %v4119 = vunpack.c.h.b16 %v585
        %v4120 = vunpack.c.l.b16 %v586
        %v4121 = vunpack.c.h.b16 %v586
        %v4122 = vunpack.c.l.b16 %v587
        %v4123 = vunpack.c.h.b16 %v587
        %v4124 = vunpack.c.l.b16 %v588
        %v4125 = vunpack.c.h.b16 %v588
        %v4126 = vunpack.c.l.b16 %v589
        %v4127 = vunpack.c.h.b16 %v589
        %v4128 = vunpack.c.l.b16 %v590
        %v4129 = vunpack.c.h.b16 %v590
        %v4130 = vunpack.c.l.b16 %v591
        %v4131 = vunpack.c.h.b16 %v591
        %v4132 = vunpack.c.l.b16 %v592
        %v4133 = vunpack.c.h.b16 %v592
        %v4134 = vunpack.c.l.b16 %v593
        %v4135 = vunpack.c.h.b16 %v593
        %v4136 = vunpack.c.l.b16 %v594
        %v4137 = vunpack.c.h.b16 %v594
        %v4138 = vunpack.c.l.b16 %v595
        %v4139 = vunpack.c.h.b16 %v595
        %v4140 = vunpack.c.l.b16 %v596
        %v4141 = vunpack.c.h.b16 %v596
        %v4142 = vunpack.c.l.b16 %v597
        %v4143 = vunpack.c.h.b16 %v597
        %v4144 = vunpack.c.l.b16 %v598
        %v4145 = vunpack.c.h.b16 %v598
        %v4146 = vunpack.c.l.b16 %v599
        %v4147 = vunpack.c.h.b16 %v599
        %v4148 = vunpack.c.l.b16 %v600
        %v4149 = vunpack.c.h.b16 %v600
        %v4150 = vunpack.c.l.b16 %v601
        %v4151 = vunpack.c.h.b16 %v601
        %v4152 = vunpack.c.l.b16 %v602
        %v4153 = vunpack.c.h.b16 %v602
        %v4154 = vunpack.c.l.b16 %v603
        %v4155 = vunpack.c.h.b16 %v603
        %v4156 = vunpack.c.l.b16 %v604
        %v4157 = vunpack.c.h.b16 %v604
        %v4158 = vunpack.c.l.b16 %v605
        %v4159 = vunpack.c.h.b16 %v605
        %v4160 = vunpack.c.l.b16 %v606
        %v4161 = vunpack.c.h.b16 %v606
        %v4162 = vunpack.c.l.b16 %v607
        %v4163 = vunpack.c.h.b16 %v607
        %v4164 = vunpack.c.l.b16 %v608
        %v4165 = vunpack.c.h.b16 %v608
        %v4166 = vunpack.c.l.b16 %v609
        %v4167 = vunpack.c.h.b16 %v609
        %v4168 = vunpack.c.l.b16 %v610
        %v4169 = vunpack.c.h.b16 %v610
        %v4170 = vunpack.c.l.b16 %v611
        %v4171 = vunpack.c.h.b16 %v611
        %v4172 = vunpack.c.l.b16 %v612
        %v4173 = vunpack.c.h.b16 %v612
        %v4174 = vunpack.c.l.b16 %v613
        %v4175 = vunpack.c.h.b16 %v613
        %v4176 = vunpack.c.l.b16 %v614
        %v4177 = vunpack.c.h.b16 %v614
        %v4178 = vunpack.c.l.b16 %v615
        %v4179 = vunpack.c.h.b16 %v615
        %v4180 = vunpack.c.l.b16 %v616
        %v4181 = vunpack.c.h.b16 %v616
        %v4182 = vunpack.c.l.b16 %v617
        %v4183 = vunpack.c.h.b16 %v617
        %v4184 = vunpack.c.l.b16 %v618
        %v4185 = vunpack.c.h.b16 %v618
        %v4186 = vunpack.c.l.b16 %v619
        %v4187 = vunpack.c.h.b16 %v619
        %v4188 = vunpack.c.l.b16 %v620
        %v4189 = vunpack.c.h.b16 %v620
        %v4190 = vunpack.c.l.b16 %v621
        %v4191 = vunpack.c.h.b16 %v621
        %v4192 = vunpack.c.l.b16 %v622
        %v4193 = vunpack.c.h.b16 %v622
        %v4194 = vunpack.c.l.b16 %v623
        %v4195 = vunpack.c.h.b16 %v623
        %v4196 = vunpack.c.l.b16 %v624
        %v4197 = vunpack.c.h.b16 %v624
        %v4198 = vunpack.c.l.b16 %v625
        %v4199 = vunpack.c.h.b16 %v625
        %v4200 = vunpack.c.l.b16 %v626
        %v4201 = vunpack.c.h.b16 %v626
        %v4202 = vunpack.c.l.b16 %v627
        %v4203 = vunpack.c.h.b16 %v627
        %v4204 = vunpack.c.l.b16 %v628
        %v4205 = vunpack.c.h.b16 %v628
        %v4206 = vunpack.c.l.b16 %v629
        %v4207 = vunpack.c.h.b16 %v629
        %v4208 = vunpack.c.l.b16 %v630
        %v4209 = vunpack.c.h.b16 %v630
        %v4210 = vunpack.c.l.b16 %v631
        %v4211 = vunpack.c.h.b16 %v631
        %v4212 = vunpack.c.l.b16 %v632
        %v4213 = vunpack.c.h.b16 %v632
        %v4214 = vunpack.c.l.b16 %v633
        %v4215 = vunpack.c.h.b16 %v633
        %v4216 = vunpack.c.l.b16 %v634
        %v4217 = vunpack.c.h.b16 %v634
        %v4218 = vunpack.c.l.b16 %v635
        %v4219 = vunpack.c.h.b16 %v635
        %v4220 = vunpack.c.l.b16 %v636
        %v4221 = vunpack.c.h.b16 %v636
        %v4222 = vunpack.c.l.b16 %v637
        %v4223 = vunpack.c.h.b16 %v637
        %v4224 = vunpack.c.l.b16 %v638
        %v4225 = vunpack.c.h.b16 %v638
        %v4226 = vunpack.c.l.b16 %v639
        %v4227 = vunpack.c.h.b16 %v639
        %v4228 = vunpack.c.l.b16 %v640
        %v4229 = vunpack.c.h.b16 %v640
        %v4230 = vunpack.c.l.b16 %v641
        %v4231 = vunpack.c.h.b16 %v641
        %v4232 = vunpack.c.l.b16 %v642
        %v4233 = vunpack.c.h.b16 %v642
        %v4234 = vunpack.c.l.b16 %v643
        %v4235 = vunpack.c.h.b16 %v643
        %v4236 = vunpack.c.l.b16 %v644
        %v4237 = vunpack.c.h.b16 %v644
        %v4238 = vunpack.c.l.b16 %v645
        %v4239 = vunpack.c.h.b16 %v645
        %v4240 = vunpack.c.l.b16 %v646
        %v4241 = vunpack.c.h.b16 %v646
        %v4242 = vunpack.c.l.b16 %v647
        %v4243 = vunpack.c.h.b16 %v647
        %v4244 = vunpack.c.l.b16 %v648
        %v4245 = vunpack.c.h.b16 %v648
        %v4246 = vunpack.c.l.b16 %v649
        %v4247 = vunpack.c.h.b16 %v649
        %v4248 = vunpack.c.l.b16 %v650
        %v4249 = vunpack.c.h.b16 %v650
        %v4250 = vunpack.c.l.b16 %v651
        %v4251 = vunpack.c.h.b16 %v651
        %v4252 = vunpack.c.l.b16 %v652
        %v4253 = vunpack.c.h.b16 %v652
        %v4254 = vunpack.c.l.b16 %v653
        %v4255 = vunpack.c.h.b16 %v653
        %v4256 = vunpack.c.l.b16 %v654
        %v4257 = vunpack.c.h.b16 %v654
        %v4258 = vunpack.c.l.b16 %v655
        %v4259 = vunpack.c.h.b16 %v655
        %v4260 = vunpack.c.l.b16 %v656
        %v4261 = vunpack.c.h.b16 %v656
        %v4262 = vunpack.c.l.b16 %v657
        %v4263 = vunpack.c.h.b16 %v657
        %v4264 = vunpack.c.l.b16 %v658
        %v4265 = vunpack.c.h.b16 %v658
        %v4266 = vunpack.c.l.b16 %v659
        %v4267 = vunpack.c.h.b16 %v659
        %v4268 = vunpack.c.l.b16 %v660
        %v4269 = vunpack.c.h.b16 %v660
        %v4270 = vunpack.c.l.b16 %v661
        %v4271 = vunpack.c.h.b16 %v661
        %v4272 = vunpack.c.l.b16 %v662
        %v4273 = vunpack.c.h.b16 %v662
        %v4274 = vunpack.c.l.b16 %v663
        %v4275 = vunpack.c.h.b16 %v663
        %v4276 = vunpack.c.l.b16 %v664
        %v4277 = vunpack.c.h.b16 %v664
        %v4278 = vunpack.c.l.b16 %v665
        %v4279 = vunpack.c.h.b16 %v665
        %v4280 = vunpack.c.l.b16 %v666
        %v4281 = vunpack.c.h.b16 %v666
        %v4282 = vunpack.c.l.b16 %v667
        %v4283 = vunpack.c.h.b16 %v667
        %v4284 = vunpack.c.l.b16 %v668
        %v4285 = vunpack.c.h.b16 %v668
        %v4286 = vunpack.c.l.b16 %v669
        %v4287 = vunpack.c.h.b16 %v669
        %v4288 = vunpack.c.l.b16 %v670
        %v4289 = vunpack.c.h.b16 %v670
        %v4290 = vunpack.c.l.b16 %v671
        %v4291 = vunpack.c.h.b16 %v671
        %v4292 = vunpack.c.l.b16 %v672
        %v4293 = vunpack.c.h.b16 %v672
        %v4294 = vunpack.c.l.b16 %v673
        %v4295 = vunpack.c.h.b16 %v673
        %v4296 = vunpack.c.l.b16 %v674
        %v4297 = vunpack.c.h.b16 %v674
        %v4298 = vunpack.c.l.b16 %v675
        %v4299 = vunpack.c.h.b16 %v675
        %v4300 = vunpack.c.l.b16 %v676
        %v4301 = vunpack.c.h.b16 %v676
        %v4302 = vunpack.c.l.b16 %v677
        %v4303 = vunpack.c.h.b16 %v677
        %v4304 = vunpack.c.l.b16 %v678
        %v4305 = vunpack.c.h.b16 %v678
        %v4306 = vunpack.c.l.b16 %v679
        %v4307 = vunpack.c.h.b16 %v679
        %v4308 = vunpack.c.l.b16 %v680
        %v4309 = vunpack.c.h.b16 %v680
        %v4310 = vunpack.c.l.b16 %v681
        %v4311 = vunpack.c.h.b16 %v681
        %v4312 = vunpack.c.l.b16 %v682
        %v4313 = vunpack.c.h.b16 %v682
        %v4314 = vunpack.c.l.b16 %v683
        %v4315 = vunpack.c.h.b16 %v683
        %v4316 = vunpack.c.l.b16 %v684
        %v4317 = vunpack.c.h.b16 %v684
        %v4318 = vunpack.c.l.b16 %v685
        %v4319 = vunpack.c.h.b16 %v685
        %v4320 = vunpack.c.l.b16 %v686
        %v4321 = vunpack.c.h.b16 %v686
        %v4322 = vunpack.c.l.b16 %v687
        %v4323 = vunpack.c.h.b16 %v687
        %v4324 = vunpack.c.l.b16 %v688
        %v4325 = vunpack.c.h.b16 %v688
        %v4326 = vunpack.c.l.b16 %v689
        %v4327 = vunpack.c.h.b16 %v689
        %v4328 = vunpack.c.l.b16 %v690
        %v4329 = vunpack.c.h.b16 %v690
        %v4330 = vunpack.c.l.b16 %v691
        %v4331 = vunpack.c.h.b16 %v691
        %v4332 = vunpack.c.l.b16 %v692
        %v4333 = vunpack.c.h.b16 %v692
        %v4334 = vunpack.c.l.b16 %v693
        %v4335 = vunpack.c.h.b16 %v693
        %v4336 = vunpack.c.l.b16 %v694
        %v4337 = vunpack.c.h.b16 %v694
        %v4338 = vunpack.c.l.b16 %v695
        %v4339 = vunpack.c.h.b16 %v695
        %v4340 = vunpack.c.l.b16 %v696
        %v4341 = vunpack.c.h.b16 %v696
        %v4342 = vunpack.c.l.b16 %v697
        %v4343 = vunpack.c.h.b16 %v697
        %v4344 = vunpack.c.l.b16 %v698
        %v4345 = vunpack.c.h.b16 %v698
        %v4346 = vunpack.c.l.b16 %v699
        %v4347 = vunpack.c.h.b16 %v699
        %v4348 = vunpack.c.l.b16 %v700
        %v4349 = vunpack.c.h.b16 %v700
        %v4350 = vunpack.c.l.b16 %v701
        %v4351 = vunpack.c.h.b16 %v701
        %v4352 = vunpack.c.l.b16 %v702
        %v4353 = vunpack.c.h.b16 %v702
        %v4354 = vunpack.c.l.b16 %v703
        %v4355 = vunpack.c.h.b16 %v703
        %v4356 = vunpack.c.l.b16 %v704
        %v4357 = vunpack.c.h.b16 %v704
        %v4358 = vunpack.c.l.b16 %v705
        %v4359 = vunpack.c.h.b16 %v705
        %v4360 = vunpack.c.l.b16 %v706
        %v4361 = vunpack.c.h.b16 %v706
        %v4362 = vunpack.c.l.b16 %v707
        %v4363 = vunpack.c.h.b16 %v707
        %v4364 = vunpack.c.l.b16 %v708
        %v4365 = vunpack.c.h.b16 %v708
        %v4366 = vunpack.c.l.b16 %v709
        %v4367 = vunpack.c.h.b16 %v709
        %v4368 = vunpack.c.l.b16 %v710
        %v4369 = vunpack.c.h.b16 %v710
        %v4370 = vunpack.c.l.b16 %v711
        %v4371 = vunpack.c.h.b16 %v711
        %v4372 = vunpack.c.l.b16 %v712
        %v4373 = vunpack.c.h.b16 %v712
        %v4374 = vunpack.c.l.b16 %v713
        %v4375 = vunpack.c.h.b16 %v713
        %v4376 = vunpack.c.l.b16 %v714
        %v4377 = vunpack.c.h.b16 %v714
        %v4378 = vunpack.c.l.b16 %v715
        %v4379 = vunpack.c.h.b16 %v715
        %v4380 = vunpack.c.l.b16 %v716
        %v4381 = vunpack.c.h.b16 %v716
        %v4382 = vunpack.c.l.b16 %v717
        %v4383 = vunpack.c.h.b16 %v717
        %v4384 = vunpack.c.l.b16 %v718
        %v4385 = vunpack.c.h.b16 %v718
        %v4386 = vunpack.c.l.b16 %v719
        %v4387 = vunpack.c.h.b16 %v719
        %v4388 = vunpack.c.l.b16 %v720
        %v4389 = vunpack.c.h.b16 %v720
        %v4390 = vunpack.c.l.b16 %v721
        %v4391 = vunpack.c.h.b16 %v721
        %v4392 = vunpack.c.l.b16 %v722
        %v4393 = vunpack.c.h.b16 %v722
        %v4394 = vunpack.c.l.b16 %v723
        %v4395 = vunpack.c.h.b16 %v723
        %v4396 = vunpack.c.l.b16 %v724
        %v4397 = vunpack.c.h.b16 %v724
        %v4398 = vunpack.c.l.b16 %v725
        %v4399 = vunpack.c.h.b16 %v725
        %v4400 = vunpack.c.l.b16 %v726
        %v4401 = vunpack.c.h.b16 %v726
        %v4402 = vunpack.c.l.b16 %v727
        %v4403 = vunpack.c.h.b16 %v727
        %v4404 = vunpack.c.l.b16 %v728
        %v4405 = vunpack.c.h.b16 %v728
        %v4406 = vunpack.c.l.b16 %v729
        %v4407 = vunpack.c.h.b16 %v729
        %v4408 = vunpack.c.l.b16 %v730
        %v4409 = vunpack.c.h.b16 %v730
        %v4410 = vunpack.c.l.b16 %v731
        %v4411 = vunpack.c.h.b16 %v731
        %v4412 = vunpack.c.l.b16 %v732
        %v4413 = vunpack.c.h.b16 %v732
        %v4414 = vunpack.c.l.b16 %v733
        %v4415 = vunpack.c.h.b16 %v733
        %v4416 = vunpack.c.l.b16 %v734
        %v4417 = vunpack.c.h.b16 %v734
        %v4418 = vunpack.c.l.b16 %v735
        %v4419 = vunpack.c.h.b16 %v735
        %v4420 = vunpack.c.l.b16 %v736
        %v4421 = vunpack.c.h.b16 %v736
        %v4422 = vunpack.c.l.b16 %v737
        %v4423 = vunpack.c.h.b16 %v737
        %v4424 = vunpack.c.l.b16 %v738
        %v4425 = vunpack.c.h.b16 %v738
        %v4426 = vunpack.c.l.b16 %v739
        %v4427 = vunpack.c.h.b16 %v739
        %v4428 = vunpack.c.l.b16 %v740
        %v4429 = vunpack.c.h.b16 %v740
        %v4430 = vunpack.c.l.b16 %v741
        %v4431 = vunpack.c.h.b16 %v741
        %v4432 = vunpack.c.l.b16 %v742
        %v4433 = vunpack.c.h.b16 %v742
        %v4434 = vunpack.c.l.b16 %v743
        %v4435 = vunpack.c.h.b16 %v743
        %v4436 = vunpack.c.l.b16 %v744
        %v4437 = vunpack.c.h.b16 %v744
        %v4438 = vunpack.c.l.b16 %v745
        %v4439 = vunpack.c.h.b16 %v745
        %v4440 = vunpack.c.l.b16 %v746
        %v4441 = vunpack.c.h.b16 %v746
        %v4442 = vunpack.c.l.b16 %v747
        %v4443 = vunpack.c.h.b16 %v747
        %v4444 = vunpack.c.l.b16 %v748
        %v4445 = vunpack.c.h.b16 %v748
        %v4446 = vunpack.c.l.b16 %v749
        %v4447 = vunpack.c.h.b16 %v749
        %v4448 = vunpack.c.l.b16 %v750
        %v4449 = vunpack.c.h.b16 %v750
        %v4450 = vunpack.c.l.b16 %v751
        %v4451 = vunpack.c.h.b16 %v751
        %v4452 = vunpack.c.l.b16 %v752
        %v4453 = vunpack.c.h.b16 %v752
        %v4454 = vunpack.c.l.b16 %v753
        %v4455 = vunpack.c.h.b16 %v753
        %v4456 = vunpack.c.l.b16 %v754
        %v4457 = vunpack.c.h.b16 %v754
        %v4458 = vunpack.c.l.b16 %v755
        %v4459 = vunpack.c.h.b16 %v755
        %v4460 = vunpack.c.l.b16 %v756
        %v4461 = vunpack.c.h.b16 %v756
        %v4462 = vunpack.c.l.b16 %v757
        %v4463 = vunpack.c.h.b16 %v757
        %v4464 = vunpack.c.l.b16 %v758
        %v4465 = vunpack.c.h.b16 %v758
        %v4466 = vunpack.c.l.b16 %v759
        %v4467 = vunpack.c.h.b16 %v759
        %v4468 = vunpack.c.l.b16 %v760
        %v4469 = vunpack.c.h.b16 %v760
        %v4470 = vunpack.c.l.b16 %v761
        %v4471 = vunpack.c.h.b16 %v761
        %v4472 = vunpack.c.l.b16 %v762
        %v4473 = vunpack.c.h.b16 %v762
        %v4474 = vunpack.c.l.b16 %v763
        %v4475 = vunpack.c.h.b16 %v763
        %v4476 = vunpack.c.l.b16 %v764
        %v4477 = vunpack.c.h.b16 %v764
        %v4478 = vunpack.c.l.b16 %v765
        %v4479 = vunpack.c.h.b16 %v765
        %v4480 = vunpack.c.l.b16 %v766
        %v4481 = vunpack.c.h.b16 %v766
        %v4482 = vunpack.c.l.b16 %v767
        %v4483 = vunpack.c.h.b16 %v767
        %v4484 = vunpack.c.l.b16 %v768
        %v4485 = vunpack.c.h.b16 %v768
        %v4486 = vunpack.c.l.b16 %v769
        %v4487 = vunpack.c.h.b16 %v769
        %v4488 = vunpack.c.l.b16 %v770
        %v4489 = vunpack.c.h.b16 %v770
        %v4490 = vunpack.c.l.b16 %v771
        %v4491 = vunpack.c.h.b16 %v771
        %v4492 = vunpack.c.l.b16 %v772
        %v4493 = vunpack.c.h.b16 %v772
        %v4494 = vunpack.c.l.b16 %v773
        %v4495 = vunpack.c.h.b16 %v773
        %v4496 = vunpack.c.l.b16 %v774
        %v4497 = vunpack.c.h.b16 %v774
        %v4498 = vunpack.c.l.b16 %v775
        %v4499 = vunpack.c.h.b16 %v775
        %v4500 = vunpack.c.l.b16 %v776
        %v4501 = vunpack.c.h.b16 %v776
        %v4502 = vunpack.c.l.b16 %v777
        %v4503 = vunpack.c.h.b16 %v777
        %v4504 = vunpack.c.l.b16 %v778
        %v4505 = vunpack.c.h.b16 %v778
        %v4506 = vunpack.c.l.b16 %v779
        %v4507 = vunpack.c.h.b16 %v779
        %v4508 = vunpack.c.l.b16 %v780
        %v4509 = vunpack.c.h.b16 %v780
        %v4510 = vunpack.c.l.b16 %v781
        %v4511 = vunpack.c.h.b16 %v781
        %v4512 = vunpack.c.l.b16 %v782
        %v4513 = vunpack.c.h.b16 %v782
        %v4514 = vunpack.c.l.b16 %v783
        %v4515 = vunpack.c.h.b16 %v783
        %v4516 = vunpack.c.l.b16 %v784
        %v4517 = vunpack.c.h.b16 %v784
        %v4518 = vunpack.c.l.b16 %v785
        %v4519 = vunpack.c.h.b16 %v785
        %v4520 = vunpack.c.l.b16 %v786
        %v4521 = vunpack.c.h.b16 %v786
        %v4522 = vunpack.c.l.b16 %v787
        %v4523 = vunpack.c.h.b16 %v787
        %v4524 = vunpack.c.l.b16 %v788
        %v4525 = vunpack.c.h.b16 %v788
        %v4526 = vunpack.c.l.b16 %v789
        %v4527 = vunpack.c.h.b16 %v789
        %v4528 = vunpack.c.l.b16 %v790
        %v4529 = vunpack.c.h.b16 %v790
        %v4530 = vunpack.c.l.b16 %v791
        %v4531 = vunpack.c.h.b16 %v791
        %v4532 = vunpack.c.l.b16 %v792
        %v4533 = vunpack.c.h.b16 %v792
        %v4534 = vunpack.c.l.b16 %v793
        %v4535 = vunpack.c.h.b16 %v793
        %v4536 = vunpack.c.l.b16 %v794
        %v4537 = vunpack.c.h.b16 %v794
        %v4538 = vunpack.c.l.b16 %v795
        %v4539 = vunpack.c.h.b16 %v795
        %v4540 = vunpack.c.l.b16 %v796
        %v4541 = vunpack.c.h.b16 %v796
        %v4542 = vunpack.c.l.b16 %v797
        %v4543 = vunpack.c.h.b16 %v797
        %v4544 = vunpack.c.l.b16 %v798
        %v4545 = vunpack.c.h.b16 %v798
        %v4546 = vunpack.c.l.b16 %v799
        %v4547 = vunpack.c.h.b16 %v799
        %v4548 = vunpack.c.l.b16 %v800
        %v4549 = vunpack.c.h.b16 %v800
        %v4550 = vunpack.c.l.b16 %v801
        %v4551 = vunpack.c.h.b16 %v801
        %v4552 = vunpack.c.l.b16 %v802
        %v4553 = vunpack.c.h.b16 %v802
        %v4554 = vunpack.c.l.b16 %v803
        %v4555 = vunpack.c.h.b16 %v803
        %v4556 = vunpack.c.l.b16 %v804
        %v4557 = vunpack.c.h.b16 %v804
        %v4558 = vunpack.c.l.b16 %v805
        %v4559 = vunpack.c.h.b16 %v805
        %v4560 = vunpack.c.l.b16 %v806
        %v4561 = vunpack.c.h.b16 %v806
        %v4562 = vunpack.c.l.b16 %v807
        %v4563 = vunpack.c.h.b16 %v807
        %v4564 = vunpack.c.l.b16 %v808
        %v4565 = vunpack.c.h.b16 %v808
        %v4566 = vunpack.c.l.b16 %v809
        %v4567 = vunpack.c.h.b16 %v809
        %v4568 = vunpack.c.l.b16 %v810
        %v4569 = vunpack.c.h.b16 %v810
        %v4570 = vunpack.c.l.b16 %v811
        %v4571 = vunpack.c.h.b16 %v811
        %v4572 = vunpack.c.l.b16 %v812
        %v4573 = vunpack.c.h.b16 %v812
        %v4574 = vunpack.c.l.b16 %v813
        %v4575 = vunpack.c.h.b16 %v813
        %v4576 = vunpack.c.l.b16 %v814
        %v4577 = vunpack.c.h.b16 %v814
        %v4578 = vunpack.c.l.b16 %v815
        %v4579 = vunpack.c.h.b16 %v815
        %v4580 = vunpack.c.l.b16 %v816
        %v4581 = vunpack.c.h.b16 %v816
        %v4582 = vunpack.c.l.b16 %v817
        %v4583 = vunpack.c.h.b16 %v817
        %v4584 = vunpack.c.l.b16 %v818
        %v4585 = vunpack.c.h.b16 %v818
        %v4586 = vunpack.c.l.b16 %v819
        %v4587 = vunpack.c.h.b16 %v819
        %v4588 = vunpack.c.l.b16 %v820
        %v4589 = vunpack.c.h.b16 %v820
        %v4590 = vunpack.c.l.b16 %v821
        %v4591 = vunpack.c.h.b16 %v821
        %v4592 = vunpack.c.l.b16 %v822
        %v4593 = vunpack.c.h.b16 %v822
        %v4594 = vunpack.c.l.b16 %v823
        %v4595 = vunpack.c.h.b16 %v823
        %v4596 = vunpack.c.l.b16 %v824
        %v4597 = vunpack.c.h.b16 %v824
        %v4598 = vunpack.c.l.b16 %v825
        %v4599 = vunpack.c.h.b16 %v825
        %v4600 = vunpack.c.l.b16 %v826
        %v4601 = vunpack.c.h.b16 %v826
        %v4602 = vunpack.c.l.b16 %v827
        %v4603 = vunpack.c.h.b16 %v827
        %v4604 = vunpack.c.l.b16 %v828
        %v4605 = vunpack.c.h.b16 %v828
        %v4606 = vunpack.c.l.b16 %v829
        %v4607 = vunpack.c.h.b16 %v829
        %v4608 = vunpack.c.l.b16 %v830
        %v4609 = vunpack.c.h.b16 %v830
        %v4610 = vunpack.c.l.b16 %v831
        %v4611 = vunpack.c.h.b16 %v831
        %v4612 = vunpack.c.l.b16 %v832
        %v4613 = vunpack.c.h.b16 %v832
        %v4614 = vunpack.c.l.b16 %v833
        %v4615 = vunpack.c.h.b16 %v833
        %v4616 = vunpack.c.l.b16 %v834
        %v4617 = vunpack.c.h.b16 %v834
        %v4618 = vunpack.c.l.b16 %v835
        %v4619 = vunpack.c.h.b16 %v835
        %v4620 = vunpack.c.l.b16 %v836
        %v4621 = vunpack.c.h.b16 %v836
        %v4622 = vunpack.c.l.b16 %v837
        %v4623 = vunpack.c.h.b16 %v837
        %v4624 = vunpack.c.l.b16 %v838
        %v4625 = vunpack.c.h.b16 %v838
        %v4626 = vunpack.c.l.b16 %v839
        %v4627 = vunpack.c.h.b16 %v839
        %v4628 = vunpack.c.l.b16 %v840
        %v4629 = vunpack.c.h.b16 %v840
        %v4630 = vunpack.c.l.b16 %v841
        %v4631 = vunpack.c.h.b16 %v841
        %v4632 = vunpack.c.l.b16 %v842
        %v4633 = vunpack.c.h.b16 %v842
        %v4634 = vunpack.c.l.b16 %v843
        %v4635 = vunpack.c.h.b16 %v843
        %v4636 = vunpack.c.l.b16 %v844
        %v4637 = vunpack.c.h.b16 %v844
        %v4638 = vunpack.c.l.b16 %v845
        %v4639 = vunpack.c.h.b16 %v845
        %v4640 = vunpack.c.l.b16 %v846
        %v4641 = vunpack.c.h.b16 %v846
        %v4642 = vunpack.c.l.b16 %v847
        %v4643 = vunpack.c.h.b16 %v847
        %v4644 = vunpack.c.l.b16 %v848
        %v4645 = vunpack.c.h.b16 %v848
        %v4646 = vunpack.c.l.b16 %v849
        %v4647 = vunpack.c.h.b16 %v849
        %v4648 = vunpack.c.l.b16 %v850
        %v4649 = vunpack.c.h.b16 %v850
        %v4650 = vunpack.c.l.b16 %v851
        %v4651 = vunpack.c.h.b16 %v851
        %v4652 = vunpack.c.l.b16 %v852
        %v4653 = vunpack.c.h.b16 %v852
        %v4654 = vunpack.c.l.b16 %v853
        %v4655 = vunpack.c.h.b16 %v853
        %v4656 = vunpack.c.l.b16 %v854
        %v4657 = vunpack.c.h.b16 %v854
        %v4658 = vunpack.c.l.b16 %v855
        %v4659 = vunpack.c.h.b16 %v855
        %v4660 = vunpack.c.l.b16 %v856
        %v4661 = vunpack.c.h.b16 %v856
        %v4662 = vunpack.c.l.b16 %v857
        %v4663 = vunpack.c.h.b16 %v857
        %v4664 = vunpack.c.l.b16 %v858
        %v4665 = vunpack.c.h.b16 %v858
        %v4666 = vunpack.c.l.b16 %v859
        %v4667 = vunpack.c.h.b16 %v859
        %v4668 = vunpack.c.l.b16 %v860
        %v4669 = vunpack.c.h.b16 %v860
        %v4670 = vunpack.c.l.b16 %v861
        %v4671 = vunpack.c.h.b16 %v861
        %v4672 = vunpack.c.l.b16 %v862
        %v4673 = vunpack.c.h.b16 %v862
        %v4674 = vunpack.c.l.b16 %v863
        %v4675 = vunpack.c.h.b16 %v863
        %v4676 = vunpack.c.l.b16 %v864
        %v4677 = vunpack.c.h.b16 %v864
        %v4678 = vunpack.c.l.b16 %v865
        %v4679 = vunpack.c.h.b16 %v865
        %v4680 = vunpack.c.l.b16 %v866
        %v4681 = vunpack.c.h.b16 %v866
        %v4682 = vunpack.c.l.b16 %v867
        %v4683 = vunpack.c.h.b16 %v867
        %v4684 = vunpack.c.l.b16 %v868
        %v4685 = vunpack.c.h.b16 %v868
        %v4686 = vunpack.c.l.b16 %v869
        %v4687 = vunpack.c.h.b16 %v869
        %v4688 = vunpack.c.l.b16 %v870
        %v4689 = vunpack.c.h.b16 %v870
        %v4690 = vunpack.c.l.b16 %v871
        %v4691 = vunpack.c.h.b16 %v871
        %v4692 = vunpack.c.l.b16 %v872
        %v4693 = vunpack.c.h.b16 %v872
        %v4694 = vunpack.c.l.b16 %v873
        %v4695 = vunpack.c.h.b16 %v873
        %v4696 = vunpack.c.l.b16 %v874
        %v4697 = vunpack.c.h.b16 %v874
        %v4698 = vunpack.c.l.b16 %v875
        %v4699 = vunpack.c.h.b16 %v875
        %v4700 = vunpack.c.l.b16 %v876
        %v4701 = vunpack.c.h.b16 %v876
        %v4702 = vunpack.c.l.b16 %v877
        %v4703 = vunpack.c.h.b16 %v877
        %v4704 = vunpack.c.l.b16 %v878
        %v4705 = vunpack.c.h.b16 %v878
        %v4706 = vunpack.c.l.b16 %v879
        %v4707 = vunpack.c.h.b16 %v879
        %v4708 = vunpack.c.l.b16 %v880
        %v4709 = vunpack.c.h.b16 %v880
        %v4710 = vunpack.c.l.b16 %v881
        %v4711 = vunpack.c.h.b16 %v881
        %v4712 = vunpack.c.l.b16 %v882
        %v4713 = vunpack.c.h.b16 %v882
        %v4714 = vunpack.c.l.b16 %v883
        %v4715 = vunpack.c.h.b16 %v883
        %v4716 = vunpack.c.l.b16 %v884
        %v4717 = vunpack.c.h.b16 %v884
        %v4718 = vunpack.c.l.b16 %v885
        %v4719 = vunpack.c.h.b16 %v885
        %v4720 = vunpack.c.l.b16 %v886
        %v4721 = vunpack.c.h.b16 %v886
        %v4722 = vunpack.c.l.b16 %v887
        %v4723 = vunpack.c.h.b16 %v887
        %v4724 = vunpack.c.l.b16 %v888
        %v4725 = vunpack.c.h.b16 %v888
        %v4726 = vunpack.c.l.b16 %v889
        %v4727 = vunpack.c.h.b16 %v889
        %v4728 = vunpack.c.l.b16 %v890
        %v4729 = vunpack.c.h.b16 %v890
        %v4730 = vunpack.c.l.b16 %v891
        %v4731 = vunpack.c.h.b16 %v891
        %v4732 = vunpack.c.l.b16 %v892
        %v4733 = vunpack.c.h.b16 %v892
        %v4734 = vunpack.c.l.b16 %v893
        %v4735 = vunpack.c.h.b16 %v893
        %v4736 = vunpack.c.l.b16 %v894
        %v4737 = vunpack.c.h.b16 %v894
        %v4738 = vunpack.c.l.b16 %v895
        %v4739 = vunpack.c.h.b16 %v895
        %v4740 = vunpack.c.l.b16 %v896
        %v4741 = vunpack.c.h.b16 %v896
        %v4742 = vunpack.c.l.b16 %v897
        %v4743 = vunpack.c.h.b16 %v897
        %v4744 = vunpack.c.l.b16 %v898
        %v4745 = vunpack.c.h.b16 %v898
        %v4746 = vunpack.c.l.b16 %v899
        %v4747 = vunpack.c.h.b16 %v899
        %v4748 = vunpack.c.l.b16 %v900
        %v4749 = vunpack.c.h.b16 %v900
        %v4750 = vunpack.c.l.b16 %v901
        %v4751 = vunpack.c.h.b16 %v901
        %v4752 = vpack.c.b16 %v3996, %v3984
        %v4753 = vpack.c.b16 %v3997, %v3985
        %v4754 = vpack.c.b16 %v3998, %v3986
        %v4755 = vpack.c.b16 %v3999, %v3987
        %v4756 = vpack.c.b16 %v4000, %v3988
        %v4757 = vpack.c.b16 %v4001, %v3989
        %v4758 = vpack.c.b16 %v4002, %v3990
        %v4759 = vpack.c.b16 %v4003, %v3991
        %v4760 = vpack.c.b16 %v4004, %v3992
        %v4761 = vpack.c.b16 %v4005, %v3993
        %v4762 = vpack.c.b16 %v4006, %v3994
        %v4763 = vpack.c.b16 %v4007, %v3995
        %v4764 = vpack.c.b16 %v4020, %v4008
        %v4765 = vpack.c.b16 %v4021, %v4009
        %v4766 = vpack.c.b16 %v4022, %v4010
        %v4767 = vpack.c.b16 %v4023, %v4011
        %v4768 = vpack.c.b16 %v4024, %v4012
        %v4769 = vpack.c.b16 %v4025, %v4013
        %v4770 = vpack.c.b16 %v4026, %v4014
        %v4771 = vpack.c.b16 %v4027, %v4015
        %v4772 = vpack.c.b16 %v4028, %v4016
        %v4773 = vpack.c.b16 %v4029, %v4017
        %v4774 = vpack.c.b16 %v4030, %v4018
        %v4775 = vpack.c.b16 %v4031, %v4019
        %v4776 = vpack.c.b16 %v4044, %v4032
        %v4777 = vpack.c.b16 %v4045, %v4033
        %v4778 = vpack.c.b16 %v4046, %v4034
        %v4779 = vpack.c.b16 %v4047, %v4035
        %v4780 = vpack.c.b16 %v4048, %v4036
        %v4781 = vpack.c.b16 %v4049, %v4037
        %v4782 = vpack.c.b16 %v4050, %v4038
        %v4783 = vpack.c.b16 %v4051, %v4039
        %v4784 = vpack.c.b16 %v4052, %v4040
        %v4785 = vpack.c.b16 %v4053, %v4041
        %v4786 = vpack.c.b16 %v4054, %v4042
        %v4787 = vpack.c.b16 %v4055, %v4043
        %v4788 = vpack.c.b16 %v4068, %v4056
        %v4789 = vpack.c.b16 %v4069, %v4057
        %v4790 = vpack.c.b16 %v4070, %v4058
        %v4791 = vpack.c.b16 %v4071, %v4059
        %v4792 = vpack.c.b16 %v4072, %v4060
        %v4793 = vpack.c.b16 %v4073, %v4061
        %v4794 = vpack.c.b16 %v4074, %v4062
        %v4795 = vpack.c.b16 %v4075, %v4063
        %v4796 = vpack.c.b16 %v4076, %v4064
        %v4797 = vpack.c.b16 %v4077, %v4065
        %v4798 = vpack.c.b16 %v4078, %v4066
        %v4799 = vpack.c.b16 %v4079, %v4067
        %v4800 = vpack.c.b16 %v4092, %v4080
        %v4801 = vpack.c.b16 %v4093, %v4081
        %v4802 = vpack.c.b16 %v4094, %v4082
        %v4803 = vpack.c.b16 %v4095, %v4083
        %v4804 = vpack.c.b16 %v4096, %v4084
        %v4805 = vpack.c.b16 %v4097, %v4085
        %v4806 = vpack.c.b16 %v4098, %v4086
        %v4807 = vpack.c.b16 %v4099, %v4087
        %v4808 = vpack.c.b16 %v4100, %v4088
        %v4809 = vpack.c.b16 %v4101, %v4089
        %v4810 = vpack.c.b16 %v4102, %v4090
        %v4811 = vpack.c.b16 %v4103, %v4091
        %v4812 = vpack.c.b16 %v4116, %v4104
        %v4813 = vpack.c.b16 %v4117, %v4105
        %v4814 = vpack.c.b16 %v4118, %v4106
        %v4815 = vpack.c.b16 %v4119, %v4107
        %v4816 = vpack.c.b16 %v4120, %v4108
        %v4817 = vpack.c.b16 %v4121, %v4109
        %v4818 = vpack.c.b16 %v4122, %v4110
        %v4819 = vpack.c.b16 %v4123, %v4111
        %v4820 = vpack.c.b16 %v4124, %v4112
        %v4821 = vpack.c.b16 %v4125, %v4113
        %v4822 = vpack.c.b16 %v4126, %v4114
        %v4823 = vpack.c.b16 %v4127, %v4115
        %v4824 = vpack.c.b16 %v4140, %v4128
        %v4825 = vpack.c.b16 %v4141, %v4129
        %v4826 = vpack.c.b16 %v4142, %v4130
        %v4827 = vpack.c.b16 %v4143, %v4131
        %v4828 = vpack.c.b16 %v4144, %v4132
        %v4829 = vpack.c.b16 %v4145, %v4133
        %v4830 = vpack.c.b16 %v4146, %v4134
        %v4831 = vpack.c.b16 %v4147, %v4135
        %v4832 = vpack.c.b16 %v4148, %v4136
        %v4833 = vpack.c.b16 %v4149, %v4137
        %v4834 = vpack.c.b16 %v4150, %v4138
        %v4835 = vpack.c.b16 %v4151, %v4139
        %v4836 = vpack.c.b16 %v4164, %v4152
        %v4837 = vpack.c.b16 %v4165, %v4153
        %v4838 = vpack.c.b16 %v4166, %v4154
        %v4839 = vpack.c.b16 %v4167, %v4155
        %v4840 = vpack.c.b16 %v4168, %v4156
        %v4841 = vpack.c.b16 %v4169, %v4157
        %v4842 = vpack.c.b16 %v4170, %v4158
        %v4843 = vpack.c.b16 %v4171, %v4159
        %v4844 = vpack.c.b16 %v4172, %v4160
        %v4845 = vpack.c.b16 %v4173, %v4161
        %v4846 = vpack.c.b16 %v4174, %v4162
        %v4847 = vpack.c.b16 %v4175, %v4163
        %v4848 = vpack.c.b16 %v4188, %v4176
        %v4849 = vpack.c.b16 %v4189, %v4177
        %v4850 = vpack.c.b16 %v4190, %v4178
        %v4851 = vpack.c.b16 %v4191, %v4179
        %v4852 = vpack.c.b16 %v4192, %v4180
        %v4853 = vpack.c.b16 %v4193, %v4181
        %v4854 = vpack.c.b16 %v4194, %v4182
        %v4855 = vpack.c.b16 %v4195, %v4183
        %v4856 = vpack.c.b16 %v4196, %v4184
        %v4857 = vpack.c.b16 %v4197, %v4185
        %v4858 = vpack.c.b16 %v4198, %v4186
        %v4859 = vpack.c.b16 %v4199, %v4187
        %v4860 = vpack.c.b16 %v4212, %v4200
        %v4861 = vpack.c.b16 %v4213, %v4201
        %v4862 = vpack.c.b16 %v4214, %v4202
        %v4863 = vpack.c.b16 %v4215, %v4203
        %v4864 = vpack.c.b16 %v4216, %v4204
        %v4865 = vpack.c.b16 %v4217, %v4205
        %v4866 = vpack.c.b16 %v4218, %v4206
        %v4867 = vpack.c.b16 %v4219, %v4207
        %v4868 = vpack.c.b16 %v4220, %v4208
        %v4869 = vpack.c.b16 %v4221, %v4209
        %v4870 = vpack.c.b16 %v4222, %v4210
        %v4871 = vpack.c.b16 %v4223, %v4211
        %v4872 = vpack.c.b16 %v4236, %v4224
        %v4873 = vpack.c.b16 %v4237, %v4225
        %v4874 = vpack.c.b16 %v4238, %v4226
        %v4875 = vpack.c.b16 %v4239, %v4227
        %v4876 = vpack.c.b16 %v4240, %v4228
        %v4877 = vpack.c.b16 %v4241, %v4229
        %v4878 = vpack.c.b16 %v4242, %v4230
        %v4879 = vpack.c.b16 %v4243, %v4231
        %v4880 = vpack.c.b16 %v4244, %v4232
        %v4881 = vpack.c.b16 %v4245, %v4233
        %v4882 = vpack.c.b16 %v4246, %v4234
        %v4883 = vpack.c.b16 %v4247, %v4235
        %v4884 = vpack.c.b16 %v4260, %v4248
        %v4885 = vpack.c.b16 %v4261, %v4249
        %v4886 = vpack.c.b16 %v4262, %v4250
        %v4887 = vpack.c.b16 %v4263, %v4251
        %v4888 = vpack.c.b16 %v4264, %v4252
        %v4889 = vpack.c.b16 %v4265, %v4253
        %v4890 = vpack.c.b16 %v4266, %v4254
        %v4891 = vpack.c.b16 %v4267, %v4255
        %v4892 = vpack.c.b16 %v4268, %v4256
        %v4893 = vpack.c.b16 %v4269, %v4257
        %v4894 = vpack.c.b16 %v4270, %v4258
        %v4895 = vpack.c.b16 %v4271, %v4259
        %v4896 = vpack.c.b16 %v4284, %v4272
        %v4897 = vpack.c.b16 %v4285, %v4273
        %v4898 = vpack.c.b16 %v4286, %v4274
        %v4899 = vpack.c.b16 %v4287, %v4275
        %v4900 = vpack.c.b16 %v4288, %v4276
        %v4901 = vpack.c.b16 %v4289, %v4277
        %v4902 = vpack.c.b16 %v4290, %v4278
        %v4903 = vpack.c.b16 %v4291, %v4279
        %v4904 = vpack.c.b16 %v4292, %v4280
        %v4905 = vpack.c.b16 %v4293, %v4281
        %v4906 = vpack.c.b16 %v4294, %v4282
        %v4907 = vpack.c.b16 %v4295, %v4283
        %v4908 = vpack.c.b16 %v4308, %v4296
        %v4909 = vpack.c.b16 %v4309, %v4297
        %v4910 = vpack.c.b16 %v4310, %v4298
        %v4911 = vpack.c.b16 %v4311, %v4299
        %v4912 = vpack.c.b16 %v4312, %v4300
        %v4913 = vpack.c.b16 %v4313, %v4301
        %v4914 = vpack.c.b16 %v4314, %v4302
        %v4915 = vpack.c.b16 %v4315, %v4303
        %v4916 = vpack.c.b16 %v4316, %v4304
        %v4917 = vpack.c.b16 %v4317, %v4305
        %v4918 = vpack.c.b16 %v4318, %v4306
        %v4919 = vpack.c.b16 %v4319, %v4307
        %v4920 = vpack.c.b16 %v4332, %v4320
        %v4921 = vpack.c.b16 %v4333, %v4321
        %v4922 = vpack.c.b16 %v4334, %v4322
        %v4923 = vpack.c.b16 %v4335, %v4323
        %v4924 = vpack.c.b16 %v4336, %v4324
        %v4925 = vpack.c.b16 %v4337, %v4325
        %v4926 = vpack.c.b16 %v4338, %v4326
        %v4927 = vpack.c.b16 %v4339, %v4327
        %v4928 = vpack.c.b16 %v4340, %v4328
        %v4929 = vpack.c.b16 %v4341, %v4329
        %v4930 = vpack.c.b16 %v4342, %v4330
        %v4931 = vpack.c.b16 %v4343, %v4331
        %v4932 = vpack.c.b16 %v4356, %v4344
        %v4933 = vpack.c.b16 %v4357, %v4345
        %v4934 = vpack.c.b16 %v4358, %v4346
        %v4935 = vpack.c.b16 %v4359, %v4347
        %v4936 = vpack.c.b16 %v4360, %v4348
        %v4937 = vpack.c.b16 %v4361, %v4349
        %v4938 = vpack.c.b16 %v4362, %v4350
        %v4939 = vpack.c.b16 %v4363, %v4351
        %v4940 = vpack.c.b16 %v4364, %v4352
        %v4941 = vpack.c.b16 %v4365, %v4353
        %v4942 = vpack.c.b16 %v4366, %v4354
        %v4943 = vpack.c.b16 %v4367, %v4355
        %v4944 = vpack.c.b16 %v4380, %v4368
        %v4945 = vpack.c.b16 %v4381, %v4369
        %v4946 = vpack.c.b16 %v4382, %v4370
        %v4947 = vpack.c.b16 %v4383, %v4371
        %v4948 = vpack.c.b16 %v4384, %v4372
        %v4949 = vpack.c.b16 %v4385, %v4373
        %v4950 = vpack.c.b16 %v4386, %v4374
        %v4951 = vpack.c.b16 %v4387, %v4375
        %v4952 = vpack.c.b16 %v4388, %v4376
        %v4953 = vpack.c.b16 %v4389, %v4377
        %v4954 = vpack.c.b16 %v4390, %v4378
        %v4955 = vpack.c.b16 %v4391, %v4379
        %v4956 = vpack.c.b16 %v4404, %v4392
        %v4957 = vpack.c.b16 %v4405, %v4393
        %v4958 = vpack.c.b16 %v4406, %v4394
        %v4959 = vpack.c.b16 %v4407, %v4395
        %v4960 = vpack.c.b16 %v4408, %v4396
        %v4961 = vpack.c.b16 %v4409, %v4397
        %v4962 = vpack.c.b16 %v4410, %v4398
        %v4963 = vpack.c.b16 %v4411, %v4399
        %v4964 = vpack.c.b16 %v4412, %v4400
        %v4965 = vpack.c.b16 %v4413, %v4401
        %v4966 = vpack.c.b16 %v4414, %v4402
        %v4967 = vpack.c.b16 %v4415, %v4403
        %v4968 = vpack.c.b16 %v4428, %v4416
        %v4969 = vpack.c.b16 %v4429, %v4417
        %v4970 = vpack.c.b16 %v4430, %v4418
        %v4971 = vpack.c.b16 %v4431, %v4419
        %v4972 = vpack.c.b16 %v4432, %v4420
        %v4973 = vpack.c.b16 %v4433, %v4421
        %v4974 = vpack.c.b16 %v4434, %v4422
        %v4975 = vpack.c.b16 %v4435, %v4423
        %v4976 = vpack.c.b16 %v4436, %v4424
        %v4977 = vpack.c.b16 %v4437, %v4425
        %v4978 = vpack.c.b16 %v4438, %v4426
        %v4979 = vpack.c.b16 %v4439, %v4427
        %v4980 = vpack.c.b16 %v4452, %v4440
        %v4981 = vpack.c.b16 %v4453, %v4441
        %v4982 = vpack.c.b16 %v4454, %v4442
        %v4983 = vpack.c.b16 %v4455, %v4443
        %v4984 = vpack.c.b16 %v4456, %v4444
        %v4985 = vpack.c.b16 %v4457, %v4445
        %v4986 = vpack.c.b16 %v4458, %v4446
        %v4987 = vpack.c.b16 %v4459, %v4447
        %v4988 = vpack.c.b16 %v4460, %v4448
        %v4989 = vpack.c.b16 %v4461, %v4449
        %v4990 = vpack.c.b16 %v4462, %v4450
        %v4991 = vpack.c.b16 %v4463, %v4451
        %v4992 = vpack.c.b16 %v4476, %v4464
        %v4993 = vpack.c.b16 %v4477, %v4465
        %v4994 = vpack.c.b16 %v4478, %v4466
        %v4995 = vpack.c.b16 %v4479, %v4467
        %v4996 = vpack.c.b16 %v4480, %v4468
        %v4997 = vpack.c.b16 %v4481, %v4469
        %v4998 = vpack.c.b16 %v4482, %v4470
        %v4999 = vpack.c.b16 %v4483, %v4471
        %v5000 = vpack.c.b16 %v4484, %v4472
        %v5001 = vpack.c.b16 %v4485, %v4473
        %v5002 = vpack.c.b16 %v4486, %v4474
        %v5003 = vpack.c.b16 %v4487, %v4475
        %v5004 = vpack.c.b16 %v4500, %v4488
        %v5005 = vpack.c.b16 %v4501, %v4489
        %v5006 = vpack.c.b16 %v4502, %v4490
        %v5007 = vpack.c.b16 %v4503, %v4491
        %v5008 = vpack.c.b16 %v4504, %v4492
        %v5009 = vpack.c.b16 %v4505, %v4493
        %v5010 = vpack.c.b16 %v4506, %v4494
        %v5011 = vpack.c.b16 %v4507, %v4495
        %v5012 = vpack.c.b16 %v4508, %v4496
        %v5013 = vpack.c.b16 %v4509, %v4497
        %v5014 = vpack.c.b16 %v4510, %v4498
        %v5015 = vpack.c.b16 %v4511, %v4499
        %v5016 = vpack.c.b16 %v4524, %v4512
        %v5017 = vpack.c.b16 %v4525, %v4513
        %v5018 = vpack.c.b16 %v4526, %v4514
        %v5019 = vpack.c.b16 %v4527, %v4515
        %v5020 = vpack.c.b16 %v4528, %v4516
        %v5021 = vpack.c.b16 %v4529, %v4517
        %v5022 = vpack.c.b16 %v4530, %v4518
        %v5023 = vpack.c.b16 %v4531, %v4519
        %v5024 = vpack.c.b16 %v4532, %v4520
        %v5025 = vpack.c.b16 %v4533, %v4521
        %v5026 = vpack.c.b16 %v4534, %v4522
        %v5027 = vpack.c.b16 %v4535, %v4523
        %v5028 = vpack.c.b16 %v4548, %v4536
        %v5029 = vpack.c.b16 %v4549, %v4537
        %v5030 = vpack.c.b16 %v4550, %v4538
        %v5031 = vpack.c.b16 %v4551, %v4539
        %v5032 = vpack.c.b16 %v4552, %v4540
        %v5033 = vpack.c.b16 %v4553, %v4541
        %v5034 = vpack.c.b16 %v4554, %v4542
        %v5035 = vpack.c.b16 %v4555, %v4543
        %v5036 = vpack.c.b16 %v4556, %v4544
        %v5037 = vpack.c.b16 %v4557, %v4545
        %v5038 = vpack.c.b16 %v4558, %v4546
        %v5039 = vpack.c.b16 %v4559, %v4547
        %v5040 = vpack.c.b16 %v4572, %v4560
        %v5041 = vpack.c.b16 %v4573, %v4561
        %v5042 = vpack.c.b16 %v4574, %v4562
        %v5043 = vpack.c.b16 %v4575, %v4563
        %v5044 = vpack.c.b16 %v4576, %v4564
        %v5045 = vpack.c.b16 %v4577, %v4565
        %v5046 = vpack.c.b16 %v4578, %v4566
        %v5047 = vpack.c.b16 %v4579, %v4567
        %v5048 = vpack.c.b16 %v4580, %v4568
        %v5049 = vpack.c.b16 %v4581, %v4569
        %v5050 = vpack.c.b16 %v4582, %v4570
        %v5051 = vpack.c.b16 %v4583, %v4571
        %v5052 = vpack.c.b16 %v4596, %v4584
        %v5053 = vpack.c.b16 %v4597, %v4585
        %v5054 = vpack.c.b16 %v4598, %v4586
        %v5055 = vpack.c.b16 %v4599, %v4587
        %v5056 = vpack.c.b16 %v4600, %v4588
        %v5057 = vpack.c.b16 %v4601, %v4589
        %v5058 = vpack.c.b16 %v4602, %v4590
        %v5059 = vpack.c.b16 %v4603, %v4591
        %v5060 = vpack.c.b16 %v4604, %v4592
        %v5061 = vpack.c.b16 %v4605, %v4593
        %v5062 = vpack.c.b16 %v4606, %v4594
        %v5063 = vpack.c.b16 %v4607, %v4595
        %v5064 = vpack.c.b16 %v4620, %v4608
        %v5065 = vpack.c.b16 %v4621, %v4609
        %v5066 = vpack.c.b16 %v4622, %v4610
        %v5067 = vpack.c.b16 %v4623, %v4611
        %v5068 = vpack.c.b16 %v4624, %v4612
        %v5069 = vpack.c.b16 %v4625, %v4613
        %v5070 = vpack.c.b16 %v4626, %v4614
        %v5071 = vpack.c.b16 %v4627, %v4615
        %v5072 = vpack.c.b16 %v4628, %v4616
        %v5073 = vpack.c.b16 %v4629, %v4617
        %v5074 = vpack.c.b16 %v4630, %v4618
        %v5075 = vpack.c.b16 %v4631, %v4619
        %v5076 = vpack.c.b16 %v4644, %v4632
        %v5077 = vpack.c.b16 %v4645, %v4633
        %v5078 = vpack.c.b16 %v4646, %v4634
        %v5079 = vpack.c.b16 %v4647, %v4635
        %v5080 = vpack.c.b16 %v4648, %v4636
        %v5081 = vpack.c.b16 %v4649, %v4637
        %v5082 = vpack.c.b16 %v4650, %v4638
        %v5083 = vpack.c.b16 %v4651, %v4639
        %v5084 = vpack.c.b16 %v4652, %v4640
        %v5085 = vpack.c.b16 %v4653, %v4641
        %v5086 = vpack.c.b16 %v4654, %v4642
        %v5087 = vpack.c.b16 %v4655, %v4643
        %v5088 = vpack.c.b16 %v4668, %v4656
        %v5089 = vpack.c.b16 %v4669, %v4657
        %v5090 = vpack.c.b16 %v4670, %v4658
        %v5091 = vpack.c.b16 %v4671, %v4659
        %v5092 = vpack.c.b16 %v4672, %v4660
        %v5093 = vpack.c.b16 %v4673, %v4661
        %v5094 = vpack.c.b16 %v4674, %v4662
        %v5095 = vpack.c.b16 %v4675, %v4663
        %v5096 = vpack.c.b16 %v4676, %v4664
        %v5097 = vpack.c.b16 %v4677, %v4665
        %v5098 = vpack.c.b16 %v4678, %v4666
        %v5099 = vpack.c.b16 %v4679, %v4667
        %v5100 = vpack.c.b16 %v4692, %v4680
        %v5101 = vpack.c.b16 %v4693, %v4681
        %v5102 = vpack.c.b16 %v4694, %v4682
        %v5103 = vpack.c.b16 %v4695, %v4683
        %v5104 = vpack.c.b16 %v4696, %v4684
        %v5105 = vpack.c.b16 %v4697, %v4685
        %v5106 = vpack.c.b16 %v4698, %v4686
        %v5107 = vpack.c.b16 %v4699, %v4687
        %v5108 = vpack.c.b16 %v4700, %v4688
        %v5109 = vpack.c.b16 %v4701, %v4689
        %v5110 = vpack.c.b16 %v4702, %v4690
        %v5111 = vpack.c.b16 %v4703, %v4691
        %v5112 = vpack.c.b16 %v4716, %v4704
        %v5113 = vpack.c.b16 %v4717, %v4705
        %v5114 = vpack.c.b16 %v4718, %v4706
        %v5115 = vpack.c.b16 %v4719, %v4707
        %v5116 = vpack.c.b16 %v4720, %v4708
        %v5117 = vpack.c.b16 %v4721, %v4709
        %v5118 = vpack.c.b16 %v4722, %v4710
        %v5119 = vpack.c.b16 %v4723, %v4711
        %v5120 = vpack.c.b16 %v4724, %v4712
        %v5121 = vpack.c.b16 %v4725, %v4713
        %v5122 = vpack.c.b16 %v4726, %v4714
        %v5123 = vpack.c.b16 %v4727, %v4715
        %v5124 = vpack.c.b16 %v4740, %v4728
        %v5125 = vpack.c.b16 %v4741, %v4729
        %v5126 = vpack.c.b16 %v4742, %v4730
        %v5127 = vpack.c.b16 %v4743, %v4731
        %v5128 = vpack.c.b16 %v4744, %v4732
        %v5129 = vpack.c.b16 %v4745, %v4733
        %v5130 = vpack.c.b16 %v4746, %v4734
        %v5131 = vpack.c.b16 %v4747, %v4735
        %v5132 = vpack.c.b16 %v4748, %v4736
        %v5133 = vpack.c.b16 %v4749, %v4737
        %v5134 = vpack.c.b16 %v4750, %v4738
        %v5135 = vpack.c.b16 %v4751, %v4739
        %5520 = vmatprep.subr.bf16.mxu0 %v4837
        %5521 = vmatpush1.bf16.msra.mxu0 %v4836
        %5522 = vmatprep.subr.bf16.mxu0 %v4825
        %5523 = vmatpush1.bf16.msra.mxu0 %v4824
        %5524 = vmatprep.subr.bf16.mxu0 %v4813
        %5525 = vmatpush1.bf16.msra.mxu0 %v4812
        %5526 = vmatprep.subr.bf16.mxu0 %v4801
        %5527 = vmatpush1.bf16.msra.mxu0 %v4800
        %5528 = vmatprep.subr.bf16.mxu0 %v4789
        %5529 = vmatpush1.bf16.msra.mxu0 %v4788
        %5530 = vmatprep.subr.bf16.mxu0 %v4777
        %5531 = vmatpush1.bf16.msra.mxu0 %v4776
        %5532 = vmatprep.subr.bf16.mxu0 %v4765
        %5533 = vmatpush1.bf16.msra.mxu0 %v4764
        %5534 = vmatprep.subr.bf16.mxu0 %v4753
        %5535 = vmatpush1.bf16.msra.mxu0 %v4752
        %5536 = vmatprep.subr.bf16.mxu0 %v4933
        %5537 = vmatpush2.bf16.msra.mxu0 %v4932
        %5538 = vmatprep.subr.bf16.mxu0 %v4921
        %5539 = vmatpush2.bf16.msra.mxu0 %v4920
        %5540 = vmatprep.subr.bf16.mxu0 %v4909
        %5541 = vmatpush2.bf16.msra.mxu0 %v4908
        %5542 = vmatprep.subr.bf16.mxu0 %v4897
        %5543 = vmatpush2.bf16.msra.mxu0 %v4896
        %5544 = vmatprep.subr.bf16.mxu0 %v4885
        %5545 = vmatpush2.bf16.msra.mxu0 %v4884
        %5546 = vmatprep.subr.bf16.mxu0 %v4873
        %5547 = vmatpush2.bf16.msra.mxu0 %v4872
        %5548 = vmatprep.subr.bf16.mxu0 %v4861
        %5549 = vmatpush2.bf16.msra.mxu0 %v4860
        %5550 = vmatprep.subr.bf16.mxu0 %v4849
        %5551 = vmatpush2.bf16.msra.mxu0 %v4848
        %5552 = vmatprep.mubr.bf16.mxu0 %v3597
        %5553 = vmatmul.mubr.bf16.gmra.mxu0 %v3596
        %v5554 = vpop.f32.mrf.mxu0
        %v5555 = vadd.f32 0.0, %v5554
        %v5556 = vpop.f32.mrf.mxu0
        %v5557 = vadd.f32 0.0, %v5556
        %v5558 = vpop.f32.mrf.mxu0
        %v5559 = vadd.f32 0.0, %v5558
        %v5560 = vpop.f32.mrf.mxu0
        %v5561 = vadd.f32 0.0, %v5560
        %5562 = vdwg.mxu0
        %5563 = vmatprep.subr.bf16.mxu0 %v5029
        %5564 = vmatpush1.bf16.msra.mxu0 %v5028
        %5565 = vmatprep.subr.bf16.mxu0 %v5017
        %5566 = vmatpush1.bf16.msra.mxu0 %v5016
        %5567 = vmatprep.subr.bf16.mxu0 %v5005
        %5568 = vmatpush1.bf16.msra.mxu0 %v5004
        %5569 = vmatprep.subr.bf16.mxu0 %v4993
        %5570 = vmatpush1.bf16.msra.mxu0 %v4992
        %5571 = vmatprep.subr.bf16.mxu0 %v4981
        %5572 = vmatpush1.bf16.msra.mxu0 %v4980
        %5573 = vmatprep.subr.bf16.mxu0 %v4969
        %5574 = vmatpush1.bf16.msra.mxu0 %v4968
        %5575 = vmatprep.subr.bf16.mxu0 %v4957
        %5576 = vmatpush1.bf16.msra.mxu0 %v4956
        %5577 = vmatprep.subr.bf16.mxu0 %v4945
        %5578 = vmatpush1.bf16.msra.mxu0 %v4944
        %5579 = vmatprep.subr.bf16.mxu0 %v5125
        %5580 = vmatpush2.bf16.msra.mxu0 %v5124
        %5581 = vmatprep.subr.bf16.mxu0 %v5113
        %5582 = vmatpush2.bf16.msra.mxu0 %v5112
        %5583 = vmatprep.subr.bf16.mxu0 %v5101
        %5584 = vmatpush2.bf16.msra.mxu0 %v5100
        %5585 = vmatprep.subr.bf16.mxu0 %v5089
        %5586 = vmatpush2.bf16.msra.mxu0 %v5088
        %5587 = vmatprep.subr.bf16.mxu0 %v5077
        %5588 = vmatpush2.bf16.msra.mxu0 %v5076
        %5589 = vmatprep.subr.bf16.mxu0 %v5065
        %5590 = vmatpush2.bf16.msra.mxu0 %v5064
        %5591 = vmatprep.subr.bf16.mxu0 %v5053
        %5592 = vmatpush2.bf16.msra.mxu0 %v5052
        %5593 = vmatprep.subr.bf16.mxu0 %v5041
        %5594 = vmatpush2.bf16.msra.mxu0 %v5040
        %5595 = vmatprep.mubr.bf16.mxu0 %v3599
        %5596 = vmatmul.mubr.bf16.gmra.mxu0 %v3598
        %v5597 = vpop.f32.mrf.mxu0
        %v5598 = vadd.f32 %v5555, %v5597
        %v5599 = vpop.f32.mrf.mxu0
        %v5600 = vadd.f32 %v5557, %v5599
        %v5601 = vpop.f32.mrf.mxu0
        %v5602 = vadd.f32 %v5559, %v5601
        %v5603 = vpop.f32.mrf.mxu0
        %v5604 = vadd.f32 %v5561, %v5603
        %5605 = vdwg.mxu0
        %5606 = vmatprep.subr.bf16.mxu0 %v4839
        %5607 = vmatpush1.bf16.msra.mxu0 %v4838
        %5608 = vmatprep.subr.bf16.mxu0 %v4827
        %5609 = vmatpush1.bf16.msra.mxu0 %v4826
        %5610 = vmatprep.subr.bf16.mxu0 %v4815
        %5611 = vmatpush1.bf16.msra.mxu0 %v4814
        %5612 = vmatprep.subr.bf16.mxu0 %v4803
        %5613 = vmatpush1.bf16.msra.mxu0 %v4802
        %5614 = vmatprep.subr.bf16.mxu0 %v4791
        %5615 = vmatpush1.bf16.msra.mxu0 %v4790
        %5616 = vmatprep.subr.bf16.mxu0 %v4779
        %5617 = vmatpush1.bf16.msra.mxu0 %v4778
        %5618 = vmatprep.subr.bf16.mxu0 %v4767
        %5619 = vmatpush1.bf16.msra.mxu0 %v4766
        %5620 = vmatprep.subr.bf16.mxu0 %v4755
        %5621 = vmatpush1.bf16.msra.mxu0 %v4754
        %5622 = vmatprep.subr.bf16.mxu0 %v4935
        %5623 = vmatpush2.bf16.msra.mxu0 %v4934
        %5624 = vmatprep.subr.bf16.mxu0 %v4923
        %5625 = vmatpush2.bf16.msra.mxu0 %v4922
        %5626 = vmatprep.subr.bf16.mxu0 %v4911
        %5627 = vmatpush2.bf16.msra.mxu0 %v4910
        %5628 = vmatprep.subr.bf16.mxu0 %v4899
        %5629 = vmatpush2.bf16.msra.mxu0 %v4898
        %5630 = vmatprep.subr.bf16.mxu0 %v4887
        %5631 = vmatpush2.bf16.msra.mxu0 %v4886
        %5632 = vmatprep.subr.bf16.mxu0 %v4875
        %5633 = vmatpush2.bf16.msra.mxu0 %v4874
        %5634 = vmatprep.subr.bf16.mxu0 %v4863
        %5635 = vmatpush2.bf16.msra.mxu0 %v4862
        %5636 = vmatprep.subr.bf16.mxu0 %v4851
        %5637 = vmatpush2.bf16.msra.mxu0 %v4850
        %5638 = vmatprep.mubr.bf16.mxu0 %v3597
        %5639 = vmatmul.mubr.bf16.gmra.mxu0 %v3596
        %v5640 = vpop.f32.mrf.mxu0
        %v5641 = vadd.f32 0.0, %v5640
        %v5642 = vpop.f32.mrf.mxu0
        %v5643 = vadd.f32 0.0, %v5642
        %v5644 = vpop.f32.mrf.mxu0
        %v5645 = vadd.f32 0.0, %v5644
        %v5646 = vpop.f32.mrf.mxu0
        %v5647 = vadd.f32 0.0, %v5646
        %5648 = vdwg.mxu0
        %5649 = vmatprep.subr.bf16.mxu0 %v5031
        %5650 = vmatpush1.bf16.msra.mxu0 %v5030
        %5651 = vmatprep.subr.bf16.mxu0 %v5019
        %5652 = vmatpush1.bf16.msra.mxu0 %v5018
        %5653 = vmatprep.subr.bf16.mxu0 %v5007
        %5654 = vmatpush1.bf16.msra.mxu0 %v5006
        %5655 = vmatprep.subr.bf16.mxu0 %v4995
        %5656 = vmatpush1.bf16.msra.mxu0 %v4994
        %5657 = vmatprep.subr.bf16.mxu0 %v4983
        %5658 = vmatpush1.bf16.msra.mxu0 %v4982
        %5659 = vmatprep.subr.bf16.mxu0 %v4971
        %5660 = vmatpush1.bf16.msra.mxu0 %v4970
        %5661 = vmatprep.subr.bf16.mxu0 %v4959
        %5662 = vmatpush1.bf16.msra.mxu0 %v4958
        %5663 = vmatprep.subr.bf16.mxu0 %v4947
        %5664 = vmatpush1.bf16.msra.mxu0 %v4946
        %5665 = vmatprep.subr.bf16.mxu0 %v5127
        %5666 = vmatpush2.bf16.msra.mxu0 %v5126
        %5667 = vmatprep.subr.bf16.mxu0 %v5115
        %5668 = vmatpush2.bf16.msra.mxu0 %v5114
        %5669 = vmatprep.subr.bf16.mxu0 %v5103
        %5670 = vmatpush2.bf16.msra.mxu0 %v5102
        %5671 = vmatprep.subr.bf16.mxu0 %v5091
        %5672 = vmatpush2.bf16.msra.mxu0 %v5090
        %5673 = vmatprep.subr.bf16.mxu0 %v5079
        %5674 = vmatpush2.bf16.msra.mxu0 %v5078
        %5675 = vmatprep.subr.bf16.mxu0 %v5067
        %5676 = vmatpush2.bf16.msra.mxu0 %v5066
        %5677 = vmatprep.subr.bf16.mxu0 %v5055
        %5678 = vmatpush2.bf16.msra.mxu0 %v5054
        %5679 = vmatprep.subr.bf16.mxu0 %v5043
        %5680 = vmatpush2.bf16.msra.mxu0 %v5042
        %5681 = vmatprep.mubr.bf16.mxu0 %v3599
        %5682 = vmatmul.mubr.bf16.gmra.mxu0 %v3598
        %v5683 = vpop.f32.mrf.mxu0
        %v5684 = vadd.f32 %v5641, %v5683
        %v5685 = vpop.f32.mrf.mxu0
        %v5686 = vadd.f32 %v5643, %v5685
        %v5687 = vpop.f32.mrf.mxu0
        %v5688 = vadd.f32 %v5645, %v5687
        %v5689 = vpop.f32.mrf.mxu0
        %v5690 = vadd.f32 %v5647, %v5689
        %5691 = vdwg.mxu0
        %5692 = vmatprep.subr.bf16.mxu0 %v4841
        %5693 = vmatpush1.bf16.msra.mxu0 %v4840
        %5694 = vmatprep.subr.bf16.mxu0 %v4829
        %5695 = vmatpush1.bf16.msra.mxu0 %v4828
        %5696 = vmatprep.subr.bf16.mxu0 %v4817
        %5697 = vmatpush1.bf16.msra.mxu0 %v4816
        %5698 = vmatprep.subr.bf16.mxu0 %v4805
        %5699 = vmatpush1.bf16.msra.mxu0 %v4804
        %5700 = vmatprep.subr.bf16.mxu0 %v4793
        %5701 = vmatpush1.bf16.msra.mxu0 %v4792
        %5702 = vmatprep.subr.bf16.mxu0 %v4781
        %5703 = vmatpush1.bf16.msra.mxu0 %v4780
        %5704 = vmatprep.subr.bf16.mxu0 %v4769
        %5705 = vmatpush1.bf16.msra.mxu0 %v4768
        %5706 = vmatprep.subr.bf16.mxu0 %v4757
        %5707 = vmatpush1.bf16.msra.mxu0 %v4756
        %5708 = vmatprep.subr.bf16.mxu0 %v4937
        %5709 = vmatpush2.bf16.msra.mxu0 %v4936
        %5710 = vmatprep.subr.bf16.mxu0 %v4925
        %5711 = vmatpush2.bf16.msra.mxu0 %v4924
        %5712 = vmatprep.subr.bf16.mxu0 %v4913
        %5713 = vmatpush2.bf16.msra.mxu0 %v4912
        %5714 = vmatprep.subr.bf16.mxu0 %v4901
        %5715 = vmatpush2.bf16.msra.mxu0 %v4900
        %5716 = vmatprep.subr.bf16.mxu0 %v4889
        %5717 = vmatpush2.bf16.msra.mxu0 %v4888
        %5718 = vmatprep.subr.bf16.mxu0 %v4877
        %5719 = vmatpush2.bf16.msra.mxu0 %v4876
        %5720 = vmatprep.subr.bf16.mxu0 %v4865
        %5721 = vmatpush2.bf16.msra.mxu0 %v4864
        %5722 = vmatprep.subr.bf16.mxu0 %v4853
        %5723 = vmatpush2.bf16.msra.mxu0 %v4852
        %5724 = vmatprep.mubr.bf16.mxu0 %v3597
        %5725 = vmatmul.mubr.bf16.gmra.mxu0 %v3596
        %v5726 = vpop.f32.mrf.mxu0
        %v5727 = vadd.f32 0.0, %v5726
        %v5728 = vpop.f32.mrf.mxu0
        %v5729 = vadd.f32 0.0, %v5728
        %v5730 = vpop.f32.mrf.mxu0
        %v5731 = vadd.f32 0.0, %v5730
        %v5732 = vpop.f32.mrf.mxu0
        %v5733 = vadd.f32 0.0, %v5732
        %5734 = vdwg.mxu0
        %5735 = vmatprep.subr.bf16.mxu0 %v5033
        %5736 = vmatpush1.bf16.msra.mxu0 %v5032
        %5737 = vmatprep.subr.bf16.mxu0 %v5021
        %5738 = vmatpush1.bf16.msra.mxu0 %v5020
        %5739 = vmatprep.subr.bf16.mxu0 %v5009
        %5740 = vmatpush1.bf16.msra.mxu0 %v5008
        %5741 = vmatprep.subr.bf16.mxu0 %v4997
        %5742 = vmatpush1.bf16.msra.mxu0 %v4996
        %5743 = vmatprep.subr.bf16.mxu0 %v4985
        %5744 = vmatpush1.bf16.msra.mxu0 %v4984
        %5745 = vmatprep.subr.bf16.mxu0 %v4973
        %5746 = vmatpush1.bf16.msra.mxu0 %v4972
        %5747 = vmatprep.subr.bf16.mxu0 %v4961
        %5748 = vmatpush1.bf16.msra.mxu0 %v4960
        %5749 = vmatprep.subr.bf16.mxu0 %v4949
        %5750 = vmatpush1.bf16.msra.mxu0 %v4948
        %5751 = vmatprep.subr.bf16.mxu0 %v5129
        %5752 = vmatpush2.bf16.msra.mxu0 %v5128
        %5753 = vmatprep.subr.bf16.mxu0 %v5117
        %5754 = vmatpush2.bf16.msra.mxu0 %v5116
        %5755 = vmatprep.subr.bf16.mxu0 %v5105
        %5756 = vmatpush2.bf16.msra.mxu0 %v5104
        %5757 = vmatprep.subr.bf16.mxu0 %v5093
        %5758 = vmatpush2.bf16.msra.mxu0 %v5092
        %5759 = vmatprep.subr.bf16.mxu0 %v5081
        %5760 = vmatpush2.bf16.msra.mxu0 %v5080
        %5761 = vmatprep.subr.bf16.mxu0 %v5069
        %5762 = vmatpush2.bf16.msra.mxu0 %v5068
        %5763 = vmatprep.subr.bf16.mxu0 %v5057
        %5764 = vmatpush2.bf16.msra.mxu0 %v5056
        %5765 = vmatprep.subr.bf16.mxu0 %v5045
        %5766 = vmatpush2.bf16.msra.mxu0 %v5044
        %5767 = vmatprep.mubr.bf16.mxu0 %v3599
        %5768 = vmatmul.mubr.bf16.gmra.mxu0 %v3598
        %v5769 = vpop.f32.mrf.mxu0
        %v5770 = vadd.f32 %v5727, %v5769
        %v5771 = vpop.f32.mrf.mxu0
        %v5772 = vadd.f32 %v5729, %v5771
        %v5773 = vpop.f32.mrf.mxu0
        %v5774 = vadd.f32 %v5731, %v5773
        %v5775 = vpop.f32.mrf.mxu0
        %v5776 = vadd.f32 %v5733, %v5775
        %5777 = vdwg.mxu0
        %5778 = vmatprep.subr.bf16.mxu0 %v4843
        %5779 = vmatpush1.bf16.msra.mxu0 %v4842
        %5780 = vmatprep.subr.bf16.mxu0 %v4831
        %5781 = vmatpush1.bf16.msra.mxu0 %v4830
        %5782 = vmatprep.subr.bf16.mxu0 %v4819
        %5783 = vmatpush1.bf16.msra.mxu0 %v4818
        %5784 = vmatprep.subr.bf16.mxu0 %v4807
        %5785 = vmatpush1.bf16.msra.mxu0 %v4806
        %5786 = vmatprep.subr.bf16.mxu0 %v4795
        %5787 = vmatpush1.bf16.msra.mxu0 %v4794
        %5788 = vmatprep.subr.bf16.mxu0 %v4783
        %5789 = vmatpush1.bf16.msra.mxu0 %v4782
        %5790 = vmatprep.subr.bf16.mxu0 %v4771
        %5791 = vmatpush1.bf16.msra.mxu0 %v4770
        %5792 = vmatprep.subr.bf16.mxu0 %v4759
        %5793 = vmatpush1.bf16.msra.mxu0 %v4758
        %5794 = vmatprep.subr.bf16.mxu0 %v4939
        %5795 = vmatpush2.bf16.msra.mxu0 %v4938
        %5796 = vmatprep.subr.bf16.mxu0 %v4927
        %5797 = vmatpush2.bf16.msra.mxu0 %v4926
        %5798 = vmatprep.subr.bf16.mxu0 %v4915
        %5799 = vmatpush2.bf16.msra.mxu0 %v4914
        %5800 = vmatprep.subr.bf16.mxu0 %v4903
        %5801 = vmatpush2.bf16.msra.mxu0 %v4902
        %5802 = vmatprep.subr.bf16.mxu0 %v4891
        %5803 = vmatpush2.bf16.msra.mxu0 %v4890
        %5804 = vmatprep.subr.bf16.mxu0 %v4879
        %5805 = vmatpush2.bf16.msra.mxu0 %v4878
        %5806 = vmatprep.subr.bf16.mxu0 %v4867
        %5807 = vmatpush2.bf16.msra.mxu0 %v4866
        %5808 = vmatprep.subr.bf16.mxu0 %v4855
        %5809 = vmatpush2.bf16.msra.mxu0 %v4854
        %5810 = vmatprep.mubr.bf16.mxu0 %v3597
        %5811 = vmatmul.mubr.bf16.gmra.mxu0 %v3596
        %v5812 = vpop.f32.mrf.mxu0
        %v5813 = vadd.f32 0.0, %v5812
        %v5814 = vpop.f32.mrf.mxu0
        %v5815 = vadd.f32 0.0, %v5814
        %v5816 = vpop.f32.mrf.mxu0
        %v5817 = vadd.f32 0.0, %v5816
        %v5818 = vpop.f32.mrf.mxu0
        %v5819 = vadd.f32 0.0, %v5818
        %5820 = vdwg.mxu0
        %5821 = vmatprep.subr.bf16.mxu0 %v5035
        %5822 = vmatpush1.bf16.msra.mxu0 %v5034
        %5823 = vmatprep.subr.bf16.mxu0 %v5023
        %5824 = vmatpush1.bf16.msra.mxu0 %v5022
        %5825 = vmatprep.subr.bf16.mxu0 %v5011
        %5826 = vmatpush1.bf16.msra.mxu0 %v5010
        %5827 = vmatprep.subr.bf16.mxu0 %v4999
        %5828 = vmatpush1.bf16.msra.mxu0 %v4998
        %5829 = vmatprep.subr.bf16.mxu0 %v4987
        %5830 = vmatpush1.bf16.msra.mxu0 %v4986
        %5831 = vmatprep.subr.bf16.mxu0 %v4975
        %5832 = vmatpush1.bf16.msra.mxu0 %v4974
        %5833 = vmatprep.subr.bf16.mxu0 %v4963
        %5834 = vmatpush1.bf16.msra.mxu0 %v4962
        %5835 = vmatprep.subr.bf16.mxu0 %v4951
        %5836 = vmatpush1.bf16.msra.mxu0 %v4950
        %5837 = vmatprep.subr.bf16.mxu0 %v5131
        %5838 = vmatpush2.bf16.msra.mxu0 %v5130
        %5839 = vmatprep.subr.bf16.mxu0 %v5119
        %5840 = vmatpush2.bf16.msra.mxu0 %v5118
        %5841 = vmatprep.subr.bf16.mxu0 %v5107
        %5842 = vmatpush2.bf16.msra.mxu0 %v5106
        %5843 = vmatprep.subr.bf16.mxu0 %v5095
        %5844 = vmatpush2.bf16.msra.mxu0 %v5094
        %5845 = vmatprep.subr.bf16.mxu0 %v5083
        %5846 = vmatpush2.bf16.msra.mxu0 %v5082
        %5847 = vmatprep.subr.bf16.mxu0 %v5071
        %5848 = vmatpush2.bf16.msra.mxu0 %v5070
        %5849 = vmatprep.subr.bf16.mxu0 %v5059
        %5850 = vmatpush2.bf16.msra.mxu0 %v5058
        %5851 = vmatprep.subr.bf16.mxu0 %v5047
        %5852 = vmatpush2.bf16.msra.mxu0 %v5046
        %5853 = vmatprep.mubr.bf16.mxu0 %v3599
        %5854 = vmatmul.mubr.bf16.gmra.mxu0 %v3598
        %v5855 = vpop.f32.mrf.mxu0
        %v5856 = vadd.f32 %v5813, %v5855
        %v5857 = vpop.f32.mrf.mxu0
        %v5858 = vadd.f32 %v5815, %v5857
        %v5859 = vpop.f32.mrf.mxu0
        %v5860 = vadd.f32 %v5817, %v5859
        %v5861 = vpop.f32.mrf.mxu0
        %v5862 = vadd.f32 %v5819, %v5861
        %5863 = vdwg.mxu0
        %5864 = vmatprep.subr.bf16.mxu0 %v4845
        %5865 = vmatpush1.bf16.msra.mxu0 %v4844
        %5866 = vmatprep.subr.bf16.mxu0 %v4833
        %5867 = vmatpush1.bf16.msra.mxu0 %v4832
        %5868 = vmatprep.subr.bf16.mxu0 %v4821
        %5869 = vmatpush1.bf16.msra.mxu0 %v4820
        %5870 = vmatprep.subr.bf16.mxu0 %v4809
        %5871 = vmatpush1.bf16.msra.mxu0 %v4808
        %5872 = vmatprep.subr.bf16.mxu0 %v4797
        %5873 = vmatpush1.bf16.msra.mxu0 %v4796
        %5874 = vmatprep.subr.bf16.mxu0 %v4785
        %5875 = vmatpush1.bf16.msra.mxu0 %v4784
        %5876 = vmatprep.subr.bf16.mxu0 %v4773
        %5877 = vmatpush1.bf16.msra.mxu0 %v4772
        %5878 = vmatprep.subr.bf16.mxu0 %v4761
        %5879 = vmatpush1.bf16.msra.mxu0 %v4760
        %5880 = vmatprep.subr.bf16.mxu0 %v4941
        %5881 = vmatpush2.bf16.msra.mxu0 %v4940
        %5882 = vmatprep.subr.bf16.mxu0 %v4929
        %5883 = vmatpush2.bf16.msra.mxu0 %v4928
        %5884 = vmatprep.subr.bf16.mxu0 %v4917
        %5885 = vmatpush2.bf16.msra.mxu0 %v4916
        %5886 = vmatprep.subr.bf16.mxu0 %v4905
        %5887 = vmatpush2.bf16.msra.mxu0 %v4904
        %5888 = vmatprep.subr.bf16.mxu0 %v4893
        %5889 = vmatpush2.bf16.msra.mxu0 %v4892
        %5890 = vmatprep.subr.bf16.mxu0 %v4881
        %5891 = vmatpush2.bf16.msra.mxu0 %v4880
        %5892 = vmatprep.subr.bf16.mxu0 %v4869
        %5893 = vmatpush2.bf16.msra.mxu0 %v4868
        %5894 = vmatprep.subr.bf16.mxu0 %v4857
        %5895 = vmatpush2.bf16.msra.mxu0 %v4856
        %5896 = vmatprep.mubr.bf16.mxu0 %v3597
        %5897 = vmatmul.mubr.bf16.gmra.mxu0 %v3596
        %v5898 = vpop.f32.mrf.mxu0
        %v5899 = vadd.f32 0.0, %v5898
        %v5900 = vpop.f32.mrf.mxu0
        %v5901 = vadd.f32 0.0, %v5900
        %v5902 = vpop.f32.mrf.mxu0
        %v5903 = vadd.f32 0.0, %v5902
        %v5904 = vpop.f32.mrf.mxu0
        %v5905 = vadd.f32 0.0, %v5904
        %5906 = vdwg.mxu0
        %5907 = vmatprep.subr.bf16.mxu0 %v5037
        %5908 = vmatpush1.bf16.msra.mxu0 %v5036
        %5909 = vmatprep.subr.bf16.mxu0 %v5025
        %5910 = vmatpush1.bf16.msra.mxu0 %v5024
        %5911 = vmatprep.subr.bf16.mxu0 %v5013
        %5912 = vmatpush1.bf16.msra.mxu0 %v5012
        %5913 = vmatprep.subr.bf16.mxu0 %v5001
        %5914 = vmatpush1.bf16.msra.mxu0 %v5000
        %5915 = vmatprep.subr.bf16.mxu0 %v4989
        %5916 = vmatpush1.bf16.msra.mxu0 %v4988
        %5917 = vmatprep.subr.bf16.mxu0 %v4977
        %5918 = vmatpush1.bf16.msra.mxu0 %v4976
        %5919 = vmatprep.subr.bf16.mxu0 %v4965
        %5920 = vmatpush1.bf16.msra.mxu0 %v4964
        %5921 = vmatprep.subr.bf16.mxu0 %v4953
        %5922 = vmatpush1.bf16.msra.mxu0 %v4952
        %5923 = vmatprep.subr.bf16.mxu0 %v5133
        %5924 = vmatpush2.bf16.msra.mxu0 %v5132
        %5925 = vmatprep.subr.bf16.mxu0 %v5121
        %5926 = vmatpush2.bf16.msra.mxu0 %v5120
        %5927 = vmatprep.subr.bf16.mxu0 %v5109
        %5928 = vmatpush2.bf16.msra.mxu0 %v5108
        %5929 = vmatprep.subr.bf16.mxu0 %v5097
        %5930 = vmatpush2.bf16.msra.mxu0 %v5096
        %5931 = vmatprep.subr.bf16.mxu0 %v5085
        %5932 = vmatpush2.bf16.msra.mxu0 %v5084
        %5933 = vmatprep.subr.bf16.mxu0 %v5073
        %5934 = vmatpush2.bf16.msra.mxu0 %v5072
        %5935 = vmatprep.subr.bf16.mxu0 %v5061
        %5936 = vmatpush2.bf16.msra.mxu0 %v5060
        %5937 = vmatprep.subr.bf16.mxu0 %v5049
        %5938 = vmatpush2.bf16.msra.mxu0 %v5048
        %5939 = vmatprep.mubr.bf16.mxu0 %v3599
        %5940 = vmatmul.mubr.bf16.gmra.mxu0 %v3598
        %v5941 = vpop.f32.mrf.mxu0
        %v5942 = vadd.f32 %v5899, %v5941
        %v5943 = vpop.f32.mrf.mxu0
        %v5944 = vadd.f32 %v5901, %v5943
        %v5945 = vpop.f32.mrf.mxu0
        %v5946 = vadd.f32 %v5903, %v5945
        %v5947 = vpop.f32.mrf.mxu0
        %v5948 = vadd.f32 %v5905, %v5947
        %5949 = vdwg.mxu0
        %5950 = vmatprep.subr.bf16.mxu0 %v4847
        %5951 = vmatpush1.bf16.msra.mxu0 %v4846
        %5952 = vmatprep.subr.bf16.mxu0 %v4835
        %5953 = vmatpush1.bf16.msra.mxu0 %v4834
        %5954 = vmatprep.subr.bf16.mxu0 %v4823
        %5955 = vmatpush1.bf16.msra.mxu0 %v4822
        %5956 = vmatprep.subr.bf16.mxu0 %v4811
        %5957 = vmatpush1.bf16.msra.mxu0 %v4810
        %5958 = vmatprep.subr.bf16.mxu0 %v4799
        %5959 = vmatpush1.bf16.msra.mxu0 %v4798
        %5960 = vmatprep.subr.bf16.mxu0 %v4787
        %5961 = vmatpush1.bf16.msra.mxu0 %v4786
        %5962 = vmatprep.subr.bf16.mxu0 %v4775
        %5963 = vmatpush1.bf16.msra.mxu0 %v4774
        %5964 = vmatprep.subr.bf16.mxu0 %v4763
        %5965 = vmatpush1.bf16.msra.mxu0 %v4762
        %5966 = vmatprep.subr.bf16.mxu0 %v4943
        %5967 = vmatpush2.bf16.msra.mxu0 %v4942
        %5968 = vmatprep.subr.bf16.mxu0 %v4931
        %5969 = vmatpush2.bf16.msra.mxu0 %v4930
        %5970 = vmatprep.subr.bf16.mxu0 %v4919
        %5971 = vmatpush2.bf16.msra.mxu0 %v4918
        %5972 = vmatprep.subr.bf16.mxu0 %v4907
        %5973 = vmatpush2.bf16.msra.mxu0 %v4906
        %5974 = vmatprep.subr.bf16.mxu0 %v4895
        %5975 = vmatpush2.bf16.msra.mxu0 %v4894
        %5976 = vmatprep.subr.bf16.mxu0 %v4883
        %5977 = vmatpush2.bf16.msra.mxu0 %v4882
        %5978 = vmatprep.subr.bf16.mxu0 %v4871
        %5979 = vmatpush2.bf16.msra.mxu0 %v4870
        %5980 = vmatprep.subr.bf16.mxu0 %v4859
        %5981 = vmatpush2.bf16.msra.mxu0 %v4858
        %5982 = vmatprep.mubr.bf16.mxu0 %v3597
        %5983 = vmatmul.mubr.bf16.gmra.mxu0 %v3596
        %v5984 = vpop.f32.mrf.mxu0
        %v5985 = vadd.f32 0.0, %v5984
        %v5986 = vpop.f32.mrf.mxu0
        %v5987 = vadd.f32 0.0, %v5986
        %v5988 = vpop.f32.mrf.mxu0
        %v5989 = vadd.f32 0.0, %v5988
        %v5990 = vpop.f32.mrf.mxu0
        %v5991 = vadd.f32 0.0, %v5990
        %5992 = vdwg.mxu0
        %5993 = vmatprep.subr.bf16.mxu0 %v5039
        %5994 = vmatpush1.bf16.msra.mxu0 %v5038
        %5995 = vmatprep.subr.bf16.mxu0 %v5027
        %5996 = vmatpush1.bf16.msra.mxu0 %v5026
        %5997 = vmatprep.subr.bf16.mxu0 %v5015
        %5998 = vmatpush1.bf16.msra.mxu0 %v5014
        %5999 = vmatprep.subr.bf16.mxu0 %v5003
        %6000 = vmatpush1.bf16.msra.mxu0 %v5002
        %6001 = vmatprep.subr.bf16.mxu0 %v4991
        %6002 = vmatpush1.bf16.msra.mxu0 %v4990
        %6003 = vmatprep.subr.bf16.mxu0 %v4979
        %6004 = vmatpush1.bf16.msra.mxu0 %v4978
        %6005 = vmatprep.subr.bf16.mxu0 %v4967
        %6006 = vmatpush1.bf16.msra.mxu0 %v4966
        %6007 = vmatprep.subr.bf16.mxu0 %v4955
        %6008 = vmatpush1.bf16.msra.mxu0 %v4954
        %6009 = vmatprep.subr.bf16.mxu0 %v5135
        %6010 = vmatpush2.bf16.msra.mxu0 %v5134
        %6011 = vmatprep.subr.bf16.mxu0 %v5123
        %6012 = vmatpush2.bf16.msra.mxu0 %v5122
        %6013 = vmatprep.subr.bf16.mxu0 %v5111
        %6014 = vmatpush2.bf16.msra.mxu0 %v5110
        %6015 = vmatprep.subr.bf16.mxu0 %v5099
        %6016 = vmatpush2.bf16.msra.mxu0 %v5098
        %6017 = vmatprep.subr.bf16.mxu0 %v5087
        %6018 = vmatpush2.bf16.msra.mxu0 %v5086
        %6019 = vmatprep.subr.bf16.mxu0 %v5075
        %6020 = vmatpush2.bf16.msra.mxu0 %v5074
        %6021 = vmatprep.subr.bf16.mxu0 %v5063
        %6022 = vmatpush2.bf16.msra.mxu0 %v5062
        %6023 = vmatprep.subr.bf16.mxu0 %v5051
        %6024 = vmatpush2.bf16.msra.mxu0 %v5050
        %6025 = vmatprep.mubr.bf16.mxu0 %v3599
        %6026 = vmatmul.mubr.bf16.gmra.mxu0 %v3598
        %v6027 = vpop.f32.mrf.mxu0
        %v6028 = vadd.f32 %v5985, %v6027
        %v6029 = vpop.f32.mrf.mxu0
        %v6030 = vadd.f32 %v5987, %v6029
        %v6031 = vpop.f32.mrf.mxu0
        %v6032 = vadd.f32 %v5989, %v6031
        %v6033 = vpop.f32.mrf.mxu0
        %v6034 = vadd.f32 %v5991, %v6033
        %6035 = vdwg.mxu0
        %v6036 = vunpack.c.l.bf16 %v3584
        %v6037 = vunpack.c.h.bf16 %v3584
        %v6038 = vunpack.c.l.bf16 %v3585
        %v6039 = vunpack.c.h.bf16 %v3585
        %v6040 = vunpack.c.l.bf16 %v3590
        %v6041 = vunpack.c.h.bf16 %v3590
        %v6042 = vunpack.c.l.bf16 %v3591
        %v6043 = vunpack.c.h.bf16 %v3591
        %v6044 = vadd.f32 %v6036, %v5598
        %v6045 = vadd.f32 %v6037, %v5600
        %v6046 = vadd.f32 %v6038, %v5684
        %v6047 = vadd.f32 %v6039, %v5686
        %v6048 = vadd.f32 %v6040, %v5602
        %v6049 = vadd.f32 %v6041, %v5604
        %v6050 = vadd.f32 %v6042, %v5688
        %v6051 = vadd.f32 %v6043, %v5690
        %v6052 = vxor.u32 %v6044, 2147483648
        %v6053 = vxor.u32 %v6045, 2147483648
        %v6054 = vxor.u32 %v6046, 2147483648
        %v6055 = vxor.u32 %v6047, 2147483648
        %v6056 = vxor.u32 %v6048, 2147483648
        %v6057 = vxor.u32 %v6049, 2147483648
        %v6058 = vxor.u32 %v6050, 2147483648
        %v6059 = vxor.u32 %v6051, 2147483648
        %v6060 = vmul.f32 %v6052, 1.442695
        %v6061 = vpow.pop %v6060
        %v6062 = vmul.f32 %v6053, 1.442695
        %v6063 = vpow.pop %v6062
        %v6064 = vmul.f32 %v6054, 1.442695
        %v6065 = vpow.pop %v6064
        %v6066 = vmul.f32 %v6055, 1.442695
        %v6067 = vpow.pop %v6066
        %v6068 = vmul.f32 %v6056, 1.442695
        %v6069 = vpow.pop %v6068
        %v6070 = vmul.f32 %v6057, 1.442695
        %v6071 = vpow.pop %v6070
        %v6072 = vmul.f32 %v6058, 1.442695
        %v6073 = vpow.pop %v6072
        %v6074 = vmul.f32 %v6059, 1.442695
        %v6075 = vpow.pop %v6074
        %v6076 = vadd.f32 %v6061, 1.0
        %v6077 = vadd.f32 %v6063, 1.0
        %v6078 = vadd.f32 %v6065, 1.0
        %v6079 = vadd.f32 %v6067, 1.0
        %v6080 = vadd.f32 %v6069, 1.0
        %v6081 = vadd.f32 %v6071, 1.0
        %v6082 = vadd.f32 %v6073, 1.0
        %v6083 = vadd.f32 %v6075, 1.0
        %v6084 = vrcp.pop %v6076
        %v6085 = vmul.f32 1.0, %v6084
        %v6086 = vrcp.pop %v6077
        %v6087 = vmul.f32 1.0, %v6086
        %v6088 = vrcp.pop %v6078
        %v6089 = vmul.f32 1.0, %v6088
        %v6090 = vrcp.pop %v6079
        %v6091 = vmul.f32 1.0, %v6090
        %v6092 = vrcp.pop %v6080
        %v6093 = vmul.f32 1.0, %v6092
        %v6094 = vrcp.pop %v6081
        %v6095 = vmul.f32 1.0, %v6094
        %v6096 = vrcp.pop %v6082
        %v6097 = vmul.f32 1.0, %v6096
        %v6098 = vrcp.pop %v6083
        %v6099 = vmul.f32 1.0, %v6098
        %v6100 = vunpack.c.l.bf16 %v3586
        %v6101 = vunpack.c.h.bf16 %v3586
        %v6102 = vunpack.c.l.bf16 %v3587
        %v6103 = vunpack.c.h.bf16 %v3587
        %v6104 = vunpack.c.l.bf16 %v3592
        %v6105 = vunpack.c.h.bf16 %v3592
        %v6106 = vunpack.c.l.bf16 %v3593
        %v6107 = vunpack.c.h.bf16 %v3593
        %v6108 = vadd.f32 %v6100, %v5770
        %v6109 = vadd.f32 %v6101, %v5772
        %v6110 = vadd.f32 %v6102, %v5856
        %v6111 = vadd.f32 %v6103, %v5858
        %v6112 = vadd.f32 %v6104, %v5774
        %v6113 = vadd.f32 %v6105, %v5776
        %v6114 = vadd.f32 %v6106, %v5860
        %v6115 = vadd.f32 %v6107, %v5862
        %v6116 = vxor.u32 %v6108, 2147483648
        %v6117 = vxor.u32 %v6109, 2147483648
        %v6118 = vxor.u32 %v6110, 2147483648
        %v6119 = vxor.u32 %v6111, 2147483648
        %v6120 = vxor.u32 %v6112, 2147483648
        %v6121 = vxor.u32 %v6113, 2147483648
        %v6122 = vxor.u32 %v6114, 2147483648
        %v6123 = vxor.u32 %v6115, 2147483648
        %v6124 = vmul.f32 %v6116, 1.442695
        %v6125 = vpow.pop %v6124
        %v6126 = vmul.f32 %v6117, 1.442695
        %v6127 = vpow.pop %v6126
        %v6128 = vmul.f32 %v6118, 1.442695
        %v6129 = vpow.pop %v6128
        %v6130 = vmul.f32 %v6119, 1.442695
        %v6131 = vpow.pop %v6130
        %v6132 = vmul.f32 %v6120, 1.442695
        %v6133 = vpow.pop %v6132
        %v6134 = vmul.f32 %v6121, 1.442695
        %v6135 = vpow.pop %v6134
        %v6136 = vmul.f32 %v6122, 1.442695
        %v6137 = vpow.pop %v6136
        %v6138 = vmul.f32 %v6123, 1.442695
        %v6139 = vpow.pop %v6138
        %v6140 = vadd.f32 %v6125, 1.0
        %v6141 = vadd.f32 %v6127, 1.0
        %v6142 = vadd.f32 %v6129, 1.0
        %v6143 = vadd.f32 %v6131, 1.0
        %v6144 = vadd.f32 %v6133, 1.0
        %v6145 = vadd.f32 %v6135, 1.0
        %v6146 = vadd.f32 %v6137, 1.0
        %v6147 = vadd.f32 %v6139, 1.0
        %v6148 = vrcp.pop %v6140
        %v6149 = vmul.f32 1.0, %v6148
        %v6150 = vrcp.pop %v6141
        %v6151 = vmul.f32 1.0, %v6150
        %v6152 = vrcp.pop %v6142
        %v6153 = vmul.f32 1.0, %v6152
        %v6154 = vrcp.pop %v6143
        %v6155 = vmul.f32 1.0, %v6154
        %v6156 = vrcp.pop %v6144
        %v6157 = vmul.f32 1.0, %v6156
        %v6158 = vrcp.pop %v6145
        %v6159 = vmul.f32 1.0, %v6158
        %v6160 = vrcp.pop %v6146
        %v6161 = vmul.f32 1.0, %v6160
        %v6162 = vrcp.pop %v6147
        %v6163 = vmul.f32 1.0, %v6162
        %v6164 = vadd.f32 %v5942, %v909
        %v6165 = vadd.f32 %v5944, %v913
        %v6166 = vadd.f32 %v6028, %v917
        %v6167 = vadd.f32 %v6030, %v921
        %v6168 = vadd.f32 %v5946, %v909
        %v6169 = vadd.f32 %v5948, %v913
        %v6170 = vadd.f32 %v6032, %v917
        %v6171 = vadd.f32 %v6034, %v921
        %v6172 = vmul.f32 %v6085, %v6164
        %v6173 = vmul.f32 %v6087, %v6165
        %v6174 = vmul.f32 %v6089, %v6166
        %v6175 = vmul.f32 %v6091, %v6167
        %v6176 = vmul.f32 %v6093, %v6168
        %v6177 = vmul.f32 %v6095, %v6169
        %v6178 = vmul.f32 %v6097, %v6170
        %v6179 = vmul.f32 %v6099, %v6171
        %v6180 = vunpack.c.l.bf16 %v3588
        %v6181 = vunpack.c.h.bf16 %v3588
        %v6182 = vunpack.c.l.bf16 %v3589
        %v6183 = vunpack.c.h.bf16 %v3589
        %v6184 = vunpack.c.l.bf16 %v3594
        %v6185 = vunpack.c.h.bf16 %v3594
        %v6186 = vunpack.c.l.bf16 %v3595
        %v6187 = vunpack.c.h.bf16 %v3595
        %v6188 = vadd.f32 %v6180, %v6172
        %v6189 = vadd.f32 %v6181, %v6173
        %v6190 = vadd.f32 %v6182, %v6174
        %v6191 = vadd.f32 %v6183, %v6175
        %v6192 = vadd.f32 %v6184, %v6176
        %v6193 = vadd.f32 %v6185, %v6177
        %v6194 = vadd.f32 %v6186, %v6178
        %v6195 = vadd.f32 %v6187, %v6179
        %v6196 = vtanh.pop %v6188
        %v6197 = vtanh.pop %v6189
        %v6198 = vtanh.pop %v6190
        %v6199 = vtanh.pop %v6191
        %v6200 = vtanh.pop %v6192
        %v6201 = vtanh.pop %v6193
        %v6202 = vtanh.pop %v6194
        %v6203 = vtanh.pop %v6195
        %v6204 = vsub.f32 1.0, %v6149
        %v6205 = vsub.f32 1.0, %v6151
        %v6206 = vsub.f32 1.0, %v6153
        %v6207 = vsub.f32 1.0, %v6155
        %v6208 = vsub.f32 1.0, %v6157
        %v6209 = vsub.f32 1.0, %v6159
        %v6210 = vsub.f32 1.0, %v6161
        %v6211 = vsub.f32 1.0, %v6163
        %v6212 = vmul.f32 %v6204, %v6196
        %v6213 = vmul.f32 %v6205, %v6197
        %v6214 = vmul.f32 %v6206, %v6198
        %v6215 = vmul.f32 %v6207, %v6199
        %v6216 = vmul.f32 %v6208, %v6200
        %v6217 = vmul.f32 %v6209, %v6201
        %v6218 = vmul.f32 %v6210, %v6202
        %v6219 = vmul.f32 %v6211, %v6203
        %v6220 = vmul.f32 %v6149, %v3573
        %v6221 = vmul.f32 %v6151, %v3574
        %v6222 = vmul.f32 %v6153, %v3575
        %v6223 = vmul.f32 %v6155, %v3576
        %v6224 = vmul.f32 %v6157, %v3577
        %v6225 = vmul.f32 %v6159, %v3578
        %v6226 = vmul.f32 %v6161, %v3579
        %v6227 = vmul.f32 %v6163, %v3580
        %v6228 = vadd.f32 %v6212, %v6220
        %v6229 = vadd.f32 %v6213, %v6221
        %v6230 = vadd.f32 %v6214, %v6222
        %v6231 = vadd.f32 %v6215, %v6223
        %v6232 = vadd.f32 %v6216, %v6224
        %v6233 = vadd.f32 %v6217, %v6225
        %v6234 = vadd.f32 %v6218, %v6226
        %v6235 = vadd.f32 %v6219, %v6227
      $region77: #{tpu_custom_call.1} parent=69 // loop_footer
        %s3570 = sadd.s32 %s3568, 1
      $region78: #{tpu_custom_call.1} parent=69 // loop_footer_branch
        %3567 = sbr.rel target = $region74
      $region79: #{tpu_custom_call.1} parent=69 // loop_exit
        _
      %v6236 = vpack.c.bf16 %v3577, %v3573
      %v6237 = vpack.c.bf16 %v3578, %v3574
      %v6238 = vpack.c.bf16 %v3579, %v3575
      %v6239 = vpack.c.bf16 %v3580, %v3576
      %v6244 = vunpack.c.l.b16 %v6236
      %v6245 = vunpack.c.l.b16 %v6237
      %v6246 = vunpack.c.l.b16 %v6238
      %v6247 = vunpack.c.l.b16 %v6239
      %v6248 = vunpack.c.h.b16 %v6236
      %v6249 = vunpack.c.h.b16 %v6237
      %v6250 = vunpack.c.h.b16 %v6238
      %v6251 = vunpack.c.h.b16 %v6239
      %v6252 = vpack.c.b16 %v6245, %v6244
      %v6253 = vpack.c.b16 %v6247, %v6246
      %v6254 = vpack.c.b16 %v6249, %v6248
      %v6255 = vpack.c.b16 %v6251, %v6250
      %s6260 = smul.u32 %s3566, 8
      %s6261 = smul.addr %s6260, 4
      %s6262 = scalar_lea.vmem [#allocation2], %s6261
      %6263 = vst [vmem:[%s6262] sm:$0xff] %v6252
      %6264 = vst [vmem:[%s6262 + $0x8] sm:$0xff] %v6253
      %6265 = vst [vmem:[%s6262 + $0x10] sm:$0xff] %v6254
      %6266 = vst [vmem:[%s6262 + $0x18] sm:$0xff] %v6255
      %p6267 = scmp.lt.s32.totalorder %s3553, 7
      // Predicated region
      $region80: #{tpu_custom_call.1} parent=69 // pred_check
        %p6268 = pneg %p6267
      $region81: #{tpu_custom_call.1} parent=69 // pred_check_branch
        %6270 = sbr.rel (%p6268) target = $region83
      $region82: #{tpu_custom_call.1} parent=69 // pred_region
        %6271 = vmatprep.subr.bf16.mxu0 %v2261
        %6272 = vmatpush1.bf16.msra.mxu0 %v2260
        %6273 = vmatprep.subr.bf16.mxu0 %v2249
        %6274 = vmatpush1.bf16.msra.mxu0 %v2248
        %6275 = vmatprep.subr.bf16.mxu0 %v2237
        %6276 = vmatpush1.bf16.msra.mxu0 %v2236
        %6277 = vmatprep.subr.bf16.mxu0 %v2225
        %6278 = vmatpush1.bf16.msra.mxu0 %v2224
        %6279 = vmatprep.subr.bf16.mxu0 %v2213
        %6280 = vmatpush1.bf16.msra.mxu0 %v2212
        %6281 = vmatprep.subr.bf16.mxu0 %v2201
        %6282 = vmatpush1.bf16.msra.mxu0 %v2200
        %6283 = vmatprep.subr.bf16.mxu0 %v2189
        %6284 = vmatpush1.bf16.msra.mxu0 %v2188
        %6285 = vmatprep.subr.bf16.mxu0 %v2177
        %6286 = vmatpush1.bf16.msra.mxu0 %v2176
        %6287 = vmatprep.subr.bf16.mxu0 %v2357
        %6288 = vmatpush2.bf16.msra.mxu0 %v2356
        %6289 = vmatprep.subr.bf16.mxu0 %v2345
        %6290 = vmatpush2.bf16.msra.mxu0 %v2344
        %6291 = vmatprep.subr.bf16.mxu0 %v2333
        %6292 = vmatpush2.bf16.msra.mxu0 %v2332
        %6293 = vmatprep.subr.bf16.mxu0 %v2321
        %6294 = vmatpush2.bf16.msra.mxu0 %v2320
        %6295 = vmatprep.subr.bf16.mxu0 %v2309
        %6296 = vmatpush2.bf16.msra.mxu0 %v2308
        %6297 = vmatprep.subr.bf16.mxu0 %v2297
        %6298 = vmatpush2.bf16.msra.mxu0 %v2296
        %6299 = vmatprep.subr.bf16.mxu0 %v2285
        %6300 = vmatpush2.bf16.msra.mxu0 %v2284
        %6301 = vmatprep.subr.bf16.mxu0 %v2273
        %6302 = vmatpush2.bf16.msra.mxu0 %v2272
        %6303 = vmatprep.mubr.bf16.mxu0 %v6237
        %6304 = vmatmul.mubr.bf16.gmra.mxu0 %v6236
        %v6305 = vpop.f32.mrf.mxu0
        %v6306 = vadd.f32 %v967, %v6305
        %v6307 = vpop.f32.mrf.mxu0
        %v6308 = vadd.f32 %v971, %v6307
        %v6309 = vpop.f32.mrf.mxu0
        %v6310 = vadd.f32 %v967, %v6309
        %v6311 = vpop.f32.mrf.mxu0
        %v6312 = vadd.f32 %v971, %v6311
        %6313 = vdwg.mxu0
        %6314 = vmatprep.subr.bf16.mxu0 %v2453
        %6315 = vmatpush1.bf16.msra.mxu0 %v2452
        %6316 = vmatprep.subr.bf16.mxu0 %v2441
        %6317 = vmatpush1.bf16.msra.mxu0 %v2440
        %6318 = vmatprep.subr.bf16.mxu0 %v2429
        %6319 = vmatpush1.bf16.msra.mxu0 %v2428
        %6320 = vmatprep.subr.bf16.mxu0 %v2417
        %6321 = vmatpush1.bf16.msra.mxu0 %v2416
        %6322 = vmatprep.subr.bf16.mxu0 %v2405
        %6323 = vmatpush1.bf16.msra.mxu0 %v2404
        %6324 = vmatprep.subr.bf16.mxu0 %v2393
        %6325 = vmatpush1.bf16.msra.mxu0 %v2392
        %6326 = vmatprep.subr.bf16.mxu0 %v2381
        %6327 = vmatpush1.bf16.msra.mxu0 %v2380
        %6328 = vmatprep.subr.bf16.mxu0 %v2369
        %6329 = vmatpush1.bf16.msra.mxu0 %v2368
        %6330 = vmatprep.subr.bf16.mxu0 %v2549
        %6331 = vmatpush2.bf16.msra.mxu0 %v2548
        %6332 = vmatprep.subr.bf16.mxu0 %v2537
        %6333 = vmatpush2.bf16.msra.mxu0 %v2536
        %6334 = vmatprep.subr.bf16.mxu0 %v2525
        %6335 = vmatpush2.bf16.msra.mxu0 %v2524
        %6336 = vmatprep.subr.bf16.mxu0 %v2513
        %6337 = vmatpush2.bf16.msra.mxu0 %v2512
        %6338 = vmatprep.subr.bf16.mxu0 %v2501
        %6339 = vmatpush2.bf16.msra.mxu0 %v2500
        %6340 = vmatprep.subr.bf16.mxu0 %v2489
        %6341 = vmatpush2.bf16.msra.mxu0 %v2488
        %6342 = vmatprep.subr.bf16.mxu0 %v2477
        %6343 = vmatpush2.bf16.msra.mxu0 %v2476
        %6344 = vmatprep.subr.bf16.mxu0 %v2465
        %6345 = vmatpush2.bf16.msra.mxu0 %v2464
        %6346 = vmatprep.mubr.bf16.mxu0 %v6239
        %6347 = vmatmul.mubr.bf16.gmra.mxu0 %v6238
        %v6348 = vpop.f32.mrf.mxu0
        %v6349 = vadd.f32 %v6306, %v6348
        %v6350 = vpop.f32.mrf.mxu0
        %v6351 = vadd.f32 %v6308, %v6350
        %v6352 = vpop.f32.mrf.mxu0
        %v6353 = vadd.f32 %v6310, %v6352
        %v6354 = vpop.f32.mrf.mxu0
        %v6355 = vadd.f32 %v6312, %v6354
        %6356 = vdwg.mxu0
        %6357 = vmatprep.subr.bf16.mxu0 %v2263
        %6358 = vmatpush1.bf16.msra.mxu0 %v2262
        %6359 = vmatprep.subr.bf16.mxu0 %v2251
        %6360 = vmatpush1.bf16.msra.mxu0 %v2250
        %6361 = vmatprep.subr.bf16.mxu0 %v2239
        %6362 = vmatpush1.bf16.msra.mxu0 %v2238
        %6363 = vmatprep.subr.bf16.mxu0 %v2227
        %6364 = vmatpush1.bf16.msra.mxu0 %v2226
        %6365 = vmatprep.subr.bf16.mxu0 %v2215
        %6366 = vmatpush1.bf16.msra.mxu0 %v2214
        %6367 = vmatprep.subr.bf16.mxu0 %v2203
        %6368 = vmatpush1.bf16.msra.mxu0 %v2202
        %6369 = vmatprep.subr.bf16.mxu0 %v2191
        %6370 = vmatpush1.bf16.msra.mxu0 %v2190
        %6371 = vmatprep.subr.bf16.mxu0 %v2179
        %6372 = vmatpush1.bf16.msra.mxu0 %v2178
        %6373 = vmatprep.subr.bf16.mxu0 %v2359
        %6374 = vmatpush2.bf16.msra.mxu0 %v2358
        %6375 = vmatprep.subr.bf16.mxu0 %v2347
        %6376 = vmatpush2.bf16.msra.mxu0 %v2346
        %6377 = vmatprep.subr.bf16.mxu0 %v2335
        %6378 = vmatpush2.bf16.msra.mxu0 %v2334
        %6379 = vmatprep.subr.bf16.mxu0 %v2323
        %6380 = vmatpush2.bf16.msra.mxu0 %v2322
        %6381 = vmatprep.subr.bf16.mxu0 %v2311
        %6382 = vmatpush2.bf16.msra.mxu0 %v2310
        %6383 = vmatprep.subr.bf16.mxu0 %v2299
        %6384 = vmatpush2.bf16.msra.mxu0 %v2298
        %6385 = vmatprep.subr.bf16.mxu0 %v2287
        %6386 = vmatpush2.bf16.msra.mxu0 %v2286
        %6387 = vmatprep.subr.bf16.mxu0 %v2275
        %6388 = vmatpush2.bf16.msra.mxu0 %v2274
        %6389 = vmatprep.mubr.bf16.mxu0 %v6237
        %6390 = vmatmul.mubr.bf16.gmra.mxu0 %v6236
        %v6391 = vpop.f32.mrf.mxu0
        %v6392 = vadd.f32 %v975, %v6391
        %v6393 = vpop.f32.mrf.mxu0
        %v6394 = vadd.f32 %v979, %v6393
        %v6395 = vpop.f32.mrf.mxu0
        %v6396 = vadd.f32 %v975, %v6395
        %v6397 = vpop.f32.mrf.mxu0
        %v6398 = vadd.f32 %v979, %v6397
        %6399 = vdwg.mxu0
        %6400 = vmatprep.subr.bf16.mxu0 %v2455
        %6401 = vmatpush1.bf16.msra.mxu0 %v2454
        %6402 = vmatprep.subr.bf16.mxu0 %v2443
        %6403 = vmatpush1.bf16.msra.mxu0 %v2442
        %6404 = vmatprep.subr.bf16.mxu0 %v2431
        %6405 = vmatpush1.bf16.msra.mxu0 %v2430
        %6406 = vmatprep.subr.bf16.mxu0 %v2419
        %6407 = vmatpush1.bf16.msra.mxu0 %v2418
        %6408 = vmatprep.subr.bf16.mxu0 %v2407
        %6409 = vmatpush1.bf16.msra.mxu0 %v2406
        %6410 = vmatprep.subr.bf16.mxu0 %v2395
        %6411 = vmatpush1.bf16.msra.mxu0 %v2394
        %6412 = vmatprep.subr.bf16.mxu0 %v2383
        %6413 = vmatpush1.bf16.msra.mxu0 %v2382
        %6414 = vmatprep.subr.bf16.mxu0 %v2371
        %6415 = vmatpush1.bf16.msra.mxu0 %v2370
        %6416 = vmatprep.subr.bf16.mxu0 %v2551
        %6417 = vmatpush2.bf16.msra.mxu0 %v2550
        %6418 = vmatprep.subr.bf16.mxu0 %v2539
        %6419 = vmatpush2.bf16.msra.mxu0 %v2538
        %6420 = vmatprep.subr.bf16.mxu0 %v2527
        %6421 = vmatpush2.bf16.msra.mxu0 %v2526
        %6422 = vmatprep.subr.bf16.mxu0 %v2515
        %6423 = vmatpush2.bf16.msra.mxu0 %v2514
        %6424 = vmatprep.subr.bf16.mxu0 %v2503
        %6425 = vmatpush2.bf16.msra.mxu0 %v2502
        %6426 = vmatprep.subr.bf16.mxu0 %v2491
        %6427 = vmatpush2.bf16.msra.mxu0 %v2490
        %6428 = vmatprep.subr.bf16.mxu0 %v2479
        %6429 = vmatpush2.bf16.msra.mxu0 %v2478
        %6430 = vmatprep.subr.bf16.mxu0 %v2467
        %6431 = vmatpush2.bf16.msra.mxu0 %v2466
        %6432 = vmatprep.mubr.bf16.mxu0 %v6239
        %6433 = vmatmul.mubr.bf16.gmra.mxu0 %v6238
        %v6434 = vpop.f32.mrf.mxu0
        %v6435 = vadd.f32 %v6392, %v6434
        %v6436 = vpop.f32.mrf.mxu0
        %v6437 = vadd.f32 %v6394, %v6436
        %v6438 = vpop.f32.mrf.mxu0
        %v6439 = vadd.f32 %v6396, %v6438
        %v6440 = vpop.f32.mrf.mxu0
        %v6441 = vadd.f32 %v6398, %v6440
        %6442 = vdwg.mxu0
        %6443 = vmatprep.subr.bf16.mxu0 %v2265
        %6444 = vmatpush1.bf16.msra.mxu0 %v2264
        %6445 = vmatprep.subr.bf16.mxu0 %v2253
        %6446 = vmatpush1.bf16.msra.mxu0 %v2252
        %6447 = vmatprep.subr.bf16.mxu0 %v2241
        %6448 = vmatpush1.bf16.msra.mxu0 %v2240
        %6449 = vmatprep.subr.bf16.mxu0 %v2229
        %6450 = vmatpush1.bf16.msra.mxu0 %v2228
        %6451 = vmatprep.subr.bf16.mxu0 %v2217
        %6452 = vmatpush1.bf16.msra.mxu0 %v2216
        %6453 = vmatprep.subr.bf16.mxu0 %v2205
        %6454 = vmatpush1.bf16.msra.mxu0 %v2204
        %6455 = vmatprep.subr.bf16.mxu0 %v2193
        %6456 = vmatpush1.bf16.msra.mxu0 %v2192
        %6457 = vmatprep.subr.bf16.mxu0 %v2181
        %6458 = vmatpush1.bf16.msra.mxu0 %v2180
        %6459 = vmatprep.subr.bf16.mxu0 %v2361
        %6460 = vmatpush2.bf16.msra.mxu0 %v2360
        %6461 = vmatprep.subr.bf16.mxu0 %v2349
        %6462 = vmatpush2.bf16.msra.mxu0 %v2348
        %6463 = vmatprep.subr.bf16.mxu0 %v2337
        %6464 = vmatpush2.bf16.msra.mxu0 %v2336
        %6465 = vmatprep.subr.bf16.mxu0 %v2325
        %6466 = vmatpush2.bf16.msra.mxu0 %v2324
        %6467 = vmatprep.subr.bf16.mxu0 %v2313
        %6468 = vmatpush2.bf16.msra.mxu0 %v2312
        %6469 = vmatprep.subr.bf16.mxu0 %v2301
        %6470 = vmatpush2.bf16.msra.mxu0 %v2300
        %6471 = vmatprep.subr.bf16.mxu0 %v2289
        %6472 = vmatpush2.bf16.msra.mxu0 %v2288
        %6473 = vmatprep.subr.bf16.mxu0 %v2277
        %6474 = vmatpush2.bf16.msra.mxu0 %v2276
        %6475 = vmatprep.mubr.bf16.mxu0 %v6237
        %6476 = vmatmul.mubr.bf16.gmra.mxu0 %v6236
        %v6477 = vpop.f32.mrf.mxu0
        %v6478 = vadd.f32 %v983, %v6477
        %v6479 = vpop.f32.mrf.mxu0
        %v6480 = vadd.f32 %v987, %v6479
        %v6481 = vpop.f32.mrf.mxu0
        %v6482 = vadd.f32 %v983, %v6481
        %v6483 = vpop.f32.mrf.mxu0
        %v6484 = vadd.f32 %v987, %v6483
        %6485 = vdwg.mxu0
        %6486 = vmatprep.subr.bf16.mxu0 %v2457
        %6487 = vmatpush1.bf16.msra.mxu0 %v2456
        %6488 = vmatprep.subr.bf16.mxu0 %v2445
        %6489 = vmatpush1.bf16.msra.mxu0 %v2444
        %6490 = vmatprep.subr.bf16.mxu0 %v2433
        %6491 = vmatpush1.bf16.msra.mxu0 %v2432
        %6492 = vmatprep.subr.bf16.mxu0 %v2421
        %6493 = vmatpush1.bf16.msra.mxu0 %v2420
        %6494 = vmatprep.subr.bf16.mxu0 %v2409
        %6495 = vmatpush1.bf16.msra.mxu0 %v2408
        %6496 = vmatprep.subr.bf16.mxu0 %v2397
        %6497 = vmatpush1.bf16.msra.mxu0 %v2396
        %6498 = vmatprep.subr.bf16.mxu0 %v2385
        %6499 = vmatpush1.bf16.msra.mxu0 %v2384
        %6500 = vmatprep.subr.bf16.mxu0 %v2373
        %6501 = vmatpush1.bf16.msra.mxu0 %v2372
        %6502 = vmatprep.subr.bf16.mxu0 %v2553
        %6503 = vmatpush2.bf16.msra.mxu0 %v2552
        %6504 = vmatprep.subr.bf16.mxu0 %v2541
        %6505 = vmatpush2.bf16.msra.mxu0 %v2540
        %6506 = vmatprep.subr.bf16.mxu0 %v2529
        %6507 = vmatpush2.bf16.msra.mxu0 %v2528
        %6508 = vmatprep.subr.bf16.mxu0 %v2517
        %6509 = vmatpush2.bf16.msra.mxu0 %v2516
        %6510 = vmatprep.subr.bf16.mxu0 %v2505
        %6511 = vmatpush2.bf16.msra.mxu0 %v2504
        %6512 = vmatprep.subr.bf16.mxu0 %v2493
        %6513 = vmatpush2.bf16.msra.mxu0 %v2492
        %6514 = vmatprep.subr.bf16.mxu0 %v2481
        %6515 = vmatpush2.bf16.msra.mxu0 %v2480
        %6516 = vmatprep.subr.bf16.mxu0 %v2469
        %6517 = vmatpush2.bf16.msra.mxu0 %v2468
        %6518 = vmatprep.mubr.bf16.mxu0 %v6239
        %6519 = vmatmul.mubr.bf16.gmra.mxu0 %v6238
        %v6520 = vpop.f32.mrf.mxu0
        %v6521 = vadd.f32 %v6478, %v6520
        %v6522 = vpop.f32.mrf.mxu0
        %v6523 = vadd.f32 %v6480, %v6522
        %v6524 = vpop.f32.mrf.mxu0
        %v6525 = vadd.f32 %v6482, %v6524
        %v6526 = vpop.f32.mrf.mxu0
        %v6527 = vadd.f32 %v6484, %v6526
        %6528 = vdwg.mxu0
        %6529 = vmatprep.subr.bf16.mxu0 %v2267
        %6530 = vmatpush1.bf16.msra.mxu0 %v2266
        %6531 = vmatprep.subr.bf16.mxu0 %v2255
        %6532 = vmatpush1.bf16.msra.mxu0 %v2254
        %6533 = vmatprep.subr.bf16.mxu0 %v2243
        %6534 = vmatpush1.bf16.msra.mxu0 %v2242
        %6535 = vmatprep.subr.bf16.mxu0 %v2231
        %6536 = vmatpush1.bf16.msra.mxu0 %v2230
        %6537 = vmatprep.subr.bf16.mxu0 %v2219
        %6538 = vmatpush1.bf16.msra.mxu0 %v2218
        %6539 = vmatprep.subr.bf16.mxu0 %v2207
        %6540 = vmatpush1.bf16.msra.mxu0 %v2206
        %6541 = vmatprep.subr.bf16.mxu0 %v2195
        %6542 = vmatpush1.bf16.msra.mxu0 %v2194
        %6543 = vmatprep.subr.bf16.mxu0 %v2183
        %6544 = vmatpush1.bf16.msra.mxu0 %v2182
        %6545 = vmatprep.subr.bf16.mxu0 %v2363
        %6546 = vmatpush2.bf16.msra.mxu0 %v2362
        %6547 = vmatprep.subr.bf16.mxu0 %v2351
        %6548 = vmatpush2.bf16.msra.mxu0 %v2350
        %6549 = vmatprep.subr.bf16.mxu0 %v2339
        %6550 = vmatpush2.bf16.msra.mxu0 %v2338
        %6551 = vmatprep.subr.bf16.mxu0 %v2327
        %6552 = vmatpush2.bf16.msra.mxu0 %v2326
        %6553 = vmatprep.subr.bf16.mxu0 %v2315
        %6554 = vmatpush2.bf16.msra.mxu0 %v2314
        %6555 = vmatprep.subr.bf16.mxu0 %v2303
        %6556 = vmatpush2.bf16.msra.mxu0 %v2302
        %6557 = vmatprep.subr.bf16.mxu0 %v2291
        %6558 = vmatpush2.bf16.msra.mxu0 %v2290
        %6559 = vmatprep.subr.bf16.mxu0 %v2279
        %6560 = vmatpush2.bf16.msra.mxu0 %v2278
        %6561 = vmatprep.mubr.bf16.mxu0 %v6237
        %6562 = vmatmul.mubr.bf16.gmra.mxu0 %v6236
        %v6563 = vpop.f32.mrf.mxu0
        %v6564 = vadd.f32 %v991, %v6563
        %v6565 = vpop.f32.mrf.mxu0
        %v6566 = vadd.f32 %v995, %v6565
        %v6567 = vpop.f32.mrf.mxu0
        %v6568 = vadd.f32 %v991, %v6567
        %v6569 = vpop.f32.mrf.mxu0
        %v6570 = vadd.f32 %v995, %v6569
        %6571 = vdwg.mxu0
        %6572 = vmatprep.subr.bf16.mxu0 %v2459
        %6573 = vmatpush1.bf16.msra.mxu0 %v2458
        %6574 = vmatprep.subr.bf16.mxu0 %v2447
        %6575 = vmatpush1.bf16.msra.mxu0 %v2446
        %6576 = vmatprep.subr.bf16.mxu0 %v2435
        %6577 = vmatpush1.bf16.msra.mxu0 %v2434
        %6578 = vmatprep.subr.bf16.mxu0 %v2423
        %6579 = vmatpush1.bf16.msra.mxu0 %v2422
        %6580 = vmatprep.subr.bf16.mxu0 %v2411
        %6581 = vmatpush1.bf16.msra.mxu0 %v2410
        %6582 = vmatprep.subr.bf16.mxu0 %v2399
        %6583 = vmatpush1.bf16.msra.mxu0 %v2398
        %6584 = vmatprep.subr.bf16.mxu0 %v2387
        %6585 = vmatpush1.bf16.msra.mxu0 %v2386
        %6586 = vmatprep.subr.bf16.mxu0 %v2375
        %6587 = vmatpush1.bf16.msra.mxu0 %v2374
        %6588 = vmatprep.subr.bf16.mxu0 %v2555
        %6589 = vmatpush2.bf16.msra.mxu0 %v2554
        %6590 = vmatprep.subr.bf16.mxu0 %v2543
        %6591 = vmatpush2.bf16.msra.mxu0 %v2542
        %6592 = vmatprep.subr.bf16.mxu0 %v2531
        %6593 = vmatpush2.bf16.msra.mxu0 %v2530
        %6594 = vmatprep.subr.bf16.mxu0 %v2519
        %6595 = vmatpush2.bf16.msra.mxu0 %v2518
        %6596 = vmatprep.subr.bf16.mxu0 %v2507
        %6597 = vmatpush2.bf16.msra.mxu0 %v2506
        %6598 = vmatprep.subr.bf16.mxu0 %v2495
        %6599 = vmatpush2.bf16.msra.mxu0 %v2494
        %6600 = vmatprep.subr.bf16.mxu0 %v2483
        %6601 = vmatpush2.bf16.msra.mxu0 %v2482
        %6602 = vmatprep.subr.bf16.mxu0 %v2471
        %6603 = vmatpush2.bf16.msra.mxu0 %v2470
        %6604 = vmatprep.mubr.bf16.mxu0 %v6239
        %6605 = vmatmul.mubr.bf16.gmra.mxu0 %v6238
        %v6606 = vpop.f32.mrf.mxu0
        %v6607 = vadd.f32 %v6564, %v6606
        %v6608 = vpop.f32.mrf.mxu0
        %v6609 = vadd.f32 %v6566, %v6608
        %v6610 = vpop.f32.mrf.mxu0
        %v6611 = vadd.f32 %v6568, %v6610
        %v6612 = vpop.f32.mrf.mxu0
        %v6613 = vadd.f32 %v6570, %v6612
        %6614 = vdwg.mxu0
        %6615 = vmatprep.subr.bf16.mxu0 %v2269
        %6616 = vmatpush1.bf16.msra.mxu0 %v2268
        %6617 = vmatprep.subr.bf16.mxu0 %v2257
        %6618 = vmatpush1.bf16.msra.mxu0 %v2256
        %6619 = vmatprep.subr.bf16.mxu0 %v2245
        %6620 = vmatpush1.bf16.msra.mxu0 %v2244
        %6621 = vmatprep.subr.bf16.mxu0 %v2233
        %6622 = vmatpush1.bf16.msra.mxu0 %v2232
        %6623 = vmatprep.subr.bf16.mxu0 %v2221
        %6624 = vmatpush1.bf16.msra.mxu0 %v2220
        %6625 = vmatprep.subr.bf16.mxu0 %v2209
        %6626 = vmatpush1.bf16.msra.mxu0 %v2208
        %6627 = vmatprep.subr.bf16.mxu0 %v2197
        %6628 = vmatpush1.bf16.msra.mxu0 %v2196
        %6629 = vmatprep.subr.bf16.mxu0 %v2185
        %6630 = vmatpush1.bf16.msra.mxu0 %v2184
        %6631 = vmatprep.subr.bf16.mxu0 %v2365
        %6632 = vmatpush2.bf16.msra.mxu0 %v2364
        %6633 = vmatprep.subr.bf16.mxu0 %v2353
        %6634 = vmatpush2.bf16.msra.mxu0 %v2352
        %6635 = vmatprep.subr.bf16.mxu0 %v2341
        %6636 = vmatpush2.bf16.msra.mxu0 %v2340
        %6637 = vmatprep.subr.bf16.mxu0 %v2329
        %6638 = vmatpush2.bf16.msra.mxu0 %v2328
        %6639 = vmatprep.subr.bf16.mxu0 %v2317
        %6640 = vmatpush2.bf16.msra.mxu0 %v2316
        %6641 = vmatprep.subr.bf16.mxu0 %v2305
        %6642 = vmatpush2.bf16.msra.mxu0 %v2304
        %6643 = vmatprep.subr.bf16.mxu0 %v2293
        %6644 = vmatpush2.bf16.msra.mxu0 %v2292
        %6645 = vmatprep.subr.bf16.mxu0 %v2281
        %6646 = vmatpush2.bf16.msra.mxu0 %v2280
        %6647 = vmatprep.mubr.bf16.mxu0 %v6237
        %6648 = vmatmul.mubr.bf16.gmra.mxu0 %v6236
        %v6649 = vpop.f32.mrf.mxu0
        %v6650 = vadd.f32 %v999, %v6649
        %v6651 = vpop.f32.mrf.mxu0
        %v6652 = vadd.f32 %v1003, %v6651
        %v6653 = vpop.f32.mrf.mxu0
        %v6654 = vadd.f32 %v999, %v6653
        %v6655 = vpop.f32.mrf.mxu0
        %v6656 = vadd.f32 %v1003, %v6655
        %6657 = vdwg.mxu0
        %6658 = vmatprep.subr.bf16.mxu0 %v2461
        %6659 = vmatpush1.bf16.msra.mxu0 %v2460
        %6660 = vmatprep.subr.bf16.mxu0 %v2449
        %6661 = vmatpush1.bf16.msra.mxu0 %v2448
        %6662 = vmatprep.subr.bf16.mxu0 %v2437
        %6663 = vmatpush1.bf16.msra.mxu0 %v2436
        %6664 = vmatprep.subr.bf16.mxu0 %v2425
        %6665 = vmatpush1.bf16.msra.mxu0 %v2424
        %6666 = vmatprep.subr.bf16.mxu0 %v2413
        %6667 = vmatpush1.bf16.msra.mxu0 %v2412
        %6668 = vmatprep.subr.bf16.mxu0 %v2401
        %6669 = vmatpush1.bf16.msra.mxu0 %v2400
        %6670 = vmatprep.subr.bf16.mxu0 %v2389
        %6671 = vmatpush1.bf16.msra.mxu0 %v2388
        %6672 = vmatprep.subr.bf16.mxu0 %v2377
        %6673 = vmatpush1.bf16.msra.mxu0 %v2376
        %6674 = vmatprep.subr.bf16.mxu0 %v2557
        %6675 = vmatpush2.bf16.msra.mxu0 %v2556
        %6676 = vmatprep.subr.bf16.mxu0 %v2545
        %6677 = vmatpush2.bf16.msra.mxu0 %v2544
        %6678 = vmatprep.subr.bf16.mxu0 %v2533
        %6679 = vmatpush2.bf16.msra.mxu0 %v2532
        %6680 = vmatprep.subr.bf16.mxu0 %v2521
        %6681 = vmatpush2.bf16.msra.mxu0 %v2520
        %6682 = vmatprep.subr.bf16.mxu0 %v2509
        %6683 = vmatpush2.bf16.msra.mxu0 %v2508
        %6684 = vmatprep.subr.bf16.mxu0 %v2497
        %6685 = vmatpush2.bf16.msra.mxu0 %v2496
        %6686 = vmatprep.subr.bf16.mxu0 %v2485
        %6687 = vmatpush2.bf16.msra.mxu0 %v2484
        %6688 = vmatprep.subr.bf16.mxu0 %v2473
        %6689 = vmatpush2.bf16.msra.mxu0 %v2472
        %6690 = vmatprep.mubr.bf16.mxu0 %v6239
        %6691 = vmatmul.mubr.bf16.gmra.mxu0 %v6238
        %v6692 = vpop.f32.mrf.mxu0
        %v6693 = vadd.f32 %v6650, %v6692
        %v6694 = vpop.f32.mrf.mxu0
        %v6695 = vadd.f32 %v6652, %v6694
        %v6696 = vpop.f32.mrf.mxu0
        %v6697 = vadd.f32 %v6654, %v6696
        %v6698 = vpop.f32.mrf.mxu0
        %v6699 = vadd.f32 %v6656, %v6698
        %6700 = vdwg.mxu0
        %6701 = vmatprep.subr.bf16.mxu0 %v2271
        %6702 = vmatpush1.bf16.msra.mxu0 %v2270
        %6703 = vmatprep.subr.bf16.mxu0 %v2259
        %6704 = vmatpush1.bf16.msra.mxu0 %v2258
        %6705 = vmatprep.subr.bf16.mxu0 %v2247
        %6706 = vmatpush1.bf16.msra.mxu0 %v2246
        %6707 = vmatprep.subr.bf16.mxu0 %v2235
        %6708 = vmatpush1.bf16.msra.mxu0 %v2234
        %6709 = vmatprep.subr.bf16.mxu0 %v2223
        %6710 = vmatpush1.bf16.msra.mxu0 %v2222
        %6711 = vmatprep.subr.bf16.mxu0 %v2211
        %6712 = vmatpush1.bf16.msra.mxu0 %v2210
        %6713 = vmatprep.subr.bf16.mxu0 %v2199
        %6714 = vmatpush1.bf16.msra.mxu0 %v2198
        %6715 = vmatprep.subr.bf16.mxu0 %v2187
        %6716 = vmatpush1.bf16.msra.mxu0 %v2186
        %6717 = vmatprep.subr.bf16.mxu0 %v2367
        %6718 = vmatpush2.bf16.msra.mxu0 %v2366
        %6719 = vmatprep.subr.bf16.mxu0 %v2355
        %6720 = vmatpush2.bf16.msra.mxu0 %v2354
        %6721 = vmatprep.subr.bf16.mxu0 %v2343
        %6722 = vmatpush2.bf16.msra.mxu0 %v2342
        %6723 = vmatprep.subr.bf16.mxu0 %v2331
        %6724 = vmatpush2.bf16.msra.mxu0 %v2330
        %6725 = vmatprep.subr.bf16.mxu0 %v2319
        %6726 = vmatpush2.bf16.msra.mxu0 %v2318
        %6727 = vmatprep.subr.bf16.mxu0 %v2307
        %6728 = vmatpush2.bf16.msra.mxu0 %v2306
        %6729 = vmatprep.subr.bf16.mxu0 %v2295
        %6730 = vmatpush2.bf16.msra.mxu0 %v2294
        %6731 = vmatprep.subr.bf16.mxu0 %v2283
        %6732 = vmatpush2.bf16.msra.mxu0 %v2282
        %6733 = vmatprep.mubr.bf16.mxu0 %v6237
        %6734 = vmatmul.mubr.bf16.gmra.mxu0 %v6236
        %v6735 = vpop.f32.mrf.mxu0
        %v6736 = vadd.f32 %v1007, %v6735
        %v6737 = vpop.f32.mrf.mxu0
        %v6738 = vadd.f32 %v1011, %v6737
        %v6739 = vpop.f32.mrf.mxu0
        %v6740 = vadd.f32 %v1007, %v6739
        %v6741 = vpop.f32.mrf.mxu0
        %v6742 = vadd.f32 %v1011, %v6741
        %6743 = vdwg.mxu0
        %6744 = vmatprep.subr.bf16.mxu0 %v2463
        %6745 = vmatpush1.bf16.msra.mxu0 %v2462
        %6746 = vmatprep.subr.bf16.mxu0 %v2451
        %6747 = vmatpush1.bf16.msra.mxu0 %v2450
        %6748 = vmatprep.subr.bf16.mxu0 %v2439
        %6749 = vmatpush1.bf16.msra.mxu0 %v2438
        %6750 = vmatprep.subr.bf16.mxu0 %v2427
        %6751 = vmatpush1.bf16.msra.mxu0 %v2426
        %6752 = vmatprep.subr.bf16.mxu0 %v2415
        %6753 = vmatpush1.bf16.msra.mxu0 %v2414
        %6754 = vmatprep.subr.bf16.mxu0 %v2403
        %6755 = vmatpush1.bf16.msra.mxu0 %v2402
        %6756 = vmatprep.subr.bf16.mxu0 %v2391
        %6757 = vmatpush1.bf16.msra.mxu0 %v2390
        %6758 = vmatprep.subr.bf16.mxu0 %v2379
        %6759 = vmatpush1.bf16.msra.mxu0 %v2378
        %6760 = vmatprep.subr.bf16.mxu0 %v2559
        %6761 = vmatpush2.bf16.msra.mxu0 %v2558
        %6762 = vmatprep.subr.bf16.mxu0 %v2547
        %6763 = vmatpush2.bf16.msra.mxu0 %v2546
        %6764 = vmatprep.subr.bf16.mxu0 %v2535
        %6765 = vmatpush2.bf16.msra.mxu0 %v2534
        %6766 = vmatprep.subr.bf16.mxu0 %v2523
        %6767 = vmatpush2.bf16.msra.mxu0 %v2522
        %6768 = vmatprep.subr.bf16.mxu0 %v2511
        %6769 = vmatpush2.bf16.msra.mxu0 %v2510
        %6770 = vmatprep.subr.bf16.mxu0 %v2499
        %6771 = vmatpush2.bf16.msra.mxu0 %v2498
        %6772 = vmatprep.subr.bf16.mxu0 %v2487
        %6773 = vmatpush2.bf16.msra.mxu0 %v2486
        %6774 = vmatprep.subr.bf16.mxu0 %v2475
        %6775 = vmatpush2.bf16.msra.mxu0 %v2474
        %6776 = vmatprep.mubr.bf16.mxu0 %v6239
        %6777 = vmatmul.mubr.bf16.gmra.mxu0 %v6238
        %v6778 = vpop.f32.mrf.mxu0
        %v6779 = vadd.f32 %v6736, %v6778
        %v6780 = vpop.f32.mrf.mxu0
        %v6781 = vadd.f32 %v6738, %v6780
        %v6782 = vpop.f32.mrf.mxu0
        %v6783 = vadd.f32 %v6740, %v6782
        %v6784 = vpop.f32.mrf.mxu0
        %v6785 = vadd.f32 %v6742, %v6784
        %6786 = vdwg.mxu0
        %v6787 = vpack.c.bf16 %v6353, %v6349
        %v6788 = vpack.c.bf16 %v6355, %v6351
        %v6789 = vpack.c.bf16 %v6439, %v6435
        %v6790 = vpack.c.bf16 %v6441, %v6437
        %v6791 = vpack.c.bf16 %v6525, %v6521
        %v6792 = vpack.c.bf16 %v6527, %v6523
        %v6793 = vpack.c.bf16 %v6611, %v6607
        %v6794 = vpack.c.bf16 %v6613, %v6609
        %v6795 = vpack.c.bf16 %v6697, %v6693
        %v6796 = vpack.c.bf16 %v6699, %v6695
        %v6797 = vpack.c.bf16 %v6783, %v6779
        %v6798 = vpack.c.bf16 %v6785, %v6781
        %v6811 = vunpack.c.l.b16 %v6787
        %v6812 = vunpack.c.l.b16 %v6788
        %v6813 = vunpack.c.l.b16 %v6789
        %v6814 = vunpack.c.l.b16 %v6790
        %v6815 = vunpack.c.l.b16 %v6791
        %v6816 = vunpack.c.l.b16 %v6792
        %v6817 = vunpack.c.l.b16 %v6793
        %v6818 = vunpack.c.l.b16 %v6794
        %v6819 = vunpack.c.l.b16 %v6795
        %v6820 = vunpack.c.l.b16 %v6796
        %v6821 = vunpack.c.l.b16 %v6797
        %v6822 = vunpack.c.l.b16 %v6798
        %v6823 = vunpack.c.h.b16 %v6787
        %v6824 = vunpack.c.h.b16 %v6788
        %v6825 = vunpack.c.h.b16 %v6789
        %v6826 = vunpack.c.h.b16 %v6790
        %v6827 = vunpack.c.h.b16 %v6791
        %v6828 = vunpack.c.h.b16 %v6792
        %v6829 = vunpack.c.h.b16 %v6793
        %v6830 = vunpack.c.h.b16 %v6794
        %v6831 = vunpack.c.h.b16 %v6795
        %v6832 = vunpack.c.h.b16 %v6796
        %v6833 = vunpack.c.h.b16 %v6797
        %v6834 = vunpack.c.h.b16 %v6798
        %v6835 = vpack.c.b16 %v6812, %v6811
        %v6836 = vpack.c.b16 %v6814, %v6813
        %v6837 = vpack.c.b16 %v6816, %v6815
        %v6838 = vpack.c.b16 %v6818, %v6817
        %v6839 = vpack.c.b16 %v6820, %v6819
        %v6840 = vpack.c.b16 %v6822, %v6821
        %v6841 = vpack.c.b16 %v6824, %v6823
        %v6842 = vpack.c.b16 %v6826, %v6825
        %v6843 = vpack.c.b16 %v6828, %v6827
        %v6844 = vpack.c.b16 %v6830, %v6829
        %v6845 = vpack.c.b16 %v6832, %v6831
        %v6846 = vpack.c.b16 %v6834, %v6833
        %s6859 = smul.u32 %s3566, 24
        %s6860 = smul.addr %s6859, 4
        %s6861 = scalar_lea.vmem [#allocation3], %s6860
        %6862 = vst [vmem:[%s6861] sm:$0xff] %v6835
        %6863 = vst [vmem:[%s6861 + $0x8] sm:$0xff] %v6836
        %6864 = vst [vmem:[%s6861 + $0x10] sm:$0xff] %v6837
        %6865 = vst [vmem:[%s6861 + $0x18] sm:$0xff] %v6838
        %6866 = vst [vmem:[%s6861 + $0x20] sm:$0xff] %v6839
        %6867 = vst [vmem:[%s6861 + $0x28] sm:$0xff] %v6840
        %6868 = vst [vmem:[%s6861 + $0x30] sm:$0xff] %v6841
        %6869 = vst [vmem:[%s6861 + $0x38] sm:$0xff] %v6842
        %6870 = vst [vmem:[%s6861 + $0x40] sm:$0xff] %v6843
        %6871 = vst [vmem:[%s6861 + $0x48] sm:$0xff] %v6844
        %6872 = vst [vmem:[%s6861 + $0x50] sm:$0xff] %v6845
        %6873 = vst [vmem:[%s6861 + $0x58] sm:$0xff] %v6846
      $region83: #{tpu_custom_call.1} parent=69 // pred_fallthru
        _
    $region70: #{tpu_custom_call.1} parent=1 // loop_footer
      %s3557 = sadd.s32 1, %s3553
    $region71: #{tpu_custom_call.1} parent=1 // loop_footer_branch
      %3552 = sbr.rel target = $region67
    $region72: #{tpu_custom_call.1} parent=1 // loop_exit
      _
    %v6874 = vld [vmem:[#allocation15] sm:$0xf]
    %v6875 = vld [vmem:[#allocation15 + $0x4] sm:$0xf]
    %v6876 = vld [vmem:[#allocation15 + $0x8] sm:$0xf]
    %v6877 = vld [vmem:[#allocation15 + $0xc] sm:$0xf]
    %v6878 = vld [vmem:[#allocation15 + $0x10] sm:$0xf]
    %v6879 = vld [vmem:[#allocation15 + $0x14] sm:$0xf]
    %v6880 = vld [vmem:[#allocation15 + $0x18] sm:$0xf]
    %v6881 = vld [vmem:[#allocation15 + $0x1c] sm:$0xf]
    %v6882 = vld [vmem:[#allocation15 + $0x20] sm:$0xf]
    %v6883 = vld [vmem:[#allocation15 + $0x24] sm:$0xf]
    %v6884 = vld [vmem:[#allocation15 + $0x28] sm:$0xf]
    %v6885 = vld [vmem:[#allocation15 + $0x2c] sm:$0xf]
    %v6886 = vld [vmem:[#allocation15 + $0x30] sm:$0xf]
    %v6887 = vld [vmem:[#allocation15 + $0x34] sm:$0xf]
    %v6888 = vld [vmem:[#allocation15 + $0x38] sm:$0xf]
    %v6889 = vld [vmem:[#allocation15 + $0x3c] sm:$0xf]
    %v6890 = vld [vmem:[#allocation15 + $0x40] sm:$0xf]
    %v6891 = vld [vmem:[#allocation15 + $0x44] sm:$0xf]
    %v6892 = vld [vmem:[#allocation15 + $0x48] sm:$0xf]
    %v6893 = vld [vmem:[#allocation15 + $0x4c] sm:$0xf]
    %v6894 = vld [vmem:[#allocation15 + $0x50] sm:$0xf]
    %v6895 = vld [vmem:[#allocation15 + $0x54] sm:$0xf]
    %v6896 = vld [vmem:[#allocation15 + $0x58] sm:$0xf]
    %v6897 = vld [vmem:[#allocation15 + $0x5c] sm:$0xf]
    %v6898 = vld [vmem:[#allocation15 + $0x60] sm:$0xf]
    %v6899 = vld [vmem:[#allocation15 + $0x64] sm:$0xf]
    %v6900 = vld [vmem:[#allocation15 + $0x68] sm:$0xf]
    %v6901 = vld [vmem:[#allocation15 + $0x6c] sm:$0xf]
    %v6902 = vld [vmem:[#allocation15 + $0x70] sm:$0xf]
    %v6903 = vld [vmem:[#allocation15 + $0x74] sm:$0xf]
    %v6904 = vld [vmem:[#allocation15 + $0x78] sm:$0xf]
    %v6905 = vld [vmem:[#allocation15 + $0x7c] sm:$0xf]
    %v6906 = vld [vmem:[#allocation15 + $0x80] sm:$0xf]
    %v6907 = vld [vmem:[#allocation15 + $0x84] sm:$0xf]
    %v6908 = vld [vmem:[#allocation15 + $0x88] sm:$0xf]
    %v6909 = vld [vmem:[#allocation15 + $0x8c] sm:$0xf]
    %v6910 = vld [vmem:[#allocation15 + $0x90] sm:$0xf]
    %v6911 = vld [vmem:[#allocation15 + $0x94] sm:$0xf]
    %v6912 = vld [vmem:[#allocation15 + $0x98] sm:$0xf]
    %v6913 = vld [vmem:[#allocation15 + $0x9c] sm:$0xf]
    %v6914 = vld [vmem:[#allocation15 + $0xa0] sm:$0xf]
    %v6915 = vld [vmem:[#allocation15 + $0xa4] sm:$0xf]
    %v6916 = vld [vmem:[#allocation15 + $0xa8] sm:$0xf]
    %v6917 = vld [vmem:[#allocation15 + $0xac] sm:$0xf]
    %v6918 = vld [vmem:[#allocation15 + $0xb0] sm:$0xf]
    %v6919 = vld [vmem:[#allocation15 + $0xb4] sm:$0xf]
    %v6920 = vld [vmem:[#allocation15 + $0xb8] sm:$0xf]
    %v6921 = vld [vmem:[#allocation15 + $0xbc] sm:$0xf]
    %v6922 = vld [vmem:[#allocation15 + $0xc0] sm:$0xf]
    %v6923 = vld [vmem:[#allocation15 + $0xc4] sm:$0xf]
    %v6924 = vld [vmem:[#allocation15 + $0xc8] sm:$0xf]
    %v6925 = vld [vmem:[#allocation15 + $0xcc] sm:$0xf]
    %v6926 = vld [vmem:[#allocation15 + $0xd0] sm:$0xf]
    %v6927 = vld [vmem:[#allocation15 + $0xd4] sm:$0xf]
    %v6928 = vld [vmem:[#allocation15 + $0xd8] sm:$0xf]
    %v6929 = vld [vmem:[#allocation15 + $0xdc] sm:$0xf]
    %v6930 = vld [vmem:[#allocation15 + $0xe0] sm:$0xf]
    %v6931 = vld [vmem:[#allocation15 + $0xe4] sm:$0xf]
    %v6932 = vld [vmem:[#allocation15 + $0xe8] sm:$0xf]
    %v6933 = vld [vmem:[#allocation15 + $0xec] sm:$0xf]
    %v6934 = vld [vmem:[#allocation15 + $0xf0] sm:$0xf]
    %v6935 = vld [vmem:[#allocation15 + $0xf4] sm:$0xf]
    %v6936 = vld [vmem:[#allocation15 + $0xf8] sm:$0xf]
    %v6937 = vld [vmem:[#allocation15 + $0xfc] sm:$0xf]
    %v6938 = vld [vmem:[#allocation16] sm:$0x1]
    %v6939 = vld [vmem:[#allocation2] sm:$0xff]
    %v6940 = vld [vmem:[#allocation2 + $0x8] sm:$0xff]
    %v6941 = vld [vmem:[#allocation2 + $0x10] sm:$0xff]
    %v6942 = vld [vmem:[#allocation2 + $0x18] sm:$0xff]
    %v6943 = vld [vmem:[#allocation2 + $0x20] sm:$0xff]
    %v6944 = vld [vmem:[#allocation2 + $0x28] sm:$0xff]
    %v6945 = vld [vmem:[#allocation2 + $0x30] sm:$0xff]
    %v6946 = vld [vmem:[#allocation2 + $0x38] sm:$0xff]
    %v6947 = vld [vmem:[#allocation2 + $0x40] sm:$0xff]
    %v6948 = vld [vmem:[#allocation2 + $0x48] sm:$0xff]
    %v6949 = vld [vmem:[#allocation2 + $0x50] sm:$0xff]
    %v6950 = vld [vmem:[#allocation2 + $0x58] sm:$0xff]
    %v6951 = vld [vmem:[#allocation2 + $0x60] sm:$0xff]
    %v6952 = vld [vmem:[#allocation2 + $0x68] sm:$0xff]
    %v6953 = vld [vmem:[#allocation2 + $0x70] sm:$0xff]
    %v6954 = vld [vmem:[#allocation2 + $0x78] sm:$0xff]
    %v6955 = vld [vmem:[#allocation2 + $0x80] sm:$0xff]
    %v6956 = vld [vmem:[#allocation2 + $0x88] sm:$0xff]
    %v6957 = vld [vmem:[#allocation2 + $0x90] sm:$0xff]
    %v6958 = vld [vmem:[#allocation2 + $0x98] sm:$0xff]
    %v6959 = vld [vmem:[#allocation2 + $0xa0] sm:$0xff]
    %v6960 = vld [vmem:[#allocation2 + $0xa8] sm:$0xff]
    %v6961 = vld [vmem:[#allocation2 + $0xb0] sm:$0xff]
    %v6962 = vld [vmem:[#allocation2 + $0xb8] sm:$0xff]
    %v6963 = vld [vmem:[#allocation2 + $0xc0] sm:$0xff]
    %v6964 = vld [vmem:[#allocation2 + $0xc8] sm:$0xff]
    %v6965 = vld [vmem:[#allocation2 + $0xd0] sm:$0xff]
    %v6966 = vld [vmem:[#allocation2 + $0xd8] sm:$0xff]
    %v6967 = vld [vmem:[#allocation2 + $0xe0] sm:$0xff]
    %v6968 = vld [vmem:[#allocation2 + $0xe8] sm:$0xff]
    %v6969 = vld [vmem:[#allocation2 + $0xf0] sm:$0xff]
    %v6970 = vld [vmem:[#allocation2 + $0xf8] sm:$0xff]
    %v6971 = vld [vmem:[#allocation2 + $0x100] sm:$0xff]
    %v6972 = vld [vmem:[#allocation2 + $0x108] sm:$0xff]
    %v6973 = vld [vmem:[#allocation2 + $0x110] sm:$0xff]
    %v6974 = vld [vmem:[#allocation2 + $0x118] sm:$0xff]
    %v6976 = vlaneseq
    %v6977 = vshrl.u32 %v6976, 7
    %v6978 = vsub.s32 0, %v6977
    %v6979 = vrot.slane %v6938, %v6978
    %v7017 = vunpack.c.l.b16 %v6939
    %v7018 = vunpack.c.h.b16 %v6939
    %v7019 = vunpack.c.l.b16 %v6940
    %v7020 = vunpack.c.h.b16 %v6940
    %v7021 = vunpack.c.l.b16 %v6941
    %v7022 = vunpack.c.h.b16 %v6941
    %v7023 = vunpack.c.l.b16 %v6942
    %v7024 = vunpack.c.h.b16 %v6942
    %v7025 = vunpack.c.l.b16 %v6943
    %v7026 = vunpack.c.h.b16 %v6943
    %v7027 = vunpack.c.l.b16 %v6944
    %v7028 = vunpack.c.h.b16 %v6944
    %v7029 = vunpack.c.l.b16 %v6945
    %v7030 = vunpack.c.h.b16 %v6945
    %v7031 = vunpack.c.l.b16 %v6946
    %v7032 = vunpack.c.h.b16 %v6946
    %v7033 = vunpack.c.l.b16 %v6947
    %v7034 = vunpack.c.h.b16 %v6947
    %v7035 = vunpack.c.l.b16 %v6948
    %v7036 = vunpack.c.h.b16 %v6948
    %v7037 = vunpack.c.l.b16 %v6949
    %v7038 = vunpack.c.h.b16 %v6949
    %v7039 = vunpack.c.l.b16 %v6950
    %v7040 = vunpack.c.h.b16 %v6950
    %v7041 = vunpack.c.l.b16 %v6951
    %v7042 = vunpack.c.h.b16 %v6951
    %v7043 = vunpack.c.l.b16 %v6952
    %v7044 = vunpack.c.h.b16 %v6952
    %v7045 = vunpack.c.l.b16 %v6953
    %v7046 = vunpack.c.h.b16 %v6953
    %v7047 = vunpack.c.l.b16 %v6954
    %v7048 = vunpack.c.h.b16 %v6954
    %v7049 = vunpack.c.l.b16 %v6955
    %v7050 = vunpack.c.h.b16 %v6955
    %v7051 = vunpack.c.l.b16 %v6956
    %v7052 = vunpack.c.h.b16 %v6956
    %v7053 = vunpack.c.l.b16 %v6957
    %v7054 = vunpack.c.h.b16 %v6957
    %v7055 = vunpack.c.l.b16 %v6958
    %v7056 = vunpack.c.h.b16 %v6958
    %v7057 = vunpack.c.l.b16 %v6959
    %v7058 = vunpack.c.h.b16 %v6959
    %v7059 = vunpack.c.l.b16 %v6960
    %v7060 = vunpack.c.h.b16 %v6960
    %v7061 = vunpack.c.l.b16 %v6961
    %v7062 = vunpack.c.h.b16 %v6961
    %v7063 = vunpack.c.l.b16 %v6962
    %v7064 = vunpack.c.h.b16 %v6962
    %v7065 = vunpack.c.l.b16 %v6963
    %v7066 = vunpack.c.h.b16 %v6963
    %v7067 = vunpack.c.l.b16 %v6964
    %v7068 = vunpack.c.h.b16 %v6964
    %v7069 = vunpack.c.l.b16 %v6965
    %v7070 = vunpack.c.h.b16 %v6965
    %v7071 = vunpack.c.l.b16 %v6966
    %v7072 = vunpack.c.h.b16 %v6966
    %v7073 = vunpack.c.l.b16 %v6967
    %v7074 = vunpack.c.h.b16 %v6967
    %v7075 = vunpack.c.l.b16 %v6968
    %v7076 = vunpack.c.h.b16 %v6968
    %v7077 = vunpack.c.l.b16 %v6969
    %v7078 = vunpack.c.h.b16 %v6969
    %v7079 = vunpack.c.l.b16 %v6970
    %v7080 = vunpack.c.h.b16 %v6970
    %v7081 = vunpack.c.l.b16 %v6971
    %v7082 = vunpack.c.h.b16 %v6971
    %v7083 = vunpack.c.l.b16 %v6972
    %v7084 = vunpack.c.h.b16 %v6972
    %v7085 = vunpack.c.l.b16 %v6973
    %v7086 = vunpack.c.h.b16 %v6973
    %v7087 = vunpack.c.l.b16 %v6974
    %v7088 = vunpack.c.h.b16 %v6974
    %v7089 = vpack.c.b16 %v7021, %v7017
    %v7090 = vpack.c.b16 %v7022, %v7018
    %v7091 = vpack.c.b16 %v7023, %v7019
    %v7092 = vpack.c.b16 %v7024, %v7020
    %v7093 = vpack.c.b16 %v7029, %v7025
    %v7094 = vpack.c.b16 %v7030, %v7026
    %v7095 = vpack.c.b16 %v7031, %v7027
    %v7096 = vpack.c.b16 %v7032, %v7028
    %v7097 = vpack.c.b16 %v7037, %v7033
    %v7098 = vpack.c.b16 %v7038, %v7034
    %v7099 = vpack.c.b16 %v7039, %v7035
    %v7100 = vpack.c.b16 %v7040, %v7036
    %v7101 = vpack.c.b16 %v7045, %v7041
    %v7102 = vpack.c.b16 %v7046, %v7042
    %v7103 = vpack.c.b16 %v7047, %v7043
    %v7104 = vpack.c.b16 %v7048, %v7044
    %v7105 = vpack.c.b16 %v7053, %v7049
    %v7106 = vpack.c.b16 %v7054, %v7050
    %v7107 = vpack.c.b16 %v7055, %v7051
    %v7108 = vpack.c.b16 %v7056, %v7052
    %v7109 = vpack.c.b16 %v7061, %v7057
    %v7110 = vpack.c.b16 %v7062, %v7058
    %v7111 = vpack.c.b16 %v7063, %v7059
    %v7112 = vpack.c.b16 %v7064, %v7060
    %v7113 = vpack.c.b16 %v7069, %v7065
    %v7114 = vpack.c.b16 %v7070, %v7066
    %v7115 = vpack.c.b16 %v7071, %v7067
    %v7116 = vpack.c.b16 %v7072, %v7068
    %v7117 = vpack.c.b16 %v7077, %v7073
    %v7118 = vpack.c.b16 %v7078, %v7074
    %v7119 = vpack.c.b16 %v7079, %v7075
    %v7120 = vpack.c.b16 %v7080, %v7076
    %v7121 = vpack.c.b16 %v7085, %v7081
    %v7122 = vpack.c.b16 %v7086, %v7082
    %v7123 = vpack.c.b16 %v7087, %v7083
    %v7124 = vpack.c.b16 %v7088, %v7084
    %v7225 = vunpack.c.l.b16 %v6874
    %v7226 = vunpack.c.l.b16 %v6875
    %v7227 = vunpack.c.l.b16 %v6876
    %v7228 = vunpack.c.l.b16 %v6877
    %v7229 = vunpack.c.l.b16 %v6878
    %v7230 = vunpack.c.l.b16 %v6879
    %v7231 = vunpack.c.l.b16 %v6880
    %v7232 = vunpack.c.l.b16 %v6881
    %v7233 = vunpack.c.l.b16 %v6882
    %v7234 = vunpack.c.l.b16 %v6883
    %v7235 = vunpack.c.l.b16 %v6884
    %v7236 = vunpack.c.l.b16 %v6885
    %v7237 = vunpack.c.l.b16 %v6886
    %v7238 = vunpack.c.l.b16 %v6887
    %v7239 = vunpack.c.l.b16 %v6888
    %v7240 = vunpack.c.l.b16 %v6889
    %v7241 = vunpack.c.l.b16 %v6890
    %v7242 = vunpack.c.l.b16 %v6891
    %v7243 = vunpack.c.l.b16 %v6892
    %v7244 = vunpack.c.l.b16 %v6893
    %v7245 = vunpack.c.l.b16 %v6894
    %v7246 = vunpack.c.l.b16 %v6895
    %v7247 = vunpack.c.l.b16 %v6896
    %v7248 = vunpack.c.l.b16 %v6897
    %v7249 = vunpack.c.l.b16 %v6898
    %v7250 = vunpack.c.l.b16 %v6899
    %v7251 = vunpack.c.l.b16 %v6900
    %v7252 = vunpack.c.l.b16 %v6901
    %v7253 = vunpack.c.l.b16 %v6902
    %v7254 = vunpack.c.l.b16 %v6903
    %v7255 = vunpack.c.l.b16 %v6904
    %v7256 = vunpack.c.l.b16 %v6905
    %v7257 = vunpack.c.l.b16 %v6906
    %v7258 = vunpack.c.l.b16 %v6907
    %v7259 = vunpack.c.l.b16 %v6908
    %v7260 = vunpack.c.l.b16 %v6909
    %v7261 = vunpack.c.l.b16 %v6910
    %v7262 = vunpack.c.l.b16 %v6911
    %v7263 = vunpack.c.l.b16 %v6912
    %v7264 = vunpack.c.l.b16 %v6913
    %v7265 = vunpack.c.l.b16 %v6914
    %v7266 = vunpack.c.l.b16 %v6915
    %v7267 = vunpack.c.l.b16 %v6916
    %v7268 = vunpack.c.l.b16 %v6917
    %v7269 = vunpack.c.l.b16 %v6918
    %v7270 = vunpack.c.l.b16 %v6919
    %v7271 = vunpack.c.l.b16 %v6920
    %v7272 = vunpack.c.l.b16 %v6921
    %v7273 = vunpack.c.l.b16 %v6922
    %v7274 = vunpack.c.l.b16 %v6923
    %v7275 = vunpack.c.l.b16 %v6924
    %v7276 = vunpack.c.l.b16 %v6925
    %v7277 = vunpack.c.l.b16 %v6926
    %v7278 = vunpack.c.l.b16 %v6927
    %v7279 = vunpack.c.l.b16 %v6928
    %v7280 = vunpack.c.l.b16 %v6929
    %v7281 = vunpack.c.l.b16 %v6930
    %v7282 = vunpack.c.l.b16 %v6931
    %v7283 = vunpack.c.l.b16 %v6932
    %v7284 = vunpack.c.l.b16 %v6933
    %v7285 = vunpack.c.l.b16 %v6934
    %v7286 = vunpack.c.l.b16 %v6935
    %v7287 = vunpack.c.l.b16 %v6936
    %v7288 = vunpack.c.l.b16 %v6937
    %v7289 = vpack.c.b16 %v7226, %v7225
    %v7290 = vpack.c.b16 %v7228, %v7227
    %v7291 = vpack.c.b16 %v7230, %v7229
    %v7292 = vpack.c.b16 %v7232, %v7231
    %v7293 = vpack.c.b16 %v7234, %v7233
    %v7294 = vpack.c.b16 %v7236, %v7235
    %v7295 = vpack.c.b16 %v7238, %v7237
    %v7296 = vpack.c.b16 %v7240, %v7239
    %v7297 = vpack.c.b16 %v7242, %v7241
    %v7298 = vpack.c.b16 %v7244, %v7243
    %v7299 = vpack.c.b16 %v7246, %v7245
    %v7300 = vpack.c.b16 %v7248, %v7247
    %v7301 = vpack.c.b16 %v7250, %v7249
    %v7302 = vpack.c.b16 %v7252, %v7251
    %v7303 = vpack.c.b16 %v7254, %v7253
    %v7304 = vpack.c.b16 %v7256, %v7255
    %v7305 = vpack.c.b16 %v7258, %v7257
    %v7306 = vpack.c.b16 %v7260, %v7259
    %v7307 = vpack.c.b16 %v7262, %v7261
    %v7308 = vpack.c.b16 %v7264, %v7263
    %v7309 = vpack.c.b16 %v7266, %v7265
    %v7310 = vpack.c.b16 %v7268, %v7267
    %v7311 = vpack.c.b16 %v7270, %v7269
    %v7312 = vpack.c.b16 %v7272, %v7271
    %v7313 = vpack.c.b16 %v7274, %v7273
    %v7314 = vpack.c.b16 %v7276, %v7275
    %v7315 = vpack.c.b16 %v7278, %v7277
    %v7316 = vpack.c.b16 %v7280, %v7279
    %v7317 = vpack.c.b16 %v7282, %v7281
    %v7318 = vpack.c.b16 %v7284, %v7283
    %v7319 = vpack.c.b16 %v7286, %v7285
    %v7320 = vpack.c.b16 %v7288, %v7287
    %7353 = vmatprep.subr.bf16.mxu0 0
    %7354 = vmatpush1.bf16.msra.mxu0 %v7296
    %7355 = vmatprep.subr.bf16.mxu0 0
    %7356 = vmatpush1.bf16.msra.mxu0 %v7295
    %7357 = vmatprep.subr.bf16.mxu0 0
    %7358 = vmatpush1.bf16.msra.mxu0 %v7294
    %7359 = vmatprep.subr.bf16.mxu0 0
    %7360 = vmatpush1.bf16.msra.mxu0 %v7293
    %7361 = vmatprep.subr.bf16.mxu0 0
    %7362 = vmatpush1.bf16.msra.mxu0 %v7292
    %7363 = vmatprep.subr.bf16.mxu0 0
    %7364 = vmatpush1.bf16.msra.mxu0 %v7291
    %7365 = vmatprep.subr.bf16.mxu0 0
    %7366 = vmatpush1.bf16.msra.mxu0 %v7290
    %7367 = vmatprep.subr.bf16.mxu0 0
    %7368 = vmatpush1.bf16.msra.mxu0 %v7289
    %7369 = vmatprep.subr.bf16.mxu0 0
    %7370 = vmatpush2.bf16.msra.mxu0 %v7304
    %7371 = vmatprep.subr.bf16.mxu0 0
    %7372 = vmatpush2.bf16.msra.mxu0 %v7303
    %7373 = vmatprep.subr.bf16.mxu0 0
    %7374 = vmatpush2.bf16.msra.mxu0 %v7302
    %7375 = vmatprep.subr.bf16.mxu0 0
    %7376 = vmatpush2.bf16.msra.mxu0 %v7301
    %7377 = vmatprep.subr.bf16.mxu0 0
    %7378 = vmatpush2.bf16.msra.mxu0 %v7300
    %7379 = vmatprep.subr.bf16.mxu0 0
    %7380 = vmatpush2.bf16.msra.mxu0 %v7299
    %7381 = vmatprep.subr.bf16.mxu0 0
    %7382 = vmatpush2.bf16.msra.mxu0 %v7298
    %7383 = vmatprep.subr.bf16.mxu0 0
    %7384 = vmatpush2.bf16.msra.mxu0 %v7297
    %7385 = vmatprep.mubr.bf16.mxu0 %v7090
    %7386 = vmatmul.mubr.bf16.gmra.mxu0 %v7089
    %v7387 = vpop.f32.mrf.mxu0
    %v7388 = vadd.f32 %v6979, %v7387
    %v7389 = vpop.f32.mrf.mxu0
    %v7390 = vpop.f32.mrf.mxu0
    %v7391 = vadd.f32 %v6979, %v7390
    %v7392 = vpop.f32.mrf.mxu0
    %7393 = vmatprep.mubr.bf16.mxu0 %v7094
    %7394 = vmatmul.mubr.bf16.gmra.mxu0 %v7093
    %v7395 = vpop.f32.mrf.mxu0
    %v7396 = vadd.f32 %v6979, %v7395
    %v7397 = vpop.f32.mrf.mxu0
    %v7398 = vpop.f32.mrf.mxu0
    %v7399 = vadd.f32 %v6979, %v7398
    %v7400 = vpop.f32.mrf.mxu0
    %7401 = vmatprep.mubr.bf16.mxu0 %v7098
    %7402 = vmatmul.mubr.bf16.gmra.mxu0 %v7097
    %v7403 = vpop.f32.mrf.mxu0
    %v7404 = vadd.f32 %v6979, %v7403
    %v7405 = vpop.f32.mrf.mxu0
    %v7406 = vpop.f32.mrf.mxu0
    %v7407 = vadd.f32 %v6979, %v7406
    %v7408 = vpop.f32.mrf.mxu0
    %7409 = vmatprep.mubr.bf16.mxu0 %v7102
    %7410 = vmatmul.mubr.bf16.gmra.mxu0 %v7101
    %v7411 = vpop.f32.mrf.mxu0
    %v7412 = vadd.f32 %v6979, %v7411
    %v7413 = vpop.f32.mrf.mxu0
    %v7414 = vpop.f32.mrf.mxu0
    %v7415 = vadd.f32 %v6979, %v7414
    %v7416 = vpop.f32.mrf.mxu0
    %7417 = vmatprep.mubr.bf16.mxu0 %v7106
    %7418 = vmatmul.mubr.bf16.gmra.mxu0 %v7105
    %v7419 = vpop.f32.mrf.mxu0
    %v7420 = vadd.f32 %v6979, %v7419
    %v7421 = vpop.f32.mrf.mxu0
    %v7422 = vpop.f32.mrf.mxu0
    %v7423 = vadd.f32 %v6979, %v7422
    %v7424 = vpop.f32.mrf.mxu0
    %7425 = vmatprep.mubr.bf16.mxu0 %v7110
    %7426 = vmatmul.mubr.bf16.gmra.mxu0 %v7109
    %v7427 = vpop.f32.mrf.mxu0
    %v7428 = vadd.f32 %v6979, %v7427
    %v7429 = vpop.f32.mrf.mxu0
    %v7430 = vpop.f32.mrf.mxu0
    %v7431 = vadd.f32 %v6979, %v7430
    %v7432 = vpop.f32.mrf.mxu0
    %7433 = vmatprep.mubr.bf16.mxu0 %v7114
    %7434 = vmatmul.mubr.bf16.gmra.mxu0 %v7113
    %v7435 = vpop.f32.mrf.mxu0
    %v7436 = vadd.f32 %v6979, %v7435
    %v7437 = vpop.f32.mrf.mxu0
    %v7438 = vpop.f32.mrf.mxu0
    %v7439 = vadd.f32 %v6979, %v7438
    %v7440 = vpop.f32.mrf.mxu0
    %7441 = vmatprep.mubr.bf16.mxu0 %v7118
    %7442 = vmatmul.mubr.bf16.gmra.mxu0 %v7117
    %v7443 = vpop.f32.mrf.mxu0
    %v7444 = vadd.f32 %v6979, %v7443
    %v7445 = vpop.f32.mrf.mxu0
    %v7446 = vpop.f32.mrf.mxu0
    %v7447 = vadd.f32 %v6979, %v7446
    %v7448 = vpop.f32.mrf.mxu0
    %7449 = vmatprep.mubr.bf16.mxu0 %v7122
    %7450 = vmatmul.mubr.bf16.gmra.mxu0 %v7121
    %v7451 = vpop.f32.mrf.mxu0
    %v7452 = vadd.f32 %v6979, %v7451
    %v7453 = vpop.f32.mrf.mxu0
    %v7454 = vpop.f32.mrf.mxu0
    %v7455 = vadd.f32 %v6979, %v7454
    %v7456 = vpop.f32.mrf.mxu0
    %7457 = vdwg.mxu0
    %7458 = vmatprep.subr.bf16.mxu0 0
    %7459 = vmatpush1.bf16.msra.mxu0 %v7312
    %7460 = vmatprep.subr.bf16.mxu0 0
    %7461 = vmatpush1.bf16.msra.mxu0 %v7311
    %7462 = vmatprep.subr.bf16.mxu0 0
    %7463 = vmatpush1.bf16.msra.mxu0 %v7310
    %7464 = vmatprep.subr.bf16.mxu0 0
    %7465 = vmatpush1.bf16.msra.mxu0 %v7309
    %7466 = vmatprep.subr.bf16.mxu0 0
    %7467 = vmatpush1.bf16.msra.mxu0 %v7308
    %7468 = vmatprep.subr.bf16.mxu0 0
    %7469 = vmatpush1.bf16.msra.mxu0 %v7307
    %7470 = vmatprep.subr.bf16.mxu0 0
    %7471 = vmatpush1.bf16.msra.mxu0 %v7306
    %7472 = vmatprep.subr.bf16.mxu0 0
    %7473 = vmatpush1.bf16.msra.mxu0 %v7305
    %7474 = vmatprep.subr.bf16.mxu0 0
    %7475 = vmatpush2.bf16.msra.mxu0 %v7320
    %7476 = vmatprep.subr.bf16.mxu0 0
    %7477 = vmatpush2.bf16.msra.mxu0 %v7319
    %7478 = vmatprep.subr.bf16.mxu0 0
    %7479 = vmatpush2.bf16.msra.mxu0 %v7318
    %7480 = vmatprep.subr.bf16.mxu0 0
    %7481 = vmatpush2.bf16.msra.mxu0 %v7317
    %7482 = vmatprep.subr.bf16.mxu0 0
    %7483 = vmatpush2.bf16.msra.mxu0 %v7316
    %7484 = vmatprep.subr.bf16.mxu0 0
    %7485 = vmatpush2.bf16.msra.mxu0 %v7315
    %7486 = vmatprep.subr.bf16.mxu0 0
    %7487 = vmatpush2.bf16.msra.mxu0 %v7314
    %7488 = vmatprep.subr.bf16.mxu0 0
    %7489 = vmatpush2.bf16.msra.mxu0 %v7313
    %7490 = vmatprep.mubr.bf16.mxu0 %v7092
    %7491 = vmatmul.mubr.bf16.gmra.mxu0 %v7091
    %v7492 = vpop.f32.mrf.mxu0
    %v7493 = vadd.f32 %v7388, %v7492
    %v7494 = vpop.f32.mrf.mxu0
    %v7495 = vpop.f32.mrf.mxu0
    %v7496 = vadd.f32 %v7391, %v7495
    %v7497 = vpop.f32.mrf.mxu0
    %7498 = vmatprep.mubr.bf16.mxu0 %v7096
    %7499 = vmatmul.mubr.bf16.gmra.mxu0 %v7095
    %v7500 = vpop.f32.mrf.mxu0
    %v7501 = vadd.f32 %v7396, %v7500
    %v7502 = vpop.f32.mrf.mxu0
    %v7503 = vpop.f32.mrf.mxu0
    %v7504 = vadd.f32 %v7399, %v7503
    %v7505 = vpop.f32.mrf.mxu0
    %7506 = vmatprep.mubr.bf16.mxu0 %v7100
    %7507 = vmatmul.mubr.bf16.gmra.mxu0 %v7099
    %v7508 = vpop.f32.mrf.mxu0
    %v7509 = vadd.f32 %v7404, %v7508
    %v7510 = vpop.f32.mrf.mxu0
    %v7511 = vpop.f32.mrf.mxu0
    %v7512 = vadd.f32 %v7407, %v7511
    %v7513 = vpop.f32.mrf.mxu0
    %7514 = vmatprep.mubr.bf16.mxu0 %v7104
    %7515 = vmatmul.mubr.bf16.gmra.mxu0 %v7103
    %v7516 = vpop.f32.mrf.mxu0
    %v7517 = vadd.f32 %v7412, %v7516
    %v7518 = vpop.f32.mrf.mxu0
    %v7519 = vpop.f32.mrf.mxu0
    %v7520 = vadd.f32 %v7415, %v7519
    %v7521 = vpop.f32.mrf.mxu0
    %7522 = vmatprep.mubr.bf16.mxu0 %v7108
    %7523 = vmatmul.mubr.bf16.gmra.mxu0 %v7107
    %v7524 = vpop.f32.mrf.mxu0
    %v7525 = vadd.f32 %v7420, %v7524
    %v7526 = vpop.f32.mrf.mxu0
    %v7527 = vpop.f32.mrf.mxu0
    %v7528 = vadd.f32 %v7423, %v7527
    %v7529 = vpop.f32.mrf.mxu0
    %7530 = vmatprep.mubr.bf16.mxu0 %v7112
    %7531 = vmatmul.mubr.bf16.gmra.mxu0 %v7111
    %v7532 = vpop.f32.mrf.mxu0
    %v7533 = vadd.f32 %v7428, %v7532
    %v7534 = vpop.f32.mrf.mxu0
    %v7535 = vpop.f32.mrf.mxu0
    %v7536 = vadd.f32 %v7431, %v7535
    %v7537 = vpop.f32.mrf.mxu0
    %7538 = vmatprep.mubr.bf16.mxu0 %v7116
    %7539 = vmatmul.mubr.bf16.gmra.mxu0 %v7115
    %v7540 = vpop.f32.mrf.mxu0
    %v7541 = vadd.f32 %v7436, %v7540
    %v7542 = vpop.f32.mrf.mxu0
    %v7543 = vpop.f32.mrf.mxu0
    %v7544 = vadd.f32 %v7439, %v7543
    %v7545 = vpop.f32.mrf.mxu0
    %7546 = vmatprep.mubr.bf16.mxu0 %v7120
    %7547 = vmatmul.mubr.bf16.gmra.mxu0 %v7119
    %v7548 = vpop.f32.mrf.mxu0
    %v7549 = vadd.f32 %v7444, %v7548
    %v7550 = vpop.f32.mrf.mxu0
    %v7551 = vpop.f32.mrf.mxu0
    %v7552 = vadd.f32 %v7447, %v7551
    %v7553 = vpop.f32.mrf.mxu0
    %7554 = vmatprep.mubr.bf16.mxu0 %v7124
    %7555 = vmatmul.mubr.bf16.gmra.mxu0 %v7123
    %v7556 = vpop.f32.mrf.mxu0
    %v7557 = vadd.f32 %v7452, %v7556
    %v7558 = vpop.f32.mrf.mxu0
    %v7559 = vpop.f32.mrf.mxu0
    %v7560 = vadd.f32 %v7455, %v7559
    %v7561 = vpop.f32.mrf.mxu0
    %7562 = vdwg.mxu0
    %7563 = vst [vmem:[#allocation18] sm:$0xff] %v7493
    %7564 = vst [vmem:[#allocation18 + $0x8] sm:$0xff] %v7496
    %7565 = vst [vmem:[#allocation18 + $0x10] sm:$0xff] %v7501
    %7566 = vst [vmem:[#allocation18 + $0x18] sm:$0xff] %v7504
    %7567 = vst [vmem:[#allocation18 + $0x20] sm:$0xff] %v7509
    %7568 = vst [vmem:[#allocation18 + $0x28] sm:$0xff] %v7512
    %7569 = vst [vmem:[#allocation18 + $0x30] sm:$0xff] %v7517
    %7570 = vst [vmem:[#allocation18 + $0x38] sm:$0xff] %v7520
    %7571 = vst [vmem:[#allocation18 + $0x40] sm:$0xff] %v7525
    %7572 = vst [vmem:[#allocation18 + $0x48] sm:$0xff] %v7528
    %7573 = vst [vmem:[#allocation18 + $0x50] sm:$0xff] %v7533
    %7574 = vst [vmem:[#allocation18 + $0x58] sm:$0xff] %v7536
    %7575 = vst [vmem:[#allocation18 + $0x60] sm:$0xff] %v7541
    %7576 = vst [vmem:[#allocation18 + $0x68] sm:$0xff] %v7544
    %7577 = vst [vmem:[#allocation18 + $0x70] sm:$0xff] %v7549
    %7578 = vst [vmem:[#allocation18 + $0x78] sm:$0xff] %v7552
    %7579 = vst [vmem:[#allocation18 + $0x80] sm:$0xff] %v7557
    %7580 = vst [vmem:[#allocation18 + $0x88] sm:$0xff] %v7560
    // Predicated region
    $region84: #{tpu_custom_call.1} parent=1 // pred_check
      _
    $region85: #{tpu_custom_call.1} parent=1 // pred_check_branch
      %7582 = sbr.rel (0) target = $region87
    $region86: #{tpu_custom_call.1} parent=1 // pred_region
      %s7584 = ssub.s32 2304, 2304
      %7585 = vsyncadd [#allocation6], %s7584
      %s7586 = sshll.u32 [#allocation18], 4
      %s7587 = int_to_ptr.vmem [resolvable:$true] %s7586
      %7592 = dma.vmem_to_hbm [thread:$0]  %s7587, 2304, %s8, [#allocation6], 128, 128, 8
    $region87: #{tpu_custom_call.1} parent=1 // pred_fallthru
      _
    // Predicated region
    $region88: #{tpu_custom_call.1} parent=1 // pred_check
      _
    $region89: #{tpu_custom_call.1} parent=1 // pred_check_branch
      %7594 = sbr.rel (0) target = $region91
    $region90: #{tpu_custom_call.1} parent=1 // pred_region
      %7595 = dma.done [#allocation6], 2304
    $region91: #{tpu_custom_call.1} parent=1 // pred_fallthru
      _
    %7596 = vsyncpa [#allocation5], 1
    %7597 = vsyncpa [#allocation8], 1
    %7598 = vsyncpa [#allocation11], 1
    %7599 = vsyncpa [#allocation14], 1
    %7600 = vsyncpa [#allocation17], 1
    %7601 = vsyncpa [#allocation6], 1

</llo_original>
